<compile_context>
chip_gen: v7x
topology: tpu7x:2x2x1
jax: 0.10.0
libtpu: 0.0.40
codegen_flags: <defaults>
</compile_context>

<pallas_src>
import functools

import jax
import jax.numpy as jnp
from jax.experimental import pallas as pl
from jax.experimental.pallas import tpu as pltpu

_BN_EPS = 1e-5
_VMEM_LIMIT = 48 * 1024 * 1024     # <= 48 MiB: v7x physical VMEM is 64 MiB/core
_ROW_BLOCK = 8                     # pixel rows per grid step (smaller favors
                                   # v7x's 2 cores, larger favors v5e/v6e)


def _round_up(x, m):
    return ((x + m - 1) // m) * m


def _pick_tile(m):
    for t in (512, 256, 128, 64, 32, 16, 8):
        if m % t == 0:
            return t
    return m


class _Geom:
    """Flattened, spatially padded activation layout shared by all conv blocks.

    Real pixel (y, x) of an HxW image lives at flat row (Hb + y)*Wp + (1 + x)
    of an (L, C) slab, where Wp = round_up(W + 2, 8).  The image is preceded /
    followed by Hb padded rows so every Hb-row output block is block aligned,
    and all non-pixel positions are masked inside the kernels (so stale values
    in never-written pad blocks are harmless).
    """

    def __init__(self, h, w, hb=_ROW_BLOCK):
        self.H, self.W = h, w
        self.Hb = max(2, min(hb, h))
        self.Wp = _round_up(w + 2, 8)
        self.nb = -(-h // self.Hb)              # row blocks per image
        self.R = self.Hb * (self.nb + 2)        # padded rows (top/bottom guard)
        self.B = self.Hb * self.Wp              # flat rows per output block
        self.L = self.R * self.Wp               # flat rows per image
        self.guard = self.Wp + 8                # halo rows loaded around a block

    def pad_to_flat(self, x_nhwc):
        n, h, w, c = x_nhwc.shape
        xp = jnp.pad(x_nhwc, ((0, 0),
                              (self.Hb, self.R - self.Hb - h),
                              (1, self.Wp - 1 - w),
                              (0, 0)))
        return xp.reshape(n, self.L, c)

    def valid_mask(self):
        r = jnp.arange(self.R)[:, None]
        c = jnp.arange(self.Wp)[None, :]
        m = ((r >= self.Hb) & (r < self.Hb + self.H) &
             (c >= 1) & (c < 1 + self.W))
        return m.astype(jnp.float32).reshape(self.L, 1)

    def flat_to_image(self, x_flat):
        n, _, c = x_flat.shape
        return x_flat.reshape(n, self.R, self.Wp, c)[
            :, self.Hb:self.Hb + self.H, 1:1 + self.W, :]


# ----------------------------- Pallas kernels ------------------------------ #

def _conv3x3_fused_kernel(x_ref, mask_ref, sc_ref, sh_ref, rm_ref, w_ref,
                          y_ref, st_ref, *, Wp, B, guard):
    """Fused [prev BN + ReLU] -> 3x3 conv (single deep-K matmul) + BN partials.

    x_ref    : (1, L, Cin)   bf16  whole padded image (pre-BN act / raw input)
    mask_ref : (L, 1)        f32   1.0 at real pixel positions, 0.0 at padding
    sc/sh/rm : (1, Cin)      f32   prev layer's folded BN scale/shift, relu mask
    w_ref    : (9*Cin, Cout) bf16  tap-major, channel-minor packed weights
    y_ref    : (1, B, Cout)  bf16  pre-BN conv output for this row block
    st_ref   : (1,1,2,Cout)  f32   per-block [sum, sum_sq] over real pixels
    """
    rb = pl.program_id(1)
    m_slab = B + 2 * guard
    p0 = pl.multiple_of((rb + 1) * B, 8)            # first output flat row
    start = pl.multiple_of((rb + 1) * B - guard, 8)

    # --- fused prologue: previous layer's BatchNorm (scale/shift) + ReLU ----
    xs = x_ref[0, pl.ds(start, m_slab), :].astype(jnp.float32)    # (m_slab, C)
    z = xs * sc_ref[...] + sh_ref[...]
    z = jnp.where(rm_ref[...] > 0.5, jnp.maximum(z, 0.0), z)
    valid = mask_ref[pl.ds(start, m_slab), :] > 0.5               # (m_slab, 1)
    a = jnp.where(valid, z, 0.0).astype(jnp.bfloat16)             # zero padding

    # --- in-VMEM im2col: 9 contiguous row slabs -> one deep-K matmul --------
    taps = []
    for ky in (-1, 0, 1):
        for kx in (-1, 0, 1):
            off = guard + ky * Wp + kx                            # static int
            taps.append(a[off:off + B, :])
    lhs = jnp.concatenate(taps, axis=-1)                          # (B, 9*Cin)
    acc = jnp.dot(lhs, w_ref[...], preferred_element_type=jnp.float32)

    # NOTE: conv bias intentionally omitted -- it cancels under train-mode BN.
    y_ref[0] = acc.astype(y_ref.dtype)

    # --- per-block BatchNorm partials (only real pixels contribute) ---------
    om = mask_ref[pl.ds(p0, B), :] > 0.5
    accm = jnp.where(om, acc, 0.0)
    st_ref[0, 0] = jnp.concatenate(
        [jnp.sum(accm, axis=0, keepdims=True),
         jnp.sum(accm * accm, axis=0, keepdims=True)], axis=0)


def _bn_relu_1x1_kernel(y_ref, sc_ref, sh_ref, w_ref, b_ref, o_ref):
    """Last block's BN + ReLU fused with the final 1x1 conv (2 px per row)."""
    z = y_ref[...].astype(jnp.float32) * sc_ref[...] + sh_ref[...]
    a = jnp.maximum(z, 0.0).astype(jnp.bfloat16)
    o_ref[...] = (jnp.dot(a, w_ref[...], preferred_element_type=jnp.float32)
                  + b_ref[...])


# ------------------------------ layer wrappers ------------------------------ #

def _conv_block(x, mask, scale_in, shift_in, relu_in, w, g, cout):
    """3x3 conv with the *previous* layer's BN+ReLU fused into its prologue."""
    n, length, cp = x.shape
    kernel = functools.partial(_conv3x3_fused_kernel,
                               Wp=g.Wp, B=g.B, guard=g.guard)
    y, st = pl.pallas_call(
        kernel,
        grid=(n, g.nb),
        in_specs=[
            pl.BlockSpec((1, length, cp), lambda i, j: (i, 0, 0)),  # once/image
            pl.BlockSpec((length, 1), lambda i, j: (0, 0)),
            pl.BlockSpec((1, cp), lambda i, j: (0, 0)),
            pl.BlockSpec((1, cp), lambda i, j: (0, 0)),
            pl.BlockSpec((1, cp), lambda i, j: (0, 0)),
            pl.BlockSpec(w.shape, lambda i, j: (0, 0)),
        ],
        out_specs=[
            pl.BlockSpec((1, g.B, cout), lambda i, j: (i, j + 1, 0)),
            pl.BlockSpec((1, 1, 2, cout), lambda i, j: (i, j, 0, 0)),
        ],
        out_shape=[
            jax.ShapeDtypeStruct((n, length, cout), jnp.bfloat16),
            jax.ShapeDtypeStruct((n, g.nb, 2, cout), jnp.float32),
        ],
        compiler_params=pltpu.CompilerParams(
            dimension_semantics=("parallel", "parallel"),
            vmem_limit_bytes=_VMEM_LIMIT),
    )(x, mask, scale_in.reshape(1, cp), shift_in.reshape(1, cp),
      relu_in.reshape(1, cp), w)
    return y, st


def _finalize_bn(st, gamma, beta, count):
    """Fold batch-exact BN stats (from per-block partials) into scale/shift."""
    tot = jnp.sum(st, axis=(0, 1))                       # (2, Cout)
    mean = tot[0] / count
    var = jnp.maximum(tot[1] / count - mean * mean, 0.0)
    scale = gamma * jax.lax.rsqrt(var + _BN_EPS)
    shift = beta - mean * scale
    return scale, shift


def _final_stage(y5, scale5, shift5, wf, bf, cfin=3, cpk=8):
    """after_concat BN+ReLU fused with the final 1x1 conv.

    Two pixels are packed per 128-lane row (lane-dense loads) via a free
    reshape in the wrapper; the 3 output channels are padded to 8."""
    n, length, c = y5.shape
    m2 = n * length // 2
    yp = y5.reshape(m2, 2 * c)                           # free reinterpretation
    sc = jnp.tile(scale5, 2).reshape(1, 2 * c)
    sh = jnp.tile(shift5, 2).reshape(1, 2 * c)
    wp = jnp.zeros((2 * c, 2 * cpk), jnp.float32)
    wp = wp.at[:c, :cfin].set(wf).at[c:, cpk:cpk + cfin].set(wf)
    bp = jnp.zeros((1, 2 * cpk), jnp.float32)
    bp = bp.at[0, :cfin].set(bf).at[0, cpk:cpk + cfin].set(bf)
    tm = _pick_tile(m2)
    out = pl.pallas_call(
        _bn_relu_1x1_kernel,
        grid=(m2 // tm,),
        in_specs=[
            pl.BlockSpec((tm, 2 * c), lambda i: (i, 0)),
            pl.BlockSpec((1, 2 * c), lambda i: (0, 0)),
            pl.BlockSpec((1, 2 * c), lambda i: (0, 0)),
            pl.BlockSpec((2 * c, 2 * cpk), lambda i: (0, 0)),
            pl.BlockSpec((1, 2 * cpk), lambda i: (0, 0)),
        ],
        out_specs=pl.BlockSpec((tm, 2 * cpk), lambda i: (i, 0)),
        out_shape=jax.ShapeDtypeStruct((m2, 2 * cpk), jnp.float32),
        compiler_params=pltpu.CompilerParams(
            dimension_semantics=("parallel",),
            vmem_limit_bytes=_VMEM_LIMIT),
    )(yp, sc, sh, wp.astype(jnp.bfloat16), bp)
    return out.reshape(n, length, cpk)


# ------------------------------- parameters --------------------------------- #

def init_params(key, msg_len, n_channels=64):
    def conv_params(k, cin, cout):
        cpad = _round_up(cin, 8)
        k1, k2, k3, k4 = jax.random.split(k, 4)
        w = jax.random.normal(k1, (cout, cin, 3, 3), jnp.float32) * 0.05
        # torch (Cout,Cin,3,3) -> (3,3,Cin,Cout) -> zero-pad Cin -> (9*Cpad,Cout)
        # row order is tap-major / channel-minor, matching the kernel's
        # lane-concatenated im2col LHS.
        w9 = jnp.transpose(w, (2, 3, 1, 0))
        w9 = jnp.pad(w9, ((0, 0), (0, 0), (0, cpad - cin), (0, 0)))
        w9 = w9.reshape(9 * cpad, cout).astype(jnp.bfloat16)
        b = jax.random.normal(k2, (cout,), jnp.float32) * 0.05  # unused: cancels under train-mode BN
        gamma = 1.0 + 0.1 * jax.random.normal(k3, (cout,), jnp.float32)
        beta = 0.1 * jax.random.normal(k4, (cout,), jnp.float32)
        return dict(w=w9, b=b, gamma=gamma, beta=beta)

    keys = jax.random.split(key, 8)
    params = {
        "conv_layers": [conv_params(keys[0], 3, n_channels)]
        + [conv_params(keys[i], n_channels, n_channels) for i in (1, 2, 3)],
    }
    # nn.Linear(msg_len, msg_len): torch weight is (out, in); store transposed.
    wl = jax.random.normal(keys[4], (msg_len, msg_len), jnp.float32) * 0.1
    bl = jax.random.normal(keys[5], (msg_len,), jnp.float32) * 0.1
    params["msg_linear"] = dict(w=wl.T, b=bl)
    params["after_concat"] = conv_params(keys[6], msg_len + n_channels + 3,
                                         n_channels)
    # final 1x1 conv: torch weight (3, n_channels, 1, 1) -> (n_channels, 3)
    k7a, k7b = jax.random.split(keys[7])
    wf = jax.random.normal(k7a, (3, n_channels, 1, 1), jnp.float32) * 0.05
    params["final"] = dict(w=jnp.transpose(wf[:, :, 0, 0], (1, 0)),
                           b=jax.random.normal(k7b, (3,), jnp.float32) * 0.05)
    return params


# --------------------------------- forward ---------------------------------- #

def hidden_encoder_forward(params, img_nchw, msg):
    n, _, h, w = img_nchw.shape
    msg_len = msg.shape[-1]
    nc = params["conv_layers"][0]["gamma"].shape[0]
    g = _Geom(h, w)
    count = n * h * w

    img_nhwc = jnp.transpose(img_nchw, (0, 2, 3, 1)).astype(jnp.float32)
    img_flat = g.pad_to_flat(img_nhwc).astype(jnp.bfloat16)          # (N, L, 3)
    mask = g.valid_mask()                                            # (L, 1)

    # ---- conv_layers: 4 x ConvBNRelu; each BN+ReLU fused into the NEXT conv.
    # TODO(synk): layer 1 (Cin=3 padded to 8) still has low lane/K occupancy;
    # its im2col could be pre-expanded to K=32 in the wrapper.
    x = jnp.pad(img_flat, ((0, 0), (0, 0), (0, 8 - 3)))              # (N, L, 8)
    scale_in = jnp.concatenate([jnp.ones(3), jnp.zeros(5)]).astype(jnp.float32)
    shift_in = jnp.zeros(8, jnp.float32)
    relu_in = jnp.zeros(8, jnp.float32)      # no relu on the raw image input
    for p in params["conv_layers"]:
        x, st = _conv_block(x, mask, scale_in, shift_in, relu_in, p["w"], g, nc)
        scale_in, shift_in = _finalize_bn(st, p["gamma"], p["beta"], count)
        relu_in = jnp.ones_like(scale_in)

    # ---- message branch: the tiny msg_len x msg_len matmul stays in XLA ----
    pm = params["msg_linear"]
    msg_feat = jnp.dot(msg.astype(jnp.float32), pm["w"]) + pm["b"]
    msg_b = jnp.broadcast_to(msg_feat[:, None, :].astype(jnp.bfloat16),
                             (n, g.L, msg_len))

    # ---- after_concat ConvBNRelu --------------------------------------------
    # Channel order matches torch.cat([expanded_msg, conv_image, img], dim=1).
    # conv_image enters PRE-BN; its BN+ReLU is applied by the kernel prologue
    # via per-channel scale/shift and a relu channel-mask (msg/img pass raw).
    # TODO(synk): the spatially-constant msg channels could be folded into a
    # per-image shift (with border corrections) to avoid materializing them.
    pc = params["after_concat"]
    cin5 = msg_len + nc + 3
    cpad5 = _round_up(cin5, 8)
    concat = jnp.concatenate([msg_b, x, img_flat], axis=-1)
    concat = jnp.pad(concat, ((0, 0), (0, 0), (0, cpad5 - cin5)))
    sc5 = jnp.concatenate([jnp.ones(msg_len), scale_in, jnp.ones(3),
                           jnp.zeros(cpad5 - cin5)]).astype(jnp.float32)
    sh5 = jnp.concatenate([jnp.zeros(msg_len), shift_in,
                           jnp.zeros(3 + cpad5 - cin5)]).astype(jnp.float32)
    rm5 = jnp.concatenate([jnp.zeros(msg_len), jnp.ones(nc),
                           jnp.zeros(3 + cpad5 - cin5)]).astype(jnp.float32)
    y5, st5 = _conv_block(concat, mask, sc5, sh5, rm5, pc["w"], g, nc)
    scale5, shift5 = _finalize_bn(st5, pc["gamma"], pc["beta"], count)

    # ---- final 1x1 conv fused with the last BN+ReLU --------------------------
    out_flat = _final_stage(y5, scale5, shift5,
                            params["final"]["w"], params["final"]["b"])
    out = g.flat_to_image(out_flat)[..., :3]                        # (N,H,W,3)
    return jnp.transpose(out, (0, 3, 1, 2))                         # NCHW f32


if __name__ == "__main__":
    key = jax.random.PRNGKey(0)
    k_img, k_msg, k_par = jax.random.split(key, 3)

    batch, msg_len, n_channels, H, W = 2, 8, 64, 16, 16
    img = jax.random.normal(k_img, (batch, 3, H, W), jnp.float32)
    msg = jax.random.bernoulli(k_msg, 0.5, (batch, msg_len)).astype(jnp.float32)

    params = init_params(k_par, msg_len, n_channels)

    out = jax.jit(hidden_encoder_forward)(params, img, msg)
    out = jax.block_until_ready(out)
    assert out.shape == (batch, 3, H, W), out.shape
    assert out.dtype == jnp.float32
    assert bool(jnp.all(jnp.isfinite(out)))
    print("KERNEL_OK")
</pallas_src>

<mosaic_0001>
module attributes {stable_mosaic.version = 11 : i64} {
  func.func @_conv3x3_fused_kernel(%arg0: i32, %arg1: i32, %arg2: memref<1x768x64xbf16, #tpu.memory_space<vmem>>, %arg3: memref<768x1xf32, #tpu.memory_space<vmem>>, %arg4: memref<1x64xf32, #tpu.memory_space<vmem>>, %arg5: memref<1x64xf32, #tpu.memory_space<vmem>>, %arg6: memref<1x64xf32, #tpu.memory_space<vmem>>, %arg7: memref<576x64xbf16, #tpu.memory_space<vmem>>, %arg8: memref<1x192x64xbf16, #tpu.memory_space<vmem>>, %arg9: memref<1x1x2x64xf32, #tpu.memory_space<vmem>>) attributes {dimension_semantics = [#tpu.dimension_semantics<parallel>, #tpu.dimension_semantics<parallel>], iteration_bounds = array<i64: 2, 2>, scalar_prefetch = 0 : i64, scratch_operands = 0 : i64, tpu.core_type = #tpu.core_type<tc>, window_params = [{transform_indices = @transform_0, window_bounds = array<i64: 1, 768, 64>}, {pipeline_mode = #tpu.pipeline_mode<synchronous>, transform_indices = @transform_1, window_bounds = array<i64: 768, 1>}, {pipeline_mode = #tpu.pipeline_mode<synchronous>, transform_indices = @transform_2, window_bounds = array<i64: 1, 64>}, {pipeline_mode = #tpu.pipeline_mode<synchronous>, transform_indices = @transform_3, window_bounds = array<i64: 1, 64>}, {pipeline_mode = #tpu.pipeline_mode<synchronous>, transform_indices = @transform_4, window_bounds = array<i64: 1, 64>}, {pipeline_mode = #tpu.pipeline_mode<synchronous>, transform_indices = @transform_5, window_bounds = array<i64: 576, 64>}, {transform_indices = @transform_6, window_bounds = array<i64: 1, 192, 64>}, {transform_indices = @transform_7, window_bounds = array<i64: 1, 1, 2, 64>}]} {
    %c1_i32 = arith.constant 1 : i32
    %0 = arith.addi %arg1, %c1_i32 : i32
    %c192_i32 = arith.constant 192 : i32
    %1 = arith.muli %0, %c192_i32 : i32
    %2 = tpu.assume_multiple %1, 8 : i32
    %c1_i32_0 = arith.constant 1 : i32
    %3 = arith.addi %arg1, %c1_i32_0 : i32
    %c192_i32_1 = arith.constant 192 : i32
    %4 = arith.muli %3, %c192_i32_1 : i32
    %c32_i32 = arith.constant 32 : i32
    %5 = arith.subi %4, %c32_i32 : i32
    %6 = tpu.assume_multiple %5, 8 : i32
    %c0 = arith.constant 0 : index
    %7 = arith.index_cast %6 : i32 to index
    %c0_2 = arith.constant 0 : index
    %8 = vector.load %arg2[%c0, %7, %c0_2] : memref<1x768x64xbf16, #tpu.memory_space<vmem>>, vector<1x256x64xbf16>
    %9 = vector.shape_cast %8 : vector<1x256x64xbf16> to vector<256x64xbf16>
    %10 = arith.extf %9 : vector<256x64xbf16> to vector<256x64xf32>
    %c0_3 = arith.constant 0 : index
    %c0_4 = arith.constant 0 : index
    %11 = vector.load %arg4[%c0_3, %c0_4] : memref<1x64xf32, #tpu.memory_space<vmem>>, vector<1x64xf32>
    %12 = vector.broadcast %11 : vector<1x64xf32> to vector<256x64xf32>
    %13 = arith.mulf %10, %12 : vector<256x64xf32>
    %c0_5 = arith.constant 0 : index
    %c0_6 = arith.constant 0 : index
    %14 = vector.load %arg5[%c0_5, %c0_6] : memref<1x64xf32, #tpu.memory_space<vmem>>, vector<1x64xf32>
    %15 = vector.broadcast %14 : vector<1x64xf32> to vector<256x64xf32>
    %16 = arith.addf %13, %15 : vector<256x64xf32>
    %c0_7 = arith.constant 0 : index
    %c0_8 = arith.constant 0 : index
    %17 = vector.load %arg6[%c0_7, %c0_8] : memref<1x64xf32, #tpu.memory_space<vmem>>, vector<1x64xf32>
    %cst = arith.constant 5.000000e-01 : f32
    %18 = vector.broadcast %cst : f32 to vector<1x64xf32>
    %19 = arith.cmpf ogt, %17, %18 : vector<1x64xf32>
    %cst_9 = arith.constant 0.000000e+00 : f32
    %20 = vector.broadcast %cst_9 : f32 to vector<256x64xf32>
    %21 = arith.maximumf %16, %20 : vector<256x64xf32>
    %22 = vector.shape_cast %19 : vector<1x64xi1> to vector<1x64xi1>
    %23 = vector.broadcast %22 : vector<1x64xi1> to vector<256x64xi1>
    %24 = arith.select %23, %21, %16 : vector<256x64xi1>, vector<256x64xf32>
    %25 = arith.index_cast %6 : i32 to index
    %c0_10 = arith.constant 0 : index
    %26 = vector.load %arg3[%25, %c0_10] : memref<768x1xf32, #tpu.memory_space<vmem>>, vector<256x1xf32>
    %cst_11 = arith.constant 5.000000e-01 : f32
    %27 = vector.broadcast %cst_11 : f32 to vector<256x1xf32>
    %28 = arith.cmpf ogt, %26, %27 : vector<256x1xf32>
    %cst_12 = arith.constant 0.000000e+00 : f32
    %29 = vector.shape_cast %28 : vector<256x1xi1> to vector<256x1xi1>
    %30 = vector.broadcast %29 : vector<256x1xi1> to vector<256x64xi1>
    %31 = vector.broadcast %cst_12 : f32 to vector<256x64xf32>
    %32 = arith.select %30, %24, %31 : vector<256x64xi1>, vector<256x64xf32>
    %33 = arith.truncf %32 : vector<256x64xf32> to vector<256x64xbf16>
    %34 = vector.extract_strided_slice %33 {offsets = [7, 0], sizes = [192, 64], strides = [1, 1]} : vector<256x64xbf16> to vector<192x64xbf16>
    %35 = vector.extract_strided_slice %33 {offsets = [8, 0], sizes = [192, 64], strides = [1, 1]} : vector<256x64xbf16> to vector<192x64xbf16>
    %36 = vector.extract_strided_slice %33 {offsets = [9, 0], sizes = [192, 64], strides = [1, 1]} : vector<256x64xbf16> to vector<192x64xbf16>
    %37 = vector.extract_strided_slice %33 {offsets = [31, 0], sizes = [192, 64], strides = [1, 1]} : vector<256x64xbf16> to vector<192x64xbf16>
    %38 = vector.extract_strided_slice %33 {offsets = [32, 0], sizes = [192, 64], strides = [1, 1]} : vector<256x64xbf16> to vector<192x64xbf16>
    %39 = vector.extract_strided_slice %33 {offsets = [33, 0], sizes = [192, 64], strides = [1, 1]} : vector<256x64xbf16> to vector<192x64xbf16>
    %40 = vector.extract_strided_slice %33 {offsets = [55, 0], sizes = [192, 64], strides = [1, 1]} : vector<256x64xbf16> to vector<192x64xbf16>
    %41 = vector.extract_strided_slice %33 {offsets = [56, 0], sizes = [192, 64], strides = [1, 1]} : vector<256x64xbf16> to vector<192x64xbf16>
    %42 = vector.extract_strided_slice %33 {offsets = [57, 0], sizes = [192, 64], strides = [1, 1]} : vector<256x64xbf16> to vector<192x64xbf16>
    %43 = tpu.concatenate %34, %35, %36, %37, %38, %39, %40, %41, %42 in 1 : vector<192x64xbf16>, vector<192x64xbf16>, vector<192x64xbf16>, vector<192x64xbf16>, vector<192x64xbf16>, vector<192x64xbf16>, vector<192x64xbf16>, vector<192x64xbf16>, vector<192x64xbf16> -> vector<192x576xbf16>
    %c0_13 = arith.constant 0 : index
    %c0_14 = arith.constant 0 : index
    %44 = vector.load %arg7[%c0_13, %c0_14] : memref<576x64xbf16, #tpu.memory_space<vmem>>, vector<576x64xbf16>
    %cst_15 = arith.constant dense<0.000000e+00> : vector<192x64xf32>
    %45 = tpu.matmul %43, %44, %cst_15 {dimension_numbers = #tpu.dot_dimension_numbers<[1], [0], [0], [1], [0, 0, 1, 1], [], []>} : vector<192x576xbf16>, vector<576x64xbf16>, vector<192x64xf32> -> vector<192x64xf32>
    %46 = arith.truncf %45 : vector<192x64xf32> to vector<192x64xbf16>
    %c0_16 = arith.constant 0 : index
    %c0_17 = arith.constant 0 : index
    %c0_18 = arith.constant 0 : index
    %47 = vector.load %arg8[%c0_16, %c0_17, %c0_18] : memref<1x192x64xbf16, #tpu.memory_space<vmem>>, vector<1x192x64xbf16>
    %48 = vector.shape_cast %47 : vector<1x192x64xbf16> to vector<192x64xbf16>
    %49 = vector.shape_cast %46 : vector<192x64xbf16> to vector<1x192x64xbf16>
    tpu.vector_store %arg8[%c0_16, %c0_17, %c0_18], %49 {strides = array<i32>} : memref<1x192x64xbf16, #tpu.memory_space<vmem>>, vector<1x192x64xbf16>,
    %50 = arith.index_cast %2 : i32 to index
    %c0_19 = arith.constant 0 : index
    %51 = vector.load %arg3[%50, %c0_19] : memref<768x1xf32, #tpu.memory_space<vmem>>, vector<192x1xf32>
    %cst_20 = arith.constant 5.000000e-01 : f32
    %52 = vector.broadcast %cst_20 : f32 to vector<192x1xf32>
    %53 = arith.cmpf ogt, %51, %52 : vector<192x1xf32>
    %cst_21 = arith.constant 0.000000e+00 : f32
    %54 = vector.shape_cast %53 : vector<192x1xi1> to vector<192x1xi1>
    %55 = vector.broadcast %54 : vector<192x1xi1> to vector<192x64xi1>
    %56 = vector.broadcast %cst_21 : f32 to vector<192x64xf32>
    %57 = arith.select %55, %45, %56 : vector<192x64xi1>, vector<192x64xf32>
    %cst_22 = arith.constant dense<0.000000e+00> : vector<64xf32>
    %58 = vector.multi_reduction <add>, %57, %cst_22 [0] : vector<192x64xf32> to vector<64xf32>
    %59 = vector.shape_cast %58 : vector<64xf32> to vector<1x64xf32>
    %60 = arith.mulf %57, %57 : vector<192x64xf32>
    %cst_23 = arith.constant dense<0.000000e+00> : vector<64xf32>
    %61 = vector.multi_reduction <add>, %60, %cst_23 [0] : vector<192x64xf32> to vector<64xf32>
    %62 = vector.shape_cast %61 : vector<64xf32> to vector<1x64xf32>
    %63 = tpu.concatenate %59, %62 in 0 : vector<1x64xf32>, vector<1x64xf32> -> vector<2x64xf32>
    %c0_24 = arith.constant 0 : index
    %c0_25 = arith.constant 0 : index
    %c0_26 = arith.constant 0 : index
    %c0_27 = arith.constant 0 : index
    %64 = vector.load %arg9[%c0_24, %c0_25, %c0_26, %c0_27] : memref<1x1x2x64xf32, #tpu.memory_space<vmem>>, vector<1x1x2x64xf32>
    %65 = vector.shape_cast %64 : vector<1x1x2x64xf32> to vector<2x64xf32>
    %66 = vector.shape_cast %63 : vector<2x64xf32> to vector<1x1x2x64xf32>
    tpu.vector_store %arg9[%c0_24, %c0_25, %c0_26, %c0_27], %66 {strides = array<i32>} : memref<1x1x2x64xf32, #tpu.memory_space<vmem>>, vector<1x1x2x64xf32>,
    return
  }
  func.func @transform_0(%arg0: i32, %arg1: i32) -> (i32, i32, i32) {
    %c0_i32 = arith.constant 0 : i32
    %c0_i32_0 = arith.constant 0 : i32
    %c0_i32_1 = arith.constant 0 : i32
    return %arg0, %c0_i32, %c0_i32_0 : i32, i32, i32
  }
  func.func @transform_1(%arg0: i32, %arg1: i32) -> (i32, i32) {
    %c0_i32 = arith.constant 0 : i32
    %c0_i32_0 = arith.constant 0 : i32
    %c0_i32_1 = arith.constant 0 : i32
    return %c0_i32, %c0_i32_0 : i32, i32
  }
  func.func @transform_2(%arg0: i32, %arg1: i32) -> (i32, i32) {
    %c0_i32 = arith.constant 0 : i32
    %c0_i32_0 = arith.constant 0 : i32
    %c0_i32_1 = arith.constant 0 : i32
    return %c0_i32, %c0_i32_0 : i32, i32
  }
  func.func @transform_3(%arg0: i32, %arg1: i32) -> (i32, i32) {
    %c0_i32 = arith.constant 0 : i32
    %c0_i32_0 = arith.constant 0 : i32
    %c0_i32_1 = arith.constant 0 : i32
    return %c0_i32, %c0_i32_0 : i32, i32
  }
  func.func @transform_4(%arg0: i32, %arg1: i32) -> (i32, i32) {
    %c0_i32 = arith.constant 0 : i32
    %c0_i32_0 = arith.constant 0 : i32
    %c0_i32_1 = arith.constant 0 : i32
    return %c0_i32, %c0_i32_0 : i32, i32
  }
  func.func @transform_5(%arg0: i32, %arg1: i32) -> (i32, i32) {
    %c0_i32 = arith.constant 0 : i32
    %c0_i32_0 = arith.constant 0 : i32
    %c0_i32_1 = arith.constant 0 : i32
    return %c0_i32, %c0_i32_0 : i32, i32
  }
  func.func @transform_6(%arg0: i32, %arg1: i32) -> (i32, i32, i32) {
    %c1_i32 = arith.constant 1 : i32
    %0 = arith.addi %arg1, %c1_i32 : i32
    %c0_i32 = arith.constant 0 : i32
    %c0_i32_0 = arith.constant 0 : i32
    return %arg0, %0, %c0_i32 : i32, i32, i32
  }
  func.func @transform_7(%arg0: i32, %arg1: i32) -> (i32, i32, i32, i32) {
    %c0_i32 = arith.constant 0 : i32
    %c0_i32_0 = arith.constant 0 : i32
    %c0_i32_1 = arith.constant 0 : i32
    return %arg0, %arg1, %c0_i32, %c0_i32_0 : i32, i32, i32, i32
  }
}

module attributes {stable_mosaic.version = 11 : i64} {
  func.func @_conv3x3_fused_kernel(%arg0: i32, %arg1: i32, %arg2: memref<1x768x8xbf16, #tpu.memory_space<vmem>>, %arg3: memref<768x1xf32, #tpu.memory_space<vmem>>, %arg4: memref<1x8xf32, #tpu.memory_space<vmem>>, %arg5: memref<1x8xf32, #tpu.memory_space<vmem>>, %arg6: memref<1x8xf32, #tpu.memory_space<vmem>>, %arg7: memref<72x64xbf16, #tpu.memory_space<vmem>>, %arg8: memref<1x192x64xbf16, #tpu.memory_space<vmem>>, %arg9: memref<1x1x2x64xf32, #tpu.memory_space<vmem>>) attributes {dimension_semantics = [#tpu.dimension_semantics<parallel>, #tpu.dimension_semantics<parallel>], iteration_bounds = array<i64: 2, 2>, scalar_prefetch = 0 : i64, scratch_operands = 0 : i64, tpu.core_type = #tpu.core_type<tc>, window_params = [{transform_indices = @transform_0, window_bounds = array<i64: 1, 768, 8>}, {pipeline_mode = #tpu.pipeline_mode<synchronous>, transform_indices = @transform_1, window_bounds = array<i64: 768, 1>}, {pipeline_mode = #tpu.pipeline_mode<synchronous>, transform_indices = @transform_2, window_bounds = array<i64: 1, 8>}, {pipeline_mode = #tpu.pipeline_mode<synchronous>, transform_indices = @transform_3, window_bounds = array<i64: 1, 8>}, {pipeline_mode = #tpu.pipeline_mode<synchronous>, transform_indices = @transform_4, window_bounds = array<i64: 1, 8>}, {pipeline_mode = #tpu.pipeline_mode<synchronous>, transform_indices = @transform_5, window_bounds = array<i64: 72, 64>}, {transform_indices = @transform_6, window_bounds = array<i64: 1, 192, 64>}, {transform_indices = @transform_7, window_bounds = array<i64: 1, 1, 2, 64>}]} {
    %c1_i32 = arith.constant 1 : i32
    %0 = arith.addi %arg1, %c1_i32 : i32
    %c192_i32 = arith.constant 192 : i32
    %1 = arith.muli %0, %c192_i32 : i32
    %2 = tpu.assume_multiple %1, 8 : i32
    %c1_i32_0 = arith.constant 1 : i32
    %3 = arith.addi %arg1, %c1_i32_0 : i32
    %c192_i32_1 = arith.constant 192 : i32
    %4 = arith.muli %3, %c192_i32_1 : i32
    %c32_i32 = arith.constant 32 : i32
    %5 = arith.subi %4, %c32_i32 : i32
    %6 = tpu.assume_multiple %5, 8 : i32
    %c0 = arith.constant 0 : index
    %7 = arith.index_cast %6 : i32 to index
    %c0_2 = arith.constant 0 : index
    %8 = vector.load %arg2[%c0, %7, %c0_2] : memref<1x768x8xbf16, #tpu.memory_space<vmem>>, vector<1x256x8xbf16>
    %9 = vector.shape_cast %8 : vector<1x256x8xbf16> to vector<256x8xbf16>
    %10 = arith.extf %9 : vector<256x8xbf16> to vector<256x8xf32>
    %c0_3 = arith.constant 0 : index
    %c0_4 = arith.constant 0 : index
    %11 = vector.load %arg4[%c0_3, %c0_4] : memref<1x8xf32, #tpu.memory_space<vmem>>, vector<1x8xf32>
    %12 = vector.broadcast %11 : vector<1x8xf32> to vector<256x8xf32>
    %13 = arith.mulf %10, %12 : vector<256x8xf32>
    %c0_5 = arith.constant 0 : index
    %c0_6 = arith.constant 0 : index
    %14 = vector.load %arg5[%c0_5, %c0_6] : memref<1x8xf32, #tpu.memory_space<vmem>>, vector<1x8xf32>
    %15 = vector.broadcast %14 : vector<1x8xf32> to vector<256x8xf32>
    %16 = arith.addf %13, %15 : vector<256x8xf32>
    %c0_7 = arith.constant 0 : index
    %c0_8 = arith.constant 0 : index
    %17 = vector.load %arg6[%c0_7, %c0_8] : memref<1x8xf32, #tpu.memory_space<vmem>>, vector<1x8xf32>
    %cst = arith.constant 5.000000e-01 : f32
    %18 = vector.broadcast %cst : f32 to vector<1x8xf32>
    %19 = arith.cmpf ogt, %17, %18 : vector<1x8xf32>
    %cst_9 = arith.constant 0.000000e+00 : f32
    %20 = vector.broadcast %cst_9 : f32 to vector<256x8xf32>
    %21 = arith.maximumf %16, %20 : vector<256x8xf32>
    %22 = vector.shape_cast %19 : vector<1x8xi1> to vector<1x8xi1>
    %23 = vector.broadcast %22 : vector<1x8xi1> to vector<256x8xi1>
    %24 = arith.select %23, %21, %16 : vector<256x8xi1>, vector<256x8xf32>
    %25 = arith.index_cast %6 : i32 to index
    %c0_10 = arith.constant 0 : index
    %26 = vector.load %arg3[%25, %c0_10] : memref<768x1xf32, #tpu.memory_space<vmem>>, vector<256x1xf32>
    %cst_11 = arith.constant 5.000000e-01 : f32
    %27 = vector.broadcast %cst_11 : f32 to vector<256x1xf32>
    %28 = arith.cmpf ogt, %26, %27 : vector<256x1xf32>
    %cst_12 = arith.constant 0.000000e+00 : f32
    %29 = vector.shape_cast %28 : vector<256x1xi1> to vector<256x1xi1>
    %30 = vector.broadcast %29 : vector<256x1xi1> to vector<256x8xi1>
    %31 = vector.broadcast %cst_12 : f32 to vector<256x8xf32>
    %32 = arith.select %30, %24, %31 : vector<256x8xi1>, vector<256x8xf32>
    %33 = arith.truncf %32 : vector<256x8xf32> to vector<256x8xbf16>
    %34 = vector.extract_strided_slice %33 {offsets = [7, 0], sizes = [192, 8], strides = [1, 1]} : vector<256x8xbf16> to vector<192x8xbf16>
    %35 = vector.extract_strided_slice %33 {offsets = [8, 0], sizes = [192, 8], strides = [1, 1]} : vector<256x8xbf16> to vector<192x8xbf16>
    %36 = vector.extract_strided_slice %33 {offsets = [9, 0], sizes = [192, 8], strides = [1, 1]} : vector<256x8xbf16> to vector<192x8xbf16>
    %37 = vector.extract_strided_slice %33 {offsets = [31, 0], sizes = [192, 8], strides = [1, 1]} : vector<256x8xbf16> to vector<192x8xbf16>
    %38 = vector.extract_strided_slice %33 {offsets = [32, 0], sizes = [192, 8], strides = [1, 1]} : vector<256x8xbf16> to vector<192x8xbf16>
    %39 = vector.extract_strided_slice %33 {offsets = [33, 0], sizes = [192, 8], strides = [1, 1]} : vector<256x8xbf16> to vector<192x8xbf16>
    %40 = vector.extract_strided_slice %33 {offsets = [55, 0], sizes = [192, 8], strides = [1, 1]} : vector<256x8xbf16> to vector<192x8xbf16>
    %41 = vector.extract_strided_slice %33 {offsets = [56, 0], sizes = [192, 8], strides = [1, 1]} : vector<256x8xbf16> to vector<192x8xbf16>
    %42 = vector.extract_strided_slice %33 {offsets = [57, 0], sizes = [192, 8], strides = [1, 1]} : vector<256x8xbf16> to vector<192x8xbf16>
    %43 = tpu.concatenate %34, %35, %36, %37, %38, %39, %40, %41, %42 in 1 : vector<192x8xbf16>, vector<192x8xbf16>, vector<192x8xbf16>, vector<192x8xbf16>, vector<192x8xbf16>, vector<192x8xbf16>, vector<192x8xbf16>, vector<192x8xbf16>, vector<192x8xbf16> -> vector<192x72xbf16>
    %c0_13 = arith.constant 0 : index
    %c0_14 = arith.constant 0 : index
    %44 = vector.load %arg7[%c0_13, %c0_14] : memref<72x64xbf16, #tpu.memory_space<vmem>>, vector<72x64xbf16>
    %cst_15 = arith.constant dense<0.000000e+00> : vector<192x64xf32>
    %45 = tpu.matmul %43, %44, %cst_15 {dimension_numbers = #tpu.dot_dimension_numbers<[1], [0], [0], [1], [0, 0, 1, 1], [], []>} : vector<192x72xbf16>, vector<72x64xbf16>, vector<192x64xf32> -> vector<192x64xf32>
    %46 = arith.truncf %45 : vector<192x64xf32> to vector<192x64xbf16>
    %c0_16 = arith.constant 0 : index
    %c0_17 = arith.constant 0 : index
    %c0_18 = arith.constant 0 : index
    %47 = vector.load %arg8[%c0_16, %c0_17, %c0_18] : memref<1x192x64xbf16, #tpu.memory_space<vmem>>, vector<1x192x64xbf16>
    %48 = vector.shape_cast %47 : vector<1x192x64xbf16> to vector<192x64xbf16>
    %49 = vector.shape_cast %46 : vector<192x64xbf16> to vector<1x192x64xbf16>
    tpu.vector_store %arg8[%c0_16, %c0_17, %c0_18], %49 {strides = array<i32>} : memref<1x192x64xbf16, #tpu.memory_space<vmem>>, vector<1x192x64xbf16>,
    %50 = arith.index_cast %2 : i32 to index
    %c0_19 = arith.constant 0 : index
    %51 = vector.load %arg3[%50, %c0_19] : memref<768x1xf32, #tpu.memory_space<vmem>>, vector<192x1xf32>
    %cst_20 = arith.constant 5.000000e-01 : f32
    %52 = vector.broadcast %cst_20 : f32 to vector<192x1xf32>
    %53 = arith.cmpf ogt, %51, %52 : vector<192x1xf32>
    %cst_21 = arith.constant 0.000000e+00 : f32
    %54 = vector.shape_cast %53 : vector<192x1xi1> to vector<192x1xi1>
    %55 = vector.broadcast %54 : vector<192x1xi1> to vector<192x64xi1>
    %56 = vector.broadcast %cst_21 : f32 to vector<192x64xf32>
    %57 = arith.select %55, %45, %56 : vector<192x64xi1>, vector<192x64xf32>
    %cst_22 = arith.constant dense<0.000000e+00> : vector<64xf32>
    %58 = vector.multi_reduction <add>, %57, %cst_22 [0] : vector<192x64xf32> to vector<64xf32>
    %59 = vector.shape_cast %58 : vector<64xf32> to vector<1x64xf32>
    %60 = arith.mulf %57, %57 : vector<192x64xf32>
    %cst_23 = arith.constant dense<0.000000e+00> : vector<64xf32>
    %61 = vector.multi_reduction <add>, %60, %cst_23 [0] : vector<192x64xf32> to vector<64xf32>
    %62 = vector.shape_cast %61 : vector<64xf32> to vector<1x64xf32>
    %63 = tpu.concatenate %59, %62 in 0 : vector<1x64xf32>, vector<1x64xf32> -> vector<2x64xf32>
    %c0_24 = arith.constant 0 : index
    %c0_25 = arith.constant 0 : index
    %c0_26 = arith.constant 0 : index
    %c0_27 = arith.constant 0 : index
    %64 = vector.load %arg9[%c0_24, %c0_25, %c0_26, %c0_27] : memref<1x1x2x64xf32, #tpu.memory_space<vmem>>, vector<1x1x2x64xf32>
    %65 = vector.shape_cast %64 : vector<1x1x2x64xf32> to vector<2x64xf32>
    %66 = vector.shape_cast %63 : vector<2x64xf32> to vector<1x1x2x64xf32>
    tpu.vector_store %arg9[%c0_24, %c0_25, %c0_26, %c0_27], %66 {strides = array<i32>} : memref<1x1x2x64xf32, #tpu.memory_space<vmem>>, vector<1x1x2x64xf32>,
    return
  }
  func.func @transform_0(%arg0: i32, %arg1: i32) -> (i32, i32, i32) {
    %c0_i32 = arith.constant 0 : i32
    %c0_i32_0 = arith.constant 0 : i32
    %c0_i32_1 = arith.constant 0 : i32
    return %arg0, %c0_i32, %c0_i32_0 : i32, i32, i32
  }
  func.func @transform_1(%arg0: i32, %arg1: i32) -> (i32, i32) {
    %c0_i32 = arith.constant 0 : i32
    %c0_i32_0 = arith.constant 0 : i32
    %c0_i32_1 = arith.constant 0 : i32
    return %c0_i32, %c0_i32_0 : i32, i32
  }
  func.func @transform_2(%arg0: i32, %arg1: i32) -> (i32, i32) {
    %c0_i32 = arith.constant 0 : i32
    %c0_i32_0 = arith.constant 0 : i32
    %c0_i32_1 = arith.constant 0 : i32
    return %c0_i32, %c0_i32_0 : i32, i32
  }
  func.func @transform_3(%arg0: i32, %arg1: i32) -> (i32, i32) {
    %c0_i32 = arith.constant 0 : i32
    %c0_i32_0 = arith.constant 0 : i32
    %c0_i32_1 = arith.constant 0 : i32
    return %c0_i32, %c0_i32_0 : i32, i32
  }
  func.func @transform_4(%arg0: i32, %arg1: i32) -> (i32, i32) {
    %c0_i32 = arith.constant 0 : i32
    %c0_i32_0 = arith.constant 0 : i32
    %c0_i32_1 = arith.constant 0 : i32
    return %c0_i32, %c0_i32_0 : i32, i32
  }
  func.func @transform_5(%arg0: i32, %arg1: i32) -> (i32, i32) {
    %c0_i32 = arith.constant 0 : i32
    %c0_i32_0 = arith.constant 0 : i32
    %c0_i32_1 = arith.constant 0 : i32
    return %c0_i32, %c0_i32_0 : i32, i32
  }
  func.func @transform_6(%arg0: i32, %arg1: i32) -> (i32, i32, i32) {
    %c1_i32 = arith.constant 1 : i32
    %0 = arith.addi %arg1, %c1_i32 : i32
    %c0_i32 = arith.constant 0 : i32
    %c0_i32_0 = arith.constant 0 : i32
    return %arg0, %0, %c0_i32 : i32, i32, i32
  }
  func.func @transform_7(%arg0: i32, %arg1: i32) -> (i32, i32, i32, i32) {
    %c0_i32 = arith.constant 0 : i32
    %c0_i32_0 = arith.constant 0 : i32
    %c0_i32_1 = arith.constant 0 : i32
    return %arg0, %arg1, %c0_i32, %c0_i32_0 : i32, i32, i32, i32
  }
}

module attributes {stable_mosaic.version = 11 : i64} {
  func.func @_conv3x3_fused_kernel(%arg0: i32, %arg1: i32, %arg2: memref<1x768x80xbf16, #tpu.memory_space<vmem>>, %arg3: memref<768x1xf32, #tpu.memory_space<vmem>>, %arg4: memref<1x80xf32, #tpu.memory_space<vmem>>, %arg5: memref<1x80xf32, #tpu.memory_space<vmem>>, %arg6: memref<1x80xf32, #tpu.memory_space<vmem>>, %arg7: memref<720x64xbf16, #tpu.memory_space<vmem>>, %arg8: memref<1x192x64xbf16, #tpu.memory_space<vmem>>, %arg9: memref<1x1x2x64xf32, #tpu.memory_space<vmem>>) attributes {dimension_semantics = [#tpu.dimension_semantics<parallel>, #tpu.dimension_semantics<parallel>], iteration_bounds = array<i64: 2, 2>, scalar_prefetch = 0 : i64, scratch_operands = 0 : i64, tpu.core_type = #tpu.core_type<tc>, window_params = [{transform_indices = @transform_0, window_bounds = array<i64: 1, 768, 80>}, {pipeline_mode = #tpu.pipeline_mode<synchronous>, transform_indices = @transform_1, window_bounds = array<i64: 768, 1>}, {pipeline_mode = #tpu.pipeline_mode<synchronous>, transform_indices = @transform_2, window_bounds = array<i64: 1, 80>}, {pipeline_mode = #tpu.pipeline_mode<synchronous>, transform_indices = @transform_3, window_bounds = array<i64: 1, 80>}, {pipeline_mode = #tpu.pipeline_mode<synchronous>, transform_indices = @transform_4, window_bounds = array<i64: 1, 80>}, {pipeline_mode = #tpu.pipeline_mode<synchronous>, transform_indices = @transform_5, window_bounds = array<i64: 720, 64>}, {transform_indices = @transform_6, window_bounds = array<i64: 1, 192, 64>}, {transform_indices = @transform_7, window_bounds = array<i64: 1, 1, 2, 64>}]} {
    %c1_i32 = arith.constant 1 : i32
    %0 = arith.addi %arg1, %c1_i32 : i32
    %c192_i32 = arith.constant 192 : i32
    %1 = arith.muli %0, %c192_i32 : i32
    %2 = tpu.assume_multiple %1, 8 : i32
    %c1_i32_0 = arith.constant 1 : i32
    %3 = arith.addi %arg1, %c1_i32_0 : i32
    %c192_i32_1 = arith.constant 192 : i32
    %4 = arith.muli %3, %c192_i32_1 : i32
    %c32_i32 = arith.constant 32 : i32
    %5 = arith.subi %4, %c32_i32 : i32
    %6 = tpu.assume_multiple %5, 8 : i32
    %c0 = arith.constant 0 : index
    %7 = arith.index_cast %6 : i32 to index
    %c0_2 = arith.constant 0 : index
    %8 = vector.load %arg2[%c0, %7, %c0_2] : memref<1x768x80xbf16, #tpu.memory_space<vmem>>, vector<1x256x80xbf16>
    %9 = vector.shape_cast %8 : vector<1x256x80xbf16> to vector<256x80xbf16>
    %10 = arith.extf %9 : vector<256x80xbf16> to vector<256x80xf32>
    %c0_3 = arith.constant 0 : index
    %c0_4 = arith.constant 0 : index
    %11 = vector.load %arg4[%c0_3, %c0_4] : memref<1x80xf32, #tpu.memory_space<vmem>>, vector<1x80xf32>
    %12 = vector.broadcast %11 : vector<1x80xf32> to vector<256x80xf32>
    %13 = arith.mulf %10, %12 : vector<256x80xf32>
    %c0_5 = arith.constant 0 : index
    %c0_6 = arith.constant 0 : index
    %14 = vector.load %arg5[%c0_5, %c0_6] : memref<1x80xf32, #tpu.memory_space<vmem>>, vector<1x80xf32>
    %15 = vector.broadcast %14 : vector<1x80xf32> to vector<256x80xf32>
    %16 = arith.addf %13, %15 : vector<256x80xf32>
    %c0_7 = arith.constant 0 : index
    %c0_8 = arith.constant 0 : index
    %17 = vector.load %arg6[%c0_7, %c0_8] : memref<1x80xf32, #tpu.memory_space<vmem>>, vector<1x80xf32>
    %cst = arith.constant 5.000000e-01 : f32
    %18 = vector.broadcast %cst : f32 to vector<1x80xf32>
    %19 = arith.cmpf ogt, %17, %18 : vector<1x80xf32>
    %cst_9 = arith.constant 0.000000e+00 : f32
    %20 = vector.broadcast %cst_9 : f32 to vector<256x80xf32>
    %21 = arith.maximumf %16, %20 : vector<256x80xf32>
    %22 = vector.shape_cast %19 : vector<1x80xi1> to vector<1x80xi1>
    %23 = vector.broadcast %22 : vector<1x80xi1> to vector<256x80xi1>
    %24 = arith.select %23, %21, %16 : vector<256x80xi1>, vector<256x80xf32>
    %25 = arith.index_cast %6 : i32 to index
    %c0_10 = arith.constant 0 : index
    %26 = vector.load %arg3[%25, %c0_10] : memref<768x1xf32, #tpu.memory_space<vmem>>, vector<256x1xf32>
    %cst_11 = arith.constant 5.000000e-01 : f32
    %27 = vector.broadcast %cst_11 : f32 to vector<256x1xf32>
    %28 = arith.cmpf ogt, %26, %27 : vector<256x1xf32>
    %cst_12 = arith.constant 0.000000e+00 : f32
    %29 = vector.shape_cast %28 : vector<256x1xi1> to vector<256x1xi1>
    %30 = vector.broadcast %29 : vector<256x1xi1> to vector<256x80xi1>
    %31 = vector.broadcast %cst_12 : f32 to vector<256x80xf32>
    %32 = arith.select %30, %24, %31 : vector<256x80xi1>, vector<256x80xf32>
    %33 = arith.truncf %32 : vector<256x80xf32> to vector<256x80xbf16>
    %34 = vector.extract_strided_slice %33 {offsets = [7, 0], sizes = [192, 80], strides = [1, 1]} : vector<256x80xbf16> to vector<192x80xbf16>
    %35 = vector.extract_strided_slice %33 {offsets = [8, 0], sizes = [192, 80], strides = [1, 1]} : vector<256x80xbf16> to vector<192x80xbf16>
    %36 = vector.extract_strided_slice %33 {offsets = [9, 0], sizes = [192, 80], strides = [1, 1]} : vector<256x80xbf16> to vector<192x80xbf16>
    %37 = vector.extract_strided_slice %33 {offsets = [31, 0], sizes = [192, 80], strides = [1, 1]} : vector<256x80xbf16> to vector<192x80xbf16>
    %38 = vector.extract_strided_slice %33 {offsets = [32, 0], sizes = [192, 80], strides = [1, 1]} : vector<256x80xbf16> to vector<192x80xbf16>
    %39 = vector.extract_strided_slice %33 {offsets = [33, 0], sizes = [192, 80], strides = [1, 1]} : vector<256x80xbf16> to vector<192x80xbf16>
    %40 = vector.extract_strided_slice %33 {offsets = [55, 0], sizes = [192, 80], strides = [1, 1]} : vector<256x80xbf16> to vector<192x80xbf16>
    %41 = vector.extract_strided_slice %33 {offsets = [56, 0], sizes = [192, 80], strides = [1, 1]} : vector<256x80xbf16> to vector<192x80xbf16>
    %42 = vector.extract_strided_slice %33 {offsets = [57, 0], sizes = [192, 80], strides = [1, 1]} : vector<256x80xbf16> to vector<192x80xbf16>
    %43 = tpu.concatenate %34, %35, %36, %37, %38, %39, %40, %41, %42 in 1 : vector<192x80xbf16>, vector<192x80xbf16>, vector<192x80xbf16>, vector<192x80xbf16>, vector<192x80xbf16>, vector<192x80xbf16>, vector<192x80xbf16>, vector<192x80xbf16>, vector<192x80xbf16> -> vector<192x720xbf16>
    %c0_13 = arith.constant 0 : index
    %c0_14 = arith.constant 0 : index
    %44 = vector.load %arg7[%c0_13, %c0_14] : memref<720x64xbf16, #tpu.memory_space<vmem>>, vector<720x64xbf16>
    %cst_15 = arith.constant dense<0.000000e+00> : vector<192x64xf32>
    %45 = tpu.matmul %43, %44, %cst_15 {dimension_numbers = #tpu.dot_dimension_numbers<[1], [0], [0], [1], [0, 0, 1, 1], [], []>} : vector<192x720xbf16>, vector<720x64xbf16>, vector<192x64xf32> -> vector<192x64xf32>
    %46 = arith.truncf %45 : vector<192x64xf32> to vector<192x64xbf16>
    %c0_16 = arith.constant 0 : index
    %c0_17 = arith.constant 0 : index
    %c0_18 = arith.constant 0 : index
    %47 = vector.load %arg8[%c0_16, %c0_17, %c0_18] : memref<1x192x64xbf16, #tpu.memory_space<vmem>>, vector<1x192x64xbf16>
    %48 = vector.shape_cast %47 : vector<1x192x64xbf16> to vector<192x64xbf16>
    %49 = vector.shape_cast %46 : vector<192x64xbf16> to vector<1x192x64xbf16>
    tpu.vector_store %arg8[%c0_16, %c0_17, %c0_18], %49 {strides = array<i32>} : memref<1x192x64xbf16, #tpu.memory_space<vmem>>, vector<1x192x64xbf16>,
    %50 = arith.index_cast %2 : i32 to index
    %c0_19 = arith.constant 0 : index
    %51 = vector.load %arg3[%50, %c0_19] : memref<768x1xf32, #tpu.memory_space<vmem>>, vector<192x1xf32>
    %cst_20 = arith.constant 5.000000e-01 : f32
    %52 = vector.broadcast %cst_20 : f32 to vector<192x1xf32>
    %53 = arith.cmpf ogt, %51, %52 : vector<192x1xf32>
    %cst_21 = arith.constant 0.000000e+00 : f32
    %54 = vector.shape_cast %53 : vector<192x1xi1> to vector<192x1xi1>
    %55 = vector.broadcast %54 : vector<192x1xi1> to vector<192x64xi1>
    %56 = vector.broadcast %cst_21 : f32 to vector<192x64xf32>
    %57 = arith.select %55, %45, %56 : vector<192x64xi1>, vector<192x64xf32>
    %cst_22 = arith.constant dense<0.000000e+00> : vector<64xf32>
    %58 = vector.multi_reduction <add>, %57, %cst_22 [0] : vector<192x64xf32> to vector<64xf32>
    %59 = vector.shape_cast %58 : vector<64xf32> to vector<1x64xf32>
    %60 = arith.mulf %57, %57 : vector<192x64xf32>
    %cst_23 = arith.constant dense<0.000000e+00> : vector<64xf32>
    %61 = vector.multi_reduction <add>, %60, %cst_23 [0] : vector<192x64xf32> to vector<64xf32>
    %62 = vector.shape_cast %61 : vector<64xf32> to vector<1x64xf32>
    %63 = tpu.concatenate %59, %62 in 0 : vector<1x64xf32>, vector<1x64xf32> -> vector<2x64xf32>
    %c0_24 = arith.constant 0 : index
    %c0_25 = arith.constant 0 : index
    %c0_26 = arith.constant 0 : index
    %c0_27 = arith.constant 0 : index
    %64 = vector.load %arg9[%c0_24, %c0_25, %c0_26, %c0_27] : memref<1x1x2x64xf32, #tpu.memory_space<vmem>>, vector<1x1x2x64xf32>
    %65 = vector.shape_cast %64 : vector<1x1x2x64xf32> to vector<2x64xf32>
    %66 = vector.shape_cast %63 : vector<2x64xf32> to vector<1x1x2x64xf32>
    tpu.vector_store %arg9[%c0_24, %c0_25, %c0_26, %c0_27], %66 {strides = array<i32>} : memref<1x1x2x64xf32, #tpu.memory_space<vmem>>, vector<1x1x2x64xf32>,
    return
  }
  func.func @transform_0(%arg0: i32, %arg1: i32) -> (i32, i32, i32) {
    %c0_i32 = arith.constant 0 : i32
    %c0_i32_0 = arith.constant 0 : i32
    %c0_i32_1 = arith.constant 0 : i32
    return %arg0, %c0_i32, %c0_i32_0 : i32, i32, i32
  }
  func.func @transform_1(%arg0: i32, %arg1: i32) -> (i32, i32) {
    %c0_i32 = arith.constant 0 : i32
    %c0_i32_0 = arith.constant 0 : i32
    %c0_i32_1 = arith.constant 0 : i32
    return %c0_i32, %c0_i32_0 : i32, i32
  }
  func.func @transform_2(%arg0: i32, %arg1: i32) -> (i32, i32) {
    %c0_i32 = arith.constant 0 : i32
    %c0_i32_0 = arith.constant 0 : i32
    %c0_i32_1 = arith.constant 0 : i32
    return %c0_i32, %c0_i32_0 : i32, i32
  }
  func.func @transform_3(%arg0: i32, %arg1: i32) -> (i32, i32) {
    %c0_i32 = arith.constant 0 : i32
    %c0_i32_0 = arith.constant 0 : i32
    %c0_i32_1 = arith.constant 0 : i32
    return %c0_i32, %c0_i32_0 : i32, i32
  }
  func.func @transform_4(%arg0: i32, %arg1: i32) -> (i32, i32) {
    %c0_i32 = arith.constant 0 : i32
    %c0_i32_0 = arith.constant 0 : i32
    %c0_i32_1 = arith.constant 0 : i32
    return %c0_i32, %c0_i32_0 : i32, i32
  }
  func.func @transform_5(%arg0: i32, %arg1: i32) -> (i32, i32) {
    %c0_i32 = arith.constant 0 : i32
    %c0_i32_0 = arith.constant 0 : i32
    %c0_i32_1 = arith.constant 0 : i32
    return %c0_i32, %c0_i32_0 : i32, i32
  }
  func.func @transform_6(%arg0: i32, %arg1: i32) -> (i32, i32, i32) {
    %c1_i32 = arith.constant 1 : i32
    %0 = arith.addi %arg1, %c1_i32 : i32
    %c0_i32 = arith.constant 0 : i32
    %c0_i32_0 = arith.constant 0 : i32
    return %arg0, %0, %c0_i32 : i32, i32, i32
  }
  func.func @transform_7(%arg0: i32, %arg1: i32) -> (i32, i32, i32, i32) {
    %c0_i32 = arith.constant 0 : i32
    %c0_i32_0 = arith.constant 0 : i32
    %c0_i32_1 = arith.constant 0 : i32
    return %arg0, %arg1, %c0_i32, %c0_i32_0 : i32, i32, i32, i32
  }
}

module attributes {stable_mosaic.version = 11 : i64} {
  func.func @_bn_relu_1x1_kernel(%arg0: i32, %arg1: memref<256x128xbf16, #tpu.memory_space<vmem>>, %arg2: memref<1x128xf32, #tpu.memory_space<vmem>>, %arg3: memref<1x128xf32, #tpu.memory_space<vmem>>, %arg4: memref<128x16xbf16, #tpu.memory_space<vmem>>, %arg5: memref<1x16xf32, #tpu.memory_space<vmem>>, %arg6: memref<256x16xf32, #tpu.memory_space<vmem>>) attributes {dimension_semantics = [#tpu.dimension_semantics<parallel>], iteration_bounds = array<i64: 3>, scalar_prefetch = 0 : i64, scratch_operands = 0 : i64, tpu.core_type = #tpu.core_type<tc>, window_params = [{transform_indices = @transform_0, window_bounds = array<i64: 256, 128>}, {pipeline_mode = #tpu.pipeline_mode<synchronous>, transform_indices = @transform_1, window_bounds = array<i64: 1, 128>}, {pipeline_mode = #tpu.pipeline_mode<synchronous>, transform_indices = @transform_2, window_bounds = array<i64: 1, 128>}, {pipeline_mode = #tpu.pipeline_mode<synchronous>, transform_indices = @transform_3, window_bounds = array<i64: 128, 16>}, {pipeline_mode = #tpu.pipeline_mode<synchronous>, transform_indices = @transform_4, window_bounds = array<i64: 1, 16>}, {transform_indices = @transform_5, window_bounds = array<i64: 256, 16>}]} {
    %c0 = arith.constant 0 : index
    %c0_0 = arith.constant 0 : index
    %0 = vector.load %arg1[%c0, %c0_0] : memref<256x128xbf16, #tpu.memory_space<vmem>>, vector<256x128xbf16>
    %1 = arith.extf %0 : vector<256x128xbf16> to vector<256x128xf32>
    %c0_1 = arith.constant 0 : index
    %c0_2 = arith.constant 0 : index
    %2 = vector.load %arg2[%c0_1, %c0_2] : memref<1x128xf32, #tpu.memory_space<vmem>>, vector<1x128xf32>
    %3 = vector.broadcast %2 : vector<1x128xf32> to vector<256x128xf32>
    %4 = arith.mulf %1, %3 : vector<256x128xf32>
    %c0_3 = arith.constant 0 : index
    %c0_4 = arith.constant 0 : index
    %5 = vector.load %arg3[%c0_3, %c0_4] : memref<1x128xf32, #tpu.memory_space<vmem>>, vector<1x128xf32>
    %6 = vector.broadcast %5 : vector<1x128xf32> to vector<256x128xf32>
    %7 = arith.addf %4, %6 : vector<256x128xf32>
    %cst = arith.constant 0.000000e+00 : f32
    %8 = vector.broadcast %cst : f32 to vector<256x128xf32>
    %9 = arith.maximumf %7, %8 : vector<256x128xf32>
    %10 = arith.truncf %9 : vector<256x128xf32> to vector<256x128xbf16>
    %c0_5 = arith.constant 0 : index
    %c0_6 = arith.constant 0 : index
    %11 = vector.load %arg4[%c0_5, %c0_6] : memref<128x16xbf16, #tpu.memory_space<vmem>>, vector<128x16xbf16>
    %cst_7 = arith.constant dense<0.000000e+00> : vector<256x16xf32>
    %12 = tpu.matmul %10, %11, %cst_7 {dimension_numbers = #tpu.dot_dimension_numbers<[1], [0], [0], [1], [0, 0, 1, 1], [], []>} : vector<256x128xbf16>, vector<128x16xbf16>, vector<256x16xf32> -> vector<256x16xf32>
    %c0_8 = arith.constant 0 : index
    %c0_9 = arith.constant 0 : index
    %13 = vector.load %arg5[%c0_8, %c0_9] : memref<1x16xf32, #tpu.memory_space<vmem>>, vector<1x16xf32>
    %14 = vector.broadcast %13 : vector<1x16xf32> to vector<256x16xf32>
    %15 = arith.addf %12, %14 : vector<256x16xf32>
    %c0_10 = arith.constant 0 : index
    %c0_11 = arith.constant 0 : index
    %16 = vector.load %arg6[%c0_10, %c0_11] : memref<256x16xf32, #tpu.memory_space<vmem>>, vector<256x16xf32>
    tpu.vector_store %arg6[%c0_10, %c0_11], %15 {strides = array<i32>} : memref<256x16xf32, #tpu.memory_space<vmem>>, vector<256x16xf32>,
    return
  }
  func.func @transform_0(%arg0: i32) -> (i32, i32) {
    %c0_i32 = arith.constant 0 : i32
    %c0_i32_0 = arith.constant 0 : i32
    return %arg0, %c0_i32 : i32, i32
  }
  func.func @transform_1(%arg0: i32) -> (i32, i32) {
    %c0_i32 = arith.constant 0 : i32
    %c0_i32_0 = arith.constant 0 : i32
    %c0_i32_1 = arith.constant 0 : i32
    return %c0_i32, %c0_i32_0 : i32, i32
  }
  func.func @transform_2(%arg0: i32) -> (i32, i32) {
    %c0_i32 = arith.constant 0 : i32
    %c0_i32_0 = arith.constant 0 : i32
    %c0_i32_1 = arith.constant 0 : i32
    return %c0_i32, %c0_i32_0 : i32, i32
  }
  func.func @transform_3(%arg0: i32) -> (i32, i32) {
    %c0_i32 = arith.constant 0 : i32
    %c0_i32_0 = arith.constant 0 : i32
    %c0_i32_1 = arith.constant 0 : i32
    return %c0_i32, %c0_i32_0 : i32, i32
  }
  func.func @transform_4(%arg0: i32) -> (i32, i32) {
    %c0_i32 = arith.constant 0 : i32
    %c0_i32_0 = arith.constant 0 : i32
    %c0_i32_1 = arith.constant 0 : i32
    return %c0_i32, %c0_i32_0 : i32, i32
  }
  func.func @transform_5(%arg0: i32) -> (i32, i32) {
    %c0_i32 = arith.constant 0 : i32
    %c0_i32_0 = arith.constant 0 : i32
    return %arg0, %c0_i32 : i32, i32
  }
}

</mosaic_0001>

<llo_original>
// kernel: hidden_encoder_forward.7
$region0: #{hidden_encoder_forward.7}
  #allocation0 [shape = 'u32[]', space=smem, size = 0x4, offset = 0x4, fixed_abs, tag = 'smem constant byte address 0x4 - core index']
  #allocation1 [shape = 'u32[144,128]{1,0:T(1,128)}', space=vmem, size = 0x12000, scoped, tag = 'internal scratch']
  %s0 = inlined_call_operand.vmem [shape: bf16[2,768,64], index: 0, kind: input, shape index: {}]
  %s1 = inlined_call_operand.vmem [shape: f32[768,1], index: 1, kind: input, shape index: {}]
  %s2 = inlined_call_operand.vmem [shape: f32[1,64], index: 2, kind: input, shape index: {}]
  %s3 = inlined_call_operand.vmem [shape: f32[1,64], index: 3, kind: input, shape index: {}]
  %s4 = inlined_call_operand.vmem [shape: f32[1,64], index: 4, kind: input, shape index: {}]
  %s5 = inlined_call_operand.vmem [shape: bf16[576,64], index: 5, kind: input, shape index: {}]
  %s6 = inlined_call_operand.vmem [shape: bf16[2,768,64], index: 6, kind: output, shape index: {0}]
  %s7 = inlined_call_operand.vmem [shape: f32[2,2,2,64], index: 7, kind: output, shape index: {1}]
  %8 = xla_tuple %s6, %s7
  %s9 = sld [smem:[#allocation0]]
  $region65: #{hidden_encoder_forward.7} parent=0
    _
  %s11 = ssub.s32 1, %s9
  %s12 = scalar_select 0, %s11, %s9
  loop: start=0, step=1, limit=6
  $region2: #{hidden_encoder_forward.7} parent=0 // loop_pre_header
    _
  $region3: #{hidden_encoder_forward.7} parent=0 // loop_header
    %s14 = sphi 0, %s18
    %p15 = scmp.ge.s32.totalorder %s14, 6
    %s21 = sphi 0, %s33
    %s22 = sphi 0, %s29
    %s23 = sphi 0, %s21
    %s24 = sphi 0, %s22
    %s25 = sphi 0, %s23
    %s26 = sphi 0, %s24
    %s36 = sphi 0, %s38
    %s39 = sphi 0, %s36
    %s40 = sphi 0, %s39
    %s56 = sphi 0, %s40
    %s60 = sphi 0, %s60
    %s62 = sphi 0, %s60
    %s63 = sphi 0, %s62
    %s77 = sphi 0, %s63
    %s81 = sphi 0, %s81
    %s83 = sphi 0, %s81
    %s84 = sphi 0, %s83
    %s98 = sphi 0, %s84
    %s102 = sphi 0, %s102
    %s104 = sphi 0, %s102
    %s105 = sphi 0, %s104
    %s119 = sphi 0, %s105
    %s123 = sphi 0, %s123
    %s125 = sphi 0, %s123
    %s126 = sphi 0, %s125
    %s140 = sphi 0, %s126
    %s144 = sphi 0, %s144
    %s146 = sphi 0, %s144
    %s147 = sphi 0, %s146
    %s161 = sphi 0, %s147
    %s171 = sphi 0, %s173
    %s174 = sphi 0, %s171
    %s175 = sphi 0, %s174
    %s191 = sphi 0, %s175
    %s199 = sphi 0, %s201
    %s202 = sphi 0, %s199
    %s203 = sphi 0, %s202
    %s219 = sphi 0, %s203
  $region4: #{hidden_encoder_forward.7} parent=0 // loop_header_branch
    %17 = sbr.rel (%p15) target = $region8
  $region5: #{hidden_encoder_forward.7} parent=0 // loop_body
    %s19 = ssub.s32 %s14, 1
    %s20 = ssub.s32 %s14, 2
    %s27 = sadd.s32 1, %s22
    %p28 = scmp.ge.s32.totalorder %s27, 2
    %s29 = scalar_select %p28, 0, %s27
    %s30 = sadd.s32 1, %s21
    %s31 = scalar_select %p28, %s30, %s21
    %p32 = scmp.ge.s32.totalorder %s31, 2
    %s33 = scalar_select %p32, 0, %s31
    %s34 = ssub.s32 %s21, %s33
    %p35 = scmp.eq.s32.totalorder %s34, 0
    %s37 = sadd.s32 %s36, 1
    %s38 = scalar_select %p35, %s36, %s37
    %p41 = pneg %p35
    %p42 = scmp.eq.s32.totalorder %s14, 3
    %p43 = por %p41, %p42
    %p44 = scmp.ne.s32.totalorder %s36, %s39
    %p45 = scmp.eq.s32.totalorder %s14, 0
    %p46 = por %p44, %p45
    %p47 = scmp.ne.s32.totalorder %s36, %s39
    %p48 = scmp.eq.s32.totalorder %s19, 3
    %p49 = por %p47, %p48
    %p50 = scmp.ne.s32.totalorder %s39, %s40
    %p51 = scmp.eq.s32.totalorder %s19, 0
    %p52 = por %p50, %p51
    %p53 = scmp.ne.s32.totalorder %s39, %s40
    %p54 = scmp.eq.s32.totalorder %s20, 3
    %p55 = por %p53, %p54
    %p57 = scmp.ne.s32.totalorder %s40, %s56
    %p58 = scmp.eq.s32.totalorder %s20, 0
    %p59 = por %p57, %p58
    %s61 = sadd.s32 %s60, 1
    %p64 = scmp.eq.s32.totalorder %s14, 3
    %p65 = scmp.ne.s32.totalorder %s60, %s62
    %p66 = scmp.eq.s32.totalorder %s14, 0
    %p67 = por %p65, %p66
    %p68 = scmp.ne.s32.totalorder %s60, %s62
    %p69 = scmp.eq.s32.totalorder %s19, 3
    %p70 = por %p68, %p69
    %p71 = scmp.ne.s32.totalorder %s62, %s63
    %p72 = scmp.eq.s32.totalorder %s19, 0
    %p73 = por %p71, %p72
    %p74 = scmp.ne.s32.totalorder %s62, %s63
    %p75 = scmp.eq.s32.totalorder %s20, 3
    %p76 = por %p74, %p75
    %p78 = scmp.ne.s32.totalorder %s63, %s77
    %p79 = scmp.eq.s32.totalorder %s20, 0
    %p80 = por %p78, %p79
    %s82 = sadd.s32 %s81, 1
    %p85 = scmp.eq.s32.totalorder %s14, 3
    %p86 = scmp.ne.s32.totalorder %s81, %s83
    %p87 = scmp.eq.s32.totalorder %s14, 0
    %p88 = por %p86, %p87
    %p89 = scmp.ne.s32.totalorder %s81, %s83
    %p90 = scmp.eq.s32.totalorder %s19, 3
    %p91 = por %p89, %p90
    %p92 = scmp.ne.s32.totalorder %s83, %s84
    %p93 = scmp.eq.s32.totalorder %s19, 0
    %p94 = por %p92, %p93
    %p95 = scmp.ne.s32.totalorder %s83, %s84
    %p96 = scmp.eq.s32.totalorder %s20, 3
    %p97 = por %p95, %p96
    %p99 = scmp.ne.s32.totalorder %s84, %s98
    %p100 = scmp.eq.s32.totalorder %s20, 0
    %p101 = por %p99, %p100
    %s103 = sadd.s32 %s102, 1
    %p106 = scmp.eq.s32.totalorder %s14, 3
    %p107 = scmp.ne.s32.totalorder %s102, %s104
    %p108 = scmp.eq.s32.totalorder %s14, 0
    %p109 = por %p107, %p108
    %p110 = scmp.ne.s32.totalorder %s102, %s104
    %p111 = scmp.eq.s32.totalorder %s19, 3
    %p112 = por %p110, %p111
    %p113 = scmp.ne.s32.totalorder %s104, %s105
    %p114 = scmp.eq.s32.totalorder %s19, 0
    %p115 = por %p113, %p114
    %p116 = scmp.ne.s32.totalorder %s104, %s105
    %p117 = scmp.eq.s32.totalorder %s20, 3
    %p118 = por %p116, %p117
    %p120 = scmp.ne.s32.totalorder %s105, %s119
    %p121 = scmp.eq.s32.totalorder %s20, 0
    %p122 = por %p120, %p121
    %s124 = sadd.s32 %s123, 1
    %p127 = scmp.eq.s32.totalorder %s14, 3
    %p128 = scmp.ne.s32.totalorder %s123, %s125
    %p129 = scmp.eq.s32.totalorder %s14, 0
    %p130 = por %p128, %p129
    %p131 = scmp.ne.s32.totalorder %s123, %s125
    %p132 = scmp.eq.s32.totalorder %s19, 3
    %p133 = por %p131, %p132
    %p134 = scmp.ne.s32.totalorder %s125, %s126
    %p135 = scmp.eq.s32.totalorder %s19, 0
    %p136 = por %p134, %p135
    %p137 = scmp.ne.s32.totalorder %s125, %s126
    %p138 = scmp.eq.s32.totalorder %s20, 3
    %p139 = por %p137, %p138
    %p141 = scmp.ne.s32.totalorder %s126, %s140
    %p142 = scmp.eq.s32.totalorder %s20, 0
    %p143 = por %p141, %p142
    %s145 = sadd.s32 %s144, 1
    %p148 = scmp.eq.s32.totalorder %s14, 3
    %p149 = scmp.ne.s32.totalorder %s144, %s146
    %p150 = scmp.eq.s32.totalorder %s14, 0
    %p151 = por %p149, %p150
    %p152 = scmp.ne.s32.totalorder %s144, %s146
    %p153 = scmp.eq.s32.totalorder %s19, 3
    %p154 = por %p152, %p153
    %p155 = scmp.ne.s32.totalorder %s146, %s147
    %p156 = scmp.eq.s32.totalorder %s19, 0
    %p157 = por %p155, %p156
    %p158 = scmp.ne.s32.totalorder %s146, %s147
    %p159 = scmp.eq.s32.totalorder %s20, 3
    %p160 = por %p158, %p159
    %p162 = scmp.ne.s32.totalorder %s147, %s161
    %p163 = scmp.eq.s32.totalorder %s20, 0
    %p164 = por %p162, %p163
    %s165 = sadd.s32 %s22, 1
    %s166 = sadd.s32 %s29, 1
    %s167 = ssub.s32 %s21, %s33
    %s168 = ssub.s32 %s165, %s166
    %s169 = sor.u32 %s167, %s168
    %p170 = scmp.eq.s32.totalorder %s169, 0
    %s172 = sadd.s32 %s171, 1
    %s173 = scalar_select %p170, %s171, %s172
    %p176 = pneg %p170
    %p177 = scmp.eq.s32.totalorder %s14, 3
    %p178 = por %p176, %p177
    %p179 = scmp.ne.s32.totalorder %s171, %s174
    %p180 = scmp.eq.s32.totalorder %s14, 0
    %p181 = por %p179, %p180
    %p182 = scmp.ne.s32.totalorder %s171, %s174
    %p183 = scmp.eq.s32.totalorder %s19, 3
    %p184 = por %p182, %p183
    %p185 = scmp.ne.s32.totalorder %s174, %s175
    %p186 = scmp.eq.s32.totalorder %s19, 0
    %p187 = por %p185, %p186
    %p188 = scmp.ne.s32.totalorder %s174, %s175
    %p189 = scmp.eq.s32.totalorder %s20, 3
    %p190 = por %p188, %p189
    %p192 = scmp.ne.s32.totalorder %s175, %s191
    %p193 = scmp.eq.s32.totalorder %s20, 0
    %p194 = por %p192, %p193
    %s195 = ssub.s32 %s21, %s33
    %s196 = ssub.s32 %s22, %s29
    %s197 = sor.u32 %s195, %s196
    %p198 = scmp.eq.s32.totalorder %s197, 0
    %s200 = sadd.s32 %s199, 1
    %s201 = scalar_select %p198, %s199, %s200
    %p204 = pneg %p198
    %p205 = scmp.eq.s32.totalorder %s14, 3
    %p206 = por %p204, %p205
    %p207 = scmp.ne.s32.totalorder %s199, %s202
    %p208 = scmp.eq.s32.totalorder %s14, 0
    %p209 = por %p207, %p208
    %p210 = scmp.ne.s32.totalorder %s199, %s202
    %p211 = scmp.eq.s32.totalorder %s19, 3
    %p212 = por %p210, %p211
    %p213 = scmp.ne.s32.totalorder %s202, %s203
    %p214 = scmp.eq.s32.totalorder %s19, 0
    %p215 = por %p213, %p214
    %p216 = scmp.ne.s32.totalorder %s202, %s203
    %p217 = scmp.eq.s32.totalorder %s20, 3
    %p218 = por %p216, %p217
    %p220 = scmp.ne.s32.totalorder %s203, %s219
    %p221 = scmp.eq.s32.totalorder %s20, 0
    %p222 = por %p220, %p221
    %p223 = scmp.le.s32.totalorder 1, %s14
    %p224 = scmp.lt.s32.totalorder %s14, 5
    %p225 = pnand %p223, %p224
    %p226 = pneg %p225
    // Predicated region
    $region9: #{hidden_encoder_forward.7} parent=5 // pred_check
      _
    $region10: #{hidden_encoder_forward.7} parent=5 // pred_check_branch
      %228 = sbr.rel (%p225) target = $region12
    $region11: #{hidden_encoder_forward.7} parent=5 // pred_region
      %s229 = ssub.s32 %s14, 1
      // Predicated region
      $region13: #{hidden_encoder_forward.7} parent=11 // pred_check
        %p230 = pneg %p73
      $region14: #{hidden_encoder_forward.7} parent=11 // pred_check_branch
        %232 = sbr.rel (%p230) target = $region16
      $region15: #{hidden_encoder_forward.7} parent=11 // pred_region
        _
      $region16: #{hidden_encoder_forward.7} parent=11 // pred_fallthru
        _
      // Predicated region
      $region17: #{hidden_encoder_forward.7} parent=11 // pred_check
        %p233 = pneg %p94
      $region18: #{hidden_encoder_forward.7} parent=11 // pred_check_branch
        %235 = sbr.rel (%p233) target = $region20
      $region19: #{hidden_encoder_forward.7} parent=11 // pred_region
        _
      $region20: #{hidden_encoder_forward.7} parent=11 // pred_fallthru
        _
      // Predicated region
      $region21: #{hidden_encoder_forward.7} parent=11 // pred_check
        %p236 = pneg %p115
      $region22: #{hidden_encoder_forward.7} parent=11 // pred_check_branch
        %238 = sbr.rel (%p236) target = $region24
      $region23: #{hidden_encoder_forward.7} parent=11 // pred_region
        _
      $region24: #{hidden_encoder_forward.7} parent=11 // pred_fallthru
        _
      // Predicated region
      $region25: #{hidden_encoder_forward.7} parent=11 // pred_check
        %p239 = pneg %p136
      $region26: #{hidden_encoder_forward.7} parent=11 // pred_check_branch
        %241 = sbr.rel (%p239) target = $region28
      $region27: #{hidden_encoder_forward.7} parent=11 // pred_region
        _
      $region28: #{hidden_encoder_forward.7} parent=11 // pred_fallthru
        _
      // Predicated region
      $region29: #{hidden_encoder_forward.7} parent=11 // pred_check
        %p242 = pneg %p157
      $region30: #{hidden_encoder_forward.7} parent=11 // pred_check_branch
        %244 = sbr.rel (%p242) target = $region32
      $region31: #{hidden_encoder_forward.7} parent=11 // pred_region
        _
      $region32: #{hidden_encoder_forward.7} parent=11 // pred_fallthru
        _
    $region12: #{hidden_encoder_forward.7} parent=5 // pred_fallthru
      _
    %p245 = scmp.lt.s32.totalorder %s14, 4
    // Predicated region
    $region33: #{hidden_encoder_forward.7} parent=5 // pred_check
      %p246 = pneg %p245
    $region34: #{hidden_encoder_forward.7} parent=5 // pred_check_branch
      %248 = sbr.rel (%p246) target = $region36
    $region35: #{hidden_encoder_forward.7} parent=5 // pred_region
      // Predicated region
      $region37: #{hidden_encoder_forward.7} parent=35 // pred_check
        %p249 = pneg %p46
      $region38: #{hidden_encoder_forward.7} parent=35 // pred_check_branch
        %251 = sbr.rel (%p249) target = $region40
      $region39: #{hidden_encoder_forward.7} parent=35 // pred_region
        %p252 = scmp.lt.s32.totalorder %s21, 1
        %s253 = scalar_select %p252, %s21, 1
        %s254 = smul.addr %s253, 96
        %s255 = smul.addr %s254, 4
        %s256 = scalar_lea.vmem %s0, %s255
      $region40: #{hidden_encoder_forward.7} parent=35 // pred_fallthru
        _
    $region36: #{hidden_encoder_forward.7} parent=5 // pred_fallthru
      _
    %p257 = scmp.le.s32.totalorder 1, %s14
    %p258 = scmp.lt.s32.totalorder %s14, 5
    %p259 = pnand %p257, %p258
    %p260 = pneg %p259
    // Predicated region
    $region41: #{hidden_encoder_forward.7} parent=5 // pred_check
      _
    $region42: #{hidden_encoder_forward.7} parent=5 // pred_check_branch
      %262 = sbr.rel (%p259) target = $region44
    $region43: #{hidden_encoder_forward.7} parent=5 // pred_region
      %s263 = ssub.s32 %s14, 1
      %p264 = scmp.lt.s32.totalorder %s23, 1
      %s265 = scalar_select %p264, %s23, 1
      %s266 = smul.addr %s265, 96
      %s267 = smul.addr %s266, 4
      %s268 = scalar_lea.vmem %s0, %s267
      %p269 = pneg %p52
      %p270 = pneg %p49
      %p271 = pneg %p73
      %p272 = pneg %p70
      %p273 = pneg %p94
      %p274 = pneg %p91
      %p275 = pneg %p115
      %p276 = pneg %p112
      %p277 = pneg %p136
      %p278 = pneg %p133
      %p279 = pneg %p157
      %p280 = pneg %p154
      %p281 = pneg %p187
      %p282 = pneg %p184
      %s283 = sadd.s32 %s24, 1
      %s284 = smul.u32 24, %s283
      %p285 = scmp.lt.s32.totalorder %s23, 1
      %s286 = scalar_select %p285, %s23, 1
      %p287 = scmp.lt.s32.totalorder %s284, 95
      %s288 = scalar_select %p287, %s284, 95
      %s289 = smul.addr %s286, 96
      %s290 = sadd.s32 %s288, %s289
      %s291 = smul.addr %s290, 4
      %s292 = scalar_lea.vmem %s6, %s291
      %p293 = pneg %p215
      %p294 = pneg %p212
      %p295 = scmp.lt.s32.totalorder %s23, 1
      %s296 = scalar_select %p295, %s23, 1
      %p297 = scmp.lt.s32.totalorder %s24, 1
      %s298 = scalar_select %p297, %s24, 1
      %s299 = smul.addr %s296, 2
      %s300 = sadd.s32 %s298, %s299
      %s301 = smul.addr %s300, 2
      %s302 = scalar_lea.vmem %s7, %s301
      %p303 = scmp.lt.s32.totalorder %s23, 1
      %s304 = scalar_select %p303, %s23, 1
      %s305 = smul.addr %s304, 96
      %s306 = smul.addr %s305, 4
      %s307 = scalar_lea.vmem %s0, %s306
      %s308 = sadd.s32 %s24, 1
      %s309 = smul.u32 24, %s308
      %p310 = scmp.lt.s32.totalorder %s23, 1
      %s311 = scalar_select %p310, %s23, 1
      %p312 = scmp.lt.s32.totalorder %s309, 95
      %s313 = scalar_select %p312, %s309, 95
      %s314 = smul.addr %s311, 96
      %s315 = sadd.s32 %s313, %s314
      %s316 = smul.addr %s315, 4
      %s317 = scalar_lea.vmem %s6, %s316
      %s318 = sadd.s32 %s24, 1
      %s319 = smul.u32 24, %s318
      %p320 = scmp.lt.s32.totalorder %s23, 1
      %s321 = scalar_select %p320, %s23, 1
      %p322 = scmp.lt.s32.totalorder %s24, 1
      %s323 = scalar_select %p322, %s24, 1
      %s324 = smul.addr %s321, 2
      %s325 = sadd.s32 %s323, %s324
      %s326 = smul.addr %s325, 2
      %s327 = scalar_lea.vmem %s7, %s326
      %s329 = sadd.s32 %s24, 1
      %s330 = smul.u32 %s329, 192
      %s331 = ssub.s32 %s330, 32
      %s332 = sshra.s32 %s331, 3
      %s333 = sand.u32 %s331, 7
      %s334 = smul.addr %s332, 4
      %s335 = scalar_lea.vmem %s307, %s334
      %v336 = vld [vmem:[%s335] sm:$0xf]
      %v337 = vld [vmem:[%s335 + $0x4] sm:$0xf]
      %v338 = vld [vmem:[%s335 + $0x8] sm:$0xf]
      %v339 = vld [vmem:[%s335 + $0xc] sm:$0xf]
      %v340 = vld [vmem:[%s335 + $0x10] sm:$0xf]
      %v341 = vld [vmem:[%s335 + $0x14] sm:$0xf]
      %v342 = vld [vmem:[%s335 + $0x18] sm:$0xf]
      %v343 = vld [vmem:[%s335 + $0x1c] sm:$0xf]
      %v344 = vld [vmem:[%s335 + $0x20] sm:$0xf]
      %v345 = vld [vmem:[%s335 + $0x24] sm:$0xf]
      %v346 = vld [vmem:[%s335 + $0x28] sm:$0xf]
      %v347 = vld [vmem:[%s335 + $0x2c] sm:$0xf]
      %v348 = vld [vmem:[%s335 + $0x30] sm:$0xf]
      %v349 = vld [vmem:[%s335 + $0x34] sm:$0xf]
      %v350 = vld [vmem:[%s335 + $0x38] sm:$0xf]
      %v351 = vld [vmem:[%s335 + $0x3c] sm:$0xf]
      %v352 = vld [vmem:[%s335 + $0x40] sm:$0xf]
      %v353 = vld [vmem:[%s335 + $0x44] sm:$0xf]
      %v354 = vld [vmem:[%s335 + $0x48] sm:$0xf]
      %v355 = vld [vmem:[%s335 + $0x4c] sm:$0xf]
      %v356 = vld [vmem:[%s335 + $0x50] sm:$0xf]
      %v357 = vld [vmem:[%s335 + $0x54] sm:$0xf]
      %v358 = vld [vmem:[%s335 + $0x58] sm:$0xf]
      %v359 = vld [vmem:[%s335 + $0x5c] sm:$0xf]
      %v360 = vld [vmem:[%s335 + $0x60] sm:$0xf]
      %v361 = vld [vmem:[%s335 + $0x64] sm:$0xf]
      %v362 = vld [vmem:[%s335 + $0x68] sm:$0xf]
      %v363 = vld [vmem:[%s335 + $0x6c] sm:$0xf]
      %v364 = vld [vmem:[%s335 + $0x70] sm:$0xf]
      %v365 = vld [vmem:[%s335 + $0x74] sm:$0xf]
      %v366 = vld [vmem:[%s335 + $0x78] sm:$0xf]
      %v367 = vld [vmem:[%s335 + $0x7c] sm:$0xf]
      %v368 = vunpack.c.l.bf16 %v336
      %v369 = vunpack.c.l.bf16 %v337
      %v370 = vunpack.c.l.bf16 %v338
      %v371 = vunpack.c.l.bf16 %v339
      %v372 = vunpack.c.l.bf16 %v340
      %v373 = vunpack.c.l.bf16 %v341
      %v374 = vunpack.c.l.bf16 %v342
      %v375 = vunpack.c.l.bf16 %v343
      %v376 = vunpack.c.l.bf16 %v344
      %v377 = vunpack.c.l.bf16 %v345
      %v378 = vunpack.c.l.bf16 %v346
      %v379 = vunpack.c.l.bf16 %v347
      %v380 = vunpack.c.l.bf16 %v348
      %v381 = vunpack.c.l.bf16 %v349
      %v382 = vunpack.c.l.bf16 %v350
      %v383 = vunpack.c.l.bf16 %v351
      %v384 = vunpack.c.l.bf16 %v352
      %v385 = vunpack.c.l.bf16 %v353
      %v386 = vunpack.c.l.bf16 %v354
      %v387 = vunpack.c.l.bf16 %v355
      %v388 = vunpack.c.l.bf16 %v356
      %v389 = vunpack.c.l.bf16 %v357
      %v390 = vunpack.c.l.bf16 %v358
      %v391 = vunpack.c.l.bf16 %v359
      %v392 = vunpack.c.l.bf16 %v360
      %v393 = vunpack.c.l.bf16 %v361
      %v394 = vunpack.c.l.bf16 %v362
      %v395 = vunpack.c.l.bf16 %v363
      %v396 = vunpack.c.l.bf16 %v364
      %v397 = vunpack.c.l.bf16 %v365
      %v398 = vunpack.c.l.bf16 %v366
      %v399 = vunpack.c.l.bf16 %v367
      %v400 = vld [vmem:[%s2] sm:$0x1]
      %v402 = vlaneseq
      %v403 = vshrl.u32 %v402, 7
      %v404 = vsub.s32 0, %v403
      %v405 = vrot.slane %v400, %v404
      %v407 = vmul.f32 %v368, %v405
      %v408 = vmul.f32 %v369, %v405
      %v409 = vmul.f32 %v370, %v405
      %v410 = vmul.f32 %v371, %v405
      %v411 = vmul.f32 %v372, %v405
      %v412 = vmul.f32 %v373, %v405
      %v413 = vmul.f32 %v374, %v405
      %v414 = vmul.f32 %v375, %v405
      %v415 = vmul.f32 %v376, %v405
      %v416 = vmul.f32 %v377, %v405
      %v417 = vmul.f32 %v378, %v405
      %v418 = vmul.f32 %v379, %v405
      %v419 = vmul.f32 %v380, %v405
      %v420 = vmul.f32 %v381, %v405
      %v421 = vmul.f32 %v382, %v405
      %v422 = vmul.f32 %v383, %v405
      %v423 = vmul.f32 %v384, %v405
      %v424 = vmul.f32 %v385, %v405
      %v425 = vmul.f32 %v386, %v405
      %v426 = vmul.f32 %v387, %v405
      %v427 = vmul.f32 %v388, %v405
      %v428 = vmul.f32 %v389, %v405
      %v429 = vmul.f32 %v390, %v405
      %v430 = vmul.f32 %v391, %v405
      %v431 = vmul.f32 %v392, %v405
      %v432 = vmul.f32 %v393, %v405
      %v433 = vmul.f32 %v394, %v405
      %v434 = vmul.f32 %v395, %v405
      %v435 = vmul.f32 %v396, %v405
      %v436 = vmul.f32 %v397, %v405
      %v437 = vmul.f32 %v398, %v405
      %v438 = vmul.f32 %v399, %v405
      %v439 = vld [vmem:[%s3] sm:$0x1]
      %v441 = vlaneseq
      %v442 = vshrl.u32 %v441, 7
      %v443 = vsub.s32 0, %v442
      %v444 = vrot.slane %v439, %v443
      %v446 = vadd.f32 %v407, %v444
      %v447 = vadd.f32 %v408, %v444
      %v448 = vadd.f32 %v409, %v444
      %v449 = vadd.f32 %v410, %v444
      %v450 = vadd.f32 %v411, %v444
      %v451 = vadd.f32 %v412, %v444
      %v452 = vadd.f32 %v413, %v444
      %v453 = vadd.f32 %v414, %v444
      %v454 = vadd.f32 %v415, %v444
      %v455 = vadd.f32 %v416, %v444
      %v456 = vadd.f32 %v417, %v444
      %v457 = vadd.f32 %v418, %v444
      %v458 = vadd.f32 %v419, %v444
      %v459 = vadd.f32 %v420, %v444
      %v460 = vadd.f32 %v421, %v444
      %v461 = vadd.f32 %v422, %v444
      %v462 = vadd.f32 %v423, %v444
      %v463 = vadd.f32 %v424, %v444
      %v464 = vadd.f32 %v425, %v444
      %v465 = vadd.f32 %v426, %v444
      %v466 = vadd.f32 %v427, %v444
      %v467 = vadd.f32 %v428, %v444
      %v468 = vadd.f32 %v429, %v444
      %v469 = vadd.f32 %v430, %v444
      %v470 = vadd.f32 %v431, %v444
      %v471 = vadd.f32 %v432, %v444
      %v472 = vadd.f32 %v433, %v444
      %v473 = vadd.f32 %v434, %v444
      %v474 = vadd.f32 %v435, %v444
      %v475 = vadd.f32 %v436, %v444
      %v476 = vadd.f32 %v437, %v444
      %v477 = vadd.f32 %v438, %v444
      %v478 = vld [vmem:[%s4] sm:$0x1]
      %vm479 = vcmp.gt.f32.partialorder %v478, 0.5
      %v480 = vmax.f32 %v446, 0.0
      %v481 = vmax.f32 %v447, 0.0
      %v482 = vmax.f32 %v448, 0.0
      %v483 = vmax.f32 %v449, 0.0
      %v484 = vmax.f32 %v450, 0.0
      %v485 = vmax.f32 %v451, 0.0
      %v486 = vmax.f32 %v452, 0.0
      %v487 = vmax.f32 %v453, 0.0
      %v488 = vmax.f32 %v454, 0.0
      %v489 = vmax.f32 %v455, 0.0
      %v490 = vmax.f32 %v456, 0.0
      %v491 = vmax.f32 %v457, 0.0
      %v492 = vmax.f32 %v458, 0.0
      %v493 = vmax.f32 %v459, 0.0
      %v494 = vmax.f32 %v460, 0.0
      %v495 = vmax.f32 %v461, 0.0
      %v496 = vmax.f32 %v462, 0.0
      %v497 = vmax.f32 %v463, 0.0
      %v498 = vmax.f32 %v464, 0.0
      %v499 = vmax.f32 %v465, 0.0
      %v500 = vmax.f32 %v466, 0.0
      %v501 = vmax.f32 %v467, 0.0
      %v502 = vmax.f32 %v468, 0.0
      %v503 = vmax.f32 %v469, 0.0
      %v504 = vmax.f32 %v470, 0.0
      %v505 = vmax.f32 %v471, 0.0
      %v506 = vmax.f32 %v472, 0.0
      %v507 = vmax.f32 %v473, 0.0
      %v508 = vmax.f32 %v474, 0.0
      %v509 = vmax.f32 %v475, 0.0
      %v510 = vmax.f32 %v476, 0.0
      %v511 = vmax.f32 %v477, 0.0
      %v512 = vsel %vm479, 1, 0
      %v513 = vlaneseq
      %v514 = vshrl.u32 %v513, 7
      %v515 = vsub.s32 0, %v514
      %v516 = vrot.slane %v512, %v515
      %vm517 = vcmp.eq.s32.totalorder %v516, 1
      %v518 = vsel %vm517, %v480, %v446
      %v519 = vsel %vm517, %v481, %v447
      %v520 = vsel %vm517, %v482, %v448
      %v521 = vsel %vm517, %v483, %v449
      %v522 = vsel %vm517, %v484, %v450
      %v523 = vsel %vm517, %v485, %v451
      %v524 = vsel %vm517, %v486, %v452
      %v525 = vsel %vm517, %v487, %v453
      %v526 = vsel %vm517, %v488, %v454
      %v527 = vsel %vm517, %v489, %v455
      %v528 = vsel %vm517, %v490, %v456
      %v529 = vsel %vm517, %v491, %v457
      %v530 = vsel %vm517, %v492, %v458
      %v531 = vsel %vm517, %v493, %v459
      %v532 = vsel %vm517, %v494, %v460
      %v533 = vsel %vm517, %v495, %v461
      %v534 = vsel %vm517, %v496, %v462
      %v535 = vsel %vm517, %v497, %v463
      %v536 = vsel %vm517, %v498, %v464
      %v537 = vsel %vm517, %v499, %v465
      %v538 = vsel %vm517, %v500, %v466
      %v539 = vsel %vm517, %v501, %v467
      %v540 = vsel %vm517, %v502, %v468
      %v541 = vsel %vm517, %v503, %v469
      %v542 = vsel %vm517, %v504, %v470
      %v543 = vsel %vm517, %v505, %v471
      %v544 = vsel %vm517, %v506, %v472
      %v545 = vsel %vm517, %v507, %v473
      %v546 = vsel %vm517, %v508, %v474
      %v547 = vsel %vm517, %v509, %v475
      %v548 = vsel %vm517, %v510, %v476
      %v549 = vsel %vm517, %v511, %v477
      %s550 = scalar_lea.vmem %s1, %s331
      %v551 = vld [vmem:[%s550] sm:$0xff]
      %v552 = vld [vmem:[%s550 + $0x8] sm:$0xff]
      %v553 = vld [vmem:[%s550 + $0x10] sm:$0xff]
      %v554 = vld [vmem:[%s550 + $0x18] sm:$0xff]
      %v555 = vld [vmem:[%s550 + $0x20] sm:$0xff]
      %v556 = vld [vmem:[%s550 + $0x28] sm:$0xff]
      %v557 = vld [vmem:[%s550 + $0x30] sm:$0xff]
      %v558 = vld [vmem:[%s550 + $0x38] sm:$0xff]
      %v559 = vld [vmem:[%s550 + $0x40] sm:$0xff]
      %v560 = vld [vmem:[%s550 + $0x48] sm:$0xff]
      %v561 = vld [vmem:[%s550 + $0x50] sm:$0xff]
      %v562 = vld [vmem:[%s550 + $0x58] sm:$0xff]
      %v563 = vld [vmem:[%s550 + $0x60] sm:$0xff]
      %v564 = vld [vmem:[%s550 + $0x68] sm:$0xff]
      %v565 = vld [vmem:[%s550 + $0x70] sm:$0xff]
      %v566 = vld [vmem:[%s550 + $0x78] sm:$0xff]
      %v567 = vld [vmem:[%s550 + $0x80] sm:$0xff]
      %v568 = vld [vmem:[%s550 + $0x88] sm:$0xff]
      %v569 = vld [vmem:[%s550 + $0x90] sm:$0xff]
      %v570 = vld [vmem:[%s550 + $0x98] sm:$0xff]
      %v571 = vld [vmem:[%s550 + $0xa0] sm:$0xff]
      %v572 = vld [vmem:[%s550 + $0xa8] sm:$0xff]
      %v573 = vld [vmem:[%s550 + $0xb0] sm:$0xff]
      %v574 = vld [vmem:[%s550 + $0xb8] sm:$0xff]
      %v575 = vld [vmem:[%s550 + $0xc0] sm:$0xff]
      %v576 = vld [vmem:[%s550 + $0xc8] sm:$0xff]
      %v577 = vld [vmem:[%s550 + $0xd0] sm:$0xff]
      %v578 = vld [vmem:[%s550 + $0xd8] sm:$0xff]
      %v579 = vld [vmem:[%s550 + $0xe0] sm:$0xff]
      %v580 = vld [vmem:[%s550 + $0xe8] sm:$0xff]
      %v581 = vld [vmem:[%s550 + $0xf0] sm:$0xff]
      %v582 = vld [vmem:[%s550 + $0xf8] sm:$0xff]
      %vm583 = vcmp.gt.f32.partialorder %v551, 0.5
      %vm584 = vcmp.gt.f32.partialorder %v552, 0.5
      %vm585 = vcmp.gt.f32.partialorder %v553, 0.5
      %vm586 = vcmp.gt.f32.partialorder %v554, 0.5
      %vm587 = vcmp.gt.f32.partialorder %v555, 0.5
      %vm588 = vcmp.gt.f32.partialorder %v556, 0.5
      %vm589 = vcmp.gt.f32.partialorder %v557, 0.5
      %vm590 = vcmp.gt.f32.partialorder %v558, 0.5
      %vm591 = vcmp.gt.f32.partialorder %v559, 0.5
      %vm592 = vcmp.gt.f32.partialorder %v560, 0.5
      %vm593 = vcmp.gt.f32.partialorder %v561, 0.5
      %vm594 = vcmp.gt.f32.partialorder %v562, 0.5
      %vm595 = vcmp.gt.f32.partialorder %v563, 0.5
      %vm596 = vcmp.gt.f32.partialorder %v564, 0.5
      %vm597 = vcmp.gt.f32.partialorder %v565, 0.5
      %vm598 = vcmp.gt.f32.partialorder %v566, 0.5
      %vm599 = vcmp.gt.f32.partialorder %v567, 0.5
      %vm600 = vcmp.gt.f32.partialorder %v568, 0.5
      %vm601 = vcmp.gt.f32.partialorder %v569, 0.5
      %vm602 = vcmp.gt.f32.partialorder %v570, 0.5
      %vm603 = vcmp.gt.f32.partialorder %v571, 0.5
      %vm604 = vcmp.gt.f32.partialorder %v572, 0.5
      %vm605 = vcmp.gt.f32.partialorder %v573, 0.5
      %vm606 = vcmp.gt.f32.partialorder %v574, 0.5
      %vm607 = vcmp.gt.f32.partialorder %v575, 0.5
      %vm608 = vcmp.gt.f32.partialorder %v576, 0.5
      %vm609 = vcmp.gt.f32.partialorder %v577, 0.5
      %vm610 = vcmp.gt.f32.partialorder %v578, 0.5
      %vm611 = vcmp.gt.f32.partialorder %v579, 0.5
      %vm612 = vcmp.gt.f32.partialorder %v580, 0.5
      %vm613 = vcmp.gt.f32.partialorder %v581, 0.5
      %vm614 = vcmp.gt.f32.partialorder %v582, 0.5
      %v615 = vsel %vm583, 1, 0
      %v616 = vsel %vm584, 1, 0
      %v617 = vsel %vm585, 1, 0
      %v618 = vsel %vm586, 1, 0
      %v619 = vsel %vm587, 1, 0
      %v620 = vsel %vm588, 1, 0
      %v621 = vsel %vm589, 1, 0
      %v622 = vsel %vm590, 1, 0
      %v623 = vsel %vm591, 1, 0
      %v624 = vsel %vm592, 1, 0
      %v625 = vsel %vm593, 1, 0
      %v626 = vsel %vm594, 1, 0
      %v627 = vsel %vm595, 1, 0
      %v628 = vsel %vm596, 1, 0
      %v629 = vsel %vm597, 1, 0
      %v630 = vsel %vm598, 1, 0
      %v631 = vsel %vm599, 1, 0
      %v632 = vsel %vm600, 1, 0
      %v633 = vsel %vm601, 1, 0
      %v634 = vsel %vm602, 1, 0
      %v635 = vsel %vm603, 1, 0
      %v636 = vsel %vm604, 1, 0
      %v637 = vsel %vm605, 1, 0
      %v638 = vsel %vm606, 1, 0
      %v639 = vsel %vm607, 1, 0
      %v640 = vsel %vm608, 1, 0
      %v641 = vsel %vm609, 1, 0
      %v642 = vsel %vm610, 1, 0
      %v643 = vsel %vm611, 1, 0
      %v644 = vsel %vm612, 1, 0
      %v645 = vsel %vm613, 1, 0
      %v646 = vsel %vm614, 1, 0
      %647 = vset.pattern.permute.xlu0 0
      %648 = vperm.xlu0 %647, %v615
      %v649 = vpop.permute.xlu0 %648
      %650 = vset.pattern.permute.xlu0 0
      %651 = vperm.xlu0 %650, %v616
      %v652 = vpop.permute.xlu0 %651
      %653 = vset.pattern.permute.xlu0 0
      %654 = vperm.xlu0 %653, %v617
      %v655 = vpop.permute.xlu0 %654
      %656 = vset.pattern.permute.xlu0 0
      %657 = vperm.xlu0 %656, %v618
      %v658 = vpop.permute.xlu0 %657
      %659 = vset.pattern.permute.xlu0 0
      %660 = vperm.xlu0 %659, %v619
      %v661 = vpop.permute.xlu0 %660
      %662 = vset.pattern.permute.xlu0 0
      %663 = vperm.xlu0 %662, %v620
      %v664 = vpop.permute.xlu0 %663
      %665 = vset.pattern.permute.xlu0 0
      %666 = vperm.xlu0 %665, %v621
      %v667 = vpop.permute.xlu0 %666
      %668 = vset.pattern.permute.xlu0 0
      %669 = vperm.xlu0 %668, %v622
      %v670 = vpop.permute.xlu0 %669
      %671 = vset.pattern.permute.xlu0 0
      %672 = vperm.xlu0 %671, %v623
      %v673 = vpop.permute.xlu0 %672
      %674 = vset.pattern.permute.xlu0 0
      %675 = vperm.xlu0 %674, %v624
      %v676 = vpop.permute.xlu0 %675
      %677 = vset.pattern.permute.xlu0 0
      %678 = vperm.xlu0 %677, %v625
      %v679 = vpop.permute.xlu0 %678
      %680 = vset.pattern.permute.xlu0 0
      %681 = vperm.xlu0 %680, %v626
      %v682 = vpop.permute.xlu0 %681
      %683 = vset.pattern.permute.xlu0 0
      %684 = vperm.xlu0 %683, %v627
      %v685 = vpop.permute.xlu0 %684
      %686 = vset.pattern.permute.xlu0 0
      %687 = vperm.xlu0 %686, %v628
      %v688 = vpop.permute.xlu0 %687
      %689 = vset.pattern.permute.xlu0 0
      %690 = vperm.xlu0 %689, %v629
      %v691 = vpop.permute.xlu0 %690
      %692 = vset.pattern.permute.xlu0 0
      %693 = vperm.xlu0 %692, %v630
      %v694 = vpop.permute.xlu0 %693
      %695 = vset.pattern.permute.xlu0 0
      %696 = vperm.xlu0 %695, %v631
      %v697 = vpop.permute.xlu0 %696
      %698 = vset.pattern.permute.xlu0 0
      %699 = vperm.xlu0 %698, %v632
      %v700 = vpop.permute.xlu0 %699
      %701 = vset.pattern.permute.xlu0 0
      %702 = vperm.xlu0 %701, %v633
      %v703 = vpop.permute.xlu0 %702
      %704 = vset.pattern.permute.xlu0 0
      %705 = vperm.xlu0 %704, %v634
      %v706 = vpop.permute.xlu0 %705
      %707 = vset.pattern.permute.xlu0 0
      %708 = vperm.xlu0 %707, %v635
      %v709 = vpop.permute.xlu0 %708
      %710 = vset.pattern.permute.xlu0 0
      %711 = vperm.xlu0 %710, %v636
      %v712 = vpop.permute.xlu0 %711
      %713 = vset.pattern.permute.xlu0 0
      %714 = vperm.xlu0 %713, %v637
      %v715 = vpop.permute.xlu0 %714
      %716 = vset.pattern.permute.xlu0 0
      %717 = vperm.xlu0 %716, %v638
      %v718 = vpop.permute.xlu0 %717
      %719 = vset.pattern.permute.xlu0 0
      %720 = vperm.xlu0 %719, %v639
      %v721 = vpop.permute.xlu0 %720
      %722 = vset.pattern.permute.xlu0 0
      %723 = vperm.xlu0 %722, %v640
      %v724 = vpop.permute.xlu0 %723
      %725 = vset.pattern.permute.xlu0 0
      %726 = vperm.xlu0 %725, %v641
      %v727 = vpop.permute.xlu0 %726
      %728 = vset.pattern.permute.xlu0 0
      %729 = vperm.xlu0 %728, %v642
      %v730 = vpop.permute.xlu0 %729
      %731 = vset.pattern.permute.xlu0 0
      %732 = vperm.xlu0 %731, %v643
      %v733 = vpop.permute.xlu0 %732
      %734 = vset.pattern.permute.xlu0 0
      %735 = vperm.xlu0 %734, %v644
      %v736 = vpop.permute.xlu0 %735
      %737 = vset.pattern.permute.xlu0 0
      %738 = vperm.xlu0 %737, %v645
      %v739 = vpop.permute.xlu0 %738
      %740 = vset.pattern.permute.xlu0 0
      %741 = vperm.xlu0 %740, %v646
      %v742 = vpop.permute.xlu0 %741
      %vm743 = vcmp.eq.s32.totalorder %v649, 1
      %vm744 = vcmp.eq.s32.totalorder %v652, 1
      %vm745 = vcmp.eq.s32.totalorder %v655, 1
      %vm746 = vcmp.eq.s32.totalorder %v658, 1
      %vm747 = vcmp.eq.s32.totalorder %v661, 1
      %vm748 = vcmp.eq.s32.totalorder %v664, 1
      %vm749 = vcmp.eq.s32.totalorder %v667, 1
      %vm750 = vcmp.eq.s32.totalorder %v670, 1
      %vm751 = vcmp.eq.s32.totalorder %v673, 1
      %vm752 = vcmp.eq.s32.totalorder %v676, 1
      %vm753 = vcmp.eq.s32.totalorder %v679, 1
      %vm754 = vcmp.eq.s32.totalorder %v682, 1
      %vm755 = vcmp.eq.s32.totalorder %v685, 1
      %vm756 = vcmp.eq.s32.totalorder %v688, 1
      %vm757 = vcmp.eq.s32.totalorder %v691, 1
      %vm758 = vcmp.eq.s32.totalorder %v694, 1
      %vm759 = vcmp.eq.s32.totalorder %v697, 1
      %vm760 = vcmp.eq.s32.totalorder %v700, 1
      %vm761 = vcmp.eq.s32.totalorder %v703, 1
      %vm762 = vcmp.eq.s32.totalorder %v706, 1
      %vm763 = vcmp.eq.s32.totalorder %v709, 1
      %vm764 = vcmp.eq.s32.totalorder %v712, 1
      %vm765 = vcmp.eq.s32.totalorder %v715, 1
      %vm766 = vcmp.eq.s32.totalorder %v718, 1
      %vm767 = vcmp.eq.s32.totalorder %v721, 1
      %vm768 = vcmp.eq.s32.totalorder %v724, 1
      %vm769 = vcmp.eq.s32.totalorder %v727, 1
      %vm770 = vcmp.eq.s32.totalorder %v730, 1
      %vm771 = vcmp.eq.s32.totalorder %v733, 1
      %vm772 = vcmp.eq.s32.totalorder %v736, 1
      %vm773 = vcmp.eq.s32.totalorder %v739, 1
      %vm774 = vcmp.eq.s32.totalorder %v742, 1
      %v775 = vsel %vm743, %v518, 0.0
      %v776 = vsel %vm744, %v519, 0.0
      %v777 = vsel %vm745, %v520, 0.0
      %v778 = vsel %vm746, %v521, 0.0
      %v779 = vsel %vm747, %v522, 0.0
      %v780 = vsel %vm748, %v523, 0.0
      %v781 = vsel %vm749, %v524, 0.0
      %v782 = vsel %vm750, %v525, 0.0
      %v783 = vsel %vm751, %v526, 0.0
      %v784 = vsel %vm752, %v527, 0.0
      %v785 = vsel %vm753, %v528, 0.0
      %v786 = vsel %vm754, %v529, 0.0
      %v787 = vsel %vm755, %v530, 0.0
      %v788 = vsel %vm756, %v531, 0.0
      %v789 = vsel %vm757, %v532, 0.0
      %v790 = vsel %vm758, %v533, 0.0
      %v791 = vsel %vm759, %v534, 0.0
      %v792 = vsel %vm760, %v535, 0.0
      %v793 = vsel %vm761, %v536, 0.0
      %v794 = vsel %vm762, %v537, 0.0
      %v795 = vsel %vm763, %v538, 0.0
      %v796 = vsel %vm764, %v539, 0.0
      %v797 = vsel %vm765, %v540, 0.0
      %v798 = vsel %vm766, %v541, 0.0
      %v799 = vsel %vm767, %v542, 0.0
      %v800 = vsel %vm768, %v543, 0.0
      %v801 = vsel %vm769, %v544, 0.0
      %v802 = vsel %vm770, %v545, 0.0
      %v803 = vsel %vm771, %v546, 0.0
      %v804 = vsel %vm772, %v547, 0.0
      %v805 = vsel %vm773, %v548, 0.0
      %v806 = vsel %vm774, %v549, 0.0
      %v807 = vpack.c.bf16 %v776, %v775
      %v808 = vpack.c.bf16 %v778, %v777
      %v809 = vpack.c.bf16 %v780, %v779
      %v810 = vpack.c.bf16 %v782, %v781
      %v811 = vpack.c.bf16 %v784, %v783
      %v812 = vpack.c.bf16 %v786, %v785
      %v813 = vpack.c.bf16 %v788, %v787
      %v814 = vpack.c.bf16 %v790, %v789
      %v815 = vpack.c.bf16 %v792, %v791
      %v816 = vpack.c.bf16 %v794, %v793
      %v817 = vpack.c.bf16 %v796, %v795
      %v818 = vpack.c.bf16 %v798, %v797
      %v819 = vpack.c.bf16 %v800, %v799
      %v820 = vpack.c.bf16 %v802, %v801
      %v821 = vpack.c.bf16 %v804, %v803
      %v822 = vpack.c.bf16 %v806, %v805
      %vm823 = vsmask.f32 7424
      %v825 = vshrl.u32 %v807, 16
      %v827 = vshll.u32 %v807, 16
      %v829 = vrot.slane %v827, 1
      %v830 = vor.u32 %v825, %v829
      %v832 = vshll.u32 %v808, 16
      %v834 = vrot.slane %v832, 1
      %v835 = vsel %vm823, %v830, %v834
      %v836 = vshrl.u32 %v808, 16
      %v838 = vor.u32 %v836, %v834
      %v840 = vshll.u32 %v809, 16
      %v842 = vrot.slane %v840, 1
      %v843 = vsel %vm823, %v838, %v842
      %v844 = vshrl.u32 %v809, 16
      %v846 = vor.u32 %v844, %v842
      %v848 = vshll.u32 %v810, 16
      %v850 = vrot.slane %v848, 1
      %v851 = vsel %vm823, %v846, %v850
      %v852 = vshrl.u32 %v810, 16
      %v854 = vor.u32 %v852, %v850
      %v856 = vshll.u32 %v811, 16
      %v858 = vrot.slane %v856, 1
      %v859 = vsel %vm823, %v854, %v858
      %v860 = vshrl.u32 %v811, 16
      %v862 = vor.u32 %v860, %v858
      %v864 = vshll.u32 %v812, 16
      %v866 = vrot.slane %v864, 1
      %v867 = vsel %vm823, %v862, %v866
      %v868 = vshrl.u32 %v812, 16
      %v870 = vor.u32 %v868, %v866
      %v872 = vshll.u32 %v813, 16
      %v874 = vrot.slane %v872, 1
      %v875 = vsel %vm823, %v870, %v874
      %v876 = vshrl.u32 %v813, 16
      %v878 = vor.u32 %v876, %v874
      %v880 = vshll.u32 %v814, 16
      %v882 = vrot.slane %v880, 1
      %v883 = vsel %vm823, %v878, %v882
      %v884 = vshrl.u32 %v814, 16
      %v886 = vor.u32 %v884, %v882
      %v888 = vshll.u32 %v815, 16
      %v890 = vrot.slane %v888, 1
      %v891 = vsel %vm823, %v886, %v890
      %v892 = vshrl.u32 %v815, 16
      %v894 = vor.u32 %v892, %v890
      %v896 = vshll.u32 %v816, 16
      %v898 = vrot.slane %v896, 1
      %v899 = vsel %vm823, %v894, %v898
      %v900 = vshrl.u32 %v816, 16
      %v902 = vor.u32 %v900, %v898
      %v904 = vshll.u32 %v817, 16
      %v906 = vrot.slane %v904, 1
      %v907 = vsel %vm823, %v902, %v906
      %v908 = vshrl.u32 %v817, 16
      %v910 = vor.u32 %v908, %v906
      %v912 = vshll.u32 %v818, 16
      %v914 = vrot.slane %v912, 1
      %v915 = vsel %vm823, %v910, %v914
      %v916 = vshrl.u32 %v818, 16
      %v918 = vor.u32 %v916, %v914
      %v920 = vshll.u32 %v819, 16
      %v922 = vrot.slane %v920, 1
      %v923 = vsel %vm823, %v918, %v922
      %v924 = vshrl.u32 %v819, 16
      %v926 = vor.u32 %v924, %v922
      %927 = vrot.lane.b32.xlu0 %v835, 64
      %v928 = vpop.permute.xlu0 %927
      %929 = vrot.lane.b32.xlu0 %v843, 64
      %v930 = vpop.permute.xlu0 %929
      %931 = vrot.lane.b32.xlu0 %v851, 64
      %v932 = vpop.permute.xlu0 %931
      %933 = vrot.lane.b32.xlu0 %v859, 64
      %v934 = vpop.permute.xlu0 %933
      %935 = vrot.lane.b32.xlu0 %v867, 64
      %v936 = vpop.permute.xlu0 %935
      %937 = vrot.lane.b32.xlu0 %v875, 64
      %v938 = vpop.permute.xlu0 %937
      %939 = vrot.lane.b32.xlu0 %v883, 64
      %v940 = vpop.permute.xlu0 %939
      %941 = vrot.lane.b32.xlu0 %v891, 64
      %v942 = vpop.permute.xlu0 %941
      %943 = vrot.lane.b32.xlu0 %v899, 64
      %v944 = vpop.permute.xlu0 %943
      %945 = vrot.lane.b32.xlu0 %v907, 64
      %v946 = vpop.permute.xlu0 %945
      %947 = vrot.lane.b32.xlu0 %v915, 64
      %v948 = vpop.permute.xlu0 %947
      %949 = vrot.lane.b32.xlu0 %v923, 64
      %v950 = vpop.permute.xlu0 %949
      %951 = vrot.lane.b32.xlu0 %v926, 64
      %v952 = vpop.permute.xlu0 %951
      %vm966 = vcmask 1046528
      %v967 = vrot.slane %v807, 1
      %v968 = vrot.slane %v808, 1
      %v969 = vsel %vm966, %v967, %v968
      %v970 = vrot.slane %v809, 1
      %v971 = vsel %vm966, %v968, %v970
      %v972 = vrot.slane %v810, 1
      %v973 = vsel %vm966, %v970, %v972
      %v974 = vrot.slane %v811, 1
      %v975 = vsel %vm966, %v972, %v974
      %v976 = vrot.slane %v812, 1
      %v977 = vsel %vm966, %v974, %v976
      %v978 = vrot.slane %v813, 1
      %v979 = vsel %vm966, %v976, %v978
      %v980 = vrot.slane %v814, 1
      %v981 = vsel %vm966, %v978, %v980
      %v982 = vrot.slane %v815, 1
      %v983 = vsel %vm966, %v980, %v982
      %v984 = vrot.slane %v816, 1
      %v985 = vsel %vm966, %v982, %v984
      %v986 = vrot.slane %v817, 1
      %v987 = vsel %vm966, %v984, %v986
      %v988 = vrot.slane %v818, 1
      %v989 = vsel %vm966, %v986, %v988
      %v990 = vrot.slane %v819, 1
      %v991 = vsel %vm966, %v988, %v990
      %vm993 = vcmask 1043456
      %v994 = vrot.slane %v808, 4
      %v995 = vrot.slane %v809, 4
      %v996 = vsel %vm993, %v994, %v995
      %v997 = vrot.slane %v810, 4
      %v998 = vsel %vm993, %v995, %v997
      %v999 = vrot.slane %v811, 4
      %v1000 = vsel %vm993, %v997, %v999
      %v1001 = vrot.slane %v812, 4
      %v1002 = vsel %vm993, %v999, %v1001
      %v1003 = vrot.slane %v813, 4
      %v1004 = vsel %vm993, %v1001, %v1003
      %v1005 = vrot.slane %v814, 4
      %v1006 = vsel %vm993, %v1003, %v1005
      %v1007 = vrot.slane %v815, 4
      %v1008 = vsel %vm993, %v1005, %v1007
      %v1009 = vrot.slane %v816, 4
      %v1010 = vsel %vm993, %v1007, %v1009
      %v1011 = vrot.slane %v817, 4
      %v1012 = vsel %vm993, %v1009, %v1011
      %v1013 = vrot.slane %v818, 4
      %v1014 = vsel %vm993, %v1011, %v1013
      %v1015 = vrot.slane %v819, 4
      %v1016 = vsel %vm993, %v1013, %v1015
      %v1017 = vrot.slane %v820, 4
      %v1018 = vsel %vm993, %v1015, %v1017
      %1019 = vrot.lane.b32.xlu0 %v996, 64
      %v1020 = vpop.permute.xlu0 %1019
      %1021 = vrot.lane.b32.xlu0 %v998, 64
      %v1022 = vpop.permute.xlu0 %1021
      %1023 = vrot.lane.b32.xlu0 %v1000, 64
      %v1024 = vpop.permute.xlu0 %1023
      %1025 = vrot.lane.b32.xlu0 %v1002, 64
      %v1026 = vpop.permute.xlu0 %1025
      %1027 = vrot.lane.b32.xlu0 %v1004, 64
      %v1028 = vpop.permute.xlu0 %1027
      %1029 = vrot.lane.b32.xlu0 %v1006, 64
      %v1030 = vpop.permute.xlu0 %1029
      %1031 = vrot.lane.b32.xlu0 %v1008, 64
      %v1032 = vpop.permute.xlu0 %1031
      %1033 = vrot.lane.b32.xlu0 %v1010, 64
      %v1034 = vpop.permute.xlu0 %1033
      %1035 = vrot.lane.b32.xlu0 %v1012, 64
      %v1036 = vpop.permute.xlu0 %1035
      %1037 = vrot.lane.b32.xlu0 %v1014, 64
      %v1038 = vpop.permute.xlu0 %1037
      %1039 = vrot.lane.b32.xlu0 %v1016, 64
      %v1040 = vpop.permute.xlu0 %1039
      %1041 = vrot.lane.b32.xlu0 %v1018, 64
      %v1042 = vpop.permute.xlu0 %1041
      %1043 = vrot.lane.b32.xlu0 %v1017, 64
      %v1044 = vpop.permute.xlu0 %1043
      %vm1045 = vsmask.f32 3328
      %v1046 = vrot.slane %v844, 4
      %v1047 = vrot.slane %v840, 5
      %v1048 = vor.u32 %v1046, %v1047
      %v1049 = vrot.slane %v852, 4
      %v1050 = vrot.slane %v848, 5
      %v1051 = vor.u32 %v1049, %v1050
      %v1052 = vsel %vm1045, %v1048, %v1051
      %v1053 = vrot.slane %v860, 4
      %v1054 = vrot.slane %v856, 5
      %v1055 = vor.u32 %v1053, %v1054
      %v1056 = vsel %vm1045, %v1051, %v1055
      %v1057 = vrot.slane %v868, 4
      %v1058 = vrot.slane %v864, 5
      %v1059 = vor.u32 %v1057, %v1058
      %v1060 = vsel %vm1045, %v1055, %v1059
      %v1061 = vrot.slane %v876, 4
      %v1062 = vrot.slane %v872, 5
      %v1063 = vor.u32 %v1061, %v1062
      %v1064 = vsel %vm1045, %v1059, %v1063
      %v1065 = vrot.slane %v884, 4
      %v1066 = vrot.slane %v880, 5
      %v1067 = vor.u32 %v1065, %v1066
      %v1068 = vsel %vm1045, %v1063, %v1067
      %v1069 = vrot.slane %v892, 4
      %v1070 = vrot.slane %v888, 5
      %v1071 = vor.u32 %v1069, %v1070
      %v1072 = vsel %vm1045, %v1067, %v1071
      %v1073 = vrot.slane %v900, 4
      %v1074 = vrot.slane %v896, 5
      %v1075 = vor.u32 %v1073, %v1074
      %v1076 = vsel %vm1045, %v1071, %v1075
      %v1077 = vrot.slane %v908, 4
      %v1078 = vrot.slane %v904, 5
      %v1079 = vor.u32 %v1077, %v1078
      %v1080 = vsel %vm1045, %v1075, %v1079
      %v1081 = vrot.slane %v916, 4
      %v1082 = vrot.slane %v912, 5
      %v1083 = vor.u32 %v1081, %v1082
      %v1084 = vsel %vm1045, %v1079, %v1083
      %v1085 = vrot.slane %v924, 4
      %v1086 = vrot.slane %v920, 5
      %v1087 = vor.u32 %v1085, %v1086
      %v1088 = vsel %vm1045, %v1083, %v1087
      %v1090 = vshrl.u32 %v820, 16
      %v1092 = vrot.slane %v1090, 4
      %v1093 = vshll.u32 %v820, 16
      %v1095 = vrot.slane %v1093, 5
      %v1096 = vor.u32 %v1092, %v1095
      %v1097 = vsel %vm1045, %v1087, %v1096
      %vm1099 = vcmask 1042432
      %v1100 = vrot.slane %v809, 5
      %v1101 = vrot.slane %v810, 5
      %v1102 = vsel %vm1099, %v1100, %v1101
      %v1103 = vrot.slane %v811, 5
      %v1104 = vsel %vm1099, %v1101, %v1103
      %v1105 = vrot.slane %v812, 5
      %v1106 = vsel %vm1099, %v1103, %v1105
      %v1107 = vrot.slane %v813, 5
      %v1108 = vsel %vm1099, %v1105, %v1107
      %v1109 = vrot.slane %v814, 5
      %v1110 = vsel %vm1099, %v1107, %v1109
      %v1111 = vrot.slane %v815, 5
      %v1112 = vsel %vm1099, %v1109, %v1111
      %v1113 = vrot.slane %v816, 5
      %v1114 = vsel %vm1099, %v1111, %v1113
      %v1115 = vrot.slane %v817, 5
      %v1116 = vsel %vm1099, %v1113, %v1115
      %v1117 = vrot.slane %v818, 5
      %v1118 = vsel %vm1099, %v1115, %v1117
      %v1119 = vrot.slane %v819, 5
      %v1120 = vsel %vm1099, %v1117, %v1119
      %v1121 = vrot.slane %v820, 5
      %v1122 = vsel %vm1099, %v1119, %v1121
      %v1123 = vrot.slane %v821, 5
      %v1124 = vsel %vm1099, %v1121, %v1123
      %1125 = vrot.lane.b32.xlu0 %v1100, 64
      %v1126 = vpop.permute.xlu0 %1125
      %1127 = vrot.lane.b32.xlu0 %v1102, 64
      %v1128 = vpop.permute.xlu0 %1127
      %1129 = vrot.lane.b32.xlu0 %v1104, 64
      %v1130 = vpop.permute.xlu0 %1129
      %1131 = vrot.lane.b32.xlu0 %v1106, 64
      %v1132 = vpop.permute.xlu0 %1131
      %1133 = vrot.lane.b32.xlu0 %v1108, 64
      %v1134 = vpop.permute.xlu0 %1133
      %1135 = vrot.lane.b32.xlu0 %v1110, 64
      %v1136 = vpop.permute.xlu0 %1135
      %1137 = vrot.lane.b32.xlu0 %v1112, 64
      %v1138 = vpop.permute.xlu0 %1137
      %1139 = vrot.lane.b32.xlu0 %v1114, 64
      %v1140 = vpop.permute.xlu0 %1139
      %1141 = vrot.lane.b32.xlu0 %v1116, 64
      %v1142 = vpop.permute.xlu0 %1141
      %1143 = vrot.lane.b32.xlu0 %v1118, 64
      %v1144 = vpop.permute.xlu0 %1143
      %1145 = vrot.lane.b32.xlu0 %v1120, 64
      %v1146 = vpop.permute.xlu0 %1145
      %1147 = vrot.lane.b32.xlu0 %v1122, 64
      %v1148 = vpop.permute.xlu0 %1147
      %1149 = vrot.lane.b32.xlu0 %v1124, 64
      %v1150 = vpop.permute.xlu0 %1149
      %v1151 = vrot.slane %v1093, 1
      %v1152 = vsel %vm823, %v926, %v1151
      %v1153 = vor.u32 %v1090, %v1151
      %v1155 = vshll.u32 %v821, 16
      %v1157 = vrot.slane %v1155, 1
      %v1158 = vsel %vm823, %v1153, %v1157
      %v1159 = vshrl.u32 %v821, 16
      %v1161 = vor.u32 %v1159, %v1157
      %v1163 = vshll.u32 %v822, 16
      %v1165 = vrot.slane %v1163, 1
      %v1166 = vsel %vm823, %v1161, %v1165
      %v1167 = vshrl.u32 %v822, 16
      %v1169 = vor.u32 %v1167, %v1165
      %1170 = vrot.lane.b32.xlu0 %v1152, 64
      %v1171 = vpop.permute.xlu0 %1170
      %1172 = vrot.lane.b32.xlu0 %v1158, 64
      %v1173 = vpop.permute.xlu0 %1172
      %1174 = vrot.lane.b32.xlu0 %v1166, 64
      %v1175 = vpop.permute.xlu0 %1174
      %1176 = vrot.lane.b32.xlu0 %v1169, 64
      %v1177 = vpop.permute.xlu0 %1176
      %v1179 = vrot.slane %v820, 1
      %v1180 = vsel %vm966, %v990, %v1179
      %v1181 = vrot.slane %v821, 1
      %v1182 = vsel %vm966, %v1179, %v1181
      %v1183 = vrot.slane %v822, 1
      %v1184 = vsel %vm966, %v1181, %v1183
      %vm1185 = vcmask 523264
      %v1187 = vsel %vm1185, %v807, %v928
      %v1189 = vsel %vm1185, %v808, %v930
      %v1191 = vsel %vm1185, %v809, %v932
      %v1193 = vsel %vm1185, %v810, %v934
      %v1195 = vsel %vm1185, %v811, %v936
      %v1197 = vsel %vm1185, %v812, %v938
      %v1199 = vsel %vm1185, %v813, %v940
      %v1201 = vsel %vm1185, %v814, %v942
      %v1203 = vsel %vm1185, %v815, %v944
      %v1205 = vsel %vm1185, %v816, %v946
      %v1207 = vsel %vm1185, %v817, %v948
      %v1209 = vsel %vm1185, %v818, %v950
      %v1211 = vsel %vm1185, %v819, %v952
      %v1214 = vsel %vm1185, %v969, %v1020
      %v1217 = vsel %vm1185, %v971, %v1022
      %v1220 = vsel %vm1185, %v973, %v1024
      %v1223 = vsel %vm1185, %v975, %v1026
      %v1226 = vsel %vm1185, %v977, %v1028
      %v1229 = vsel %vm1185, %v979, %v1030
      %v1232 = vsel %vm1185, %v981, %v1032
      %v1235 = vsel %vm1185, %v983, %v1034
      %v1238 = vsel %vm1185, %v985, %v1036
      %v1241 = vsel %vm1185, %v987, %v1038
      %v1244 = vsel %vm1185, %v989, %v1040
      %v1247 = vsel %vm1185, %v991, %v1042
      %v1250 = vsel %vm1185, %v990, %v1044
      %v1253 = vsel %vm1185, %v1048, %v1126
      %v1256 = vsel %vm1185, %v1052, %v1128
      %v1259 = vsel %vm1185, %v1056, %v1130
      %v1262 = vsel %vm1185, %v1060, %v1132
      %v1265 = vsel %vm1185, %v1064, %v1134
      %v1268 = vsel %vm1185, %v1068, %v1136
      %v1271 = vsel %vm1185, %v1072, %v1138
      %v1274 = vsel %vm1185, %v1076, %v1140
      %v1277 = vsel %vm1185, %v1080, %v1142
      %v1280 = vsel %vm1185, %v1084, %v1144
      %v1283 = vsel %vm1185, %v1088, %v1146
      %v1286 = vsel %vm1185, %v1097, %v1148
      %v1289 = vsel %vm1185, %v1096, %v1150
      %v1291 = vsel %vm1185, %v819, %v1171
      %v1293 = vsel %vm1185, %v820, %v1173
      %v1295 = vsel %vm1185, %v821, %v1175
      %v1297 = vsel %vm1185, %v822, %v1177
      %v1298 = vld [vmem:[%s5] sm:$0xf]
      %v1299 = vld [vmem:[%s5 + $0x4] sm:$0xf]
      %v1300 = vld [vmem:[%s5 + $0x8] sm:$0xf]
      %v1301 = vld [vmem:[%s5 + $0xc] sm:$0xf]
      %v1302 = vld [vmem:[%s5 + $0x10] sm:$0xf]
      %v1303 = vld [vmem:[%s5 + $0x14] sm:$0xf]
      %v1304 = vld [vmem:[%s5 + $0x18] sm:$0xf]
      %v1305 = vld [vmem:[%s5 + $0x1c] sm:$0xf]
      %v1306 = vld [vmem:[%s5 + $0x20] sm:$0xf]
      %v1307 = vld [vmem:[%s5 + $0x24] sm:$0xf]
      %v1308 = vld [vmem:[%s5 + $0x28] sm:$0xf]
      %v1309 = vld [vmem:[%s5 + $0x2c] sm:$0xf]
      %v1310 = vld [vmem:[%s5 + $0x30] sm:$0xf]
      %v1311 = vld [vmem:[%s5 + $0x34] sm:$0xf]
      %v1312 = vld [vmem:[%s5 + $0x38] sm:$0xf]
      %v1313 = vld [vmem:[%s5 + $0x3c] sm:$0xf]
      %v1314 = vld [vmem:[%s5 + $0x40] sm:$0xf]
      %v1315 = vld [vmem:[%s5 + $0x44] sm:$0xf]
      %v1316 = vld [vmem:[%s5 + $0x48] sm:$0xf]
      %v1317 = vld [vmem:[%s5 + $0x4c] sm:$0xf]
      %v1318 = vld [vmem:[%s5 + $0x50] sm:$0xf]
      %v1319 = vld [vmem:[%s5 + $0x54] sm:$0xf]
      %v1320 = vld [vmem:[%s5 + $0x58] sm:$0xf]
      %v1321 = vld [vmem:[%s5 + $0x5c] sm:$0xf]
      %v1322 = vld [vmem:[%s5 + $0x60] sm:$0xf]
      %v1323 = vld [vmem:[%s5 + $0x64] sm:$0xf]
      %v1324 = vld [vmem:[%s5 + $0x68] sm:$0xf]
      %v1325 = vld [vmem:[%s5 + $0x6c] sm:$0xf]
      %v1326 = vld [vmem:[%s5 + $0x70] sm:$0xf]
      %v1327 = vld [vmem:[%s5 + $0x74] sm:$0xf]
      %v1328 = vld [vmem:[%s5 + $0x78] sm:$0xf]
      %v1329 = vld [vmem:[%s5 + $0x7c] sm:$0xf]
      %v1330 = vld [vmem:[%s5 + $0x80] sm:$0xf]
      %v1331 = vld [vmem:[%s5 + $0x84] sm:$0xf]
      %v1332 = vld [vmem:[%s5 + $0x88] sm:$0xf]
      %v1333 = vld [vmem:[%s5 + $0x8c] sm:$0xf]
      %v1334 = vld [vmem:[%s5 + $0x90] sm:$0xf]
      %v1335 = vld [vmem:[%s5 + $0x94] sm:$0xf]
      %v1336 = vld [vmem:[%s5 + $0x98] sm:$0xf]
      %v1337 = vld [vmem:[%s5 + $0x9c] sm:$0xf]
      %v1338 = vld [vmem:[%s5 + $0xa0] sm:$0xf]
      %v1339 = vld [vmem:[%s5 + $0xa4] sm:$0xf]
      %v1340 = vld [vmem:[%s5 + $0xa8] sm:$0xf]
      %v1341 = vld [vmem:[%s5 + $0xac] sm:$0xf]
      %v1342 = vld [vmem:[%s5 + $0xb0] sm:$0xf]
      %v1343 = vld [vmem:[%s5 + $0xb4] sm:$0xf]
      %v1344 = vld [vmem:[%s5 + $0xb8] sm:$0xf]
      %v1345 = vld [vmem:[%s5 + $0xbc] sm:$0xf]
      %v1346 = vld [vmem:[%s5 + $0xc0] sm:$0xf]
      %v1347 = vld [vmem:[%s5 + $0xc4] sm:$0xf]
      %v1348 = vld [vmem:[%s5 + $0xc8] sm:$0xf]
      %v1349 = vld [vmem:[%s5 + $0xcc] sm:$0xf]
      %v1350 = vld [vmem:[%s5 + $0xd0] sm:$0xf]
      %v1351 = vld [vmem:[%s5 + $0xd4] sm:$0xf]
      %v1352 = vld [vmem:[%s5 + $0xd8] sm:$0xf]
      %v1353 = vld [vmem:[%s5 + $0xdc] sm:$0xf]
      %v1354 = vld [vmem:[%s5 + $0xe0] sm:$0xf]
      %v1355 = vld [vmem:[%s5 + $0xe4] sm:$0xf]
      %v1356 = vld [vmem:[%s5 + $0xe8] sm:$0xf]
      %v1357 = vld [vmem:[%s5 + $0xec] sm:$0xf]
      %v1358 = vld [vmem:[%s5 + $0xf0] sm:$0xf]
      %v1359 = vld [vmem:[%s5 + $0xf4] sm:$0xf]
      %v1360 = vld [vmem:[%s5 + $0xf8] sm:$0xf]
      %v1361 = vld [vmem:[%s5 + $0xfc] sm:$0xf]
      %v1362 = vld [vmem:[%s5 + $0x100] sm:$0xf]
      %v1363 = vld [vmem:[%s5 + $0x104] sm:$0xf]
      %v1364 = vld [vmem:[%s5 + $0x108] sm:$0xf]
      %v1365 = vld [vmem:[%s5 + $0x10c] sm:$0xf]
      %v1366 = vld [vmem:[%s5 + $0x110] sm:$0xf]
      %v1367 = vld [vmem:[%s5 + $0x114] sm:$0xf]
      %v1368 = vld [vmem:[%s5 + $0x118] sm:$0xf]
      %v1369 = vld [vmem:[%s5 + $0x11c] sm:$0xf]
      %vm1370 = vsmask.f32 4352
      %v1371 = vshrl.u32 %v1187, 16
      %v1373 = vrot.slane %v1371, 3
      %v1374 = vshll.u32 %v1187, 16
      %v1376 = vrot.slane %v1374, 4
      %v1377 = vor.u32 %v1373, %v1376
      %v1378 = vshrl.u32 %v1189, 16
      %v1380 = vrot.slane %v1378, 3
      %v1381 = vshll.u32 %v1189, 16
      %v1383 = vrot.slane %v1381, 4
      %v1384 = vor.u32 %v1380, %v1383
      %v1385 = vsel %vm1370, %v1377, %v1384
      %v1386 = vshrl.u32 %v1214, 16
      %v1388 = vrot.slane %v1386, 3
      %v1389 = vshll.u32 %v1214, 16
      %v1391 = vrot.slane %v1389, 4
      %v1392 = vor.u32 %v1388, %v1391
      %v1393 = vshrl.u32 %v1217, 16
      %v1395 = vrot.slane %v1393, 3
      %v1396 = vshll.u32 %v1217, 16
      %v1398 = vrot.slane %v1396, 4
      %v1399 = vor.u32 %v1395, %v1398
      %v1400 = vsel %vm1370, %v1392, %v1399
      %v1401 = vshrl.u32 %v1253, 16
      %v1403 = vrot.slane %v1401, 3
      %v1404 = vshll.u32 %v1253, 16
      %v1406 = vrot.slane %v1404, 4
      %v1407 = vor.u32 %v1403, %v1406
      %v1408 = vshrl.u32 %v1256, 16
      %v1410 = vrot.slane %v1408, 3
      %v1411 = vshll.u32 %v1256, 16
      %v1413 = vrot.slane %v1411, 4
      %v1414 = vor.u32 %v1410, %v1413
      %v1415 = vsel %vm1370, %v1407, %v1414
      %v1416 = vshrl.u32 %v1193, 16
      %v1418 = vrot.slane %v1416, 3
      %v1419 = vshll.u32 %v1193, 16
      %v1421 = vrot.slane %v1419, 4
      %v1422 = vor.u32 %v1418, %v1421
      %v1423 = vshrl.u32 %v1195, 16
      %v1425 = vrot.slane %v1423, 3
      %v1426 = vshll.u32 %v1195, 16
      %v1428 = vrot.slane %v1426, 4
      %v1429 = vor.u32 %v1425, %v1428
      %v1430 = vsel %vm1370, %v1422, %v1429
      %v1431 = vshrl.u32 %v975, 16
      %v1433 = vrot.slane %v1431, 3
      %v1434 = vshll.u32 %v975, 16
      %v1436 = vrot.slane %v1434, 4
      %v1437 = vor.u32 %v1433, %v1436
      %v1438 = vshrl.u32 %v977, 16
      %v1440 = vrot.slane %v1438, 3
      %v1441 = vshll.u32 %v977, 16
      %v1443 = vrot.slane %v1441, 4
      %v1444 = vor.u32 %v1440, %v1443
      %v1445 = vsel %vm1370, %v1437, %v1444
      %v1446 = vshrl.u32 %v1191, 16
      %v1448 = vrot.slane %v1446, 3
      %v1449 = vshll.u32 %v1191, 16
      %v1451 = vrot.slane %v1449, 4
      %v1452 = vor.u32 %v1448, %v1451
      %v1453 = vsel %vm1370, %v1384, %v1452
      %v1454 = vshrl.u32 %v1220, 16
      %v1456 = vrot.slane %v1454, 3
      %v1457 = vshll.u32 %v1220, 16
      %v1459 = vrot.slane %v1457, 4
      %v1460 = vor.u32 %v1456, %v1459
      %v1461 = vsel %vm1370, %v1399, %v1460
      %v1462 = vshrl.u32 %v1259, 16
      %v1464 = vrot.slane %v1462, 3
      %v1465 = vshll.u32 %v1259, 16
      %v1467 = vrot.slane %v1465, 4
      %v1468 = vor.u32 %v1464, %v1467
      %v1469 = vsel %vm1370, %v1414, %v1468
      %v1470 = vshrl.u32 %v1197, 16
      %v1472 = vrot.slane %v1470, 3
      %v1473 = vshll.u32 %v1197, 16
      %v1475 = vrot.slane %v1473, 4
      %v1476 = vor.u32 %v1472, %v1475
      %v1477 = vsel %vm1370, %v1429, %v1476
      %v1478 = vshrl.u32 %v979, 16
      %v1480 = vrot.slane %v1478, 3
      %v1481 = vshll.u32 %v979, 16
      %v1483 = vrot.slane %v1481, 4
      %v1484 = vor.u32 %v1480, %v1483
      %v1485 = vsel %vm1370, %v1444, %v1484
      %v1486 = vsel %vm1370, %v1452, %v1422
      %v1487 = vshrl.u32 %v1223, 16
      %v1489 = vrot.slane %v1487, 3
      %v1490 = vshll.u32 %v1223, 16
      %v1492 = vrot.slane %v1490, 4
      %v1493 = vor.u32 %v1489, %v1492
      %v1494 = vsel %vm1370, %v1460, %v1493
      %v1495 = vshrl.u32 %v1262, 16
      %v1497 = vrot.slane %v1495, 3
      %v1498 = vshll.u32 %v1262, 16
      %v1500 = vrot.slane %v1498, 4
      %v1501 = vor.u32 %v1497, %v1500
      %v1502 = vsel %vm1370, %v1468, %v1501
      %v1503 = vshrl.u32 %v1199, 16
      %v1505 = vrot.slane %v1503, 3
      %v1506 = vshll.u32 %v1199, 16
      %v1508 = vrot.slane %v1506, 4
      %v1509 = vor.u32 %v1505, %v1508
      %v1510 = vsel %vm1370, %v1476, %v1509
      %v1511 = vshrl.u32 %v981, 16
      %v1513 = vrot.slane %v1511, 3
      %v1514 = vshll.u32 %v981, 16
      %v1516 = vrot.slane %v1514, 4
      %v1517 = vor.u32 %v1513, %v1516
      %v1518 = vsel %vm1370, %v1484, %v1517
      %v1519 = vshrl.u32 %v1226, 16
      %v1521 = vrot.slane %v1519, 3
      %v1522 = vshll.u32 %v1226, 16
      %v1524 = vrot.slane %v1522, 4
      %v1525 = vor.u32 %v1521, %v1524
      %v1526 = vsel %vm1370, %v1493, %v1525
      %v1527 = vshrl.u32 %v1265, 16
      %v1529 = vrot.slane %v1527, 3
      %v1530 = vshll.u32 %v1265, 16
      %v1532 = vrot.slane %v1530, 4
      %v1533 = vor.u32 %v1529, %v1532
      %v1534 = vsel %vm1370, %v1501, %v1533
      %v1535 = vshrl.u32 %v1201, 16
      %v1537 = vrot.slane %v1535, 3
      %v1538 = vshll.u32 %v1201, 16
      %v1540 = vrot.slane %v1538, 4
      %v1541 = vor.u32 %v1537, %v1540
      %v1542 = vsel %vm1370, %v1509, %v1541
      %v1543 = vshrl.u32 %v983, 16
      %v1545 = vrot.slane %v1543, 3
      %v1546 = vshll.u32 %v983, 16
      %v1548 = vrot.slane %v1546, 4
      %v1549 = vor.u32 %v1545, %v1548
      %v1550 = vsel %vm1370, %v1517, %v1549
      %v1551 = vshrl.u32 %v1229, 16
      %v1553 = vrot.slane %v1551, 3
      %v1554 = vshll.u32 %v1229, 16
      %v1556 = vrot.slane %v1554, 4
      %v1557 = vor.u32 %v1553, %v1556
      %v1558 = vsel %vm1370, %v1525, %v1557
      %v1559 = vshrl.u32 %v1268, 16
      %v1561 = vrot.slane %v1559, 3
      %v1562 = vshll.u32 %v1268, 16
      %v1564 = vrot.slane %v1562, 4
      %v1565 = vor.u32 %v1561, %v1564
      %v1566 = vsel %vm1370, %v1533, %v1565
      %v1567 = vshrl.u32 %v1203, 16
      %v1569 = vrot.slane %v1567, 3
      %v1570 = vshll.u32 %v1203, 16
      %v1572 = vrot.slane %v1570, 4
      %v1573 = vor.u32 %v1569, %v1572
      %v1574 = vsel %vm1370, %v1541, %v1573
      %v1575 = vshrl.u32 %v985, 16
      %v1577 = vrot.slane %v1575, 3
      %v1578 = vshll.u32 %v985, 16
      %v1580 = vrot.slane %v1578, 4
      %v1581 = vor.u32 %v1577, %v1580
      %v1582 = vsel %vm1370, %v1549, %v1581
      %v1583 = vshrl.u32 %v1232, 16
      %v1585 = vrot.slane %v1583, 3
      %v1586 = vshll.u32 %v1232, 16
      %v1588 = vrot.slane %v1586, 4
      %v1589 = vor.u32 %v1585, %v1588
      %v1590 = vsel %vm1370, %v1557, %v1589
      %v1591 = vshrl.u32 %v1271, 16
      %v1593 = vrot.slane %v1591, 3
      %v1594 = vshll.u32 %v1271, 16
      %v1596 = vrot.slane %v1594, 4
      %v1597 = vor.u32 %v1593, %v1596
      %v1598 = vsel %vm1370, %v1565, %v1597
      %v1599 = vshrl.u32 %v1205, 16
      %v1601 = vrot.slane %v1599, 3
      %v1602 = vshll.u32 %v1205, 16
      %v1604 = vrot.slane %v1602, 4
      %v1605 = vor.u32 %v1601, %v1604
      %v1606 = vsel %vm1370, %v1573, %v1605
      %v1607 = vshrl.u32 %v987, 16
      %v1609 = vrot.slane %v1607, 3
      %v1610 = vshll.u32 %v987, 16
      %v1612 = vrot.slane %v1610, 4
      %v1613 = vor.u32 %v1609, %v1612
      %v1614 = vsel %vm1370, %v1581, %v1613
      %v1615 = vshrl.u32 %v1235, 16
      %v1617 = vrot.slane %v1615, 3
      %v1618 = vshll.u32 %v1235, 16
      %v1620 = vrot.slane %v1618, 4
      %v1621 = vor.u32 %v1617, %v1620
      %v1622 = vsel %vm1370, %v1589, %v1621
      %v1623 = vshrl.u32 %v1274, 16
      %v1625 = vrot.slane %v1623, 3
      %v1626 = vshll.u32 %v1274, 16
      %v1628 = vrot.slane %v1626, 4
      %v1629 = vor.u32 %v1625, %v1628
      %v1630 = vsel %vm1370, %v1597, %v1629
      %v1631 = vshrl.u32 %v1207, 16
      %v1633 = vrot.slane %v1631, 3
      %v1634 = vshll.u32 %v1207, 16
      %v1636 = vrot.slane %v1634, 4
      %v1637 = vor.u32 %v1633, %v1636
      %v1638 = vsel %vm1370, %v1605, %v1637
      %v1639 = vshrl.u32 %v989, 16
      %v1641 = vrot.slane %v1639, 3
      %v1642 = vshll.u32 %v989, 16
      %v1644 = vrot.slane %v1642, 4
      %v1645 = vor.u32 %v1641, %v1644
      %v1646 = vsel %vm1370, %v1613, %v1645
      %v1647 = vshrl.u32 %v1238, 16
      %v1649 = vrot.slane %v1647, 3
      %v1650 = vshll.u32 %v1238, 16
      %v1652 = vrot.slane %v1650, 4
      %v1653 = vor.u32 %v1649, %v1652
      %v1654 = vsel %vm1370, %v1621, %v1653
      %v1655 = vshrl.u32 %v1277, 16
      %v1657 = vrot.slane %v1655, 3
      %v1658 = vshll.u32 %v1277, 16
      %v1660 = vrot.slane %v1658, 4
      %v1661 = vor.u32 %v1657, %v1660
      %v1662 = vsel %vm1370, %v1629, %v1661
      %v1663 = vshrl.u32 %v1209, 16
      %v1665 = vrot.slane %v1663, 3
      %v1666 = vshll.u32 %v1209, 16
      %v1668 = vrot.slane %v1666, 4
      %v1669 = vor.u32 %v1665, %v1668
      %v1670 = vsel %vm1370, %v1637, %v1669
      %v1671 = vshrl.u32 %v991, 16
      %v1673 = vrot.slane %v1671, 3
      %v1674 = vshll.u32 %v991, 16
      %v1676 = vrot.slane %v1674, 4
      %v1677 = vor.u32 %v1673, %v1676
      %v1678 = vsel %vm1370, %v1645, %v1677
      %v1679 = vshrl.u32 %v1241, 16
      %v1681 = vrot.slane %v1679, 3
      %v1682 = vshll.u32 %v1241, 16
      %v1684 = vrot.slane %v1682, 4
      %v1685 = vor.u32 %v1681, %v1684
      %v1686 = vsel %vm1370, %v1653, %v1685
      %v1687 = vshrl.u32 %v1280, 16
      %v1689 = vrot.slane %v1687, 3
      %v1690 = vshll.u32 %v1280, 16
      %v1692 = vrot.slane %v1690, 4
      %v1693 = vor.u32 %v1689, %v1692
      %v1694 = vsel %vm1370, %v1661, %v1693
      %v1695 = vshrl.u32 %v1291, 16
      %v1697 = vrot.slane %v1695, 3
      %v1698 = vshll.u32 %v1291, 16
      %v1700 = vrot.slane %v1698, 4
      %v1701 = vor.u32 %v1697, %v1700
      %v1702 = vsel %vm1370, %v1669, %v1701
      %v1704 = vshrl.u32 %v1180, 16
      %v1706 = vrot.slane %v1704, 3
      %v1707 = vshll.u32 %v1180, 16
      %v1709 = vrot.slane %v1707, 4
      %v1710 = vor.u32 %v1706, %v1709
      %v1711 = vsel %vm1370, %v1677, %v1710
      %v1712 = vshrl.u32 %v1244, 16
      %v1714 = vrot.slane %v1712, 3
      %v1715 = vshll.u32 %v1244, 16
      %v1717 = vrot.slane %v1715, 4
      %v1718 = vor.u32 %v1714, %v1717
      %v1719 = vsel %vm1370, %v1685, %v1718
      %v1720 = vshrl.u32 %v1283, 16
      %v1722 = vrot.slane %v1720, 3
      %v1723 = vshll.u32 %v1283, 16
      %v1725 = vrot.slane %v1723, 4
      %v1726 = vor.u32 %v1722, %v1725
      %v1727 = vsel %vm1370, %v1693, %v1726
      %v1728 = vshrl.u32 %v1293, 16
      %v1730 = vrot.slane %v1728, 3
      %v1731 = vshll.u32 %v1293, 16
      %v1733 = vrot.slane %v1731, 4
      %v1734 = vor.u32 %v1730, %v1733
      %v1735 = vsel %vm1370, %v1701, %v1734
      %v1737 = vshrl.u32 %v1182, 16
      %v1739 = vrot.slane %v1737, 3
      %v1740 = vshll.u32 %v1182, 16
      %v1742 = vrot.slane %v1740, 4
      %v1743 = vor.u32 %v1739, %v1742
      %v1744 = vsel %vm1370, %v1710, %v1743
      %v1745 = vshrl.u32 %v1247, 16
      %v1747 = vrot.slane %v1745, 3
      %v1748 = vshll.u32 %v1247, 16
      %v1750 = vrot.slane %v1748, 4
      %v1751 = vor.u32 %v1747, %v1750
      %v1752 = vsel %vm1370, %v1718, %v1751
      %v1753 = vshrl.u32 %v1286, 16
      %v1755 = vrot.slane %v1753, 3
      %v1756 = vshll.u32 %v1286, 16
      %v1758 = vrot.slane %v1756, 4
      %v1759 = vor.u32 %v1755, %v1758
      %v1760 = vsel %vm1370, %v1726, %v1759
      %v1761 = vshrl.u32 %v1295, 16
      %v1763 = vrot.slane %v1761, 3
      %v1764 = vshll.u32 %v1295, 16
      %v1766 = vrot.slane %v1764, 4
      %v1767 = vor.u32 %v1763, %v1766
      %v1768 = vsel %vm1370, %v1734, %v1767
      %v1770 = vshrl.u32 %v1184, 16
      %v1772 = vrot.slane %v1770, 3
      %v1773 = vshll.u32 %v1184, 16
      %v1775 = vrot.slane %v1773, 4
      %v1776 = vor.u32 %v1772, %v1775
      %v1777 = vsel %vm1370, %v1743, %v1776
      %v1778 = vshrl.u32 %v1211, 16
      %v1780 = vrot.slane %v1778, 3
      %v1781 = vshll.u32 %v1211, 16
      %v1783 = vrot.slane %v1781, 4
      %v1784 = vor.u32 %v1780, %v1783
      %v1785 = vsel %vm1370, %v1669, %v1784
      %v1786 = vshrl.u32 %v1250, 16
      %v1788 = vrot.slane %v1786, 3
      %v1789 = vshll.u32 %v1250, 16
      %v1791 = vrot.slane %v1789, 4
      %v1792 = vor.u32 %v1788, %v1791
      %v1793 = vsel %vm1370, %v1751, %v1792
      %v1794 = vshrl.u32 %v1289, 16
      %v1796 = vrot.slane %v1794, 3
      %v1797 = vshll.u32 %v1289, 16
      %v1799 = vrot.slane %v1797, 4
      %v1800 = vor.u32 %v1796, %v1799
      %v1801 = vsel %vm1370, %v1759, %v1800
      %v1802 = vshrl.u32 %v1297, 16
      %v1804 = vrot.slane %v1802, 3
      %v1805 = vshll.u32 %v1297, 16
      %v1807 = vrot.slane %v1805, 4
      %v1808 = vor.u32 %v1804, %v1807
      %v1809 = vsel %vm1370, %v1767, %v1808
      %v1811 = vshrl.u32 %v1183, 16
      %v1813 = vrot.slane %v1811, 3
      %v1814 = vshll.u32 %v1183, 16
      %v1816 = vrot.slane %v1814, 4
      %v1817 = vor.u32 %v1813, %v1816
      %v1818 = vsel %vm1370, %v1776, %v1817
      %v1931 = vunpack.c.l.b16 %v1298
      %v1932 = vunpack.c.l.b16 %v1299
      %v1933 = vunpack.c.l.b16 %v1300
      %v1934 = vunpack.c.l.b16 %v1301
      %v1935 = vunpack.c.l.b16 %v1302
      %v1936 = vunpack.c.l.b16 %v1303
      %v1937 = vunpack.c.l.b16 %v1304
      %v1938 = vunpack.c.l.b16 %v1305
      %v1939 = vunpack.c.l.b16 %v1306
      %v1940 = vunpack.c.l.b16 %v1307
      %v1941 = vunpack.c.l.b16 %v1308
      %v1942 = vunpack.c.l.b16 %v1309
      %v1943 = vunpack.c.l.b16 %v1310
      %v1944 = vunpack.c.l.b16 %v1311
      %v1945 = vunpack.c.l.b16 %v1312
      %v1946 = vunpack.c.l.b16 %v1313
      %v1947 = vunpack.c.l.b16 %v1314
      %v1948 = vunpack.c.l.b16 %v1315
      %v1949 = vunpack.c.l.b16 %v1316
      %v1950 = vunpack.c.l.b16 %v1317
      %v1951 = vunpack.c.l.b16 %v1318
      %v1952 = vunpack.c.l.b16 %v1319
      %v1953 = vunpack.c.l.b16 %v1320
      %v1954 = vunpack.c.l.b16 %v1321
      %v1955 = vunpack.c.l.b16 %v1322
      %v1956 = vunpack.c.l.b16 %v1323
      %v1957 = vunpack.c.l.b16 %v1324
      %v1958 = vunpack.c.l.b16 %v1325
      %v1959 = vunpack.c.l.b16 %v1326
      %v1960 = vunpack.c.l.b16 %v1327
      %v1961 = vunpack.c.l.b16 %v1328
      %v1962 = vunpack.c.l.b16 %v1329
      %v1963 = vunpack.c.l.b16 %v1330
      %v1964 = vunpack.c.l.b16 %v1331
      %v1965 = vunpack.c.l.b16 %v1332
      %v1966 = vunpack.c.l.b16 %v1333
      %v1967 = vunpack.c.l.b16 %v1334
      %v1968 = vunpack.c.l.b16 %v1335
      %v1969 = vunpack.c.l.b16 %v1336
      %v1970 = vunpack.c.l.b16 %v1337
      %v1971 = vunpack.c.l.b16 %v1338
      %v1972 = vunpack.c.l.b16 %v1339
      %v1973 = vunpack.c.l.b16 %v1340
      %v1974 = vunpack.c.l.b16 %v1341
      %v1975 = vunpack.c.l.b16 %v1342
      %v1976 = vunpack.c.l.b16 %v1343
      %v1977 = vunpack.c.l.b16 %v1344
      %v1978 = vunpack.c.l.b16 %v1345
      %v1979 = vunpack.c.l.b16 %v1346
      %v1980 = vunpack.c.l.b16 %v1347
      %v1981 = vunpack.c.l.b16 %v1348
      %v1982 = vunpack.c.l.b16 %v1349
      %v1983 = vunpack.c.l.b16 %v1350
      %v1984 = vunpack.c.l.b16 %v1351
      %v1985 = vunpack.c.l.b16 %v1352
      %v1986 = vunpack.c.l.b16 %v1353
      %v1987 = vunpack.c.l.b16 %v1354
      %v1988 = vunpack.c.l.b16 %v1355
      %v1989 = vunpack.c.l.b16 %v1356
      %v1990 = vunpack.c.l.b16 %v1357
      %v1991 = vunpack.c.l.b16 %v1358
      %v1992 = vunpack.c.l.b16 %v1359
      %v1993 = vunpack.c.l.b16 %v1360
      %v1994 = vunpack.c.l.b16 %v1361
      %v1995 = vunpack.c.l.b16 %v1362
      %v1996 = vunpack.c.l.b16 %v1363
      %v1997 = vunpack.c.l.b16 %v1364
      %v1998 = vunpack.c.l.b16 %v1365
      %v1999 = vunpack.c.l.b16 %v1366
      %v2000 = vunpack.c.l.b16 %v1367
      %v2001 = vunpack.c.l.b16 %v1368
      %v2002 = vunpack.c.l.b16 %v1369
      %v2003 = vpack.c.b16 %v1932, %v1931
      %v2004 = vpack.c.b16 %v1934, %v1933
      %v2005 = vpack.c.b16 %v1936, %v1935
      %v2006 = vpack.c.b16 %v1938, %v1937
      %v2007 = vpack.c.b16 %v1940, %v1939
      %v2008 = vpack.c.b16 %v1942, %v1941
      %v2009 = vpack.c.b16 %v1944, %v1943
      %v2010 = vpack.c.b16 %v1946, %v1945
      %v2011 = vpack.c.b16 %v1948, %v1947
      %v2012 = vpack.c.b16 %v1950, %v1949
      %v2013 = vpack.c.b16 %v1952, %v1951
      %v2014 = vpack.c.b16 %v1954, %v1953
      %v2015 = vpack.c.b16 %v1956, %v1955
      %v2016 = vpack.c.b16 %v1958, %v1957
      %v2017 = vpack.c.b16 %v1960, %v1959
      %v2018 = vpack.c.b16 %v1962, %v1961
      %v2019 = vpack.c.b16 %v1964, %v1963
      %v2020 = vpack.c.b16 %v1966, %v1965
      %v2021 = vpack.c.b16 %v1968, %v1967
      %v2022 = vpack.c.b16 %v1970, %v1969
      %v2023 = vpack.c.b16 %v1972, %v1971
      %v2024 = vpack.c.b16 %v1974, %v1973
      %v2025 = vpack.c.b16 %v1976, %v1975
      %v2026 = vpack.c.b16 %v1978, %v1977
      %v2027 = vpack.c.b16 %v1980, %v1979
      %v2028 = vpack.c.b16 %v1982, %v1981
      %v2029 = vpack.c.b16 %v1984, %v1983
      %v2030 = vpack.c.b16 %v1986, %v1985
      %v2031 = vpack.c.b16 %v1988, %v1987
      %v2032 = vpack.c.b16 %v1990, %v1989
      %v2033 = vpack.c.b16 %v1992, %v1991
      %v2034 = vpack.c.b16 %v1994, %v1993
      %v2035 = vpack.c.b16 %v1996, %v1995
      %v2036 = vpack.c.b16 %v1998, %v1997
      %v2037 = vpack.c.b16 %v2000, %v1999
      %v2038 = vpack.c.b16 %v2002, %v2001
      %v2076 = vsel %vm1185, %v1445, 0
      %v2079 = vsel %vm1185, %v1485, 0
      %v2082 = vsel %vm1185, %v1518, 0
      %v2085 = vsel %vm1185, %v1550, 0
      %v2088 = vsel %vm1185, %v1582, 0
      %v2091 = vsel %vm1185, %v1614, 0
      %v2094 = vsel %vm1185, %v1646, 0
      %v2097 = vsel %vm1185, %v1678, 0
      %v2100 = vsel %vm1185, %v1711, 0
      %v2103 = vsel %vm1185, %v1744, 0
      %v2106 = vsel %vm1185, %v1777, 0
      %v2109 = vsel %vm1185, %v1818, 0
      %2111 = vmatprep.subr.bf16.mxu0 0
      %2112 = vmatpush1.bf16.msra.mxu0 %v2003
      %2113 = vmatprep.subr.bf16.mxu0 0
      %2114 = vmatpush1.bf16.msra.mxu0 %v2004
      %2115 = vmatprep.subr.bf16.mxu0 0
      %2116 = vmatpush1.bf16.msra.mxu0 %v2005
      %2117 = vmatprep.subr.bf16.mxu0 0
      %2118 = vmatpush1.bf16.msra.mxu0 %v2006
      %2119 = vmatprep.subr.bf16.mxu0 0
      %2120 = vmatpush1.bf16.msra.mxu0 %v2007
      %2121 = vmatprep.subr.bf16.mxu0 0
      %2122 = vmatpush1.bf16.msra.mxu0 %v2008
      %2123 = vmatprep.subr.bf16.mxu0 0
      %2124 = vmatpush1.bf16.msra.mxu0 %v2009
      %2125 = vmatprep.subr.bf16.mxu0 0
      %2126 = vmatpush1.bf16.msra.mxu0 %v2010
      %2127 = vmatprep.subr.bf16.mxu0 0
      %2128 = vmatpush1.bf16.msra.mxu0 %v2011
      %2129 = vmatprep.subr.bf16.mxu0 0
      %2130 = vmatpush1.bf16.msra.mxu0 %v2012
      %2131 = vmatprep.subr.bf16.mxu0 0
      %2132 = vmatpush1.bf16.msra.mxu0 %v2013
      %2133 = vmatprep.subr.bf16.mxu0 0
      %2134 = vmatpush1.bf16.msra.mxu0 %v2014
      %2135 = vmatprep.subr.bf16.mxu0 0
      %2136 = vmatpush1.bf16.msra.mxu0 %v2015
      %2137 = vmatprep.subr.bf16.mxu0 0
      %2138 = vmatpush1.bf16.msra.mxu0 %v2016
      %2139 = vmatprep.subr.bf16.mxu0 0
      %2140 = vmatpush1.bf16.msra.mxu0 %v2017
      %2141 = vmatprep.subr.bf16.mxu0 0
      %2142 = vmatpush1.bf16.msra.mxu0 %v2018
      %2143 = vmatprep.mubr.bf16.mxu0 %v1400
      %2144 = vmatmul.mubr.bf16.gmra.mrb[0].mxu0 %v1385
      %v2145 = vpop.f32.mrb[0].mxu0
      %v2146 = vadd.f32 0.0, %v2145
      %v2147 = vpop.f32.mrb[0].mxu0
      %v2148 = vpop.f32.mrb[0].mxu0
      %v2149 = vadd.f32 0.0, %v2148
      %v2150 = vpop.f32.mrb[0].mxu0
      %2151 = vmatprep.mubr.bf16.mxu0 %v1461
      %2152 = vmatmul.mubr.bf16.gmra.mrb[0].mxu0 %v1453
      %v2153 = vpop.f32.mrb[0].mxu0
      %v2154 = vadd.f32 0.0, %v2153
      %v2155 = vpop.f32.mrb[0].mxu0
      %v2156 = vpop.f32.mrb[0].mxu0
      %v2157 = vadd.f32 0.0, %v2156
      %v2158 = vpop.f32.mrb[0].mxu0
      %2159 = vmatprep.mubr.bf16.mxu0 %v1494
      %2160 = vmatmul.mubr.bf16.gmra.mrb[0].mxu0 %v1486
      %v2161 = vpop.f32.mrb[0].mxu0
      %v2162 = vadd.f32 0.0, %v2161
      %v2163 = vpop.f32.mrb[0].mxu0
      %v2164 = vpop.f32.mrb[0].mxu0
      %v2165 = vadd.f32 0.0, %v2164
      %v2166 = vpop.f32.mrb[0].mxu0
      %2167 = vmatprep.mubr.bf16.mxu0 %v1526
      %2168 = vmatmul.mubr.bf16.gmra.mrb[0].mxu0 %v1430
      %v2169 = vpop.f32.mrb[0].mxu0
      %v2170 = vadd.f32 0.0, %v2169
      %v2171 = vpop.f32.mrb[0].mxu0
      %v2172 = vpop.f32.mrb[0].mxu0
      %v2173 = vadd.f32 0.0, %v2172
      %v2174 = vpop.f32.mrb[0].mxu0
      %2175 = vmatprep.mubr.bf16.mxu0 %v1558
      %2176 = vmatmul.mubr.bf16.gmra.mrb[0].mxu0 %v1477
      %v2177 = vpop.f32.mrb[0].mxu0
      %v2178 = vadd.f32 0.0, %v2177
      %v2179 = vpop.f32.mrb[0].mxu0
      %v2180 = vpop.f32.mrb[0].mxu0
      %v2181 = vadd.f32 0.0, %v2180
      %v2182 = vpop.f32.mrb[0].mxu0
      %2183 = vmatprep.mubr.bf16.mxu0 %v1590
      %2184 = vmatmul.mubr.bf16.gmra.mrb[0].mxu0 %v1510
      %v2185 = vpop.f32.mrb[0].mxu0
      %v2186 = vadd.f32 0.0, %v2185
      %v2187 = vpop.f32.mrb[0].mxu0
      %v2188 = vpop.f32.mrb[0].mxu0
      %v2189 = vadd.f32 0.0, %v2188
      %v2190 = vpop.f32.mrb[0].mxu0
      %2191 = vmatprep.mubr.bf16.mxu0 %v1622
      %2192 = vmatmul.mubr.bf16.gmra.mrb[0].mxu0 %v1542
      %v2193 = vpop.f32.mrb[0].mxu0
      %v2194 = vadd.f32 0.0, %v2193
      %v2195 = vpop.f32.mrb[0].mxu0
      %v2196 = vpop.f32.mrb[0].mxu0
      %v2197 = vadd.f32 0.0, %v2196
      %v2198 = vpop.f32.mrb[0].mxu0
      %2199 = vmatprep.mubr.bf16.mxu0 %v1654
      %2200 = vmatmul.mubr.bf16.gmra.mrb[0].mxu0 %v1574
      %v2201 = vpop.f32.mrb[0].mxu0
      %v2202 = vadd.f32 0.0, %v2201
      %v2203 = vpop.f32.mrb[0].mxu0
      %v2204 = vpop.f32.mrb[0].mxu0
      %v2205 = vadd.f32 0.0, %v2204
      %v2206 = vpop.f32.mrb[0].mxu0
      %2207 = vmatprep.mubr.bf16.mxu0 %v1686
      %2208 = vmatmul.mubr.bf16.gmra.mrb[0].mxu0 %v1606
      %v2209 = vpop.f32.mrb[0].mxu0
      %v2210 = vadd.f32 0.0, %v2209
      %v2211 = vpop.f32.mrb[0].mxu0
      %v2212 = vpop.f32.mrb[0].mxu0
      %v2213 = vadd.f32 0.0, %v2212
      %v2214 = vpop.f32.mrb[0].mxu0
      %2215 = vmatprep.mubr.bf16.mxu0 %v1719
      %2216 = vmatmul.mubr.bf16.gmra.mrb[0].mxu0 %v1638
      %v2217 = vpop.f32.mrb[0].mxu0
      %v2218 = vadd.f32 0.0, %v2217
      %v2219 = vpop.f32.mrb[0].mxu0
      %v2220 = vpop.f32.mrb[0].mxu0
      %v2221 = vadd.f32 0.0, %v2220
      %v2222 = vpop.f32.mrb[0].mxu0
      %2223 = vmatprep.mubr.bf16.mxu0 %v1752
      %2224 = vmatmul.mubr.bf16.gmra.mrb[0].mxu0 %v1670
      %v2225 = vpop.f32.mrb[0].mxu0
      %v2226 = vadd.f32 0.0, %v2225
      %v2227 = vpop.f32.mrb[0].mxu0
      %v2228 = vpop.f32.mrb[0].mxu0
      %v2229 = vadd.f32 0.0, %v2228
      %v2230 = vpop.f32.mrb[0].mxu0
      %2231 = vmatprep.mubr.bf16.mxu0 %v1793
      %2232 = vmatmul.mubr.bf16.gmra.mrb[0].mxu0 %v1785
      %v2233 = vpop.f32.mrb[0].mxu0
      %v2234 = vadd.f32 0.0, %v2233
      %v2235 = vpop.f32.mrb[0].mxu0
      %v2236 = vpop.f32.mrb[0].mxu0
      %v2237 = vadd.f32 0.0, %v2236
      %v2238 = vpop.f32.mrb[0].mxu0
      %2239 = vdwg.mxu0
      %2240 = vmatprep.subr.bf16.mxu0 0
      %2241 = vmatpush1.bf16.msra.mxu0 %v2019
      %2242 = vmatprep.subr.bf16.mxu0 0
      %2243 = vmatpush1.bf16.msra.mxu0 %v2020
      %2244 = vmatprep.subr.bf16.mxu0 0
      %2245 = vmatpush1.bf16.msra.mxu0 %v2021
      %2246 = vmatprep.subr.bf16.mxu0 0
      %2247 = vmatpush1.bf16.msra.mxu0 %v2022
      %2248 = vmatprep.subr.bf16.mxu0 0
      %2249 = vmatpush1.bf16.msra.mxu0 %v2023
      %2250 = vmatprep.subr.bf16.mxu0 0
      %2251 = vmatpush1.bf16.msra.mxu0 %v2024
      %2252 = vmatprep.subr.bf16.mxu0 0
      %2253 = vmatpush1.bf16.msra.mxu0 %v2025
      %2254 = vmatprep.subr.bf16.mxu0 0
      %2255 = vmatpush1.bf16.msra.mxu0 %v2026
      %2256 = vmatprep.subr.bf16.mxu0 0
      %2257 = vmatpush1.bf16.msra.mxu0 %v2027
      %2258 = vmatprep.subr.bf16.mxu0 0
      %2259 = vmatpush1.bf16.msra.mxu0 %v2028
      %2260 = vmatprep.subr.bf16.mxu0 0
      %2261 = vmatpush1.bf16.msra.mxu0 %v2029
      %2262 = vmatprep.subr.bf16.mxu0 0
      %2263 = vmatpush1.bf16.msra.mxu0 %v2030
      %2264 = vmatprep.subr.bf16.mxu0 0
      %2265 = vmatpush1.bf16.msra.mxu0 %v2031
      %2266 = vmatprep.subr.bf16.mxu0 0
      %2267 = vmatpush1.bf16.msra.mxu0 %v2032
      %2268 = vmatprep.subr.bf16.mxu0 0
      %2269 = vmatpush1.bf16.msra.mxu0 %v2033
      %2270 = vmatprep.subr.bf16.mxu0 0
      %2271 = vmatpush1.bf16.msra.mxu0 %v2034
      %2272 = vmatprep.mubr.bf16.mxu0 %v1430
      %2273 = vmatmul.mubr.bf16.gmra.mrb[0].mxu0 %v1415
      %v2274 = vpop.f32.mrb[0].mxu0
      %v2275 = vadd.f32 %v2146, %v2274
      %v2276 = vpop.f32.mrb[0].mxu0
      %v2277 = vpop.f32.mrb[0].mxu0
      %v2278 = vadd.f32 %v2149, %v2277
      %v2279 = vpop.f32.mrb[0].mxu0
      %2280 = vmatprep.mubr.bf16.mxu0 %v1477
      %2281 = vmatmul.mubr.bf16.gmra.mrb[0].mxu0 %v1469
      %v2282 = vpop.f32.mrb[0].mxu0
      %v2283 = vadd.f32 %v2154, %v2282
      %v2284 = vpop.f32.mrb[0].mxu0
      %v2285 = vpop.f32.mrb[0].mxu0
      %v2286 = vadd.f32 %v2157, %v2285
      %v2287 = vpop.f32.mrb[0].mxu0
      %2288 = vmatprep.mubr.bf16.mxu0 %v1510
      %2289 = vmatmul.mubr.bf16.gmra.mrb[0].mxu0 %v1502
      %v2290 = vpop.f32.mrb[0].mxu0
      %v2291 = vadd.f32 %v2162, %v2290
      %v2292 = vpop.f32.mrb[0].mxu0
      %v2293 = vpop.f32.mrb[0].mxu0
      %v2294 = vadd.f32 %v2165, %v2293
      %v2295 = vpop.f32.mrb[0].mxu0
      %2296 = vmatprep.mubr.bf16.mxu0 %v1542
      %2297 = vmatmul.mubr.bf16.gmra.mrb[0].mxu0 %v1534
      %v2298 = vpop.f32.mrb[0].mxu0
      %v2299 = vadd.f32 %v2170, %v2298
      %v2300 = vpop.f32.mrb[0].mxu0
      %v2301 = vpop.f32.mrb[0].mxu0
      %v2302 = vadd.f32 %v2173, %v2301
      %v2303 = vpop.f32.mrb[0].mxu0
      %2304 = vmatprep.mubr.bf16.mxu0 %v1574
      %2305 = vmatmul.mubr.bf16.gmra.mrb[0].mxu0 %v1566
      %v2306 = vpop.f32.mrb[0].mxu0
      %v2307 = vadd.f32 %v2178, %v2306
      %v2308 = vpop.f32.mrb[0].mxu0
      %v2309 = vpop.f32.mrb[0].mxu0
      %v2310 = vadd.f32 %v2181, %v2309
      %v2311 = vpop.f32.mrb[0].mxu0
      %2312 = vmatprep.mubr.bf16.mxu0 %v1606
      %2313 = vmatmul.mubr.bf16.gmra.mrb[0].mxu0 %v1598
      %v2314 = vpop.f32.mrb[0].mxu0
      %v2315 = vadd.f32 %v2186, %v2314
      %v2316 = vpop.f32.mrb[0].mxu0
      %v2317 = vpop.f32.mrb[0].mxu0
      %v2318 = vadd.f32 %v2189, %v2317
      %v2319 = vpop.f32.mrb[0].mxu0
      %2320 = vmatprep.mubr.bf16.mxu0 %v1638
      %2321 = vmatmul.mubr.bf16.gmra.mrb[0].mxu0 %v1630
      %v2322 = vpop.f32.mrb[0].mxu0
      %v2323 = vadd.f32 %v2194, %v2322
      %v2324 = vpop.f32.mrb[0].mxu0
      %v2325 = vpop.f32.mrb[0].mxu0
      %v2326 = vadd.f32 %v2197, %v2325
      %v2327 = vpop.f32.mrb[0].mxu0
      %2328 = vmatprep.mubr.bf16.mxu0 %v1670
      %2329 = vmatmul.mubr.bf16.gmra.mrb[0].mxu0 %v1662
      %v2330 = vpop.f32.mrb[0].mxu0
      %v2331 = vadd.f32 %v2202, %v2330
      %v2332 = vpop.f32.mrb[0].mxu0
      %v2333 = vpop.f32.mrb[0].mxu0
      %v2334 = vadd.f32 %v2205, %v2333
      %v2335 = vpop.f32.mrb[0].mxu0
      %2336 = vmatprep.mubr.bf16.mxu0 %v1702
      %2337 = vmatmul.mubr.bf16.gmra.mrb[0].mxu0 %v1694
      %v2338 = vpop.f32.mrb[0].mxu0
      %v2339 = vadd.f32 %v2210, %v2338
      %v2340 = vpop.f32.mrb[0].mxu0
      %v2341 = vpop.f32.mrb[0].mxu0
      %v2342 = vadd.f32 %v2213, %v2341
      %v2343 = vpop.f32.mrb[0].mxu0
      %2344 = vmatprep.mubr.bf16.mxu0 %v1735
      %2345 = vmatmul.mubr.bf16.gmra.mrb[0].mxu0 %v1727
      %v2346 = vpop.f32.mrb[0].mxu0
      %v2347 = vadd.f32 %v2218, %v2346
      %v2348 = vpop.f32.mrb[0].mxu0
      %v2349 = vpop.f32.mrb[0].mxu0
      %v2350 = vadd.f32 %v2221, %v2349
      %v2351 = vpop.f32.mrb[0].mxu0
      %2352 = vmatprep.mubr.bf16.mxu0 %v1768
      %2353 = vmatmul.mubr.bf16.gmra.mrb[0].mxu0 %v1760
      %v2354 = vpop.f32.mrb[0].mxu0
      %v2355 = vadd.f32 %v2226, %v2354
      %v2356 = vpop.f32.mrb[0].mxu0
      %v2357 = vpop.f32.mrb[0].mxu0
      %v2358 = vadd.f32 %v2229, %v2357
      %v2359 = vpop.f32.mrb[0].mxu0
      %2360 = vmatprep.mubr.bf16.mxu0 %v1809
      %2361 = vmatmul.mubr.bf16.gmra.mrb[0].mxu0 %v1801
      %v2362 = vpop.f32.mrb[0].mxu0
      %v2363 = vadd.f32 %v2234, %v2362
      %v2364 = vpop.f32.mrb[0].mxu0
      %v2365 = vpop.f32.mrb[0].mxu0
      %v2366 = vadd.f32 %v2237, %v2365
      %v2367 = vpop.f32.mrb[0].mxu0
      %2368 = vdwg.mxu0
      %2369 = vmatprep.subr.bf16.mxu0 0
      %2370 = vmatpush1.bf16.msra.mxu0 %v2035
      %2371 = vmatprep.subr.bf16.mxu0 0
      %2372 = vmatpush1.bf16.msra.mxu0 %v2036
      %2373 = vmatprep.subr.bf16.mxu0 0
      %2374 = vmatpush1.bf16.msra.mxu0 %v2037
      %2375 = vmatprep.subr.bf16.mxu0 0
      %2376 = vmatpush1.bf16.msra.mxu0 %v2038
      %2377 = vmatprep.subr.bf16.mxu0 0
      %2378 = vmatpush1.bf16.msra.mxu0 0
      %2379 = vmatprep.subr.bf16.mxu0 0
      %2380 = vmatpush1.bf16.msra.mxu0 0
      %2381 = vmatprep.subr.bf16.mxu0 0
      %2382 = vmatpush1.bf16.msra.mxu0 0
      %2383 = vmatprep.subr.bf16.mxu0 0
      %2384 = vmatpush1.bf16.msra.mxu0 0
      %2385 = vmatprep.subr.bf16.mxu0 0
      %2386 = vmatpush1.bf16.msra.mxu0 0
      %2387 = vmatprep.subr.bf16.mxu0 0
      %2388 = vmatpush1.bf16.msra.mxu0 0
      %2389 = vmatprep.subr.bf16.mxu0 0
      %2390 = vmatpush1.bf16.msra.mxu0 0
      %2391 = vmatprep.subr.bf16.mxu0 0
      %2392 = vmatpush1.bf16.msra.mxu0 0
      %2393 = vmatprep.subr.bf16.mxu0 0
      %2394 = vmatpush1.bf16.msra.mxu0 0
      %2395 = vmatprep.subr.bf16.mxu0 0
      %2396 = vmatpush1.bf16.msra.mxu0 0
      %2397 = vmatprep.subr.bf16.mxu0 0
      %2398 = vmatpush1.bf16.msra.mxu0 0
      %2399 = vmatprep.subr.bf16.mxu0 0
      %2400 = vmatpush1.bf16.msra.mxu0 0
      %2401 = vmatprep.mubr.bf16.mxu0 0
      %2402 = vmatmul.mubr.bf16.gmra.mrb[0].mxu0 %v2076
      %v2403 = vpop.f32.mrb[0].mxu0
      %v2404 = vadd.f32 %v2275, %v2403
      %v2405 = vpop.f32.mrb[0].mxu0
      %v2406 = vpop.f32.mrb[0].mxu0
      %v2407 = vadd.f32 %v2278, %v2406
      %v2408 = vpop.f32.mrb[0].mxu0
      %2409 = vmatprep.mubr.bf16.mxu0 0
      %2410 = vmatmul.mubr.bf16.gmra.mrb[0].mxu0 %v2079
      %v2411 = vpop.f32.mrb[0].mxu0
      %v2412 = vadd.f32 %v2283, %v2411
      %v2413 = vpop.f32.mrb[0].mxu0
      %v2414 = vpop.f32.mrb[0].mxu0
      %v2415 = vadd.f32 %v2286, %v2414
      %v2416 = vpop.f32.mrb[0].mxu0
      %2417 = vmatprep.mubr.bf16.mxu0 0
      %2418 = vmatmul.mubr.bf16.gmra.mrb[0].mxu0 %v2082
      %v2419 = vpop.f32.mrb[0].mxu0
      %v2420 = vadd.f32 %v2291, %v2419
      %v2421 = vpop.f32.mrb[0].mxu0
      %v2422 = vpop.f32.mrb[0].mxu0
      %v2423 = vadd.f32 %v2294, %v2422
      %v2424 = vpop.f32.mrb[0].mxu0
      %2425 = vmatprep.mubr.bf16.mxu0 0
      %2426 = vmatmul.mubr.bf16.gmra.mrb[0].mxu0 %v2085
      %v2427 = vpop.f32.mrb[0].mxu0
      %v2428 = vadd.f32 %v2299, %v2427
      %v2429 = vpop.f32.mrb[0].mxu0
      %v2430 = vpop.f32.mrb[0].mxu0
      %v2431 = vadd.f32 %v2302, %v2430
      %v2432 = vpop.f32.mrb[0].mxu0
      %2433 = vmatprep.mubr.bf16.mxu0 0
      %2434 = vmatmul.mubr.bf16.gmra.mrb[0].mxu0 %v2088
      %v2435 = vpop.f32.mrb[0].mxu0
      %v2436 = vadd.f32 %v2307, %v2435
      %v2437 = vpop.f32.mrb[0].mxu0
      %v2438 = vpop.f32.mrb[0].mxu0
      %v2439 = vadd.f32 %v2310, %v2438
      %v2440 = vpop.f32.mrb[0].mxu0
      %2441 = vmatprep.mubr.bf16.mxu0 0
      %2442 = vmatmul.mubr.bf16.gmra.mrb[0].mxu0 %v2091
      %v2443 = vpop.f32.mrb[0].mxu0
      %v2444 = vadd.f32 %v2315, %v2443
      %v2445 = vpop.f32.mrb[0].mxu0
      %v2446 = vpop.f32.mrb[0].mxu0
      %v2447 = vadd.f32 %v2318, %v2446
      %v2448 = vpop.f32.mrb[0].mxu0
      %2449 = vmatprep.mubr.bf16.mxu0 0
      %2450 = vmatmul.mubr.bf16.gmra.mrb[0].mxu0 %v2094
      %v2451 = vpop.f32.mrb[0].mxu0
      %v2452 = vadd.f32 %v2323, %v2451
      %v2453 = vpop.f32.mrb[0].mxu0
      %v2454 = vpop.f32.mrb[0].mxu0
      %v2455 = vadd.f32 %v2326, %v2454
      %v2456 = vpop.f32.mrb[0].mxu0
      %2457 = vmatprep.mubr.bf16.mxu0 0
      %2458 = vmatmul.mubr.bf16.gmra.mrb[0].mxu0 %v2097
      %v2459 = vpop.f32.mrb[0].mxu0
      %v2460 = vadd.f32 %v2331, %v2459
      %v2461 = vpop.f32.mrb[0].mxu0
      %v2462 = vpop.f32.mrb[0].mxu0
      %v2463 = vadd.f32 %v2334, %v2462
      %v2464 = vpop.f32.mrb[0].mxu0
      %2465 = vmatprep.mubr.bf16.mxu0 0
      %2466 = vmatmul.mubr.bf16.gmra.mrb[0].mxu0 %v2100
      %v2467 = vpop.f32.mrb[0].mxu0
      %v2468 = vadd.f32 %v2339, %v2467
      %v2469 = vpop.f32.mrb[0].mxu0
      %v2470 = vpop.f32.mrb[0].mxu0
      %v2471 = vadd.f32 %v2342, %v2470
      %v2472 = vpop.f32.mrb[0].mxu0
      %2473 = vmatprep.mubr.bf16.mxu0 0
      %2474 = vmatmul.mubr.bf16.gmra.mrb[0].mxu0 %v2103
      %v2475 = vpop.f32.mrb[0].mxu0
      %v2476 = vadd.f32 %v2347, %v2475
      %v2477 = vpop.f32.mrb[0].mxu0
      %v2478 = vpop.f32.mrb[0].mxu0
      %v2479 = vadd.f32 %v2350, %v2478
      %v2480 = vpop.f32.mrb[0].mxu0
      %2481 = vmatprep.mubr.bf16.mxu0 0
      %2482 = vmatmul.mubr.bf16.gmra.mrb[0].mxu0 %v2106
      %v2483 = vpop.f32.mrb[0].mxu0
      %v2484 = vadd.f32 %v2355, %v2483
      %v2485 = vpop.f32.mrb[0].mxu0
      %v2486 = vpop.f32.mrb[0].mxu0
      %v2487 = vadd.f32 %v2358, %v2486
      %v2488 = vpop.f32.mrb[0].mxu0
      %2489 = vmatprep.mubr.bf16.mxu0 0
      %2490 = vmatmul.mubr.bf16.gmra.mrb[0].mxu0 %v2109
      %v2491 = vpop.f32.mrb[0].mxu0
      %v2492 = vadd.f32 %v2363, %v2491
      %v2493 = vpop.f32.mrb[0].mxu0
      %v2494 = vpop.f32.mrb[0].mxu0
      %v2495 = vadd.f32 %v2366, %v2494
      %v2496 = vpop.f32.mrb[0].mxu0
      %2497 = vdwg.mxu0
      %v2498 = vpack.c.bf16 %v2407, %v2404
      %v2499 = vpack.c.bf16 %v2415, %v2412
      %v2500 = vpack.c.bf16 %v2423, %v2420
      %v2501 = vpack.c.bf16 %v2431, %v2428
      %v2502 = vpack.c.bf16 %v2439, %v2436
      %v2503 = vpack.c.bf16 %v2447, %v2444
      %v2504 = vpack.c.bf16 %v2455, %v2452
      %v2505 = vpack.c.bf16 %v2463, %v2460
      %v2506 = vpack.c.bf16 %v2471, %v2468
      %v2507 = vpack.c.bf16 %v2479, %v2476
      %v2508 = vpack.c.bf16 %v2487, %v2484
      %v2509 = vpack.c.bf16 %v2495, %v2492
      %v2522 = vunpack.c.l.b16 %v2498
      %v2523 = vunpack.c.h.b16 %v2498
      %v2524 = vunpack.c.l.b16 %v2499
      %v2525 = vunpack.c.h.b16 %v2499
      %v2526 = vunpack.c.l.b16 %v2500
      %v2527 = vunpack.c.h.b16 %v2500
      %v2528 = vunpack.c.l.b16 %v2501
      %v2529 = vunpack.c.h.b16 %v2501
      %v2530 = vunpack.c.l.b16 %v2502
      %v2531 = vunpack.c.h.b16 %v2502
      %v2532 = vunpack.c.l.b16 %v2503
      %v2533 = vunpack.c.h.b16 %v2503
      %v2534 = vunpack.c.l.b16 %v2504
      %v2535 = vunpack.c.h.b16 %v2504
      %v2536 = vunpack.c.l.b16 %v2505
      %v2537 = vunpack.c.h.b16 %v2505
      %v2538 = vunpack.c.l.b16 %v2506
      %v2539 = vunpack.c.h.b16 %v2506
      %v2540 = vunpack.c.l.b16 %v2507
      %v2541 = vunpack.c.h.b16 %v2507
      %v2542 = vunpack.c.l.b16 %v2508
      %v2543 = vunpack.c.h.b16 %v2508
      %v2544 = vunpack.c.l.b16 %v2509
      %v2545 = vunpack.c.h.b16 %v2509
      %v2546 = vpack.c.b16 %v2522, %v2522
      %v2547 = vpack.c.b16 %v2523, %v2523
      %v2548 = vpack.c.b16 %v2524, %v2524
      %v2549 = vpack.c.b16 %v2525, %v2525
      %v2550 = vpack.c.b16 %v2526, %v2526
      %v2551 = vpack.c.b16 %v2527, %v2527
      %v2552 = vpack.c.b16 %v2528, %v2528
      %v2553 = vpack.c.b16 %v2529, %v2529
      %v2554 = vpack.c.b16 %v2530, %v2530
      %v2555 = vpack.c.b16 %v2531, %v2531
      %v2556 = vpack.c.b16 %v2532, %v2532
      %v2557 = vpack.c.b16 %v2533, %v2533
      %v2558 = vpack.c.b16 %v2534, %v2534
      %v2559 = vpack.c.b16 %v2535, %v2535
      %v2560 = vpack.c.b16 %v2536, %v2536
      %v2561 = vpack.c.b16 %v2537, %v2537
      %v2562 = vpack.c.b16 %v2538, %v2538
      %v2563 = vpack.c.b16 %v2539, %v2539
      %v2564 = vpack.c.b16 %v2540, %v2540
      %v2565 = vpack.c.b16 %v2541, %v2541
      %v2566 = vpack.c.b16 %v2542, %v2542
      %v2567 = vpack.c.b16 %v2543, %v2543
      %v2568 = vpack.c.b16 %v2544, %v2544
      %v2569 = vpack.c.b16 %v2545, %v2545
      %vm2594 = vcmask 519168
      %2595 = vst.msk [vmem:[%s317] sm:$0xf] %vm2594, %v2546
      %2596 = vst.msk [vmem:[%s317 + $0x4] sm:$0xf] %vm2594, %v2547
      %2597 = vst.msk [vmem:[%s317 + $0x8] sm:$0xf] %vm2594, %v2548
      %2598 = vst.msk [vmem:[%s317 + $0xc] sm:$0xf] %vm2594, %v2549
      %2599 = vst.msk [vmem:[%s317 + $0x10] sm:$0xf] %vm2594, %v2550
      %2600 = vst.msk [vmem:[%s317 + $0x14] sm:$0xf] %vm2594, %v2551
      %2601 = vst.msk [vmem:[%s317 + $0x18] sm:$0xf] %vm2594, %v2552
      %2602 = vst.msk [vmem:[%s317 + $0x1c] sm:$0xf] %vm2594, %v2553
      %2603 = vst.msk [vmem:[%s317 + $0x20] sm:$0xf] %vm2594, %v2554
      %2604 = vst.msk [vmem:[%s317 + $0x24] sm:$0xf] %vm2594, %v2555
      %2605 = vst.msk [vmem:[%s317 + $0x28] sm:$0xf] %vm2594, %v2556
      %2606 = vst.msk [vmem:[%s317 + $0x2c] sm:$0xf] %vm2594, %v2557
      %2607 = vst.msk [vmem:[%s317 + $0x30] sm:$0xf] %vm2594, %v2558
      %2608 = vst.msk [vmem:[%s317 + $0x34] sm:$0xf] %vm2594, %v2559
      %2609 = vst.msk [vmem:[%s317 + $0x38] sm:$0xf] %vm2594, %v2560
      %2610 = vst.msk [vmem:[%s317 + $0x3c] sm:$0xf] %vm2594, %v2561
      %2611 = vst.msk [vmem:[%s317 + $0x40] sm:$0xf] %vm2594, %v2562
      %2612 = vst.msk [vmem:[%s317 + $0x44] sm:$0xf] %vm2594, %v2563
      %2613 = vst.msk [vmem:[%s317 + $0x48] sm:$0xf] %vm2594, %v2564
      %2614 = vst.msk [vmem:[%s317 + $0x4c] sm:$0xf] %vm2594, %v2565
      %2615 = vst.msk [vmem:[%s317 + $0x50] sm:$0xf] %vm2594, %v2566
      %2616 = vst.msk [vmem:[%s317 + $0x54] sm:$0xf] %vm2594, %v2567
      %2617 = vst.msk [vmem:[%s317 + $0x58] sm:$0xf] %vm2594, %v2568
      %2618 = vst.msk [vmem:[%s317 + $0x5c] sm:$0xf] %vm2594, %v2569
      %s2619 = scalar_lea.vmem %s1, %s330
      %v2620 = vld [vmem:[%s2619] sm:$0xff]
      %v2621 = vld [vmem:[%s2619 + $0x8] sm:$0xff]
      %v2622 = vld [vmem:[%s2619 + $0x10] sm:$0xff]
      %v2623 = vld [vmem:[%s2619 + $0x18] sm:$0xff]
      %v2624 = vld [vmem:[%s2619 + $0x20] sm:$0xff]
      %v2625 = vld [vmem:[%s2619 + $0x28] sm:$0xff]
      %v2626 = vld [vmem:[%s2619 + $0x30] sm:$0xff]
      %v2627 = vld [vmem:[%s2619 + $0x38] sm:$0xff]
      %v2628 = vld [vmem:[%s2619 + $0x40] sm:$0xff]
      %v2629 = vld [vmem:[%s2619 + $0x48] sm:$0xff]
      %v2630 = vld [vmem:[%s2619 + $0x50] sm:$0xff]
      %v2631 = vld [vmem:[%s2619 + $0x58] sm:$0xff]
      %v2632 = vld [vmem:[%s2619 + $0x60] sm:$0xff]
      %v2633 = vld [vmem:[%s2619 + $0x68] sm:$0xff]
      %v2634 = vld [vmem:[%s2619 + $0x70] sm:$0xff]
      %v2635 = vld [vmem:[%s2619 + $0x78] sm:$0xff]
      %v2636 = vld [vmem:[%s2619 + $0x80] sm:$0xff]
      %v2637 = vld [vmem:[%s2619 + $0x88] sm:$0xff]
      %v2638 = vld [vmem:[%s2619 + $0x90] sm:$0xff]
      %v2639 = vld [vmem:[%s2619 + $0x98] sm:$0xff]
      %v2640 = vld [vmem:[%s2619 + $0xa0] sm:$0xff]
      %v2641 = vld [vmem:[%s2619 + $0xa8] sm:$0xff]
      %v2642 = vld [vmem:[%s2619 + $0xb0] sm:$0xff]
      %v2643 = vld [vmem:[%s2619 + $0xb8] sm:$0xff]
      %vm2644 = vcmp.gt.f32.partialorder %v2620, 0.5
      %vm2645 = vcmp.gt.f32.partialorder %v2621, 0.5
      %vm2646 = vcmp.gt.f32.partialorder %v2622, 0.5
      %vm2647 = vcmp.gt.f32.partialorder %v2623, 0.5
      %vm2648 = vcmp.gt.f32.partialorder %v2624, 0.5
      %vm2649 = vcmp.gt.f32.partialorder %v2625, 0.5
      %vm2650 = vcmp.gt.f32.partialorder %v2626, 0.5
      %vm2651 = vcmp.gt.f32.partialorder %v2627, 0.5
      %vm2652 = vcmp.gt.f32.partialorder %v2628, 0.5
      %vm2653 = vcmp.gt.f32.partialorder %v2629, 0.5
      %vm2654 = vcmp.gt.f32.partialorder %v2630, 0.5
      %vm2655 = vcmp.gt.f32.partialorder %v2631, 0.5
      %vm2656 = vcmp.gt.f32.partialorder %v2632, 0.5
      %vm2657 = vcmp.gt.f32.partialorder %v2633, 0.5
      %vm2658 = vcmp.gt.f32.partialorder %v2634, 0.5
      %vm2659 = vcmp.gt.f32.partialorder %v2635, 0.5
      %vm2660 = vcmp.gt.f32.partialorder %v2636, 0.5
      %vm2661 = vcmp.gt.f32.partialorder %v2637, 0.5
      %vm2662 = vcmp.gt.f32.partialorder %v2638, 0.5
      %vm2663 = vcmp.gt.f32.partialorder %v2639, 0.5
      %vm2664 = vcmp.gt.f32.partialorder %v2640, 0.5
      %vm2665 = vcmp.gt.f32.partialorder %v2641, 0.5
      %vm2666 = vcmp.gt.f32.partialorder %v2642, 0.5
      %vm2667 = vcmp.gt.f32.partialorder %v2643, 0.5
      %v2668 = vsel %vm2644, 1, 0
      %v2669 = vsel %vm2645, 1, 0
      %v2670 = vsel %vm2646, 1, 0
      %v2671 = vsel %vm2647, 1, 0
      %v2672 = vsel %vm2648, 1, 0
      %v2673 = vsel %vm2649, 1, 0
      %v2674 = vsel %vm2650, 1, 0
      %v2675 = vsel %vm2651, 1, 0
      %v2676 = vsel %vm2652, 1, 0
      %v2677 = vsel %vm2653, 1, 0
      %v2678 = vsel %vm2654, 1, 0
      %v2679 = vsel %vm2655, 1, 0
      %v2680 = vsel %vm2656, 1, 0
      %v2681 = vsel %vm2657, 1, 0
      %v2682 = vsel %vm2658, 1, 0
      %v2683 = vsel %vm2659, 1, 0
      %v2684 = vsel %vm2660, 1, 0
      %v2685 = vsel %vm2661, 1, 0
      %v2686 = vsel %vm2662, 1, 0
      %v2687 = vsel %vm2663, 1, 0
      %v2688 = vsel %vm2664, 1, 0
      %v2689 = vsel %vm2665, 1, 0
      %v2690 = vsel %vm2666, 1, 0
      %v2691 = vsel %vm2667, 1, 0
      %2692 = vset.pattern.permute.xlu0 0
      %2693 = vperm.xlu0 %2692, %v2668
      %v2694 = vpop.permute.xlu0 %2693
      %2695 = vset.pattern.permute.xlu0 0
      %2696 = vperm.xlu0 %2695, %v2669
      %v2697 = vpop.permute.xlu0 %2696
      %2698 = vset.pattern.permute.xlu0 0
      %2699 = vperm.xlu0 %2698, %v2670
      %v2700 = vpop.permute.xlu0 %2699
      %2701 = vset.pattern.permute.xlu0 0
      %2702 = vperm.xlu0 %2701, %v2671
      %v2703 = vpop.permute.xlu0 %2702
      %2704 = vset.pattern.permute.xlu0 0
      %2705 = vperm.xlu0 %2704, %v2672
      %v2706 = vpop.permute.xlu0 %2705
      %2707 = vset.pattern.permute.xlu0 0
      %2708 = vperm.xlu0 %2707, %v2673
      %v2709 = vpop.permute.xlu0 %2708
      %2710 = vset.pattern.permute.xlu0 0
      %2711 = vperm.xlu0 %2710, %v2674
      %v2712 = vpop.permute.xlu0 %2711
      %2713 = vset.pattern.permute.xlu0 0
      %2714 = vperm.xlu0 %2713, %v2675
      %v2715 = vpop.permute.xlu0 %2714
      %2716 = vset.pattern.permute.xlu0 0
      %2717 = vperm.xlu0 %2716, %v2676
      %v2718 = vpop.permute.xlu0 %2717
      %2719 = vset.pattern.permute.xlu0 0
      %2720 = vperm.xlu0 %2719, %v2677
      %v2721 = vpop.permute.xlu0 %2720
      %2722 = vset.pattern.permute.xlu0 0
      %2723 = vperm.xlu0 %2722, %v2678
      %v2724 = vpop.permute.xlu0 %2723
      %2725 = vset.pattern.permute.xlu0 0
      %2726 = vperm.xlu0 %2725, %v2679
      %v2727 = vpop.permute.xlu0 %2726
      %2728 = vset.pattern.permute.xlu0 0
      %2729 = vperm.xlu0 %2728, %v2680
      %v2730 = vpop.permute.xlu0 %2729
      %2731 = vset.pattern.permute.xlu0 0
      %2732 = vperm.xlu0 %2731, %v2681
      %v2733 = vpop.permute.xlu0 %2732
      %2734 = vset.pattern.permute.xlu0 0
      %2735 = vperm.xlu0 %2734, %v2682
      %v2736 = vpop.permute.xlu0 %2735
      %2737 = vset.pattern.permute.xlu0 0
      %2738 = vperm.xlu0 %2737, %v2683
      %v2739 = vpop.permute.xlu0 %2738
      %2740 = vset.pattern.permute.xlu0 0
      %2741 = vperm.xlu0 %2740, %v2684
      %v2742 = vpop.permute.xlu0 %2741
      %2743 = vset.pattern.permute.xlu0 0
      %2744 = vperm.xlu0 %2743, %v2685
      %v2745 = vpop.permute.xlu0 %2744
      %2746 = vset.pattern.permute.xlu0 0
      %2747 = vperm.xlu0 %2746, %v2686
      %v2748 = vpop.permute.xlu0 %2747
      %2749 = vset.pattern.permute.xlu0 0
      %2750 = vperm.xlu0 %2749, %v2687
      %v2751 = vpop.permute.xlu0 %2750
      %2752 = vset.pattern.permute.xlu0 0
      %2753 = vperm.xlu0 %2752, %v2688
      %v2754 = vpop.permute.xlu0 %2753
      %2755 = vset.pattern.permute.xlu0 0
      %2756 = vperm.xlu0 %2755, %v2689
      %v2757 = vpop.permute.xlu0 %2756
      %2758 = vset.pattern.permute.xlu0 0
      %2759 = vperm.xlu0 %2758, %v2690
      %v2760 = vpop.permute.xlu0 %2759
      %2761 = vset.pattern.permute.xlu0 0
      %2762 = vperm.xlu0 %2761, %v2691
      %v2763 = vpop.permute.xlu0 %2762
      %vm2764 = vcmp.eq.s32.totalorder %v2694, 1
      %vm2765 = vcmp.eq.s32.totalorder %v2697, 1
      %vm2766 = vcmp.eq.s32.totalorder %v2700, 1
      %vm2767 = vcmp.eq.s32.totalorder %v2703, 1
      %vm2768 = vcmp.eq.s32.totalorder %v2706, 1
      %vm2769 = vcmp.eq.s32.totalorder %v2709, 1
      %vm2770 = vcmp.eq.s32.totalorder %v2712, 1
      %vm2771 = vcmp.eq.s32.totalorder %v2715, 1
      %vm2772 = vcmp.eq.s32.totalorder %v2718, 1
      %vm2773 = vcmp.eq.s32.totalorder %v2721, 1
      %vm2774 = vcmp.eq.s32.totalorder %v2724, 1
      %vm2775 = vcmp.eq.s32.totalorder %v2727, 1
      %vm2776 = vcmp.eq.s32.totalorder %v2730, 1
      %vm2777 = vcmp.eq.s32.totalorder %v2733, 1
      %vm2778 = vcmp.eq.s32.totalorder %v2736, 1
      %vm2779 = vcmp.eq.s32.totalorder %v2739, 1
      %vm2780 = vcmp.eq.s32.totalorder %v2742, 1
      %vm2781 = vcmp.eq.s32.totalorder %v2745, 1
      %vm2782 = vcmp.eq.s32.totalorder %v2748, 1
      %vm2783 = vcmp.eq.s32.totalorder %v2751, 1
      %vm2784 = vcmp.eq.s32.totalorder %v2754, 1
      %vm2785 = vcmp.eq.s32.totalorder %v2757, 1
      %vm2786 = vcmp.eq.s32.totalorder %v2760, 1
      %vm2787 = vcmp.eq.s32.totalorder %v2763, 1
      %v2788 = vsel %vm2764, %v2404, 0.0
      %v2789 = vsel %vm2765, %v2407, 0.0
      %v2790 = vsel %vm2766, %v2412, 0.0
      %v2791 = vsel %vm2767, %v2415, 0.0
      %v2792 = vsel %vm2768, %v2420, 0.0
      %v2793 = vsel %vm2769, %v2423, 0.0
      %v2794 = vsel %vm2770, %v2428, 0.0
      %v2795 = vsel %vm2771, %v2431, 0.0
      %v2796 = vsel %vm2772, %v2436, 0.0
      %v2797 = vsel %vm2773, %v2439, 0.0
      %v2798 = vsel %vm2774, %v2444, 0.0
      %v2799 = vsel %vm2775, %v2447, 0.0
      %v2800 = vsel %vm2776, %v2452, 0.0
      %v2801 = vsel %vm2777, %v2455, 0.0
      %v2802 = vsel %vm2778, %v2460, 0.0
      %v2803 = vsel %vm2779, %v2463, 0.0
      %v2804 = vsel %vm2780, %v2468, 0.0
      %v2805 = vsel %vm2781, %v2471, 0.0
      %v2806 = vsel %vm2782, %v2476, 0.0
      %v2807 = vsel %vm2783, %v2479, 0.0
      %v2808 = vsel %vm2784, %v2484, 0.0
      %v2809 = vsel %vm2785, %v2487, 0.0
      %v2810 = vsel %vm2786, %v2492, 0.0
      %v2811 = vsel %vm2787, %v2495, 0.0
      %v2812 = vsel %vm1185, %v2788, 0.0
      %v2813 = vsel %vm1185, %v2789, 0.0
      %v2814 = vadd.f32 %v2812, %v2813
      %v2815 = vsel %vm1185, %v2790, 0.0
      %v2816 = vadd.f32 %v2814, %v2815
      %v2817 = vsel %vm1185, %v2791, 0.0
      %v2818 = vadd.f32 %v2816, %v2817
      %v2819 = vsel %vm1185, %v2792, 0.0
      %v2820 = vadd.f32 %v2818, %v2819
      %v2821 = vsel %vm1185, %v2793, 0.0
      %v2822 = vadd.f32 %v2820, %v2821
      %v2823 = vsel %vm1185, %v2794, 0.0
      %v2824 = vadd.f32 %v2822, %v2823
      %v2825 = vsel %vm1185, %v2795, 0.0
      %v2826 = vadd.f32 %v2824, %v2825
      %v2827 = vsel %vm1185, %v2796, 0.0
      %v2828 = vadd.f32 %v2826, %v2827
      %v2829 = vsel %vm1185, %v2797, 0.0
      %v2830 = vadd.f32 %v2828, %v2829
      %v2831 = vsel %vm1185, %v2798, 0.0
      %v2832 = vadd.f32 %v2830, %v2831
      %v2833 = vsel %vm1185, %v2799, 0.0
      %v2834 = vadd.f32 %v2832, %v2833
      %v2835 = vsel %vm1185, %v2800, 0.0
      %v2836 = vadd.f32 %v2834, %v2835
      %v2837 = vsel %vm1185, %v2801, 0.0
      %v2838 = vadd.f32 %v2836, %v2837
      %v2839 = vsel %vm1185, %v2802, 0.0
      %v2840 = vadd.f32 %v2838, %v2839
      %v2841 = vsel %vm1185, %v2803, 0.0
      %v2842 = vadd.f32 %v2840, %v2841
      %v2843 = vsel %vm1185, %v2804, 0.0
      %v2844 = vadd.f32 %v2842, %v2843
      %v2845 = vsel %vm1185, %v2805, 0.0
      %v2846 = vadd.f32 %v2844, %v2845
      %v2847 = vsel %vm1185, %v2806, 0.0
      %v2848 = vadd.f32 %v2846, %v2847
      %v2849 = vsel %vm1185, %v2807, 0.0
      %v2850 = vadd.f32 %v2848, %v2849
      %v2851 = vsel %vm1185, %v2808, 0.0
      %v2852 = vadd.f32 %v2850, %v2851
      %v2853 = vsel %vm1185, %v2809, 0.0
      %v2854 = vadd.f32 %v2852, %v2853
      %v2855 = vsel %vm1185, %v2810, 0.0
      %v2856 = vadd.f32 %v2854, %v2855
      %v2857 = vsel %vm1185, %v2811, 0.0
      %v2858 = vadd.f32 %v2856, %v2857
      %v2859 = vrot.slane %v2858, 4
      %v2860 = vadd.f32 %v2858, %v2859
      %v2861 = vrot.slane %v2860, 2
      %v2862 = vadd.f32 %v2860, %v2861
      %v2863 = vrot.slane %v2862, 1
      %v2864 = vadd.f32 %v2862, %v2863
      %v2865 = vmul.f32 %v2788, %v2788
      %v2866 = vmul.f32 %v2789, %v2789
      %v2867 = vmul.f32 %v2790, %v2790
      %v2868 = vmul.f32 %v2791, %v2791
      %v2869 = vmul.f32 %v2792, %v2792
      %v2870 = vmul.f32 %v2793, %v2793
      %v2871 = vmul.f32 %v2794, %v2794
      %v2872 = vmul.f32 %v2795, %v2795
      %v2873 = vmul.f32 %v2796, %v2796
      %v2874 = vmul.f32 %v2797, %v2797
      %v2875 = vmul.f32 %v2798, %v2798
      %v2876 = vmul.f32 %v2799, %v2799
      %v2877 = vmul.f32 %v2800, %v2800
      %v2878 = vmul.f32 %v2801, %v2801
      %v2879 = vmul.f32 %v2802, %v2802
      %v2880 = vmul.f32 %v2803, %v2803
      %v2881 = vmul.f32 %v2804, %v2804
      %v2882 = vmul.f32 %v2805, %v2805
      %v2883 = vmul.f32 %v2806, %v2806
      %v2884 = vmul.f32 %v2807, %v2807
      %v2885 = vmul.f32 %v2808, %v2808
      %v2886 = vmul.f32 %v2809, %v2809
      %v2887 = vmul.f32 %v2810, %v2810
      %v2888 = vmul.f32 %v2811, %v2811
      %v2889 = vsel %vm1185, %v2865, 0.0
      %v2890 = vsel %vm1185, %v2866, 0.0
      %v2891 = vadd.f32 %v2889, %v2890
      %v2892 = vsel %vm1185, %v2867, 0.0
      %v2893 = vadd.f32 %v2891, %v2892
      %v2894 = vsel %vm1185, %v2868, 0.0
      %v2895 = vadd.f32 %v2893, %v2894
      %v2896 = vsel %vm1185, %v2869, 0.0
      %v2897 = vadd.f32 %v2895, %v2896
      %v2898 = vsel %vm1185, %v2870, 0.0
      %v2899 = vadd.f32 %v2897, %v2898
      %v2900 = vsel %vm1185, %v2871, 0.0
      %v2901 = vadd.f32 %v2899, %v2900
      %v2902 = vsel %vm1185, %v2872, 0.0
      %v2903 = vadd.f32 %v2901, %v2902
      %v2904 = vsel %vm1185, %v2873, 0.0
      %v2905 = vadd.f32 %v2903, %v2904
      %v2906 = vsel %vm1185, %v2874, 0.0
      %v2907 = vadd.f32 %v2905, %v2906
      %v2908 = vsel %vm1185, %v2875, 0.0
      %v2909 = vadd.f32 %v2907, %v2908
      %v2910 = vsel %vm1185, %v2876, 0.0
      %v2911 = vadd.f32 %v2909, %v2910
      %v2912 = vsel %vm1185, %v2877, 0.0
      %v2913 = vadd.f32 %v2911, %v2912
      %v2914 = vsel %vm1185, %v2878, 0.0
      %v2915 = vadd.f32 %v2913, %v2914
      %v2916 = vsel %vm1185, %v2879, 0.0
      %v2917 = vadd.f32 %v2915, %v2916
      %v2918 = vsel %vm1185, %v2880, 0.0
      %v2919 = vadd.f32 %v2917, %v2918
      %v2920 = vsel %vm1185, %v2881, 0.0
      %v2921 = vadd.f32 %v2919, %v2920
      %v2922 = vsel %vm1185, %v2882, 0.0
      %v2923 = vadd.f32 %v2921, %v2922
      %v2924 = vsel %vm1185, %v2883, 0.0
      %v2925 = vadd.f32 %v2923, %v2924
      %v2926 = vsel %vm1185, %v2884, 0.0
      %v2927 = vadd.f32 %v2925, %v2926
      %v2928 = vsel %vm1185, %v2885, 0.0
      %v2929 = vadd.f32 %v2927, %v2928
      %v2930 = vsel %vm1185, %v2886, 0.0
      %v2931 = vadd.f32 %v2929, %v2930
      %v2932 = vsel %vm1185, %v2887, 0.0
      %v2933 = vadd.f32 %v2931, %v2932
      %v2934 = vsel %vm1185, %v2888, 0.0
      %v2935 = vadd.f32 %v2933, %v2934
      %v2936 = vrot.slane %v2935, 4
      %v2937 = vadd.f32 %v2935, %v2936
      %v2938 = vrot.slane %v2937, 2
      %v2939 = vadd.f32 %v2937, %v2938
      %v2940 = vrot.slane %v2939, 1
      %v2941 = vadd.f32 %v2939, %v2940
      %vm2942 = vcmask 1040384
      %v2943 = vsel %vm2942, %v2864, %v2941
      %vm2944 = vcmask 517120
      %2945 = vst.msk [vmem:[%s327] sm:$0x3] %vm2944, %v2943
      %s2946 = sadd.s32 %s24, 1
      %s2947 = smul.u32 24, %s2946
      %p2948 = scmp.lt.s32.totalorder %s23, 1
      %s2949 = scalar_select %p2948, %s23, 1
      %p2950 = scmp.lt.s32.totalorder %s2947, 95
      %s2951 = scalar_select %p2950, %s2947, 95
      %s2952 = smul.addr %s2949, 96
      %s2953 = sadd.s32 %s2951, %s2952
      %s2954 = smul.addr %s2953, 4
      %s2955 = scalar_lea.vmem %s6, %s2954
      %p2956 = scmp.lt.s32.totalorder %s23, 1
      %s2957 = scalar_select %p2956, %s23, 1
      %p2958 = scmp.lt.s32.totalorder %s24, 1
      %s2959 = scalar_select %p2958, %s24, 1
      %s2960 = smul.addr %s2957, 2
      %s2961 = sadd.s32 %s2959, %s2960
      %s2962 = smul.addr %s2961, 2
      %s2963 = scalar_lea.vmem %s7, %s2962
      // Predicated region
      $region45: #{hidden_encoder_forward.7} parent=43 // pred_check
        %p2964 = pneg %p184
      $region46: #{hidden_encoder_forward.7} parent=43 // pred_check_branch
        %2966 = sbr.rel (%p2964) target = $region48
      $region47: #{hidden_encoder_forward.7} parent=43 // pred_region
        %s2967 = sadd.s32 %s24, 1
        %s2968 = smul.u32 24, %s2967
      $region48: #{hidden_encoder_forward.7} parent=43 // pred_fallthru
        _
      // Predicated region
      $region49: #{hidden_encoder_forward.7} parent=43 // pred_check
        %p2969 = pneg %p212
      $region50: #{hidden_encoder_forward.7} parent=43 // pred_check_branch
        %2971 = sbr.rel (%p2969) target = $region52
      $region51: #{hidden_encoder_forward.7} parent=43 // pred_region
        _
      $region52: #{hidden_encoder_forward.7} parent=43 // pred_fallthru
        _
    $region44: #{hidden_encoder_forward.7} parent=5 // pred_fallthru
      _
    %p2972 = scmp.le.s32.totalorder 2, %s14
    // Predicated region
    $region53: #{hidden_encoder_forward.7} parent=5 // pred_check
      %p2973 = pneg %p2972
    $region54: #{hidden_encoder_forward.7} parent=5 // pred_check_branch
      %2975 = sbr.rel (%p2973) target = $region56
    $region55: #{hidden_encoder_forward.7} parent=5 // pred_region
      %s2976 = ssub.s32 %s14, 2
      // Predicated region
      $region57: #{hidden_encoder_forward.7} parent=55 // pred_check
        %p2977 = pneg %p190
      $region58: #{hidden_encoder_forward.7} parent=55 // pred_check_branch
        %2979 = sbr.rel (%p2977) target = $region60
      $region59: #{hidden_encoder_forward.7} parent=55 // pred_region
        %s2980 = sadd.s32 %s26, 1
        %s2981 = smul.u32 24, %s2980
        %p2982 = scmp.lt.s32.totalorder %s25, 1
        %s2983 = scalar_select %p2982, %s25, 1
        %p2984 = scmp.lt.s32.totalorder %s2981, 95
        %s2985 = scalar_select %p2984, %s2981, 95
        %s2986 = smul.addr %s2983, 96
        %s2987 = sadd.s32 %s2985, %s2986
        %s2988 = smul.addr %s2987, 4
        %s2989 = scalar_lea.vmem %s6, %s2988
      $region60: #{hidden_encoder_forward.7} parent=55 // pred_fallthru
        _
      // Predicated region
      $region61: #{hidden_encoder_forward.7} parent=55 // pred_check
        %p2990 = pneg %p218
      $region62: #{hidden_encoder_forward.7} parent=55 // pred_check_branch
        %2992 = sbr.rel (%p2990) target = $region64
      $region63: #{hidden_encoder_forward.7} parent=55 // pred_region
        %p2993 = scmp.lt.s32.totalorder %s25, 1
        %s2994 = scalar_select %p2993, %s25, 1
        %p2995 = scmp.lt.s32.totalorder %s26, 1
        %s2996 = scalar_select %p2995, %s26, 1
        %s2997 = smul.addr %s2994, 2
        %s2998 = sadd.s32 %s2996, %s2997
        %s2999 = smul.addr %s2998, 2
        %s3000 = scalar_lea.vmem %s7, %s2999
      $region64: #{hidden_encoder_forward.7} parent=55 // pred_fallthru
        _
    $region56: #{hidden_encoder_forward.7} parent=5 // pred_fallthru
      _
  $region6: #{hidden_encoder_forward.7} parent=0 // loop_footer
    %s18 = sadd.s32 1, %s14
  $region7: #{hidden_encoder_forward.7} parent=0 // loop_footer_branch
    %13 = sbr.rel target = $region3
  $region8: #{hidden_encoder_forward.7} parent=0 // loop_exit
    _

// kernel: hidden_encoder_forward.6
$region0: #{hidden_encoder_forward.6}
  #allocation0 [shape = 'u32[]', space=smem, size = 0x4, offset = 0x4, fixed_abs, tag = 'smem constant byte address 0x4 - core index']
  #allocation1 [shape = 'u32[144,128]{1,0:T(1,128)}', space=vmem, size = 0x12000, scoped, tag = 'internal scratch']
  %s0 = inlined_call_operand.vmem [shape: bf16[2,768,8], index: 0, kind: input, shape index: {}]
  %s1 = inlined_call_operand.vmem [shape: f32[768,1], index: 1, kind: input, shape index: {}]
  %s2 = inlined_call_operand.vmem [shape: f32[1,8], index: 2, kind: input, shape index: {}]
  %s3 = inlined_call_operand.vmem [shape: f32[1,8], index: 3, kind: input, shape index: {}, may-alias: {3,4}]
  %s4 = inlined_call_operand.vmem [shape: f32[1,8], index: 4, kind: input, shape index: {}, may-alias: {3,4}]
  %s5 = inlined_call_operand.vmem [shape: bf16[72,64], index: 5, kind: input, shape index: {}]
  %s6 = inlined_call_operand.vmem [shape: bf16[2,768,64], index: 6, kind: output, shape index: {0}]
  %s7 = inlined_call_operand.vmem [shape: f32[2,2,2,64], index: 7, kind: output, shape index: {1}]
  %8 = xla_tuple %s6, %s7
  %s9 = sld [smem:[#allocation0]]
  $region65: #{hidden_encoder_forward.6} parent=0
    _
  %s11 = ssub.s32 1, %s9
  %s12 = scalar_select 0, %s11, %s9
  loop: start=0, step=1, limit=6
  $region2: #{hidden_encoder_forward.6} parent=0 // loop_pre_header
    _
  $region3: #{hidden_encoder_forward.6} parent=0 // loop_header
    %s14 = sphi 0, %s18
    %p15 = scmp.ge.s32.totalorder %s14, 6
    %s21 = sphi 0, %s33
    %s22 = sphi 0, %s29
    %s23 = sphi 0, %s21
    %s24 = sphi 0, %s22
    %s25 = sphi 0, %s23
    %s26 = sphi 0, %s24
    %s36 = sphi 0, %s38
    %s39 = sphi 0, %s36
    %s40 = sphi 0, %s39
    %s56 = sphi 0, %s40
    %s60 = sphi 0, %s60
    %s62 = sphi 0, %s60
    %s63 = sphi 0, %s62
    %s77 = sphi 0, %s63
    %s81 = sphi 0, %s81
    %s83 = sphi 0, %s81
    %s84 = sphi 0, %s83
    %s98 = sphi 0, %s84
    %s102 = sphi 0, %s102
    %s104 = sphi 0, %s102
    %s105 = sphi 0, %s104
    %s119 = sphi 0, %s105
    %s123 = sphi 0, %s123
    %s125 = sphi 0, %s123
    %s126 = sphi 0, %s125
    %s140 = sphi 0, %s126
    %s144 = sphi 0, %s144
    %s146 = sphi 0, %s144
    %s147 = sphi 0, %s146
    %s161 = sphi 0, %s147
    %s171 = sphi 0, %s173
    %s174 = sphi 0, %s171
    %s175 = sphi 0, %s174
    %s191 = sphi 0, %s175
    %s199 = sphi 0, %s201
    %s202 = sphi 0, %s199
    %s203 = sphi 0, %s202
    %s219 = sphi 0, %s203
  $region4: #{hidden_encoder_forward.6} parent=0 // loop_header_branch
    %17 = sbr.rel (%p15) target = $region8
  $region5: #{hidden_encoder_forward.6} parent=0 // loop_body
    %s19 = ssub.s32 %s14, 1
    %s20 = ssub.s32 %s14, 2
    %s27 = sadd.s32 1, %s22
    %p28 = scmp.ge.s32.totalorder %s27, 2
    %s29 = scalar_select %p28, 0, %s27
    %s30 = sadd.s32 1, %s21
    %s31 = scalar_select %p28, %s30, %s21
    %p32 = scmp.ge.s32.totalorder %s31, 2
    %s33 = scalar_select %p32, 0, %s31
    %s34 = ssub.s32 %s21, %s33
    %p35 = scmp.eq.s32.totalorder %s34, 0
    %s37 = sadd.s32 %s36, 1
    %s38 = scalar_select %p35, %s36, %s37
    %p41 = pneg %p35
    %p42 = scmp.eq.s32.totalorder %s14, 3
    %p43 = por %p41, %p42
    %p44 = scmp.ne.s32.totalorder %s36, %s39
    %p45 = scmp.eq.s32.totalorder %s14, 0
    %p46 = por %p44, %p45
    %p47 = scmp.ne.s32.totalorder %s36, %s39
    %p48 = scmp.eq.s32.totalorder %s19, 3
    %p49 = por %p47, %p48
    %p50 = scmp.ne.s32.totalorder %s39, %s40
    %p51 = scmp.eq.s32.totalorder %s19, 0
    %p52 = por %p50, %p51
    %p53 = scmp.ne.s32.totalorder %s39, %s40
    %p54 = scmp.eq.s32.totalorder %s20, 3
    %p55 = por %p53, %p54
    %p57 = scmp.ne.s32.totalorder %s40, %s56
    %p58 = scmp.eq.s32.totalorder %s20, 0
    %p59 = por %p57, %p58
    %s61 = sadd.s32 %s60, 1
    %p64 = scmp.eq.s32.totalorder %s14, 3
    %p65 = scmp.ne.s32.totalorder %s60, %s62
    %p66 = scmp.eq.s32.totalorder %s14, 0
    %p67 = por %p65, %p66
    %p68 = scmp.ne.s32.totalorder %s60, %s62
    %p69 = scmp.eq.s32.totalorder %s19, 3
    %p70 = por %p68, %p69
    %p71 = scmp.ne.s32.totalorder %s62, %s63
    %p72 = scmp.eq.s32.totalorder %s19, 0
    %p73 = por %p71, %p72
    %p74 = scmp.ne.s32.totalorder %s62, %s63
    %p75 = scmp.eq.s32.totalorder %s20, 3
    %p76 = por %p74, %p75
    %p78 = scmp.ne.s32.totalorder %s63, %s77
    %p79 = scmp.eq.s32.totalorder %s20, 0
    %p80 = por %p78, %p79
    %s82 = sadd.s32 %s81, 1
    %p85 = scmp.eq.s32.totalorder %s14, 3
    %p86 = scmp.ne.s32.totalorder %s81, %s83
    %p87 = scmp.eq.s32.totalorder %s14, 0
    %p88 = por %p86, %p87
    %p89 = scmp.ne.s32.totalorder %s81, %s83
    %p90 = scmp.eq.s32.totalorder %s19, 3
    %p91 = por %p89, %p90
    %p92 = scmp.ne.s32.totalorder %s83, %s84
    %p93 = scmp.eq.s32.totalorder %s19, 0
    %p94 = por %p92, %p93
    %p95 = scmp.ne.s32.totalorder %s83, %s84
    %p96 = scmp.eq.s32.totalorder %s20, 3
    %p97 = por %p95, %p96
    %p99 = scmp.ne.s32.totalorder %s84, %s98
    %p100 = scmp.eq.s32.totalorder %s20, 0
    %p101 = por %p99, %p100
    %s103 = sadd.s32 %s102, 1
    %p106 = scmp.eq.s32.totalorder %s14, 3
    %p107 = scmp.ne.s32.totalorder %s102, %s104
    %p108 = scmp.eq.s32.totalorder %s14, 0
    %p109 = por %p107, %p108
    %p110 = scmp.ne.s32.totalorder %s102, %s104
    %p111 = scmp.eq.s32.totalorder %s19, 3
    %p112 = por %p110, %p111
    %p113 = scmp.ne.s32.totalorder %s104, %s105
    %p114 = scmp.eq.s32.totalorder %s19, 0
    %p115 = por %p113, %p114
    %p116 = scmp.ne.s32.totalorder %s104, %s105
    %p117 = scmp.eq.s32.totalorder %s20, 3
    %p118 = por %p116, %p117
    %p120 = scmp.ne.s32.totalorder %s105, %s119
    %p121 = scmp.eq.s32.totalorder %s20, 0
    %p122 = por %p120, %p121
    %s124 = sadd.s32 %s123, 1
    %p127 = scmp.eq.s32.totalorder %s14, 3
    %p128 = scmp.ne.s32.totalorder %s123, %s125
    %p129 = scmp.eq.s32.totalorder %s14, 0
    %p130 = por %p128, %p129
    %p131 = scmp.ne.s32.totalorder %s123, %s125
    %p132 = scmp.eq.s32.totalorder %s19, 3
    %p133 = por %p131, %p132
    %p134 = scmp.ne.s32.totalorder %s125, %s126
    %p135 = scmp.eq.s32.totalorder %s19, 0
    %p136 = por %p134, %p135
    %p137 = scmp.ne.s32.totalorder %s125, %s126
    %p138 = scmp.eq.s32.totalorder %s20, 3
    %p139 = por %p137, %p138
    %p141 = scmp.ne.s32.totalorder %s126, %s140
    %p142 = scmp.eq.s32.totalorder %s20, 0
    %p143 = por %p141, %p142
    %s145 = sadd.s32 %s144, 1
    %p148 = scmp.eq.s32.totalorder %s14, 3
    %p149 = scmp.ne.s32.totalorder %s144, %s146
    %p150 = scmp.eq.s32.totalorder %s14, 0
    %p151 = por %p149, %p150
    %p152 = scmp.ne.s32.totalorder %s144, %s146
    %p153 = scmp.eq.s32.totalorder %s19, 3
    %p154 = por %p152, %p153
    %p155 = scmp.ne.s32.totalorder %s146, %s147
    %p156 = scmp.eq.s32.totalorder %s19, 0
    %p157 = por %p155, %p156
    %p158 = scmp.ne.s32.totalorder %s146, %s147
    %p159 = scmp.eq.s32.totalorder %s20, 3
    %p160 = por %p158, %p159
    %p162 = scmp.ne.s32.totalorder %s147, %s161
    %p163 = scmp.eq.s32.totalorder %s20, 0
    %p164 = por %p162, %p163
    %s165 = sadd.s32 %s22, 1
    %s166 = sadd.s32 %s29, 1
    %s167 = ssub.s32 %s21, %s33
    %s168 = ssub.s32 %s165, %s166
    %s169 = sor.u32 %s167, %s168
    %p170 = scmp.eq.s32.totalorder %s169, 0
    %s172 = sadd.s32 %s171, 1
    %s173 = scalar_select %p170, %s171, %s172
    %p176 = pneg %p170
    %p177 = scmp.eq.s32.totalorder %s14, 3
    %p178 = por %p176, %p177
    %p179 = scmp.ne.s32.totalorder %s171, %s174
    %p180 = scmp.eq.s32.totalorder %s14, 0
    %p181 = por %p179, %p180
    %p182 = scmp.ne.s32.totalorder %s171, %s174
    %p183 = scmp.eq.s32.totalorder %s19, 3
    %p184 = por %p182, %p183
    %p185 = scmp.ne.s32.totalorder %s174, %s175
    %p186 = scmp.eq.s32.totalorder %s19, 0
    %p187 = por %p185, %p186
    %p188 = scmp.ne.s32.totalorder %s174, %s175
    %p189 = scmp.eq.s32.totalorder %s20, 3
    %p190 = por %p188, %p189
    %p192 = scmp.ne.s32.totalorder %s175, %s191
    %p193 = scmp.eq.s32.totalorder %s20, 0
    %p194 = por %p192, %p193
    %s195 = ssub.s32 %s21, %s33
    %s196 = ssub.s32 %s22, %s29
    %s197 = sor.u32 %s195, %s196
    %p198 = scmp.eq.s32.totalorder %s197, 0
    %s200 = sadd.s32 %s199, 1
    %s201 = scalar_select %p198, %s199, %s200
    %p204 = pneg %p198
    %p205 = scmp.eq.s32.totalorder %s14, 3
    %p206 = por %p204, %p205
    %p207 = scmp.ne.s32.totalorder %s199, %s202
    %p208 = scmp.eq.s32.totalorder %s14, 0
    %p209 = por %p207, %p208
    %p210 = scmp.ne.s32.totalorder %s199, %s202
    %p211 = scmp.eq.s32.totalorder %s19, 3
    %p212 = por %p210, %p211
    %p213 = scmp.ne.s32.totalorder %s202, %s203
    %p214 = scmp.eq.s32.totalorder %s19, 0
    %p215 = por %p213, %p214
    %p216 = scmp.ne.s32.totalorder %s202, %s203
    %p217 = scmp.eq.s32.totalorder %s20, 3
    %p218 = por %p216, %p217
    %p220 = scmp.ne.s32.totalorder %s203, %s219
    %p221 = scmp.eq.s32.totalorder %s20, 0
    %p222 = por %p220, %p221
    %p223 = scmp.le.s32.totalorder 1, %s14
    %p224 = scmp.lt.s32.totalorder %s14, 5
    %p225 = pnand %p223, %p224
    %p226 = pneg %p225
    // Predicated region
    $region9: #{hidden_encoder_forward.6} parent=5 // pred_check
      _
    $region10: #{hidden_encoder_forward.6} parent=5 // pred_check_branch
      %228 = sbr.rel (%p225) target = $region12
    $region11: #{hidden_encoder_forward.6} parent=5 // pred_region
      %s229 = ssub.s32 %s14, 1
      // Predicated region
      $region13: #{hidden_encoder_forward.6} parent=11 // pred_check
        %p230 = pneg %p73
      $region14: #{hidden_encoder_forward.6} parent=11 // pred_check_branch
        %232 = sbr.rel (%p230) target = $region16
      $region15: #{hidden_encoder_forward.6} parent=11 // pred_region
        _
      $region16: #{hidden_encoder_forward.6} parent=11 // pred_fallthru
        _
      // Predicated region
      $region17: #{hidden_encoder_forward.6} parent=11 // pred_check
        %p233 = pneg %p94
      $region18: #{hidden_encoder_forward.6} parent=11 // pred_check_branch
        %235 = sbr.rel (%p233) target = $region20
      $region19: #{hidden_encoder_forward.6} parent=11 // pred_region
        _
      $region20: #{hidden_encoder_forward.6} parent=11 // pred_fallthru
        _
      // Predicated region
      $region21: #{hidden_encoder_forward.6} parent=11 // pred_check
        %p236 = pneg %p115
      $region22: #{hidden_encoder_forward.6} parent=11 // pred_check_branch
        %238 = sbr.rel (%p236) target = $region24
      $region23: #{hidden_encoder_forward.6} parent=11 // pred_region
        _
      $region24: #{hidden_encoder_forward.6} parent=11 // pred_fallthru
        _
      // Predicated region
      $region25: #{hidden_encoder_forward.6} parent=11 // pred_check
        %p239 = pneg %p136
      $region26: #{hidden_encoder_forward.6} parent=11 // pred_check_branch
        %241 = sbr.rel (%p239) target = $region28
      $region27: #{hidden_encoder_forward.6} parent=11 // pred_region
        _
      $region28: #{hidden_encoder_forward.6} parent=11 // pred_fallthru
        _
      // Predicated region
      $region29: #{hidden_encoder_forward.6} parent=11 // pred_check
        %p242 = pneg %p157
      $region30: #{hidden_encoder_forward.6} parent=11 // pred_check_branch
        %244 = sbr.rel (%p242) target = $region32
      $region31: #{hidden_encoder_forward.6} parent=11 // pred_region
        _
      $region32: #{hidden_encoder_forward.6} parent=11 // pred_fallthru
        _
    $region12: #{hidden_encoder_forward.6} parent=5 // pred_fallthru
      _
    %p245 = scmp.lt.s32.totalorder %s14, 4
    // Predicated region
    $region33: #{hidden_encoder_forward.6} parent=5 // pred_check
      %p246 = pneg %p245
    $region34: #{hidden_encoder_forward.6} parent=5 // pred_check_branch
      %248 = sbr.rel (%p246) target = $region36
    $region35: #{hidden_encoder_forward.6} parent=5 // pred_region
      // Predicated region
      $region37: #{hidden_encoder_forward.6} parent=35 // pred_check
        %p249 = pneg %p46
      $region38: #{hidden_encoder_forward.6} parent=35 // pred_check_branch
        %251 = sbr.rel (%p249) target = $region40
      $region39: #{hidden_encoder_forward.6} parent=35 // pred_region
        %p252 = scmp.lt.s32.totalorder %s21, 1
        %s253 = scalar_select %p252, %s21, 1
        %s254 = smul.addr %s253, 96
        %s255 = smul.addr %s254, 4
        %s256 = scalar_lea.vmem %s0, %s255
      $region40: #{hidden_encoder_forward.6} parent=35 // pred_fallthru
        _
    $region36: #{hidden_encoder_forward.6} parent=5 // pred_fallthru
      _
    %p257 = scmp.le.s32.totalorder 1, %s14
    %p258 = scmp.lt.s32.totalorder %s14, 5
    %p259 = pnand %p257, %p258
    %p260 = pneg %p259
    // Predicated region
    $region41: #{hidden_encoder_forward.6} parent=5 // pred_check
      _
    $region42: #{hidden_encoder_forward.6} parent=5 // pred_check_branch
      %262 = sbr.rel (%p259) target = $region44
    $region43: #{hidden_encoder_forward.6} parent=5 // pred_region
      %s263 = ssub.s32 %s14, 1
      %p264 = scmp.lt.s32.totalorder %s23, 1
      %s265 = scalar_select %p264, %s23, 1
      %s266 = smul.addr %s265, 96
      %s267 = smul.addr %s266, 4
      %s268 = scalar_lea.vmem %s0, %s267
      %p269 = pneg %p52
      %p270 = pneg %p49
      %p271 = pneg %p73
      %p272 = pneg %p70
      %p273 = pneg %p94
      %p274 = pneg %p91
      %p275 = pneg %p115
      %p276 = pneg %p112
      %p277 = pneg %p136
      %p278 = pneg %p133
      %p279 = pneg %p157
      %p280 = pneg %p154
      %p281 = pneg %p187
      %p282 = pneg %p184
      %s283 = sadd.s32 %s24, 1
      %s284 = smul.u32 24, %s283
      %p285 = scmp.lt.s32.totalorder %s23, 1
      %s286 = scalar_select %p285, %s23, 1
      %p287 = scmp.lt.s32.totalorder %s284, 95
      %s288 = scalar_select %p287, %s284, 95
      %s289 = smul.addr %s286, 96
      %s290 = sadd.s32 %s288, %s289
      %s291 = smul.addr %s290, 4
      %s292 = scalar_lea.vmem %s6, %s291
      %p293 = pneg %p215
      %p294 = pneg %p212
      %p295 = scmp.lt.s32.totalorder %s23, 1
      %s296 = scalar_select %p295, %s23, 1
      %p297 = scmp.lt.s32.totalorder %s24, 1
      %s298 = scalar_select %p297, %s24, 1
      %s299 = smul.addr %s296, 2
      %s300 = sadd.s32 %s298, %s299
      %s301 = smul.addr %s300, 2
      %s302 = scalar_lea.vmem %s7, %s301
      %p303 = scmp.lt.s32.totalorder %s23, 1
      %s304 = scalar_select %p303, %s23, 1
      %s305 = smul.addr %s304, 96
      %s306 = smul.addr %s305, 4
      %s307 = scalar_lea.vmem %s0, %s306
      %s308 = sadd.s32 %s24, 1
      %s309 = smul.u32 24, %s308
      %p310 = scmp.lt.s32.totalorder %s23, 1
      %s311 = scalar_select %p310, %s23, 1
      %p312 = scmp.lt.s32.totalorder %s309, 95
      %s313 = scalar_select %p312, %s309, 95
      %s314 = smul.addr %s311, 96
      %s315 = sadd.s32 %s313, %s314
      %s316 = smul.addr %s315, 4
      %s317 = scalar_lea.vmem %s6, %s316
      %s318 = sadd.s32 %s24, 1
      %s319 = smul.u32 24, %s318
      %p320 = scmp.lt.s32.totalorder %s23, 1
      %s321 = scalar_select %p320, %s23, 1
      %p322 = scmp.lt.s32.totalorder %s24, 1
      %s323 = scalar_select %p322, %s24, 1
      %s324 = smul.addr %s321, 2
      %s325 = sadd.s32 %s323, %s324
      %s326 = smul.addr %s325, 2
      %s327 = scalar_lea.vmem %s7, %s326
      %s329 = sadd.s32 %s24, 1
      %s330 = smul.u32 %s329, 192
      %s331 = ssub.s32 %s330, 32
      %s332 = sshra.s32 %s331, 3
      %s333 = sand.u32 %s331, 7
      %s334 = smul.addr %s332, 4
      %s335 = scalar_lea.vmem %s307, %s334
      %v336 = vld [vmem:[%s335] sm:$0xf]
      %v337 = vld [vmem:[%s335 + $0x4] sm:$0xf]
      %v338 = vld [vmem:[%s335 + $0x8] sm:$0xf]
      %v339 = vld [vmem:[%s335 + $0xc] sm:$0xf]
      %v340 = vld [vmem:[%s335 + $0x10] sm:$0xf]
      %v341 = vld [vmem:[%s335 + $0x14] sm:$0xf]
      %v342 = vld [vmem:[%s335 + $0x18] sm:$0xf]
      %v343 = vld [vmem:[%s335 + $0x1c] sm:$0xf]
      %v344 = vld [vmem:[%s335 + $0x20] sm:$0xf]
      %v345 = vld [vmem:[%s335 + $0x24] sm:$0xf]
      %v346 = vld [vmem:[%s335 + $0x28] sm:$0xf]
      %v347 = vld [vmem:[%s335 + $0x2c] sm:$0xf]
      %v348 = vld [vmem:[%s335 + $0x30] sm:$0xf]
      %v349 = vld [vmem:[%s335 + $0x34] sm:$0xf]
      %v350 = vld [vmem:[%s335 + $0x38] sm:$0xf]
      %v351 = vld [vmem:[%s335 + $0x3c] sm:$0xf]
      %v352 = vld [vmem:[%s335 + $0x40] sm:$0xf]
      %v353 = vld [vmem:[%s335 + $0x44] sm:$0xf]
      %v354 = vld [vmem:[%s335 + $0x48] sm:$0xf]
      %v355 = vld [vmem:[%s335 + $0x4c] sm:$0xf]
      %v356 = vld [vmem:[%s335 + $0x50] sm:$0xf]
      %v357 = vld [vmem:[%s335 + $0x54] sm:$0xf]
      %v358 = vld [vmem:[%s335 + $0x58] sm:$0xf]
      %v359 = vld [vmem:[%s335 + $0x5c] sm:$0xf]
      %v360 = vld [vmem:[%s335 + $0x60] sm:$0xf]
      %v361 = vld [vmem:[%s335 + $0x64] sm:$0xf]
      %v362 = vld [vmem:[%s335 + $0x68] sm:$0xf]
      %v363 = vld [vmem:[%s335 + $0x6c] sm:$0xf]
      %v364 = vld [vmem:[%s335 + $0x70] sm:$0xf]
      %v365 = vld [vmem:[%s335 + $0x74] sm:$0xf]
      %v366 = vld [vmem:[%s335 + $0x78] sm:$0xf]
      %v367 = vld [vmem:[%s335 + $0x7c] sm:$0xf]
      %v368 = vunpack.c.l.bf16 %v336
      %v369 = vunpack.c.l.bf16 %v337
      %v370 = vunpack.c.l.bf16 %v338
      %v371 = vunpack.c.l.bf16 %v339
      %v372 = vunpack.c.l.bf16 %v340
      %v373 = vunpack.c.l.bf16 %v341
      %v374 = vunpack.c.l.bf16 %v342
      %v375 = vunpack.c.l.bf16 %v343
      %v376 = vunpack.c.l.bf16 %v344
      %v377 = vunpack.c.l.bf16 %v345
      %v378 = vunpack.c.l.bf16 %v346
      %v379 = vunpack.c.l.bf16 %v347
      %v380 = vunpack.c.l.bf16 %v348
      %v381 = vunpack.c.l.bf16 %v349
      %v382 = vunpack.c.l.bf16 %v350
      %v383 = vunpack.c.l.bf16 %v351
      %v384 = vunpack.c.l.bf16 %v352
      %v385 = vunpack.c.l.bf16 %v353
      %v386 = vunpack.c.l.bf16 %v354
      %v387 = vunpack.c.l.bf16 %v355
      %v388 = vunpack.c.l.bf16 %v356
      %v389 = vunpack.c.l.bf16 %v357
      %v390 = vunpack.c.l.bf16 %v358
      %v391 = vunpack.c.l.bf16 %v359
      %v392 = vunpack.c.l.bf16 %v360
      %v393 = vunpack.c.l.bf16 %v361
      %v394 = vunpack.c.l.bf16 %v362
      %v395 = vunpack.c.l.bf16 %v363
      %v396 = vunpack.c.l.bf16 %v364
      %v397 = vunpack.c.l.bf16 %v365
      %v398 = vunpack.c.l.bf16 %v366
      %v399 = vunpack.c.l.bf16 %v367
      %v400 = vld [vmem:[%s2] sm:$0x1]
      %v402 = vlaneseq
      %v403 = vshrl.u32 %v402, 7
      %v404 = vsub.s32 0, %v403
      %v405 = vrot.slane %v400, %v404
      %v407 = vmul.f32 %v368, %v405
      %v408 = vmul.f32 %v369, %v405
      %v409 = vmul.f32 %v370, %v405
      %v410 = vmul.f32 %v371, %v405
      %v411 = vmul.f32 %v372, %v405
      %v412 = vmul.f32 %v373, %v405
      %v413 = vmul.f32 %v374, %v405
      %v414 = vmul.f32 %v375, %v405
      %v415 = vmul.f32 %v376, %v405
      %v416 = vmul.f32 %v377, %v405
      %v417 = vmul.f32 %v378, %v405
      %v418 = vmul.f32 %v379, %v405
      %v419 = vmul.f32 %v380, %v405
      %v420 = vmul.f32 %v381, %v405
      %v421 = vmul.f32 %v382, %v405
      %v422 = vmul.f32 %v383, %v405
      %v423 = vmul.f32 %v384, %v405
      %v424 = vmul.f32 %v385, %v405
      %v425 = vmul.f32 %v386, %v405
      %v426 = vmul.f32 %v387, %v405
      %v427 = vmul.f32 %v388, %v405
      %v428 = vmul.f32 %v389, %v405
      %v429 = vmul.f32 %v390, %v405
      %v430 = vmul.f32 %v391, %v405
      %v431 = vmul.f32 %v392, %v405
      %v432 = vmul.f32 %v393, %v405
      %v433 = vmul.f32 %v394, %v405
      %v434 = vmul.f32 %v395, %v405
      %v435 = vmul.f32 %v396, %v405
      %v436 = vmul.f32 %v397, %v405
      %v437 = vmul.f32 %v398, %v405
      %v438 = vmul.f32 %v399, %v405
      %v439 = vld [vmem:[%s3] sm:$0x1]
      %v441 = vlaneseq
      %v442 = vshrl.u32 %v441, 7
      %v443 = vsub.s32 0, %v442
      %v444 = vrot.slane %v439, %v443
      %v446 = vadd.f32 %v407, %v444
      %v447 = vadd.f32 %v408, %v444
      %v448 = vadd.f32 %v409, %v444
      %v449 = vadd.f32 %v410, %v444
      %v450 = vadd.f32 %v411, %v444
      %v451 = vadd.f32 %v412, %v444
      %v452 = vadd.f32 %v413, %v444
      %v453 = vadd.f32 %v414, %v444
      %v454 = vadd.f32 %v415, %v444
      %v455 = vadd.f32 %v416, %v444
      %v456 = vadd.f32 %v417, %v444
      %v457 = vadd.f32 %v418, %v444
      %v458 = vadd.f32 %v419, %v444
      %v459 = vadd.f32 %v420, %v444
      %v460 = vadd.f32 %v421, %v444
      %v461 = vadd.f32 %v422, %v444
      %v462 = vadd.f32 %v423, %v444
      %v463 = vadd.f32 %v424, %v444
      %v464 = vadd.f32 %v425, %v444
      %v465 = vadd.f32 %v426, %v444
      %v466 = vadd.f32 %v427, %v444
      %v467 = vadd.f32 %v428, %v444
      %v468 = vadd.f32 %v429, %v444
      %v469 = vadd.f32 %v430, %v444
      %v470 = vadd.f32 %v431, %v444
      %v471 = vadd.f32 %v432, %v444
      %v472 = vadd.f32 %v433, %v444
      %v473 = vadd.f32 %v434, %v444
      %v474 = vadd.f32 %v435, %v444
      %v475 = vadd.f32 %v436, %v444
      %v476 = vadd.f32 %v437, %v444
      %v477 = vadd.f32 %v438, %v444
      %v478 = vld [vmem:[%s4] sm:$0x1]
      %vm479 = vcmp.gt.f32.partialorder %v478, 0.5
      %v480 = vmax.f32 %v446, 0.0
      %v481 = vmax.f32 %v447, 0.0
      %v482 = vmax.f32 %v448, 0.0
      %v483 = vmax.f32 %v449, 0.0
      %v484 = vmax.f32 %v450, 0.0
      %v485 = vmax.f32 %v451, 0.0
      %v486 = vmax.f32 %v452, 0.0
      %v487 = vmax.f32 %v453, 0.0
      %v488 = vmax.f32 %v454, 0.0
      %v489 = vmax.f32 %v455, 0.0
      %v490 = vmax.f32 %v456, 0.0
      %v491 = vmax.f32 %v457, 0.0
      %v492 = vmax.f32 %v458, 0.0
      %v493 = vmax.f32 %v459, 0.0
      %v494 = vmax.f32 %v460, 0.0
      %v495 = vmax.f32 %v461, 0.0
      %v496 = vmax.f32 %v462, 0.0
      %v497 = vmax.f32 %v463, 0.0
      %v498 = vmax.f32 %v464, 0.0
      %v499 = vmax.f32 %v465, 0.0
      %v500 = vmax.f32 %v466, 0.0
      %v501 = vmax.f32 %v467, 0.0
      %v502 = vmax.f32 %v468, 0.0
      %v503 = vmax.f32 %v469, 0.0
      %v504 = vmax.f32 %v470, 0.0
      %v505 = vmax.f32 %v471, 0.0
      %v506 = vmax.f32 %v472, 0.0
      %v507 = vmax.f32 %v473, 0.0
      %v508 = vmax.f32 %v474, 0.0
      %v509 = vmax.f32 %v475, 0.0
      %v510 = vmax.f32 %v476, 0.0
      %v511 = vmax.f32 %v477, 0.0
      %v512 = vsel %vm479, 1, 0
      %v513 = vlaneseq
      %v514 = vshrl.u32 %v513, 7
      %v515 = vsub.s32 0, %v514
      %v516 = vrot.slane %v512, %v515
      %vm517 = vcmp.eq.s32.totalorder %v516, 1
      %v518 = vsel %vm517, %v480, %v446
      %v519 = vsel %vm517, %v481, %v447
      %v520 = vsel %vm517, %v482, %v448
      %v521 = vsel %vm517, %v483, %v449
      %v522 = vsel %vm517, %v484, %v450
      %v523 = vsel %vm517, %v485, %v451
      %v524 = vsel %vm517, %v486, %v452
      %v525 = vsel %vm517, %v487, %v453
      %v526 = vsel %vm517, %v488, %v454
      %v527 = vsel %vm517, %v489, %v455
      %v528 = vsel %vm517, %v490, %v456
      %v529 = vsel %vm517, %v491, %v457
      %v530 = vsel %vm517, %v492, %v458
      %v531 = vsel %vm517, %v493, %v459
      %v532 = vsel %vm517, %v494, %v460
      %v533 = vsel %vm517, %v495, %v461
      %v534 = vsel %vm517, %v496, %v462
      %v535 = vsel %vm517, %v497, %v463
      %v536 = vsel %vm517, %v498, %v464
      %v537 = vsel %vm517, %v499, %v465
      %v538 = vsel %vm517, %v500, %v466
      %v539 = vsel %vm517, %v501, %v467
      %v540 = vsel %vm517, %v502, %v468
      %v541 = vsel %vm517, %v503, %v469
      %v542 = vsel %vm517, %v504, %v470
      %v543 = vsel %vm517, %v505, %v471
      %v544 = vsel %vm517, %v506, %v472
      %v545 = vsel %vm517, %v507, %v473
      %v546 = vsel %vm517, %v508, %v474
      %v547 = vsel %vm517, %v509, %v475
      %v548 = vsel %vm517, %v510, %v476
      %v549 = vsel %vm517, %v511, %v477
      %s550 = scalar_lea.vmem %s1, %s331
      %v551 = vld [vmem:[%s550] sm:$0xff]
      %v552 = vld [vmem:[%s550 + $0x8] sm:$0xff]
      %v553 = vld [vmem:[%s550 + $0x10] sm:$0xff]
      %v554 = vld [vmem:[%s550 + $0x18] sm:$0xff]
      %v555 = vld [vmem:[%s550 + $0x20] sm:$0xff]
      %v556 = vld [vmem:[%s550 + $0x28] sm:$0xff]
      %v557 = vld [vmem:[%s550 + $0x30] sm:$0xff]
      %v558 = vld [vmem:[%s550 + $0x38] sm:$0xff]
      %v559 = vld [vmem:[%s550 + $0x40] sm:$0xff]
      %v560 = vld [vmem:[%s550 + $0x48] sm:$0xff]
      %v561 = vld [vmem:[%s550 + $0x50] sm:$0xff]
      %v562 = vld [vmem:[%s550 + $0x58] sm:$0xff]
      %v563 = vld [vmem:[%s550 + $0x60] sm:$0xff]
      %v564 = vld [vmem:[%s550 + $0x68] sm:$0xff]
      %v565 = vld [vmem:[%s550 + $0x70] sm:$0xff]
      %v566 = vld [vmem:[%s550 + $0x78] sm:$0xff]
      %v567 = vld [vmem:[%s550 + $0x80] sm:$0xff]
      %v568 = vld [vmem:[%s550 + $0x88] sm:$0xff]
      %v569 = vld [vmem:[%s550 + $0x90] sm:$0xff]
      %v570 = vld [vmem:[%s550 + $0x98] sm:$0xff]
      %v571 = vld [vmem:[%s550 + $0xa0] sm:$0xff]
      %v572 = vld [vmem:[%s550 + $0xa8] sm:$0xff]
      %v573 = vld [vmem:[%s550 + $0xb0] sm:$0xff]
      %v574 = vld [vmem:[%s550 + $0xb8] sm:$0xff]
      %v575 = vld [vmem:[%s550 + $0xc0] sm:$0xff]
      %v576 = vld [vmem:[%s550 + $0xc8] sm:$0xff]
      %v577 = vld [vmem:[%s550 + $0xd0] sm:$0xff]
      %v578 = vld [vmem:[%s550 + $0xd8] sm:$0xff]
      %v579 = vld [vmem:[%s550 + $0xe0] sm:$0xff]
      %v580 = vld [vmem:[%s550 + $0xe8] sm:$0xff]
      %v581 = vld [vmem:[%s550 + $0xf0] sm:$0xff]
      %v582 = vld [vmem:[%s550 + $0xf8] sm:$0xff]
      %vm583 = vcmp.gt.f32.partialorder %v551, 0.5
      %vm584 = vcmp.gt.f32.partialorder %v552, 0.5
      %vm585 = vcmp.gt.f32.partialorder %v553, 0.5
      %vm586 = vcmp.gt.f32.partialorder %v554, 0.5
      %vm587 = vcmp.gt.f32.partialorder %v555, 0.5
      %vm588 = vcmp.gt.f32.partialorder %v556, 0.5
      %vm589 = vcmp.gt.f32.partialorder %v557, 0.5
      %vm590 = vcmp.gt.f32.partialorder %v558, 0.5
      %vm591 = vcmp.gt.f32.partialorder %v559, 0.5
      %vm592 = vcmp.gt.f32.partialorder %v560, 0.5
      %vm593 = vcmp.gt.f32.partialorder %v561, 0.5
      %vm594 = vcmp.gt.f32.partialorder %v562, 0.5
      %vm595 = vcmp.gt.f32.partialorder %v563, 0.5
      %vm596 = vcmp.gt.f32.partialorder %v564, 0.5
      %vm597 = vcmp.gt.f32.partialorder %v565, 0.5
      %vm598 = vcmp.gt.f32.partialorder %v566, 0.5
      %vm599 = vcmp.gt.f32.partialorder %v567, 0.5
      %vm600 = vcmp.gt.f32.partialorder %v568, 0.5
      %vm601 = vcmp.gt.f32.partialorder %v569, 0.5
      %vm602 = vcmp.gt.f32.partialorder %v570, 0.5
      %vm603 = vcmp.gt.f32.partialorder %v571, 0.5
      %vm604 = vcmp.gt.f32.partialorder %v572, 0.5
      %vm605 = vcmp.gt.f32.partialorder %v573, 0.5
      %vm606 = vcmp.gt.f32.partialorder %v574, 0.5
      %vm607 = vcmp.gt.f32.partialorder %v575, 0.5
      %vm608 = vcmp.gt.f32.partialorder %v576, 0.5
      %vm609 = vcmp.gt.f32.partialorder %v577, 0.5
      %vm610 = vcmp.gt.f32.partialorder %v578, 0.5
      %vm611 = vcmp.gt.f32.partialorder %v579, 0.5
      %vm612 = vcmp.gt.f32.partialorder %v580, 0.5
      %vm613 = vcmp.gt.f32.partialorder %v581, 0.5
      %vm614 = vcmp.gt.f32.partialorder %v582, 0.5
      %v615 = vsel %vm583, 1, 0
      %v616 = vsel %vm584, 1, 0
      %v617 = vsel %vm585, 1, 0
      %v618 = vsel %vm586, 1, 0
      %v619 = vsel %vm587, 1, 0
      %v620 = vsel %vm588, 1, 0
      %v621 = vsel %vm589, 1, 0
      %v622 = vsel %vm590, 1, 0
      %v623 = vsel %vm591, 1, 0
      %v624 = vsel %vm592, 1, 0
      %v625 = vsel %vm593, 1, 0
      %v626 = vsel %vm594, 1, 0
      %v627 = vsel %vm595, 1, 0
      %v628 = vsel %vm596, 1, 0
      %v629 = vsel %vm597, 1, 0
      %v630 = vsel %vm598, 1, 0
      %v631 = vsel %vm599, 1, 0
      %v632 = vsel %vm600, 1, 0
      %v633 = vsel %vm601, 1, 0
      %v634 = vsel %vm602, 1, 0
      %v635 = vsel %vm603, 1, 0
      %v636 = vsel %vm604, 1, 0
      %v637 = vsel %vm605, 1, 0
      %v638 = vsel %vm606, 1, 0
      %v639 = vsel %vm607, 1, 0
      %v640 = vsel %vm608, 1, 0
      %v641 = vsel %vm609, 1, 0
      %v642 = vsel %vm610, 1, 0
      %v643 = vsel %vm611, 1, 0
      %v644 = vsel %vm612, 1, 0
      %v645 = vsel %vm613, 1, 0
      %v646 = vsel %vm614, 1, 0
      %647 = vset.pattern.permute.xlu0 0
      %648 = vperm.xlu0 %647, %v615
      %v649 = vpop.permute.xlu0 %648
      %650 = vset.pattern.permute.xlu0 0
      %651 = vperm.xlu0 %650, %v616
      %v652 = vpop.permute.xlu0 %651
      %653 = vset.pattern.permute.xlu0 0
      %654 = vperm.xlu0 %653, %v617
      %v655 = vpop.permute.xlu0 %654
      %656 = vset.pattern.permute.xlu0 0
      %657 = vperm.xlu0 %656, %v618
      %v658 = vpop.permute.xlu0 %657
      %659 = vset.pattern.permute.xlu0 0
      %660 = vperm.xlu0 %659, %v619
      %v661 = vpop.permute.xlu0 %660
      %662 = vset.pattern.permute.xlu0 0
      %663 = vperm.xlu0 %662, %v620
      %v664 = vpop.permute.xlu0 %663
      %665 = vset.pattern.permute.xlu0 0
      %666 = vperm.xlu0 %665, %v621
      %v667 = vpop.permute.xlu0 %666
      %668 = vset.pattern.permute.xlu0 0
      %669 = vperm.xlu0 %668, %v622
      %v670 = vpop.permute.xlu0 %669
      %671 = vset.pattern.permute.xlu0 0
      %672 = vperm.xlu0 %671, %v623
      %v673 = vpop.permute.xlu0 %672
      %674 = vset.pattern.permute.xlu0 0
      %675 = vperm.xlu0 %674, %v624
      %v676 = vpop.permute.xlu0 %675
      %677 = vset.pattern.permute.xlu0 0
      %678 = vperm.xlu0 %677, %v625
      %v679 = vpop.permute.xlu0 %678
      %680 = vset.pattern.permute.xlu0 0
      %681 = vperm.xlu0 %680, %v626
      %v682 = vpop.permute.xlu0 %681
      %683 = vset.pattern.permute.xlu0 0
      %684 = vperm.xlu0 %683, %v627
      %v685 = vpop.permute.xlu0 %684
      %686 = vset.pattern.permute.xlu0 0
      %687 = vperm.xlu0 %686, %v628
      %v688 = vpop.permute.xlu0 %687
      %689 = vset.pattern.permute.xlu0 0
      %690 = vperm.xlu0 %689, %v629
      %v691 = vpop.permute.xlu0 %690
      %692 = vset.pattern.permute.xlu0 0
      %693 = vperm.xlu0 %692, %v630
      %v694 = vpop.permute.xlu0 %693
      %695 = vset.pattern.permute.xlu0 0
      %696 = vperm.xlu0 %695, %v631
      %v697 = vpop.permute.xlu0 %696
      %698 = vset.pattern.permute.xlu0 0
      %699 = vperm.xlu0 %698, %v632
      %v700 = vpop.permute.xlu0 %699
      %701 = vset.pattern.permute.xlu0 0
      %702 = vperm.xlu0 %701, %v633
      %v703 = vpop.permute.xlu0 %702
      %704 = vset.pattern.permute.xlu0 0
      %705 = vperm.xlu0 %704, %v634
      %v706 = vpop.permute.xlu0 %705
      %707 = vset.pattern.permute.xlu0 0
      %708 = vperm.xlu0 %707, %v635
      %v709 = vpop.permute.xlu0 %708
      %710 = vset.pattern.permute.xlu0 0
      %711 = vperm.xlu0 %710, %v636
      %v712 = vpop.permute.xlu0 %711
      %713 = vset.pattern.permute.xlu0 0
      %714 = vperm.xlu0 %713, %v637
      %v715 = vpop.permute.xlu0 %714
      %716 = vset.pattern.permute.xlu0 0
      %717 = vperm.xlu0 %716, %v638
      %v718 = vpop.permute.xlu0 %717
      %719 = vset.pattern.permute.xlu0 0
      %720 = vperm.xlu0 %719, %v639
      %v721 = vpop.permute.xlu0 %720
      %722 = vset.pattern.permute.xlu0 0
      %723 = vperm.xlu0 %722, %v640
      %v724 = vpop.permute.xlu0 %723
      %725 = vset.pattern.permute.xlu0 0
      %726 = vperm.xlu0 %725, %v641
      %v727 = vpop.permute.xlu0 %726
      %728 = vset.pattern.permute.xlu0 0
      %729 = vperm.xlu0 %728, %v642
      %v730 = vpop.permute.xlu0 %729
      %731 = vset.pattern.permute.xlu0 0
      %732 = vperm.xlu0 %731, %v643
      %v733 = vpop.permute.xlu0 %732
      %734 = vset.pattern.permute.xlu0 0
      %735 = vperm.xlu0 %734, %v644
      %v736 = vpop.permute.xlu0 %735
      %737 = vset.pattern.permute.xlu0 0
      %738 = vperm.xlu0 %737, %v645
      %v739 = vpop.permute.xlu0 %738
      %740 = vset.pattern.permute.xlu0 0
      %741 = vperm.xlu0 %740, %v646
      %v742 = vpop.permute.xlu0 %741
      %vm743 = vcmp.eq.s32.totalorder %v649, 1
      %vm744 = vcmp.eq.s32.totalorder %v652, 1
      %vm745 = vcmp.eq.s32.totalorder %v655, 1
      %vm746 = vcmp.eq.s32.totalorder %v658, 1
      %vm747 = vcmp.eq.s32.totalorder %v661, 1
      %vm748 = vcmp.eq.s32.totalorder %v664, 1
      %vm749 = vcmp.eq.s32.totalorder %v667, 1
      %vm750 = vcmp.eq.s32.totalorder %v670, 1
      %vm751 = vcmp.eq.s32.totalorder %v673, 1
      %vm752 = vcmp.eq.s32.totalorder %v676, 1
      %vm753 = vcmp.eq.s32.totalorder %v679, 1
      %vm754 = vcmp.eq.s32.totalorder %v682, 1
      %vm755 = vcmp.eq.s32.totalorder %v685, 1
      %vm756 = vcmp.eq.s32.totalorder %v688, 1
      %vm757 = vcmp.eq.s32.totalorder %v691, 1
      %vm758 = vcmp.eq.s32.totalorder %v694, 1
      %vm759 = vcmp.eq.s32.totalorder %v697, 1
      %vm760 = vcmp.eq.s32.totalorder %v700, 1
      %vm761 = vcmp.eq.s32.totalorder %v703, 1
      %vm762 = vcmp.eq.s32.totalorder %v706, 1
      %vm763 = vcmp.eq.s32.totalorder %v709, 1
      %vm764 = vcmp.eq.s32.totalorder %v712, 1
      %vm765 = vcmp.eq.s32.totalorder %v715, 1
      %vm766 = vcmp.eq.s32.totalorder %v718, 1
      %vm767 = vcmp.eq.s32.totalorder %v721, 1
      %vm768 = vcmp.eq.s32.totalorder %v724, 1
      %vm769 = vcmp.eq.s32.totalorder %v727, 1
      %vm770 = vcmp.eq.s32.totalorder %v730, 1
      %vm771 = vcmp.eq.s32.totalorder %v733, 1
      %vm772 = vcmp.eq.s32.totalorder %v736, 1
      %vm773 = vcmp.eq.s32.totalorder %v739, 1
      %vm774 = vcmp.eq.s32.totalorder %v742, 1
      %v775 = vsel %vm743, %v518, 0.0
      %v776 = vsel %vm744, %v519, 0.0
      %v777 = vsel %vm745, %v520, 0.0
      %v778 = vsel %vm746, %v521, 0.0
      %v779 = vsel %vm747, %v522, 0.0
      %v780 = vsel %vm748, %v523, 0.0
      %v781 = vsel %vm749, %v524, 0.0
      %v782 = vsel %vm750, %v525, 0.0
      %v783 = vsel %vm751, %v526, 0.0
      %v784 = vsel %vm752, %v527, 0.0
      %v785 = vsel %vm753, %v528, 0.0
      %v786 = vsel %vm754, %v529, 0.0
      %v787 = vsel %vm755, %v530, 0.0
      %v788 = vsel %vm756, %v531, 0.0
      %v789 = vsel %vm757, %v532, 0.0
      %v790 = vsel %vm758, %v533, 0.0
      %v791 = vsel %vm759, %v534, 0.0
      %v792 = vsel %vm760, %v535, 0.0
      %v793 = vsel %vm761, %v536, 0.0
      %v794 = vsel %vm762, %v537, 0.0
      %v795 = vsel %vm763, %v538, 0.0
      %v796 = vsel %vm764, %v539, 0.0
      %v797 = vsel %vm765, %v540, 0.0
      %v798 = vsel %vm766, %v541, 0.0
      %v799 = vsel %vm767, %v542, 0.0
      %v800 = vsel %vm768, %v543, 0.0
      %v801 = vsel %vm769, %v544, 0.0
      %v802 = vsel %vm770, %v545, 0.0
      %v803 = vsel %vm771, %v546, 0.0
      %v804 = vsel %vm772, %v547, 0.0
      %v805 = vsel %vm773, %v548, 0.0
      %v806 = vsel %vm774, %v549, 0.0
      %v807 = vpack.c.bf16 %v776, %v775
      %v808 = vpack.c.bf16 %v778, %v777
      %v809 = vpack.c.bf16 %v780, %v779
      %v810 = vpack.c.bf16 %v782, %v781
      %v811 = vpack.c.bf16 %v784, %v783
      %v812 = vpack.c.bf16 %v786, %v785
      %v813 = vpack.c.bf16 %v788, %v787
      %v814 = vpack.c.bf16 %v790, %v789
      %v815 = vpack.c.bf16 %v792, %v791
      %v816 = vpack.c.bf16 %v794, %v793
      %v817 = vpack.c.bf16 %v796, %v795
      %v818 = vpack.c.bf16 %v798, %v797
      %v819 = vpack.c.bf16 %v800, %v799
      %v820 = vpack.c.bf16 %v802, %v801
      %v821 = vpack.c.bf16 %v804, %v803
      %v822 = vpack.c.bf16 %v806, %v805
      %vm823 = vsmask.f32 7424
      %v825 = vshrl.u32 %v807, 16
      %v827 = vshll.u32 %v807, 16
      %v829 = vrot.slane %v827, 1
      %v830 = vor.u32 %v825, %v829
      %v832 = vshll.u32 %v808, 16
      %v834 = vrot.slane %v832, 1
      %v835 = vsel %vm823, %v830, %v834
      %v836 = vshrl.u32 %v808, 16
      %v838 = vor.u32 %v836, %v834
      %v840 = vshll.u32 %v809, 16
      %v842 = vrot.slane %v840, 1
      %v843 = vsel %vm823, %v838, %v842
      %v844 = vshrl.u32 %v809, 16
      %v846 = vor.u32 %v844, %v842
      %v848 = vshll.u32 %v810, 16
      %v850 = vrot.slane %v848, 1
      %v851 = vsel %vm823, %v846, %v850
      %v852 = vshrl.u32 %v810, 16
      %v854 = vor.u32 %v852, %v850
      %v856 = vshll.u32 %v811, 16
      %v858 = vrot.slane %v856, 1
      %v859 = vsel %vm823, %v854, %v858
      %v860 = vshrl.u32 %v811, 16
      %v862 = vor.u32 %v860, %v858
      %v864 = vshll.u32 %v812, 16
      %v866 = vrot.slane %v864, 1
      %v867 = vsel %vm823, %v862, %v866
      %v868 = vshrl.u32 %v812, 16
      %v870 = vor.u32 %v868, %v866
      %v872 = vshll.u32 %v813, 16
      %v874 = vrot.slane %v872, 1
      %v875 = vsel %vm823, %v870, %v874
      %v876 = vshrl.u32 %v813, 16
      %v878 = vor.u32 %v876, %v874
      %v880 = vshll.u32 %v814, 16
      %v882 = vrot.slane %v880, 1
      %v883 = vsel %vm823, %v878, %v882
      %v884 = vshrl.u32 %v814, 16
      %v886 = vor.u32 %v884, %v882
      %v888 = vshll.u32 %v815, 16
      %v890 = vrot.slane %v888, 1
      %v891 = vsel %vm823, %v886, %v890
      %v892 = vshrl.u32 %v815, 16
      %v894 = vor.u32 %v892, %v890
      %v896 = vshll.u32 %v816, 16
      %v898 = vrot.slane %v896, 1
      %v899 = vsel %vm823, %v894, %v898
      %v900 = vshrl.u32 %v816, 16
      %v902 = vor.u32 %v900, %v898
      %v904 = vshll.u32 %v817, 16
      %v906 = vrot.slane %v904, 1
      %v907 = vsel %vm823, %v902, %v906
      %v908 = vshrl.u32 %v817, 16
      %v910 = vor.u32 %v908, %v906
      %v912 = vshll.u32 %v818, 16
      %v914 = vrot.slane %v912, 1
      %v915 = vsel %vm823, %v910, %v914
      %v916 = vshrl.u32 %v818, 16
      %v918 = vor.u32 %v916, %v914
      %v920 = vshll.u32 %v819, 16
      %v922 = vrot.slane %v920, 1
      %v923 = vsel %vm823, %v918, %v922
      %v924 = vshrl.u32 %v819, 16
      %v926 = vor.u32 %v924, %v922
      %927 = vrot.lane.b32.xlu0 %v835, 8
      %v928 = vpop.permute.xlu0 %927
      %929 = vrot.lane.b32.xlu0 %v843, 8
      %v930 = vpop.permute.xlu0 %929
      %931 = vrot.lane.b32.xlu0 %v851, 8
      %v932 = vpop.permute.xlu0 %931
      %933 = vrot.lane.b32.xlu0 %v859, 8
      %v934 = vpop.permute.xlu0 %933
      %935 = vrot.lane.b32.xlu0 %v867, 8
      %v936 = vpop.permute.xlu0 %935
      %937 = vrot.lane.b32.xlu0 %v875, 8
      %v938 = vpop.permute.xlu0 %937
      %939 = vrot.lane.b32.xlu0 %v883, 8
      %v940 = vpop.permute.xlu0 %939
      %941 = vrot.lane.b32.xlu0 %v891, 8
      %v942 = vpop.permute.xlu0 %941
      %943 = vrot.lane.b32.xlu0 %v899, 8
      %v944 = vpop.permute.xlu0 %943
      %945 = vrot.lane.b32.xlu0 %v907, 8
      %v946 = vpop.permute.xlu0 %945
      %947 = vrot.lane.b32.xlu0 %v915, 8
      %v948 = vpop.permute.xlu0 %947
      %949 = vrot.lane.b32.xlu0 %v923, 8
      %v950 = vpop.permute.xlu0 %949
      %951 = vrot.lane.b32.xlu0 %v926, 8
      %v952 = vpop.permute.xlu0 %951
      %vm966 = vcmask 1046528
      %v967 = vrot.slane %v807, 1
      %v968 = vrot.slane %v808, 1
      %v969 = vsel %vm966, %v967, %v968
      %v970 = vrot.slane %v809, 1
      %v971 = vsel %vm966, %v968, %v970
      %v972 = vrot.slane %v810, 1
      %v973 = vsel %vm966, %v970, %v972
      %v974 = vrot.slane %v811, 1
      %v975 = vsel %vm966, %v972, %v974
      %v976 = vrot.slane %v812, 1
      %v977 = vsel %vm966, %v974, %v976
      %v978 = vrot.slane %v813, 1
      %v979 = vsel %vm966, %v976, %v978
      %v980 = vrot.slane %v814, 1
      %v981 = vsel %vm966, %v978, %v980
      %v982 = vrot.slane %v815, 1
      %v983 = vsel %vm966, %v980, %v982
      %v984 = vrot.slane %v816, 1
      %v985 = vsel %vm966, %v982, %v984
      %v986 = vrot.slane %v817, 1
      %v987 = vsel %vm966, %v984, %v986
      %v988 = vrot.slane %v818, 1
      %v989 = vsel %vm966, %v986, %v988
      %v990 = vrot.slane %v819, 1
      %v991 = vsel %vm966, %v988, %v990
      %992 = vrot.lane.b32.xlu0 %v969, 16
      %v993 = vpop.permute.xlu0 %992
      %994 = vrot.lane.b32.xlu0 %v971, 16
      %v995 = vpop.permute.xlu0 %994
      %996 = vrot.lane.b32.xlu0 %v973, 16
      %v997 = vpop.permute.xlu0 %996
      %998 = vrot.lane.b32.xlu0 %v975, 16
      %v999 = vpop.permute.xlu0 %998
      %1000 = vrot.lane.b32.xlu0 %v977, 16
      %v1001 = vpop.permute.xlu0 %1000
      %1002 = vrot.lane.b32.xlu0 %v979, 16
      %v1003 = vpop.permute.xlu0 %1002
      %1004 = vrot.lane.b32.xlu0 %v981, 16
      %v1005 = vpop.permute.xlu0 %1004
      %1006 = vrot.lane.b32.xlu0 %v983, 16
      %v1007 = vpop.permute.xlu0 %1006
      %1008 = vrot.lane.b32.xlu0 %v985, 16
      %v1009 = vpop.permute.xlu0 %1008
      %1010 = vrot.lane.b32.xlu0 %v987, 16
      %v1011 = vpop.permute.xlu0 %1010
      %1012 = vrot.lane.b32.xlu0 %v989, 16
      %v1013 = vpop.permute.xlu0 %1012
      %1014 = vrot.lane.b32.xlu0 %v991, 16
      %v1015 = vpop.permute.xlu0 %1014
      %1016 = vrot.lane.b32.xlu0 %v990, 16
      %v1017 = vpop.permute.xlu0 %1016
      %vm1019 = vcmask 1043456
      %v1020 = vrot.slane %v808, 4
      %v1021 = vrot.slane %v809, 4
      %v1022 = vsel %vm1019, %v1020, %v1021
      %v1023 = vrot.slane %v810, 4
      %v1024 = vsel %vm1019, %v1021, %v1023
      %v1025 = vrot.slane %v811, 4
      %v1026 = vsel %vm1019, %v1023, %v1025
      %v1027 = vrot.slane %v812, 4
      %v1028 = vsel %vm1019, %v1025, %v1027
      %v1029 = vrot.slane %v813, 4
      %v1030 = vsel %vm1019, %v1027, %v1029
      %v1031 = vrot.slane %v814, 4
      %v1032 = vsel %vm1019, %v1029, %v1031
      %v1033 = vrot.slane %v815, 4
      %v1034 = vsel %vm1019, %v1031, %v1033
      %v1035 = vrot.slane %v816, 4
      %v1036 = vsel %vm1019, %v1033, %v1035
      %v1037 = vrot.slane %v817, 4
      %v1038 = vsel %vm1019, %v1035, %v1037
      %v1039 = vrot.slane %v818, 4
      %v1040 = vsel %vm1019, %v1037, %v1039
      %v1041 = vrot.slane %v819, 4
      %v1042 = vsel %vm1019, %v1039, %v1041
      %v1043 = vrot.slane %v820, 4
      %v1044 = vsel %vm1019, %v1041, %v1043
      %1045 = vrot.lane.b32.xlu0 %v1022, 24
      %v1046 = vpop.permute.xlu0 %1045
      %1047 = vrot.lane.b32.xlu0 %v1024, 24
      %v1048 = vpop.permute.xlu0 %1047
      %1049 = vrot.lane.b32.xlu0 %v1026, 24
      %v1050 = vpop.permute.xlu0 %1049
      %1051 = vrot.lane.b32.xlu0 %v1028, 24
      %v1052 = vpop.permute.xlu0 %1051
      %1053 = vrot.lane.b32.xlu0 %v1030, 24
      %v1054 = vpop.permute.xlu0 %1053
      %1055 = vrot.lane.b32.xlu0 %v1032, 24
      %v1056 = vpop.permute.xlu0 %1055
      %1057 = vrot.lane.b32.xlu0 %v1034, 24
      %v1058 = vpop.permute.xlu0 %1057
      %1059 = vrot.lane.b32.xlu0 %v1036, 24
      %v1060 = vpop.permute.xlu0 %1059
      %1061 = vrot.lane.b32.xlu0 %v1038, 24
      %v1062 = vpop.permute.xlu0 %1061
      %1063 = vrot.lane.b32.xlu0 %v1040, 24
      %v1064 = vpop.permute.xlu0 %1063
      %1065 = vrot.lane.b32.xlu0 %v1042, 24
      %v1066 = vpop.permute.xlu0 %1065
      %1067 = vrot.lane.b32.xlu0 %v1044, 24
      %v1068 = vpop.permute.xlu0 %1067
      %1069 = vrot.lane.b32.xlu0 %v1043, 24
      %v1070 = vpop.permute.xlu0 %1069
      %vm1071 = vsmask.f32 3328
      %v1072 = vrot.slane %v844, 4
      %v1073 = vrot.slane %v840, 5
      %v1074 = vor.u32 %v1072, %v1073
      %v1075 = vrot.slane %v852, 4
      %v1076 = vrot.slane %v848, 5
      %v1077 = vor.u32 %v1075, %v1076
      %v1078 = vsel %vm1071, %v1074, %v1077
      %v1079 = vrot.slane %v860, 4
      %v1080 = vrot.slane %v856, 5
      %v1081 = vor.u32 %v1079, %v1080
      %v1082 = vsel %vm1071, %v1077, %v1081
      %v1083 = vrot.slane %v868, 4
      %v1084 = vrot.slane %v864, 5
      %v1085 = vor.u32 %v1083, %v1084
      %v1086 = vsel %vm1071, %v1081, %v1085
      %v1087 = vrot.slane %v876, 4
      %v1088 = vrot.slane %v872, 5
      %v1089 = vor.u32 %v1087, %v1088
      %v1090 = vsel %vm1071, %v1085, %v1089
      %v1091 = vrot.slane %v884, 4
      %v1092 = vrot.slane %v880, 5
      %v1093 = vor.u32 %v1091, %v1092
      %v1094 = vsel %vm1071, %v1089, %v1093
      %v1095 = vrot.slane %v892, 4
      %v1096 = vrot.slane %v888, 5
      %v1097 = vor.u32 %v1095, %v1096
      %v1098 = vsel %vm1071, %v1093, %v1097
      %v1099 = vrot.slane %v900, 4
      %v1100 = vrot.slane %v896, 5
      %v1101 = vor.u32 %v1099, %v1100
      %v1102 = vsel %vm1071, %v1097, %v1101
      %v1103 = vrot.slane %v908, 4
      %v1104 = vrot.slane %v904, 5
      %v1105 = vor.u32 %v1103, %v1104
      %v1106 = vsel %vm1071, %v1101, %v1105
      %v1107 = vrot.slane %v916, 4
      %v1108 = vrot.slane %v912, 5
      %v1109 = vor.u32 %v1107, %v1108
      %v1110 = vsel %vm1071, %v1105, %v1109
      %v1111 = vrot.slane %v924, 4
      %v1112 = vrot.slane %v920, 5
      %v1113 = vor.u32 %v1111, %v1112
      %v1114 = vsel %vm1071, %v1109, %v1113
      %v1116 = vshrl.u32 %v820, 16
      %v1118 = vrot.slane %v1116, 4
      %v1119 = vshll.u32 %v820, 16
      %v1121 = vrot.slane %v1119, 5
      %v1122 = vor.u32 %v1118, %v1121
      %v1123 = vsel %vm1071, %v1113, %v1122
      %1124 = vrot.lane.b32.xlu0 %v1074, 32
      %v1125 = vpop.permute.xlu0 %1124
      %1126 = vrot.lane.b32.xlu0 %v1078, 32
      %v1127 = vpop.permute.xlu0 %1126
      %1128 = vrot.lane.b32.xlu0 %v1082, 32
      %v1129 = vpop.permute.xlu0 %1128
      %1130 = vrot.lane.b32.xlu0 %v1086, 32
      %v1131 = vpop.permute.xlu0 %1130
      %1132 = vrot.lane.b32.xlu0 %v1090, 32
      %v1133 = vpop.permute.xlu0 %1132
      %1134 = vrot.lane.b32.xlu0 %v1094, 32
      %v1135 = vpop.permute.xlu0 %1134
      %1136 = vrot.lane.b32.xlu0 %v1098, 32
      %v1137 = vpop.permute.xlu0 %1136
      %1138 = vrot.lane.b32.xlu0 %v1102, 32
      %v1139 = vpop.permute.xlu0 %1138
      %1140 = vrot.lane.b32.xlu0 %v1106, 32
      %v1141 = vpop.permute.xlu0 %1140
      %1142 = vrot.lane.b32.xlu0 %v1110, 32
      %v1143 = vpop.permute.xlu0 %1142
      %1144 = vrot.lane.b32.xlu0 %v1114, 32
      %v1145 = vpop.permute.xlu0 %1144
      %1146 = vrot.lane.b32.xlu0 %v1123, 32
      %v1147 = vpop.permute.xlu0 %1146
      %1148 = vrot.lane.b32.xlu0 %v1122, 32
      %v1149 = vpop.permute.xlu0 %1148
      %vm1151 = vcmask 1042432
      %v1152 = vrot.slane %v809, 5
      %v1153 = vrot.slane %v810, 5
      %v1154 = vsel %vm1151, %v1152, %v1153
      %v1155 = vrot.slane %v811, 5
      %v1156 = vsel %vm1151, %v1153, %v1155
      %v1157 = vrot.slane %v812, 5
      %v1158 = vsel %vm1151, %v1155, %v1157
      %v1159 = vrot.slane %v813, 5
      %v1160 = vsel %vm1151, %v1157, %v1159
      %v1161 = vrot.slane %v814, 5
      %v1162 = vsel %vm1151, %v1159, %v1161
      %v1163 = vrot.slane %v815, 5
      %v1164 = vsel %vm1151, %v1161, %v1163
      %v1165 = vrot.slane %v816, 5
      %v1166 = vsel %vm1151, %v1163, %v1165
      %v1167 = vrot.slane %v817, 5
      %v1168 = vsel %vm1151, %v1165, %v1167
      %v1169 = vrot.slane %v818, 5
      %v1170 = vsel %vm1151, %v1167, %v1169
      %v1171 = vrot.slane %v819, 5
      %v1172 = vsel %vm1151, %v1169, %v1171
      %v1173 = vrot.slane %v820, 5
      %v1174 = vsel %vm1151, %v1171, %v1173
      %v1175 = vrot.slane %v821, 5
      %v1176 = vsel %vm1151, %v1173, %v1175
      %1177 = vrot.lane.b32.xlu0 %v1152, 40
      %v1178 = vpop.permute.xlu0 %1177
      %1179 = vrot.lane.b32.xlu0 %v1154, 40
      %v1180 = vpop.permute.xlu0 %1179
      %1181 = vrot.lane.b32.xlu0 %v1156, 40
      %v1182 = vpop.permute.xlu0 %1181
      %1183 = vrot.lane.b32.xlu0 %v1158, 40
      %v1184 = vpop.permute.xlu0 %1183
      %1185 = vrot.lane.b32.xlu0 %v1160, 40
      %v1186 = vpop.permute.xlu0 %1185
      %1187 = vrot.lane.b32.xlu0 %v1162, 40
      %v1188 = vpop.permute.xlu0 %1187
      %1189 = vrot.lane.b32.xlu0 %v1164, 40
      %v1190 = vpop.permute.xlu0 %1189
      %1191 = vrot.lane.b32.xlu0 %v1166, 40
      %v1192 = vpop.permute.xlu0 %1191
      %1193 = vrot.lane.b32.xlu0 %v1168, 40
      %v1194 = vpop.permute.xlu0 %1193
      %1195 = vrot.lane.b32.xlu0 %v1170, 40
      %v1196 = vpop.permute.xlu0 %1195
      %1197 = vrot.lane.b32.xlu0 %v1172, 40
      %v1198 = vpop.permute.xlu0 %1197
      %1199 = vrot.lane.b32.xlu0 %v1174, 40
      %v1200 = vpop.permute.xlu0 %1199
      %1201 = vrot.lane.b32.xlu0 %v1176, 40
      %v1202 = vpop.permute.xlu0 %1201
      %1204 = vrot.lane.b32.xlu0 %v810, 48
      %v1205 = vpop.permute.xlu0 %1204
      %1206 = vrot.lane.b32.xlu0 %v811, 48
      %v1207 = vpop.permute.xlu0 %1206
      %1208 = vrot.lane.b32.xlu0 %v812, 48
      %v1209 = vpop.permute.xlu0 %1208
      %1210 = vrot.lane.b32.xlu0 %v813, 48
      %v1211 = vpop.permute.xlu0 %1210
      %1212 = vrot.lane.b32.xlu0 %v814, 48
      %v1213 = vpop.permute.xlu0 %1212
      %1214 = vrot.lane.b32.xlu0 %v815, 48
      %v1215 = vpop.permute.xlu0 %1214
      %1216 = vrot.lane.b32.xlu0 %v816, 48
      %v1217 = vpop.permute.xlu0 %1216
      %1218 = vrot.lane.b32.xlu0 %v817, 48
      %v1219 = vpop.permute.xlu0 %1218
      %1220 = vrot.lane.b32.xlu0 %v818, 48
      %v1221 = vpop.permute.xlu0 %1220
      %1222 = vrot.lane.b32.xlu0 %v819, 48
      %v1223 = vpop.permute.xlu0 %1222
      %1224 = vrot.lane.b32.xlu0 %v820, 48
      %v1225 = vpop.permute.xlu0 %1224
      %1226 = vrot.lane.b32.xlu0 %v821, 48
      %v1227 = vpop.permute.xlu0 %1226
      %1228 = vrot.lane.b32.xlu0 %v822, 48
      %v1229 = vpop.permute.xlu0 %1228
      %v1230 = vrot.slane %v1119, 1
      %v1231 = vsel %vm823, %v926, %v1230
      %v1232 = vor.u32 %v1116, %v1230
      %v1234 = vshll.u32 %v821, 16
      %v1236 = vrot.slane %v1234, 1
      %v1237 = vsel %vm823, %v1232, %v1236
      %v1238 = vshrl.u32 %v821, 16
      %v1240 = vor.u32 %v1238, %v1236
      %v1242 = vshll.u32 %v822, 16
      %v1244 = vrot.slane %v1242, 1
      %v1245 = vsel %vm823, %v1240, %v1244
      %v1246 = vshrl.u32 %v822, 16
      %v1248 = vor.u32 %v1246, %v1244
      %1249 = vrot.lane.b32.xlu0 %v859, 56
      %v1250 = vpop.permute.xlu0 %1249
      %1251 = vrot.lane.b32.xlu0 %v867, 56
      %v1252 = vpop.permute.xlu0 %1251
      %1253 = vrot.lane.b32.xlu0 %v875, 56
      %v1254 = vpop.permute.xlu0 %1253
      %1255 = vrot.lane.b32.xlu0 %v883, 56
      %v1256 = vpop.permute.xlu0 %1255
      %1257 = vrot.lane.b32.xlu0 %v891, 56
      %v1258 = vpop.permute.xlu0 %1257
      %1259 = vrot.lane.b32.xlu0 %v899, 56
      %v1260 = vpop.permute.xlu0 %1259
      %1261 = vrot.lane.b32.xlu0 %v907, 56
      %v1262 = vpop.permute.xlu0 %1261
      %1263 = vrot.lane.b32.xlu0 %v915, 56
      %v1264 = vpop.permute.xlu0 %1263
      %1265 = vrot.lane.b32.xlu0 %v923, 56
      %v1266 = vpop.permute.xlu0 %1265
      %1267 = vrot.lane.b32.xlu0 %v1231, 56
      %v1268 = vpop.permute.xlu0 %1267
      %1269 = vrot.lane.b32.xlu0 %v1237, 56
      %v1270 = vpop.permute.xlu0 %1269
      %1271 = vrot.lane.b32.xlu0 %v1245, 56
      %v1272 = vpop.permute.xlu0 %1271
      %1273 = vrot.lane.b32.xlu0 %v1248, 56
      %v1274 = vpop.permute.xlu0 %1273
      %v1275 = vrot.slane %v820, 1
      %v1276 = vsel %vm966, %v990, %v1275
      %v1277 = vrot.slane %v821, 1
      %v1278 = vsel %vm966, %v1275, %v1277
      %v1279 = vrot.slane %v822, 1
      %v1280 = vsel %vm966, %v1277, %v1279
      %1281 = vrot.lane.b32.xlu0 %v975, 64
      %v1282 = vpop.permute.xlu0 %1281
      %1283 = vrot.lane.b32.xlu0 %v977, 64
      %v1284 = vpop.permute.xlu0 %1283
      %1285 = vrot.lane.b32.xlu0 %v979, 64
      %v1286 = vpop.permute.xlu0 %1285
      %1287 = vrot.lane.b32.xlu0 %v981, 64
      %v1288 = vpop.permute.xlu0 %1287
      %1289 = vrot.lane.b32.xlu0 %v983, 64
      %v1290 = vpop.permute.xlu0 %1289
      %1291 = vrot.lane.b32.xlu0 %v985, 64
      %v1292 = vpop.permute.xlu0 %1291
      %1293 = vrot.lane.b32.xlu0 %v987, 64
      %v1294 = vpop.permute.xlu0 %1293
      %1295 = vrot.lane.b32.xlu0 %v989, 64
      %v1296 = vpop.permute.xlu0 %1295
      %1297 = vrot.lane.b32.xlu0 %v991, 64
      %v1298 = vpop.permute.xlu0 %1297
      %1299 = vrot.lane.b32.xlu0 %v1276, 64
      %v1300 = vpop.permute.xlu0 %1299
      %1301 = vrot.lane.b32.xlu0 %v1278, 64
      %v1302 = vpop.permute.xlu0 %1301
      %1303 = vrot.lane.b32.xlu0 %v1280, 64
      %v1304 = vpop.permute.xlu0 %1303
      %1305 = vrot.lane.b32.xlu0 %v1279, 64
      %v1306 = vpop.permute.xlu0 %1305
      %vm1307 = vcmask 64512
      %v1309 = vsel %vm1307, %v807, %v928
      %v1311 = vsel %vm1307, %v808, %v930
      %v1313 = vsel %vm1307, %v809, %v932
      %v1315 = vsel %vm1307, %v810, %v934
      %v1317 = vsel %vm1307, %v811, %v936
      %v1319 = vsel %vm1307, %v812, %v938
      %v1321 = vsel %vm1307, %v813, %v940
      %v1323 = vsel %vm1307, %v814, %v942
      %v1325 = vsel %vm1307, %v815, %v944
      %v1327 = vsel %vm1307, %v816, %v946
      %v1329 = vsel %vm1307, %v817, %v948
      %v1331 = vsel %vm1307, %v818, %v950
      %v1333 = vsel %vm1307, %v819, %v952
      %vm1334 = vcmask 130048
      %v1336 = vsel %vm1334, %v1309, %v993
      %v1338 = vsel %vm1334, %v1311, %v995
      %v1340 = vsel %vm1334, %v1313, %v997
      %v1342 = vsel %vm1334, %v1315, %v999
      %v1344 = vsel %vm1334, %v1317, %v1001
      %v1346 = vsel %vm1334, %v1319, %v1003
      %v1348 = vsel %vm1334, %v1321, %v1005
      %v1350 = vsel %vm1334, %v1323, %v1007
      %v1352 = vsel %vm1334, %v1325, %v1009
      %v1354 = vsel %vm1334, %v1327, %v1011
      %v1356 = vsel %vm1334, %v1329, %v1013
      %v1358 = vsel %vm1334, %v1331, %v1015
      %v1360 = vsel %vm1334, %v1333, %v1017
      %vm1361 = vcmask 195584
      %v1363 = vsel %vm1361, %v1336, %v1046
      %v1365 = vsel %vm1361, %v1338, %v1048
      %v1367 = vsel %vm1361, %v1340, %v1050
      %v1369 = vsel %vm1361, %v1342, %v1052
      %v1371 = vsel %vm1361, %v1344, %v1054
      %v1373 = vsel %vm1361, %v1346, %v1056
      %v1375 = vsel %vm1361, %v1348, %v1058
      %v1377 = vsel %vm1361, %v1350, %v1060
      %v1379 = vsel %vm1361, %v1352, %v1062
      %v1381 = vsel %vm1361, %v1354, %v1064
      %v1383 = vsel %vm1361, %v1356, %v1066
      %v1385 = vsel %vm1361, %v1358, %v1068
      %v1387 = vsel %vm1361, %v1360, %v1070
      %vm1388 = vcmask 261120
      %v1390 = vsel %vm1388, %v1363, %v1125
      %v1392 = vsel %vm1388, %v1365, %v1127
      %v1394 = vsel %vm1388, %v1367, %v1129
      %v1396 = vsel %vm1388, %v1369, %v1131
      %v1398 = vsel %vm1388, %v1371, %v1133
      %v1400 = vsel %vm1388, %v1373, %v1135
      %v1402 = vsel %vm1388, %v1375, %v1137
      %v1404 = vsel %vm1388, %v1377, %v1139
      %v1406 = vsel %vm1388, %v1379, %v1141
      %v1408 = vsel %vm1388, %v1381, %v1143
      %v1410 = vsel %vm1388, %v1383, %v1145
      %v1412 = vsel %vm1388, %v1385, %v1147
      %v1414 = vsel %vm1388, %v1387, %v1149
      %vm1415 = vcmask 326656
      %v1417 = vsel %vm1415, %v1390, %v1178
      %v1419 = vsel %vm1415, %v1392, %v1180
      %v1421 = vsel %vm1415, %v1394, %v1182
      %v1423 = vsel %vm1415, %v1396, %v1184
      %v1425 = vsel %vm1415, %v1398, %v1186
      %v1427 = vsel %vm1415, %v1400, %v1188
      %v1429 = vsel %vm1415, %v1402, %v1190
      %v1431 = vsel %vm1415, %v1404, %v1192
      %v1433 = vsel %vm1415, %v1406, %v1194
      %v1435 = vsel %vm1415, %v1408, %v1196
      %v1437 = vsel %vm1415, %v1410, %v1198
      %v1439 = vsel %vm1415, %v1412, %v1200
      %v1441 = vsel %vm1415, %v1414, %v1202
      %vm1442 = vcmask 392192
      %v1444 = vsel %vm1442, %v1417, %v1205
      %v1446 = vsel %vm1442, %v1419, %v1207
      %v1448 = vsel %vm1442, %v1421, %v1209
      %v1450 = vsel %vm1442, %v1423, %v1211
      %v1452 = vsel %vm1442, %v1425, %v1213
      %v1454 = vsel %vm1442, %v1427, %v1215
      %v1456 = vsel %vm1442, %v1429, %v1217
      %v1458 = vsel %vm1442, %v1431, %v1219
      %v1460 = vsel %vm1442, %v1433, %v1221
      %v1462 = vsel %vm1442, %v1435, %v1223
      %v1464 = vsel %vm1442, %v1437, %v1225
      %v1466 = vsel %vm1442, %v1439, %v1227
      %v1468 = vsel %vm1442, %v1441, %v1229
      %vm1469 = vcmask 457728
      %v1471 = vsel %vm1469, %v1444, %v1250
      %v1473 = vsel %vm1469, %v1446, %v1252
      %v1475 = vsel %vm1469, %v1448, %v1254
      %v1477 = vsel %vm1469, %v1450, %v1256
      %v1479 = vsel %vm1469, %v1452, %v1258
      %v1481 = vsel %vm1469, %v1454, %v1260
      %v1483 = vsel %vm1469, %v1456, %v1262
      %v1485 = vsel %vm1469, %v1458, %v1264
      %v1487 = vsel %vm1469, %v1460, %v1266
      %v1489 = vsel %vm1469, %v1462, %v1268
      %v1491 = vsel %vm1469, %v1464, %v1270
      %v1493 = vsel %vm1469, %v1466, %v1272
      %v1495 = vsel %vm1469, %v1468, %v1274
      %vm1496 = vcmask 523264
      %v1498 = vsel %vm1496, %v1471, %v1282
      %v1500 = vsel %vm1496, %v1473, %v1284
      %v1502 = vsel %vm1496, %v1475, %v1286
      %v1504 = vsel %vm1496, %v1477, %v1288
      %v1506 = vsel %vm1496, %v1479, %v1290
      %v1508 = vsel %vm1496, %v1481, %v1292
      %v1510 = vsel %vm1496, %v1483, %v1294
      %v1512 = vsel %vm1496, %v1485, %v1296
      %v1514 = vsel %vm1496, %v1487, %v1298
      %v1516 = vsel %vm1496, %v1489, %v1300
      %v1518 = vsel %vm1496, %v1491, %v1302
      %v1520 = vsel %vm1496, %v1493, %v1304
      %v1522 = vsel %vm1496, %v1495, %v1306
      %v1523 = vld [vmem:[%s5] sm:$0xf]
      %v1524 = vld [vmem:[%s5 + $0x4] sm:$0xf]
      %v1525 = vld [vmem:[%s5 + $0x8] sm:$0xf]
      %v1526 = vld [vmem:[%s5 + $0xc] sm:$0xf]
      %v1527 = vld [vmem:[%s5 + $0x10] sm:$0xf]
      %v1528 = vld [vmem:[%s5 + $0x14] sm:$0xf]
      %v1529 = vld [vmem:[%s5 + $0x18] sm:$0xf]
      %v1530 = vld [vmem:[%s5 + $0x1c] sm:$0xf]
      %v1531 = vld [vmem:[%s5 + $0x20] sm:$0xf]
      %vm1532 = vsmask.f32 4352
      %v1533 = vshrl.u32 %v1498, 16
      %v1535 = vrot.slane %v1533, 3
      %v1536 = vshll.u32 %v1498, 16
      %v1538 = vrot.slane %v1536, 4
      %v1539 = vor.u32 %v1535, %v1538
      %v1540 = vshrl.u32 %v1500, 16
      %v1542 = vrot.slane %v1540, 3
      %v1543 = vshll.u32 %v1500, 16
      %v1545 = vrot.slane %v1543, 4
      %v1546 = vor.u32 %v1542, %v1545
      %v1547 = vsel %vm1532, %v1539, %v1546
      %v1548 = vshrl.u32 %v1502, 16
      %v1550 = vrot.slane %v1548, 3
      %v1551 = vshll.u32 %v1502, 16
      %v1553 = vrot.slane %v1551, 4
      %v1554 = vor.u32 %v1550, %v1553
      %v1555 = vsel %vm1532, %v1546, %v1554
      %v1556 = vshrl.u32 %v1504, 16
      %v1558 = vrot.slane %v1556, 3
      %v1559 = vshll.u32 %v1504, 16
      %v1561 = vrot.slane %v1559, 4
      %v1562 = vor.u32 %v1558, %v1561
      %v1563 = vsel %vm1532, %v1554, %v1562
      %v1564 = vshrl.u32 %v1506, 16
      %v1566 = vrot.slane %v1564, 3
      %v1567 = vshll.u32 %v1506, 16
      %v1569 = vrot.slane %v1567, 4
      %v1570 = vor.u32 %v1566, %v1569
      %v1571 = vsel %vm1532, %v1562, %v1570
      %v1572 = vshrl.u32 %v1508, 16
      %v1574 = vrot.slane %v1572, 3
      %v1575 = vshll.u32 %v1508, 16
      %v1577 = vrot.slane %v1575, 4
      %v1578 = vor.u32 %v1574, %v1577
      %v1579 = vsel %vm1532, %v1570, %v1578
      %v1580 = vshrl.u32 %v1510, 16
      %v1582 = vrot.slane %v1580, 3
      %v1583 = vshll.u32 %v1510, 16
      %v1585 = vrot.slane %v1583, 4
      %v1586 = vor.u32 %v1582, %v1585
      %v1587 = vsel %vm1532, %v1578, %v1586
      %v1588 = vshrl.u32 %v1512, 16
      %v1590 = vrot.slane %v1588, 3
      %v1591 = vshll.u32 %v1512, 16
      %v1593 = vrot.slane %v1591, 4
      %v1594 = vor.u32 %v1590, %v1593
      %v1595 = vsel %vm1532, %v1586, %v1594
      %v1596 = vshrl.u32 %v1514, 16
      %v1598 = vrot.slane %v1596, 3
      %v1599 = vshll.u32 %v1514, 16
      %v1601 = vrot.slane %v1599, 4
      %v1602 = vor.u32 %v1598, %v1601
      %v1603 = vsel %vm1532, %v1594, %v1602
      %v1604 = vshrl.u32 %v1516, 16
      %v1606 = vrot.slane %v1604, 3
      %v1607 = vshll.u32 %v1516, 16
      %v1609 = vrot.slane %v1607, 4
      %v1610 = vor.u32 %v1606, %v1609
      %v1611 = vsel %vm1532, %v1602, %v1610
      %v1612 = vshrl.u32 %v1518, 16
      %v1614 = vrot.slane %v1612, 3
      %v1615 = vshll.u32 %v1518, 16
      %v1617 = vrot.slane %v1615, 4
      %v1618 = vor.u32 %v1614, %v1617
      %v1619 = vsel %vm1532, %v1610, %v1618
      %v1620 = vshrl.u32 %v1520, 16
      %v1622 = vrot.slane %v1620, 3
      %v1623 = vshll.u32 %v1520, 16
      %v1625 = vrot.slane %v1623, 4
      %v1626 = vor.u32 %v1622, %v1625
      %v1627 = vsel %vm1532, %v1618, %v1626
      %v1628 = vshrl.u32 %v1522, 16
      %v1630 = vrot.slane %v1628, 3
      %v1631 = vshll.u32 %v1522, 16
      %v1633 = vrot.slane %v1631, 4
      %v1634 = vor.u32 %v1630, %v1633
      %v1635 = vsel %vm1532, %v1626, %v1634
      %v1645 = vunpack.c.l.b16 %v1523
      %v1646 = vunpack.c.l.b16 %v1524
      %v1647 = vunpack.c.l.b16 %v1525
      %v1648 = vunpack.c.l.b16 %v1526
      %v1649 = vunpack.c.l.b16 %v1527
      %v1650 = vunpack.c.l.b16 %v1528
      %v1651 = vunpack.c.l.b16 %v1529
      %v1652 = vunpack.c.l.b16 %v1530
      %v1653 = vunpack.c.l.b16 %v1531
      %v1654 = vpack.c.b16 %v1646, %v1645
      %v1655 = vpack.c.b16 %v1648, %v1647
      %v1656 = vpack.c.b16 %v1650, %v1649
      %v1657 = vpack.c.b16 %v1652, %v1651
      %v1658 = vpack.c.b16 %v1653, %v1653
      %vm1663 = vcmask 588800
      %v1665 = vsel %vm1663, %v1547, 0
      %v1668 = vsel %vm1663, %v1555, 0
      %v1671 = vsel %vm1663, %v1563, 0
      %v1674 = vsel %vm1663, %v1571, 0
      %v1677 = vsel %vm1663, %v1579, 0
      %v1680 = vsel %vm1663, %v1587, 0
      %v1683 = vsel %vm1663, %v1595, 0
      %v1686 = vsel %vm1663, %v1603, 0
      %v1689 = vsel %vm1663, %v1611, 0
      %v1692 = vsel %vm1663, %v1619, 0
      %v1695 = vsel %vm1663, %v1627, 0
      %v1698 = vsel %vm1663, %v1635, 0
      %vm1700 = vcmask 1043456
      %v1702 = vsel %vm1700, %v1658, 0
      %1704 = vmatprep.subr.bf16.mxu0 0
      %1705 = vmatpush1.bf16.msra.mxu0 %v1654
      %1706 = vmatprep.subr.bf16.mxu0 0
      %1707 = vmatpush1.bf16.msra.mxu0 %v1655
      %1708 = vmatprep.subr.bf16.mxu0 0
      %1709 = vmatpush1.bf16.msra.mxu0 %v1656
      %1710 = vmatprep.subr.bf16.mxu0 0
      %1711 = vmatpush1.bf16.msra.mxu0 %v1657
      %1712 = vmatprep.subr.bf16.mxu0 0
      %1713 = vmatpush1.bf16.msra.mxu0 %v1702
      %1714 = vmatprep.subr.bf16.mxu0 0
      %1715 = vmatpush1.bf16.msra.mxu0 0
      %1716 = vmatprep.subr.bf16.mxu0 0
      %1717 = vmatpush1.bf16.msra.mxu0 0
      %1718 = vmatprep.subr.bf16.mxu0 0
      %1719 = vmatpush1.bf16.msra.mxu0 0
      %1720 = vmatprep.subr.bf16.mxu0 0
      %1721 = vmatpush1.bf16.msra.mxu0 0
      %1722 = vmatprep.subr.bf16.mxu0 0
      %1723 = vmatpush1.bf16.msra.mxu0 0
      %1724 = vmatprep.subr.bf16.mxu0 0
      %1725 = vmatpush1.bf16.msra.mxu0 0
      %1726 = vmatprep.subr.bf16.mxu0 0
      %1727 = vmatpush1.bf16.msra.mxu0 0
      %1728 = vmatprep.subr.bf16.mxu0 0
      %1729 = vmatpush1.bf16.msra.mxu0 0
      %1730 = vmatprep.subr.bf16.mxu0 0
      %1731 = vmatpush1.bf16.msra.mxu0 0
      %1732 = vmatprep.subr.bf16.mxu0 0
      %1733 = vmatpush1.bf16.msra.mxu0 0
      %1734 = vmatprep.subr.bf16.mxu0 0
      %1735 = vmatpush1.bf16.msra.mxu0 0
      %1736 = vmatprep.mubr.bf16.mxu0 0
      %1737 = vmatmul.mubr.bf16.gmra.mrb[0].mxu0 %v1665
      %v1738 = vpop.f32.mrb[0].mxu0
      %v1739 = vadd.f32 0.0, %v1738
      %v1740 = vpop.f32.mrb[0].mxu0
      %v1741 = vpop.f32.mrb[0].mxu0
      %v1742 = vadd.f32 0.0, %v1741
      %v1743 = vpop.f32.mrb[0].mxu0
      %1744 = vmatprep.mubr.bf16.mxu0 0
      %1745 = vmatmul.mubr.bf16.gmra.mrb[0].mxu0 %v1668
      %v1746 = vpop.f32.mrb[0].mxu0
      %v1747 = vadd.f32 0.0, %v1746
      %v1748 = vpop.f32.mrb[0].mxu0
      %v1749 = vpop.f32.mrb[0].mxu0
      %v1750 = vadd.f32 0.0, %v1749
      %v1751 = vpop.f32.mrb[0].mxu0
      %1752 = vmatprep.mubr.bf16.mxu0 0
      %1753 = vmatmul.mubr.bf16.gmra.mrb[0].mxu0 %v1671
      %v1754 = vpop.f32.mrb[0].mxu0
      %v1755 = vadd.f32 0.0, %v1754
      %v1756 = vpop.f32.mrb[0].mxu0
      %v1757 = vpop.f32.mrb[0].mxu0
      %v1758 = vadd.f32 0.0, %v1757
      %v1759 = vpop.f32.mrb[0].mxu0
      %1760 = vmatprep.mubr.bf16.mxu0 0
      %1761 = vmatmul.mubr.bf16.gmra.mrb[0].mxu0 %v1674
      %v1762 = vpop.f32.mrb[0].mxu0
      %v1763 = vadd.f32 0.0, %v1762
      %v1764 = vpop.f32.mrb[0].mxu0
      %v1765 = vpop.f32.mrb[0].mxu0
      %v1766 = vadd.f32 0.0, %v1765
      %v1767 = vpop.f32.mrb[0].mxu0
      %1768 = vmatprep.mubr.bf16.mxu0 0
      %1769 = vmatmul.mubr.bf16.gmra.mrb[0].mxu0 %v1677
      %v1770 = vpop.f32.mrb[0].mxu0
      %v1771 = vadd.f32 0.0, %v1770
      %v1772 = vpop.f32.mrb[0].mxu0
      %v1773 = vpop.f32.mrb[0].mxu0
      %v1774 = vadd.f32 0.0, %v1773
      %v1775 = vpop.f32.mrb[0].mxu0
      %1776 = vmatprep.mubr.bf16.mxu0 0
      %1777 = vmatmul.mubr.bf16.gmra.mrb[0].mxu0 %v1680
      %v1778 = vpop.f32.mrb[0].mxu0
      %v1779 = vadd.f32 0.0, %v1778
      %v1780 = vpop.f32.mrb[0].mxu0
      %v1781 = vpop.f32.mrb[0].mxu0
      %v1782 = vadd.f32 0.0, %v1781
      %v1783 = vpop.f32.mrb[0].mxu0
      %1784 = vmatprep.mubr.bf16.mxu0 0
      %1785 = vmatmul.mubr.bf16.gmra.mrb[0].mxu0 %v1683
      %v1786 = vpop.f32.mrb[0].mxu0
      %v1787 = vadd.f32 0.0, %v1786
      %v1788 = vpop.f32.mrb[0].mxu0
      %v1789 = vpop.f32.mrb[0].mxu0
      %v1790 = vadd.f32 0.0, %v1789
      %v1791 = vpop.f32.mrb[0].mxu0
      %1792 = vmatprep.mubr.bf16.mxu0 0
      %1793 = vmatmul.mubr.bf16.gmra.mrb[0].mxu0 %v1686
      %v1794 = vpop.f32.mrb[0].mxu0
      %v1795 = vadd.f32 0.0, %v1794
      %v1796 = vpop.f32.mrb[0].mxu0
      %v1797 = vpop.f32.mrb[0].mxu0
      %v1798 = vadd.f32 0.0, %v1797
      %v1799 = vpop.f32.mrb[0].mxu0
      %1800 = vmatprep.mubr.bf16.mxu0 0
      %1801 = vmatmul.mubr.bf16.gmra.mrb[0].mxu0 %v1689
      %v1802 = vpop.f32.mrb[0].mxu0
      %v1803 = vadd.f32 0.0, %v1802
      %v1804 = vpop.f32.mrb[0].mxu0
      %v1805 = vpop.f32.mrb[0].mxu0
      %v1806 = vadd.f32 0.0, %v1805
      %v1807 = vpop.f32.mrb[0].mxu0
      %1808 = vmatprep.mubr.bf16.mxu0 0
      %1809 = vmatmul.mubr.bf16.gmra.mrb[0].mxu0 %v1692
      %v1810 = vpop.f32.mrb[0].mxu0
      %v1811 = vadd.f32 0.0, %v1810
      %v1812 = vpop.f32.mrb[0].mxu0
      %v1813 = vpop.f32.mrb[0].mxu0
      %v1814 = vadd.f32 0.0, %v1813
      %v1815 = vpop.f32.mrb[0].mxu0
      %1816 = vmatprep.mubr.bf16.mxu0 0
      %1817 = vmatmul.mubr.bf16.gmra.mrb[0].mxu0 %v1695
      %v1818 = vpop.f32.mrb[0].mxu0
      %v1819 = vadd.f32 0.0, %v1818
      %v1820 = vpop.f32.mrb[0].mxu0
      %v1821 = vpop.f32.mrb[0].mxu0
      %v1822 = vadd.f32 0.0, %v1821
      %v1823 = vpop.f32.mrb[0].mxu0
      %1824 = vmatprep.mubr.bf16.mxu0 0
      %1825 = vmatmul.mubr.bf16.gmra.mrb[0].mxu0 %v1698
      %v1826 = vpop.f32.mrb[0].mxu0
      %v1827 = vadd.f32 0.0, %v1826
      %v1828 = vpop.f32.mrb[0].mxu0
      %v1829 = vpop.f32.mrb[0].mxu0
      %v1830 = vadd.f32 0.0, %v1829
      %v1831 = vpop.f32.mrb[0].mxu0
      %1832 = vdwg.mxu0
      %v1833 = vpack.c.bf16 %v1742, %v1739
      %v1834 = vpack.c.bf16 %v1750, %v1747
      %v1835 = vpack.c.bf16 %v1758, %v1755
      %v1836 = vpack.c.bf16 %v1766, %v1763
      %v1837 = vpack.c.bf16 %v1774, %v1771
      %v1838 = vpack.c.bf16 %v1782, %v1779
      %v1839 = vpack.c.bf16 %v1790, %v1787
      %v1840 = vpack.c.bf16 %v1798, %v1795
      %v1841 = vpack.c.bf16 %v1806, %v1803
      %v1842 = vpack.c.bf16 %v1814, %v1811
      %v1843 = vpack.c.bf16 %v1822, %v1819
      %v1844 = vpack.c.bf16 %v1830, %v1827
      %v1857 = vunpack.c.l.b16 %v1833
      %v1858 = vunpack.c.h.b16 %v1833
      %v1859 = vunpack.c.l.b16 %v1834
      %v1860 = vunpack.c.h.b16 %v1834
      %v1861 = vunpack.c.l.b16 %v1835
      %v1862 = vunpack.c.h.b16 %v1835
      %v1863 = vunpack.c.l.b16 %v1836
      %v1864 = vunpack.c.h.b16 %v1836
      %v1865 = vunpack.c.l.b16 %v1837
      %v1866 = vunpack.c.h.b16 %v1837
      %v1867 = vunpack.c.l.b16 %v1838
      %v1868 = vunpack.c.h.b16 %v1838
      %v1869 = vunpack.c.l.b16 %v1839
      %v1870 = vunpack.c.h.b16 %v1839
      %v1871 = vunpack.c.l.b16 %v1840
      %v1872 = vunpack.c.h.b16 %v1840
      %v1873 = vunpack.c.l.b16 %v1841
      %v1874 = vunpack.c.h.b16 %v1841
      %v1875 = vunpack.c.l.b16 %v1842
      %v1876 = vunpack.c.h.b16 %v1842
      %v1877 = vunpack.c.l.b16 %v1843
      %v1878 = vunpack.c.h.b16 %v1843
      %v1879 = vunpack.c.l.b16 %v1844
      %v1880 = vunpack.c.h.b16 %v1844
      %v1881 = vpack.c.b16 %v1857, %v1857
      %v1882 = vpack.c.b16 %v1858, %v1858
      %v1883 = vpack.c.b16 %v1859, %v1859
      %v1884 = vpack.c.b16 %v1860, %v1860
      %v1885 = vpack.c.b16 %v1861, %v1861
      %v1886 = vpack.c.b16 %v1862, %v1862
      %v1887 = vpack.c.b16 %v1863, %v1863
      %v1888 = vpack.c.b16 %v1864, %v1864
      %v1889 = vpack.c.b16 %v1865, %v1865
      %v1890 = vpack.c.b16 %v1866, %v1866
      %v1891 = vpack.c.b16 %v1867, %v1867
      %v1892 = vpack.c.b16 %v1868, %v1868
      %v1893 = vpack.c.b16 %v1869, %v1869
      %v1894 = vpack.c.b16 %v1870, %v1870
      %v1895 = vpack.c.b16 %v1871, %v1871
      %v1896 = vpack.c.b16 %v1872, %v1872
      %v1897 = vpack.c.b16 %v1873, %v1873
      %v1898 = vpack.c.b16 %v1874, %v1874
      %v1899 = vpack.c.b16 %v1875, %v1875
      %v1900 = vpack.c.b16 %v1876, %v1876
      %v1901 = vpack.c.b16 %v1877, %v1877
      %v1902 = vpack.c.b16 %v1878, %v1878
      %v1903 = vpack.c.b16 %v1879, %v1879
      %v1904 = vpack.c.b16 %v1880, %v1880
      %vm1929 = vcmask 519168
      %1930 = vst.msk [vmem:[%s317] sm:$0xf] %vm1929, %v1881
      %1931 = vst.msk [vmem:[%s317 + $0x4] sm:$0xf] %vm1929, %v1882
      %1932 = vst.msk [vmem:[%s317 + $0x8] sm:$0xf] %vm1929, %v1883
      %1933 = vst.msk [vmem:[%s317 + $0xc] sm:$0xf] %vm1929, %v1884
      %1934 = vst.msk [vmem:[%s317 + $0x10] sm:$0xf] %vm1929, %v1885
      %1935 = vst.msk [vmem:[%s317 + $0x14] sm:$0xf] %vm1929, %v1886
      %1936 = vst.msk [vmem:[%s317 + $0x18] sm:$0xf] %vm1929, %v1887
      %1937 = vst.msk [vmem:[%s317 + $0x1c] sm:$0xf] %vm1929, %v1888
      %1938 = vst.msk [vmem:[%s317 + $0x20] sm:$0xf] %vm1929, %v1889
      %1939 = vst.msk [vmem:[%s317 + $0x24] sm:$0xf] %vm1929, %v1890
      %1940 = vst.msk [vmem:[%s317 + $0x28] sm:$0xf] %vm1929, %v1891
      %1941 = vst.msk [vmem:[%s317 + $0x2c] sm:$0xf] %vm1929, %v1892
      %1942 = vst.msk [vmem:[%s317 + $0x30] sm:$0xf] %vm1929, %v1893
      %1943 = vst.msk [vmem:[%s317 + $0x34] sm:$0xf] %vm1929, %v1894
      %1944 = vst.msk [vmem:[%s317 + $0x38] sm:$0xf] %vm1929, %v1895
      %1945 = vst.msk [vmem:[%s317 + $0x3c] sm:$0xf] %vm1929, %v1896
      %1946 = vst.msk [vmem:[%s317 + $0x40] sm:$0xf] %vm1929, %v1897
      %1947 = vst.msk [vmem:[%s317 + $0x44] sm:$0xf] %vm1929, %v1898
      %1948 = vst.msk [vmem:[%s317 + $0x48] sm:$0xf] %vm1929, %v1899
      %1949 = vst.msk [vmem:[%s317 + $0x4c] sm:$0xf] %vm1929, %v1900
      %1950 = vst.msk [vmem:[%s317 + $0x50] sm:$0xf] %vm1929, %v1901
      %1951 = vst.msk [vmem:[%s317 + $0x54] sm:$0xf] %vm1929, %v1902
      %1952 = vst.msk [vmem:[%s317 + $0x58] sm:$0xf] %vm1929, %v1903
      %1953 = vst.msk [vmem:[%s317 + $0x5c] sm:$0xf] %vm1929, %v1904
      %s1954 = scalar_lea.vmem %s1, %s330
      %v1955 = vld [vmem:[%s1954] sm:$0xff]
      %v1956 = vld [vmem:[%s1954 + $0x8] sm:$0xff]
      %v1957 = vld [vmem:[%s1954 + $0x10] sm:$0xff]
      %v1958 = vld [vmem:[%s1954 + $0x18] sm:$0xff]
      %v1959 = vld [vmem:[%s1954 + $0x20] sm:$0xff]
      %v1960 = vld [vmem:[%s1954 + $0x28] sm:$0xff]
      %v1961 = vld [vmem:[%s1954 + $0x30] sm:$0xff]
      %v1962 = vld [vmem:[%s1954 + $0x38] sm:$0xff]
      %v1963 = vld [vmem:[%s1954 + $0x40] sm:$0xff]
      %v1964 = vld [vmem:[%s1954 + $0x48] sm:$0xff]
      %v1965 = vld [vmem:[%s1954 + $0x50] sm:$0xff]
      %v1966 = vld [vmem:[%s1954 + $0x58] sm:$0xff]
      %v1967 = vld [vmem:[%s1954 + $0x60] sm:$0xff]
      %v1968 = vld [vmem:[%s1954 + $0x68] sm:$0xff]
      %v1969 = vld [vmem:[%s1954 + $0x70] sm:$0xff]
      %v1970 = vld [vmem:[%s1954 + $0x78] sm:$0xff]
      %v1971 = vld [vmem:[%s1954 + $0x80] sm:$0xff]
      %v1972 = vld [vmem:[%s1954 + $0x88] sm:$0xff]
      %v1973 = vld [vmem:[%s1954 + $0x90] sm:$0xff]
      %v1974 = vld [vmem:[%s1954 + $0x98] sm:$0xff]
      %v1975 = vld [vmem:[%s1954 + $0xa0] sm:$0xff]
      %v1976 = vld [vmem:[%s1954 + $0xa8] sm:$0xff]
      %v1977 = vld [vmem:[%s1954 + $0xb0] sm:$0xff]
      %v1978 = vld [vmem:[%s1954 + $0xb8] sm:$0xff]
      %vm1979 = vcmp.gt.f32.partialorder %v1955, 0.5
      %vm1980 = vcmp.gt.f32.partialorder %v1956, 0.5
      %vm1981 = vcmp.gt.f32.partialorder %v1957, 0.5
      %vm1982 = vcmp.gt.f32.partialorder %v1958, 0.5
      %vm1983 = vcmp.gt.f32.partialorder %v1959, 0.5
      %vm1984 = vcmp.gt.f32.partialorder %v1960, 0.5
      %vm1985 = vcmp.gt.f32.partialorder %v1961, 0.5
      %vm1986 = vcmp.gt.f32.partialorder %v1962, 0.5
      %vm1987 = vcmp.gt.f32.partialorder %v1963, 0.5
      %vm1988 = vcmp.gt.f32.partialorder %v1964, 0.5
      %vm1989 = vcmp.gt.f32.partialorder %v1965, 0.5
      %vm1990 = vcmp.gt.f32.partialorder %v1966, 0.5
      %vm1991 = vcmp.gt.f32.partialorder %v1967, 0.5
      %vm1992 = vcmp.gt.f32.partialorder %v1968, 0.5
      %vm1993 = vcmp.gt.f32.partialorder %v1969, 0.5
      %vm1994 = vcmp.gt.f32.partialorder %v1970, 0.5
      %vm1995 = vcmp.gt.f32.partialorder %v1971, 0.5
      %vm1996 = vcmp.gt.f32.partialorder %v1972, 0.5
      %vm1997 = vcmp.gt.f32.partialorder %v1973, 0.5
      %vm1998 = vcmp.gt.f32.partialorder %v1974, 0.5
      %vm1999 = vcmp.gt.f32.partialorder %v1975, 0.5
      %vm2000 = vcmp.gt.f32.partialorder %v1976, 0.5
      %vm2001 = vcmp.gt.f32.partialorder %v1977, 0.5
      %vm2002 = vcmp.gt.f32.partialorder %v1978, 0.5
      %v2003 = vsel %vm1979, 1, 0
      %v2004 = vsel %vm1980, 1, 0
      %v2005 = vsel %vm1981, 1, 0
      %v2006 = vsel %vm1982, 1, 0
      %v2007 = vsel %vm1983, 1, 0
      %v2008 = vsel %vm1984, 1, 0
      %v2009 = vsel %vm1985, 1, 0
      %v2010 = vsel %vm1986, 1, 0
      %v2011 = vsel %vm1987, 1, 0
      %v2012 = vsel %vm1988, 1, 0
      %v2013 = vsel %vm1989, 1, 0
      %v2014 = vsel %vm1990, 1, 0
      %v2015 = vsel %vm1991, 1, 0
      %v2016 = vsel %vm1992, 1, 0
      %v2017 = vsel %vm1993, 1, 0
      %v2018 = vsel %vm1994, 1, 0
      %v2019 = vsel %vm1995, 1, 0
      %v2020 = vsel %vm1996, 1, 0
      %v2021 = vsel %vm1997, 1, 0
      %v2022 = vsel %vm1998, 1, 0
      %v2023 = vsel %vm1999, 1, 0
      %v2024 = vsel %vm2000, 1, 0
      %v2025 = vsel %vm2001, 1, 0
      %v2026 = vsel %vm2002, 1, 0
      %2027 = vset.pattern.permute.xlu0 0
      %2028 = vperm.xlu0 %2027, %v2003
      %v2029 = vpop.permute.xlu0 %2028
      %2030 = vset.pattern.permute.xlu0 0
      %2031 = vperm.xlu0 %2030, %v2004
      %v2032 = vpop.permute.xlu0 %2031
      %2033 = vset.pattern.permute.xlu0 0
      %2034 = vperm.xlu0 %2033, %v2005
      %v2035 = vpop.permute.xlu0 %2034
      %2036 = vset.pattern.permute.xlu0 0
      %2037 = vperm.xlu0 %2036, %v2006
      %v2038 = vpop.permute.xlu0 %2037
      %2039 = vset.pattern.permute.xlu0 0
      %2040 = vperm.xlu0 %2039, %v2007
      %v2041 = vpop.permute.xlu0 %2040
      %2042 = vset.pattern.permute.xlu0 0
      %2043 = vperm.xlu0 %2042, %v2008
      %v2044 = vpop.permute.xlu0 %2043
      %2045 = vset.pattern.permute.xlu0 0
      %2046 = vperm.xlu0 %2045, %v2009
      %v2047 = vpop.permute.xlu0 %2046
      %2048 = vset.pattern.permute.xlu0 0
      %2049 = vperm.xlu0 %2048, %v2010
      %v2050 = vpop.permute.xlu0 %2049
      %2051 = vset.pattern.permute.xlu0 0
      %2052 = vperm.xlu0 %2051, %v2011
      %v2053 = vpop.permute.xlu0 %2052
      %2054 = vset.pattern.permute.xlu0 0
      %2055 = vperm.xlu0 %2054, %v2012
      %v2056 = vpop.permute.xlu0 %2055
      %2057 = vset.pattern.permute.xlu0 0
      %2058 = vperm.xlu0 %2057, %v2013
      %v2059 = vpop.permute.xlu0 %2058
      %2060 = vset.pattern.permute.xlu0 0
      %2061 = vperm.xlu0 %2060, %v2014
      %v2062 = vpop.permute.xlu0 %2061
      %2063 = vset.pattern.permute.xlu0 0
      %2064 = vperm.xlu0 %2063, %v2015
      %v2065 = vpop.permute.xlu0 %2064
      %2066 = vset.pattern.permute.xlu0 0
      %2067 = vperm.xlu0 %2066, %v2016
      %v2068 = vpop.permute.xlu0 %2067
      %2069 = vset.pattern.permute.xlu0 0
      %2070 = vperm.xlu0 %2069, %v2017
      %v2071 = vpop.permute.xlu0 %2070
      %2072 = vset.pattern.permute.xlu0 0
      %2073 = vperm.xlu0 %2072, %v2018
      %v2074 = vpop.permute.xlu0 %2073
      %2075 = vset.pattern.permute.xlu0 0
      %2076 = vperm.xlu0 %2075, %v2019
      %v2077 = vpop.permute.xlu0 %2076
      %2078 = vset.pattern.permute.xlu0 0
      %2079 = vperm.xlu0 %2078, %v2020
      %v2080 = vpop.permute.xlu0 %2079
      %2081 = vset.pattern.permute.xlu0 0
      %2082 = vperm.xlu0 %2081, %v2021
      %v2083 = vpop.permute.xlu0 %2082
      %2084 = vset.pattern.permute.xlu0 0
      %2085 = vperm.xlu0 %2084, %v2022
      %v2086 = vpop.permute.xlu0 %2085
      %2087 = vset.pattern.permute.xlu0 0
      %2088 = vperm.xlu0 %2087, %v2023
      %v2089 = vpop.permute.xlu0 %2088
      %2090 = vset.pattern.permute.xlu0 0
      %2091 = vperm.xlu0 %2090, %v2024
      %v2092 = vpop.permute.xlu0 %2091
      %2093 = vset.pattern.permute.xlu0 0
      %2094 = vperm.xlu0 %2093, %v2025
      %v2095 = vpop.permute.xlu0 %2094
      %2096 = vset.pattern.permute.xlu0 0
      %2097 = vperm.xlu0 %2096, %v2026
      %v2098 = vpop.permute.xlu0 %2097
      %vm2099 = vcmp.eq.s32.totalorder %v2029, 1
      %vm2100 = vcmp.eq.s32.totalorder %v2032, 1
      %vm2101 = vcmp.eq.s32.totalorder %v2035, 1
      %vm2102 = vcmp.eq.s32.totalorder %v2038, 1
      %vm2103 = vcmp.eq.s32.totalorder %v2041, 1
      %vm2104 = vcmp.eq.s32.totalorder %v2044, 1
      %vm2105 = vcmp.eq.s32.totalorder %v2047, 1
      %vm2106 = vcmp.eq.s32.totalorder %v2050, 1
      %vm2107 = vcmp.eq.s32.totalorder %v2053, 1
      %vm2108 = vcmp.eq.s32.totalorder %v2056, 1
      %vm2109 = vcmp.eq.s32.totalorder %v2059, 1
      %vm2110 = vcmp.eq.s32.totalorder %v2062, 1
      %vm2111 = vcmp.eq.s32.totalorder %v2065, 1
      %vm2112 = vcmp.eq.s32.totalorder %v2068, 1
      %vm2113 = vcmp.eq.s32.totalorder %v2071, 1
      %vm2114 = vcmp.eq.s32.totalorder %v2074, 1
      %vm2115 = vcmp.eq.s32.totalorder %v2077, 1
      %vm2116 = vcmp.eq.s32.totalorder %v2080, 1
      %vm2117 = vcmp.eq.s32.totalorder %v2083, 1
      %vm2118 = vcmp.eq.s32.totalorder %v2086, 1
      %vm2119 = vcmp.eq.s32.totalorder %v2089, 1
      %vm2120 = vcmp.eq.s32.totalorder %v2092, 1
      %vm2121 = vcmp.eq.s32.totalorder %v2095, 1
      %vm2122 = vcmp.eq.s32.totalorder %v2098, 1
      %v2123 = vsel %vm2099, %v1739, 0.0
      %v2124 = vsel %vm2100, %v1742, 0.0
      %v2125 = vsel %vm2101, %v1747, 0.0
      %v2126 = vsel %vm2102, %v1750, 0.0
      %v2127 = vsel %vm2103, %v1755, 0.0
      %v2128 = vsel %vm2104, %v1758, 0.0
      %v2129 = vsel %vm2105, %v1763, 0.0
      %v2130 = vsel %vm2106, %v1766, 0.0
      %v2131 = vsel %vm2107, %v1771, 0.0
      %v2132 = vsel %vm2108, %v1774, 0.0
      %v2133 = vsel %vm2109, %v1779, 0.0
      %v2134 = vsel %vm2110, %v1782, 0.0
      %v2135 = vsel %vm2111, %v1787, 0.0
      %v2136 = vsel %vm2112, %v1790, 0.0
      %v2137 = vsel %vm2113, %v1795, 0.0
      %v2138 = vsel %vm2114, %v1798, 0.0
      %v2139 = vsel %vm2115, %v1803, 0.0
      %v2140 = vsel %vm2116, %v1806, 0.0
      %v2141 = vsel %vm2117, %v1811, 0.0
      %v2142 = vsel %vm2118, %v1814, 0.0
      %v2143 = vsel %vm2119, %v1819, 0.0
      %v2144 = vsel %vm2120, %v1822, 0.0
      %v2145 = vsel %vm2121, %v1827, 0.0
      %v2146 = vsel %vm2122, %v1830, 0.0
      %v2147 = vsel %vm1496, %v2123, 0.0
      %v2148 = vsel %vm1496, %v2124, 0.0
      %v2149 = vadd.f32 %v2147, %v2148
      %v2150 = vsel %vm1496, %v2125, 0.0
      %v2151 = vadd.f32 %v2149, %v2150
      %v2152 = vsel %vm1496, %v2126, 0.0
      %v2153 = vadd.f32 %v2151, %v2152
      %v2154 = vsel %vm1496, %v2127, 0.0
      %v2155 = vadd.f32 %v2153, %v2154
      %v2156 = vsel %vm1496, %v2128, 0.0
      %v2157 = vadd.f32 %v2155, %v2156
      %v2158 = vsel %vm1496, %v2129, 0.0
      %v2159 = vadd.f32 %v2157, %v2158
      %v2160 = vsel %vm1496, %v2130, 0.0
      %v2161 = vadd.f32 %v2159, %v2160
      %v2162 = vsel %vm1496, %v2131, 0.0
      %v2163 = vadd.f32 %v2161, %v2162
      %v2164 = vsel %vm1496, %v2132, 0.0
      %v2165 = vadd.f32 %v2163, %v2164
      %v2166 = vsel %vm1496, %v2133, 0.0
      %v2167 = vadd.f32 %v2165, %v2166
      %v2168 = vsel %vm1496, %v2134, 0.0
      %v2169 = vadd.f32 %v2167, %v2168
      %v2170 = vsel %vm1496, %v2135, 0.0
      %v2171 = vadd.f32 %v2169, %v2170
      %v2172 = vsel %vm1496, %v2136, 0.0
      %v2173 = vadd.f32 %v2171, %v2172
      %v2174 = vsel %vm1496, %v2137, 0.0
      %v2175 = vadd.f32 %v2173, %v2174
      %v2176 = vsel %vm1496, %v2138, 0.0
      %v2177 = vadd.f32 %v2175, %v2176
      %v2178 = vsel %vm1496, %v2139, 0.0
      %v2179 = vadd.f32 %v2177, %v2178
      %v2180 = vsel %vm1496, %v2140, 0.0
      %v2181 = vadd.f32 %v2179, %v2180
      %v2182 = vsel %vm1496, %v2141, 0.0
      %v2183 = vadd.f32 %v2181, %v2182
      %v2184 = vsel %vm1496, %v2142, 0.0
      %v2185 = vadd.f32 %v2183, %v2184
      %v2186 = vsel %vm1496, %v2143, 0.0
      %v2187 = vadd.f32 %v2185, %v2186
      %v2188 = vsel %vm1496, %v2144, 0.0
      %v2189 = vadd.f32 %v2187, %v2188
      %v2190 = vsel %vm1496, %v2145, 0.0
      %v2191 = vadd.f32 %v2189, %v2190
      %v2192 = vsel %vm1496, %v2146, 0.0
      %v2193 = vadd.f32 %v2191, %v2192
      %v2194 = vrot.slane %v2193, 4
      %v2195 = vadd.f32 %v2193, %v2194
      %v2196 = vrot.slane %v2195, 2
      %v2197 = vadd.f32 %v2195, %v2196
      %v2198 = vrot.slane %v2197, 1
      %v2199 = vadd.f32 %v2197, %v2198
      %v2200 = vmul.f32 %v2123, %v2123
      %v2201 = vmul.f32 %v2124, %v2124
      %v2202 = vmul.f32 %v2125, %v2125
      %v2203 = vmul.f32 %v2126, %v2126
      %v2204 = vmul.f32 %v2127, %v2127
      %v2205 = vmul.f32 %v2128, %v2128
      %v2206 = vmul.f32 %v2129, %v2129
      %v2207 = vmul.f32 %v2130, %v2130
      %v2208 = vmul.f32 %v2131, %v2131
      %v2209 = vmul.f32 %v2132, %v2132
      %v2210 = vmul.f32 %v2133, %v2133
      %v2211 = vmul.f32 %v2134, %v2134
      %v2212 = vmul.f32 %v2135, %v2135
      %v2213 = vmul.f32 %v2136, %v2136
      %v2214 = vmul.f32 %v2137, %v2137
      %v2215 = vmul.f32 %v2138, %v2138
      %v2216 = vmul.f32 %v2139, %v2139
      %v2217 = vmul.f32 %v2140, %v2140
      %v2218 = vmul.f32 %v2141, %v2141
      %v2219 = vmul.f32 %v2142, %v2142
      %v2220 = vmul.f32 %v2143, %v2143
      %v2221 = vmul.f32 %v2144, %v2144
      %v2222 = vmul.f32 %v2145, %v2145
      %v2223 = vmul.f32 %v2146, %v2146
      %v2224 = vsel %vm1496, %v2200, 0.0
      %v2225 = vsel %vm1496, %v2201, 0.0
      %v2226 = vadd.f32 %v2224, %v2225
      %v2227 = vsel %vm1496, %v2202, 0.0
      %v2228 = vadd.f32 %v2226, %v2227
      %v2229 = vsel %vm1496, %v2203, 0.0
      %v2230 = vadd.f32 %v2228, %v2229
      %v2231 = vsel %vm1496, %v2204, 0.0
      %v2232 = vadd.f32 %v2230, %v2231
      %v2233 = vsel %vm1496, %v2205, 0.0
      %v2234 = vadd.f32 %v2232, %v2233
      %v2235 = vsel %vm1496, %v2206, 0.0
      %v2236 = vadd.f32 %v2234, %v2235
      %v2237 = vsel %vm1496, %v2207, 0.0
      %v2238 = vadd.f32 %v2236, %v2237
      %v2239 = vsel %vm1496, %v2208, 0.0
      %v2240 = vadd.f32 %v2238, %v2239
      %v2241 = vsel %vm1496, %v2209, 0.0
      %v2242 = vadd.f32 %v2240, %v2241
      %v2243 = vsel %vm1496, %v2210, 0.0
      %v2244 = vadd.f32 %v2242, %v2243
      %v2245 = vsel %vm1496, %v2211, 0.0
      %v2246 = vadd.f32 %v2244, %v2245
      %v2247 = vsel %vm1496, %v2212, 0.0
      %v2248 = vadd.f32 %v2246, %v2247
      %v2249 = vsel %vm1496, %v2213, 0.0
      %v2250 = vadd.f32 %v2248, %v2249
      %v2251 = vsel %vm1496, %v2214, 0.0
      %v2252 = vadd.f32 %v2250, %v2251
      %v2253 = vsel %vm1496, %v2215, 0.0
      %v2254 = vadd.f32 %v2252, %v2253
      %v2255 = vsel %vm1496, %v2216, 0.0
      %v2256 = vadd.f32 %v2254, %v2255
      %v2257 = vsel %vm1496, %v2217, 0.0
      %v2258 = vadd.f32 %v2256, %v2257
      %v2259 = vsel %vm1496, %v2218, 0.0
      %v2260 = vadd.f32 %v2258, %v2259
      %v2261 = vsel %vm1496, %v2219, 0.0
      %v2262 = vadd.f32 %v2260, %v2261
      %v2263 = vsel %vm1496, %v2220, 0.0
      %v2264 = vadd.f32 %v2262, %v2263
      %v2265 = vsel %vm1496, %v2221, 0.0
      %v2266 = vadd.f32 %v2264, %v2265
      %v2267 = vsel %vm1496, %v2222, 0.0
      %v2268 = vadd.f32 %v2266, %v2267
      %v2269 = vsel %vm1496, %v2223, 0.0
      %v2270 = vadd.f32 %v2268, %v2269
      %v2271 = vrot.slane %v2270, 4
      %v2272 = vadd.f32 %v2270, %v2271
      %v2273 = vrot.slane %v2272, 2
      %v2274 = vadd.f32 %v2272, %v2273
      %v2275 = vrot.slane %v2274, 1
      %v2276 = vadd.f32 %v2274, %v2275
      %vm2277 = vcmask 1040384
      %v2278 = vsel %vm2277, %v2199, %v2276
      %vm2279 = vcmask 517120
      %2280 = vst.msk [vmem:[%s327] sm:$0x3] %vm2279, %v2278
      %s2281 = sadd.s32 %s24, 1
      %s2282 = smul.u32 24, %s2281
      %p2283 = scmp.lt.s32.totalorder %s23, 1
      %s2284 = scalar_select %p2283, %s23, 1
      %p2285 = scmp.lt.s32.totalorder %s2282, 95
      %s2286 = scalar_select %p2285, %s2282, 95
      %s2287 = smul.addr %s2284, 96
      %s2288 = sadd.s32 %s2286, %s2287
      %s2289 = smul.addr %s2288, 4
      %s2290 = scalar_lea.vmem %s6, %s2289
      %p2291 = scmp.lt.s32.totalorder %s23, 1
      %s2292 = scalar_select %p2291, %s23, 1
      %p2293 = scmp.lt.s32.totalorder %s24, 1
      %s2294 = scalar_select %p2293, %s24, 1
      %s2295 = smul.addr %s2292, 2
      %s2296 = sadd.s32 %s2294, %s2295
      %s2297 = smul.addr %s2296, 2
      %s2298 = scalar_lea.vmem %s7, %s2297
      // Predicated region
      $region45: #{hidden_encoder_forward.6} parent=43 // pred_check
        %p2299 = pneg %p184
      $region46: #{hidden_encoder_forward.6} parent=43 // pred_check_branch
        %2301 = sbr.rel (%p2299) target = $region48
      $region47: #{hidden_encoder_forward.6} parent=43 // pred_region
        %s2302 = sadd.s32 %s24, 1
        %s2303 = smul.u32 24, %s2302
      $region48: #{hidden_encoder_forward.6} parent=43 // pred_fallthru
        _
      // Predicated region
      $region49: #{hidden_encoder_forward.6} parent=43 // pred_check
        %p2304 = pneg %p212
      $region50: #{hidden_encoder_forward.6} parent=43 // pred_check_branch
        %2306 = sbr.rel (%p2304) target = $region52
      $region51: #{hidden_encoder_forward.6} parent=43 // pred_region
        _
      $region52: #{hidden_encoder_forward.6} parent=43 // pred_fallthru
        _
    $region44: #{hidden_encoder_forward.6} parent=5 // pred_fallthru
      _
    %p2307 = scmp.le.s32.totalorder 2, %s14
    // Predicated region
    $region53: #{hidden_encoder_forward.6} parent=5 // pred_check
      %p2308 = pneg %p2307
    $region54: #{hidden_encoder_forward.6} parent=5 // pred_check_branch
      %2310 = sbr.rel (%p2308) target = $region56
    $region55: #{hidden_encoder_forward.6} parent=5 // pred_region
      %s2311 = ssub.s32 %s14, 2
      // Predicated region
      $region57: #{hidden_encoder_forward.6} parent=55 // pred_check
        %p2312 = pneg %p190
      $region58: #{hidden_encoder_forward.6} parent=55 // pred_check_branch
        %2314 = sbr.rel (%p2312) target = $region60
      $region59: #{hidden_encoder_forward.6} parent=55 // pred_region
        %s2315 = sadd.s32 %s26, 1
        %s2316 = smul.u32 24, %s2315
        %p2317 = scmp.lt.s32.totalorder %s25, 1
        %s2318 = scalar_select %p2317, %s25, 1
        %p2319 = scmp.lt.s32.totalorder %s2316, 95
        %s2320 = scalar_select %p2319, %s2316, 95
        %s2321 = smul.addr %s2318, 96
        %s2322 = sadd.s32 %s2320, %s2321
        %s2323 = smul.addr %s2322, 4
        %s2324 = scalar_lea.vmem %s6, %s2323
      $region60: #{hidden_encoder_forward.6} parent=55 // pred_fallthru
        _
      // Predicated region
      $region61: #{hidden_encoder_forward.6} parent=55 // pred_check
        %p2325 = pneg %p218
      $region62: #{hidden_encoder_forward.6} parent=55 // pred_check_branch
        %2327 = sbr.rel (%p2325) target = $region64
      $region63: #{hidden_encoder_forward.6} parent=55 // pred_region
        %p2328 = scmp.lt.s32.totalorder %s25, 1
        %s2329 = scalar_select %p2328, %s25, 1
        %p2330 = scmp.lt.s32.totalorder %s26, 1
        %s2331 = scalar_select %p2330, %s26, 1
        %s2332 = smul.addr %s2329, 2
        %s2333 = sadd.s32 %s2331, %s2332
        %s2334 = smul.addr %s2333, 2
        %s2335 = scalar_lea.vmem %s7, %s2334
      $region64: #{hidden_encoder_forward.6} parent=55 // pred_fallthru
        _
    $region56: #{hidden_encoder_forward.6} parent=5 // pred_fallthru
      _
  $region6: #{hidden_encoder_forward.6} parent=0 // loop_footer
    %s18 = sadd.s32 1, %s14
  $region7: #{hidden_encoder_forward.6} parent=0 // loop_footer_branch
    %13 = sbr.rel target = $region3
  $region8: #{hidden_encoder_forward.6} parent=0 // loop_exit
    _

// kernel: tile.13
$region0: #{tile.13}
  #allocation0 [shape = 's32[1]{0}', space=sflag, size = 0x4, scoped, tag = 'scoped memory for tile.13']
  %s0 = inlined_call_operand.vmem [shape: f32[64], index: 0, kind: input, shape index: {}]
  %s1 = inlined_call_operand.vmem [shape: f32[2,64], index: 1, kind: output, shape index: {}]
  // Predicated region
  $region2: #{tile.13} parent=0 // pred_check
    _
  $region3: #{tile.13} parent=0 // pred_check_branch
    %3 = sbr.rel (0) target = $region5
  $region4: #{tile.13} parent=0 // pred_region
    _
  $region5: #{tile.13} parent=0 // pred_fallthru
    _
  %v4 = vld [vmem:[%s0] ss:$0 sm:$0xff]
  %5 = vst [vmem:[%s1] sm:$0x3] %v4

// kernel: tile.14
$region0: #{tile.14}
  %s0 = inlined_call_operand.vmem [shape: f32[2,64], index: 0, kind: input, shape index: {}]
  %s1 = inlined_call_operand.vmem [shape: f32[1,128], index: 1, kind: output, shape index: {}]
  $region1: #{tile.14} parent=0
    #allocation0 [shape = 'u8[4096]{0}', space=vmem, size = 0x1000, scoped, tag = 'scoped mem for output reshape']
    #allocation1 [shape = 'u8[4096]{0}', space=vmem, size = 0x1000, scoped, tag = 'scoped mem for input reshape']
    %s3 = sshllo.u32 0, 2
    %v4 = vld [vmem:[%s0] sm:%s3]
    %5 = vst [vmem:[#allocation1] sm:%s3] %v4
    %v6 = vld [vmem:[#allocation1] sm:$0x1]
    %vm7 = vcmask 523264
    %8 = vst.msk [vmem:[#allocation0] sm:$0x1] %vm7, %v6
    %s9 = scalar_lea.vmem [#allocation1], 1
    %v10 = vld [vmem:[%s9] sm:$0x1]
    %11 = vrot.lane.b32.xlu0 %v10, 64
    %v12 = vpop.permute.xlu0 %11
    %vm13 = vcmask 1048064
    %14 = vst.msk [vmem:[#allocation0] sm:$0x1] %vm13, %v12
    %s16 = sshllo.u32 0, 1
    %v18 = vld [vmem:[#allocation0] sm:%s16]
    %s19 = sshllo.u32 0, 1
    %20 = vst [vmem:[%s1] sm:%s19] %v18

// kernel: hidden_encoder_forward.10
$region0: #{hidden_encoder_forward.10}
  #allocation0 [shape = 'u32[]', space=smem, size = 0x4, offset = 0x4, fixed_abs, tag = 'smem constant byte address 0x4 - core index']
  #allocation1 [shape = 'u32[144,128]{1,0:T(1,128)}', space=vmem, size = 0x12000, scoped, tag = 'internal scratch']
  %s0 = inlined_call_operand.vmem [shape: bf16[2,768,80], index: 0, kind: input, shape index: {}]
  %s1 = inlined_call_operand.vmem [shape: f32[768,1], index: 1, kind: input, shape index: {}]
  %s2 = inlined_call_operand.vmem [shape: f32[1,80], index: 2, kind: input, shape index: {}]
  %s3 = inlined_call_operand.vmem [shape: f32[1,80], index: 3, kind: input, shape index: {}]
  %s4 = inlined_call_operand.vmem [shape: f32[1,80], index: 4, kind: input, shape index: {}]
  %s5 = inlined_call_operand.vmem [shape: bf16[720,64], index: 5, kind: input, shape index: {}]
  %s6 = inlined_call_operand.vmem [shape: bf16[2,768,64], index: 6, kind: output, shape index: {0}]
  %s7 = inlined_call_operand.vmem [shape: f32[2,2,2,64], index: 7, kind: output, shape index: {1}]
  %8 = xla_tuple %s6, %s7
  %s9 = sld [smem:[#allocation0]]
  $region65: #{hidden_encoder_forward.10} parent=0
    _
  %s11 = ssub.s32 1, %s9
  %s12 = scalar_select 0, %s11, %s9
  loop: start=0, step=1, limit=6
  $region2: #{hidden_encoder_forward.10} parent=0 // loop_pre_header
    _
  $region3: #{hidden_encoder_forward.10} parent=0 // loop_header
    %s14 = sphi 0, %s18
    %p15 = scmp.ge.s32.totalorder %s14, 6
    %s21 = sphi 0, %s33
    %s22 = sphi 0, %s29
    %s23 = sphi 0, %s21
    %s24 = sphi 0, %s22
    %s25 = sphi 0, %s23
    %s26 = sphi 0, %s24
    %s36 = sphi 0, %s38
    %s39 = sphi 0, %s36
    %s40 = sphi 0, %s39
    %s56 = sphi 0, %s40
    %s60 = sphi 0, %s60
    %s62 = sphi 0, %s60
    %s63 = sphi 0, %s62
    %s77 = sphi 0, %s63
    %s81 = sphi 0, %s81
    %s83 = sphi 0, %s81
    %s84 = sphi 0, %s83
    %s98 = sphi 0, %s84
    %s102 = sphi 0, %s102
    %s104 = sphi 0, %s102
    %s105 = sphi 0, %s104
    %s119 = sphi 0, %s105
    %s123 = sphi 0, %s123
    %s125 = sphi 0, %s123
    %s126 = sphi 0, %s125
    %s140 = sphi 0, %s126
    %s144 = sphi 0, %s144
    %s146 = sphi 0, %s144
    %s147 = sphi 0, %s146
    %s161 = sphi 0, %s147
    %s171 = sphi 0, %s173
    %s174 = sphi 0, %s171
    %s175 = sphi 0, %s174
    %s191 = sphi 0, %s175
    %s199 = sphi 0, %s201
    %s202 = sphi 0, %s199
    %s203 = sphi 0, %s202
    %s219 = sphi 0, %s203
  $region4: #{hidden_encoder_forward.10} parent=0 // loop_header_branch
    %17 = sbr.rel (%p15) target = $region8
  $region5: #{hidden_encoder_forward.10} parent=0 // loop_body
    %s19 = ssub.s32 %s14, 1
    %s20 = ssub.s32 %s14, 2
    %s27 = sadd.s32 1, %s22
    %p28 = scmp.ge.s32.totalorder %s27, 2
    %s29 = scalar_select %p28, 0, %s27
    %s30 = sadd.s32 1, %s21
    %s31 = scalar_select %p28, %s30, %s21
    %p32 = scmp.ge.s32.totalorder %s31, 2
    %s33 = scalar_select %p32, 0, %s31
    %s34 = ssub.s32 %s21, %s33
    %p35 = scmp.eq.s32.totalorder %s34, 0
    %s37 = sadd.s32 %s36, 1
    %s38 = scalar_select %p35, %s36, %s37
    %p41 = pneg %p35
    %p42 = scmp.eq.s32.totalorder %s14, 3
    %p43 = por %p41, %p42
    %p44 = scmp.ne.s32.totalorder %s36, %s39
    %p45 = scmp.eq.s32.totalorder %s14, 0
    %p46 = por %p44, %p45
    %p47 = scmp.ne.s32.totalorder %s36, %s39
    %p48 = scmp.eq.s32.totalorder %s19, 3
    %p49 = por %p47, %p48
    %p50 = scmp.ne.s32.totalorder %s39, %s40
    %p51 = scmp.eq.s32.totalorder %s19, 0
    %p52 = por %p50, %p51
    %p53 = scmp.ne.s32.totalorder %s39, %s40
    %p54 = scmp.eq.s32.totalorder %s20, 3
    %p55 = por %p53, %p54
    %p57 = scmp.ne.s32.totalorder %s40, %s56
    %p58 = scmp.eq.s32.totalorder %s20, 0
    %p59 = por %p57, %p58
    %s61 = sadd.s32 %s60, 1
    %p64 = scmp.eq.s32.totalorder %s14, 3
    %p65 = scmp.ne.s32.totalorder %s60, %s62
    %p66 = scmp.eq.s32.totalorder %s14, 0
    %p67 = por %p65, %p66
    %p68 = scmp.ne.s32.totalorder %s60, %s62
    %p69 = scmp.eq.s32.totalorder %s19, 3
    %p70 = por %p68, %p69
    %p71 = scmp.ne.s32.totalorder %s62, %s63
    %p72 = scmp.eq.s32.totalorder %s19, 0
    %p73 = por %p71, %p72
    %p74 = scmp.ne.s32.totalorder %s62, %s63
    %p75 = scmp.eq.s32.totalorder %s20, 3
    %p76 = por %p74, %p75
    %p78 = scmp.ne.s32.totalorder %s63, %s77
    %p79 = scmp.eq.s32.totalorder %s20, 0
    %p80 = por %p78, %p79
    %s82 = sadd.s32 %s81, 1
    %p85 = scmp.eq.s32.totalorder %s14, 3
    %p86 = scmp.ne.s32.totalorder %s81, %s83
    %p87 = scmp.eq.s32.totalorder %s14, 0
    %p88 = por %p86, %p87
    %p89 = scmp.ne.s32.totalorder %s81, %s83
    %p90 = scmp.eq.s32.totalorder %s19, 3
    %p91 = por %p89, %p90
    %p92 = scmp.ne.s32.totalorder %s83, %s84
    %p93 = scmp.eq.s32.totalorder %s19, 0
    %p94 = por %p92, %p93
    %p95 = scmp.ne.s32.totalorder %s83, %s84
    %p96 = scmp.eq.s32.totalorder %s20, 3
    %p97 = por %p95, %p96
    %p99 = scmp.ne.s32.totalorder %s84, %s98
    %p100 = scmp.eq.s32.totalorder %s20, 0
    %p101 = por %p99, %p100
    %s103 = sadd.s32 %s102, 1
    %p106 = scmp.eq.s32.totalorder %s14, 3
    %p107 = scmp.ne.s32.totalorder %s102, %s104
    %p108 = scmp.eq.s32.totalorder %s14, 0
    %p109 = por %p107, %p108
    %p110 = scmp.ne.s32.totalorder %s102, %s104
    %p111 = scmp.eq.s32.totalorder %s19, 3
    %p112 = por %p110, %p111
    %p113 = scmp.ne.s32.totalorder %s104, %s105
    %p114 = scmp.eq.s32.totalorder %s19, 0
    %p115 = por %p113, %p114
    %p116 = scmp.ne.s32.totalorder %s104, %s105
    %p117 = scmp.eq.s32.totalorder %s20, 3
    %p118 = por %p116, %p117
    %p120 = scmp.ne.s32.totalorder %s105, %s119
    %p121 = scmp.eq.s32.totalorder %s20, 0
    %p122 = por %p120, %p121
    %s124 = sadd.s32 %s123, 1
    %p127 = scmp.eq.s32.totalorder %s14, 3
    %p128 = scmp.ne.s32.totalorder %s123, %s125
    %p129 = scmp.eq.s32.totalorder %s14, 0
    %p130 = por %p128, %p129
    %p131 = scmp.ne.s32.totalorder %s123, %s125
    %p132 = scmp.eq.s32.totalorder %s19, 3
    %p133 = por %p131, %p132
    %p134 = scmp.ne.s32.totalorder %s125, %s126
    %p135 = scmp.eq.s32.totalorder %s19, 0
    %p136 = por %p134, %p135
    %p137 = scmp.ne.s32.totalorder %s125, %s126
    %p138 = scmp.eq.s32.totalorder %s20, 3
    %p139 = por %p137, %p138
    %p141 = scmp.ne.s32.totalorder %s126, %s140
    %p142 = scmp.eq.s32.totalorder %s20, 0
    %p143 = por %p141, %p142
    %s145 = sadd.s32 %s144, 1
    %p148 = scmp.eq.s32.totalorder %s14, 3
    %p149 = scmp.ne.s32.totalorder %s144, %s146
    %p150 = scmp.eq.s32.totalorder %s14, 0
    %p151 = por %p149, %p150
    %p152 = scmp.ne.s32.totalorder %s144, %s146
    %p153 = scmp.eq.s32.totalorder %s19, 3
    %p154 = por %p152, %p153
    %p155 = scmp.ne.s32.totalorder %s146, %s147
    %p156 = scmp.eq.s32.totalorder %s19, 0
    %p157 = por %p155, %p156
    %p158 = scmp.ne.s32.totalorder %s146, %s147
    %p159 = scmp.eq.s32.totalorder %s20, 3
    %p160 = por %p158, %p159
    %p162 = scmp.ne.s32.totalorder %s147, %s161
    %p163 = scmp.eq.s32.totalorder %s20, 0
    %p164 = por %p162, %p163
    %s165 = sadd.s32 %s22, 1
    %s166 = sadd.s32 %s29, 1
    %s167 = ssub.s32 %s21, %s33
    %s168 = ssub.s32 %s165, %s166
    %s169 = sor.u32 %s167, %s168
    %p170 = scmp.eq.s32.totalorder %s169, 0
    %s172 = sadd.s32 %s171, 1
    %s173 = scalar_select %p170, %s171, %s172
    %p176 = pneg %p170
    %p177 = scmp.eq.s32.totalorder %s14, 3
    %p178 = por %p176, %p177
    %p179 = scmp.ne.s32.totalorder %s171, %s174
    %p180 = scmp.eq.s32.totalorder %s14, 0
    %p181 = por %p179, %p180
    %p182 = scmp.ne.s32.totalorder %s171, %s174
    %p183 = scmp.eq.s32.totalorder %s19, 3
    %p184 = por %p182, %p183
    %p185 = scmp.ne.s32.totalorder %s174, %s175
    %p186 = scmp.eq.s32.totalorder %s19, 0
    %p187 = por %p185, %p186
    %p188 = scmp.ne.s32.totalorder %s174, %s175
    %p189 = scmp.eq.s32.totalorder %s20, 3
    %p190 = por %p188, %p189
    %p192 = scmp.ne.s32.totalorder %s175, %s191
    %p193 = scmp.eq.s32.totalorder %s20, 0
    %p194 = por %p192, %p193
    %s195 = ssub.s32 %s21, %s33
    %s196 = ssub.s32 %s22, %s29
    %s197 = sor.u32 %s195, %s196
    %p198 = scmp.eq.s32.totalorder %s197, 0
    %s200 = sadd.s32 %s199, 1
    %s201 = scalar_select %p198, %s199, %s200
    %p204 = pneg %p198
    %p205 = scmp.eq.s32.totalorder %s14, 3
    %p206 = por %p204, %p205
    %p207 = scmp.ne.s32.totalorder %s199, %s202
    %p208 = scmp.eq.s32.totalorder %s14, 0
    %p209 = por %p207, %p208
    %p210 = scmp.ne.s32.totalorder %s199, %s202
    %p211 = scmp.eq.s32.totalorder %s19, 3
    %p212 = por %p210, %p211
    %p213 = scmp.ne.s32.totalorder %s202, %s203
    %p214 = scmp.eq.s32.totalorder %s19, 0
    %p215 = por %p213, %p214
    %p216 = scmp.ne.s32.totalorder %s202, %s203
    %p217 = scmp.eq.s32.totalorder %s20, 3
    %p218 = por %p216, %p217
    %p220 = scmp.ne.s32.totalorder %s203, %s219
    %p221 = scmp.eq.s32.totalorder %s20, 0
    %p222 = por %p220, %p221
    %p223 = scmp.le.s32.totalorder 1, %s14
    %p224 = scmp.lt.s32.totalorder %s14, 5
    %p225 = pnand %p223, %p224
    %p226 = pneg %p225
    // Predicated region
    $region9: #{hidden_encoder_forward.10} parent=5 // pred_check
      _
    $region10: #{hidden_encoder_forward.10} parent=5 // pred_check_branch
      %228 = sbr.rel (%p225) target = $region12
    $region11: #{hidden_encoder_forward.10} parent=5 // pred_region
      %s229 = ssub.s32 %s14, 1
      // Predicated region
      $region13: #{hidden_encoder_forward.10} parent=11 // pred_check
        %p230 = pneg %p73
      $region14: #{hidden_encoder_forward.10} parent=11 // pred_check_branch
        %232 = sbr.rel (%p230) target = $region16
      $region15: #{hidden_encoder_forward.10} parent=11 // pred_region
        _
      $region16: #{hidden_encoder_forward.10} parent=11 // pred_fallthru
        _
      // Predicated region
      $region17: #{hidden_encoder_forward.10} parent=11 // pred_check
        %p233 = pneg %p94
      $region18: #{hidden_encoder_forward.10} parent=11 // pred_check_branch
        %235 = sbr.rel (%p233) target = $region20
      $region19: #{hidden_encoder_forward.10} parent=11 // pred_region
        _
      $region20: #{hidden_encoder_forward.10} parent=11 // pred_fallthru
        _
      // Predicated region
      $region21: #{hidden_encoder_forward.10} parent=11 // pred_check
        %p236 = pneg %p115
      $region22: #{hidden_encoder_forward.10} parent=11 // pred_check_branch
        %238 = sbr.rel (%p236) target = $region24
      $region23: #{hidden_encoder_forward.10} parent=11 // pred_region
        _
      $region24: #{hidden_encoder_forward.10} parent=11 // pred_fallthru
        _
      // Predicated region
      $region25: #{hidden_encoder_forward.10} parent=11 // pred_check
        %p239 = pneg %p136
      $region26: #{hidden_encoder_forward.10} parent=11 // pred_check_branch
        %241 = sbr.rel (%p239) target = $region28
      $region27: #{hidden_encoder_forward.10} parent=11 // pred_region
        _
      $region28: #{hidden_encoder_forward.10} parent=11 // pred_fallthru
        _
      // Predicated region
      $region29: #{hidden_encoder_forward.10} parent=11 // pred_check
        %p242 = pneg %p157
      $region30: #{hidden_encoder_forward.10} parent=11 // pred_check_branch
        %244 = sbr.rel (%p242) target = $region32
      $region31: #{hidden_encoder_forward.10} parent=11 // pred_region
        _
      $region32: #{hidden_encoder_forward.10} parent=11 // pred_fallthru
        _
    $region12: #{hidden_encoder_forward.10} parent=5 // pred_fallthru
      _
    %p245 = scmp.lt.s32.totalorder %s14, 4
    // Predicated region
    $region33: #{hidden_encoder_forward.10} parent=5 // pred_check
      %p246 = pneg %p245
    $region34: #{hidden_encoder_forward.10} parent=5 // pred_check_branch
      %248 = sbr.rel (%p246) target = $region36
    $region35: #{hidden_encoder_forward.10} parent=5 // pred_region
      // Predicated region
      $region37: #{hidden_encoder_forward.10} parent=35 // pred_check
        %p249 = pneg %p46
      $region38: #{hidden_encoder_forward.10} parent=35 // pred_check_branch
        %251 = sbr.rel (%p249) target = $region40
      $region39: #{hidden_encoder_forward.10} parent=35 // pred_region
        %p252 = scmp.lt.s32.totalorder %s21, 1
        %s253 = scalar_select %p252, %s21, 1
        %s254 = smul.addr %s253, 96
        %s255 = smul.addr %s254, 4
        %s256 = scalar_lea.vmem %s0, %s255
      $region40: #{hidden_encoder_forward.10} parent=35 // pred_fallthru
        _
    $region36: #{hidden_encoder_forward.10} parent=5 // pred_fallthru
      _
    %p257 = scmp.le.s32.totalorder 1, %s14
    %p258 = scmp.lt.s32.totalorder %s14, 5
    %p259 = pnand %p257, %p258
    %p260 = pneg %p259
    // Predicated region
    $region41: #{hidden_encoder_forward.10} parent=5 // pred_check
      _
    $region42: #{hidden_encoder_forward.10} parent=5 // pred_check_branch
      %262 = sbr.rel (%p259) target = $region44
    $region43: #{hidden_encoder_forward.10} parent=5 // pred_region
      %s263 = ssub.s32 %s14, 1
      %p264 = scmp.lt.s32.totalorder %s23, 1
      %s265 = scalar_select %p264, %s23, 1
      %s266 = smul.addr %s265, 96
      %s267 = smul.addr %s266, 4
      %s268 = scalar_lea.vmem %s0, %s267
      %p269 = pneg %p52
      %p270 = pneg %p49
      %p271 = pneg %p73
      %p272 = pneg %p70
      %p273 = pneg %p94
      %p274 = pneg %p91
      %p275 = pneg %p115
      %p276 = pneg %p112
      %p277 = pneg %p136
      %p278 = pneg %p133
      %p279 = pneg %p157
      %p280 = pneg %p154
      %p281 = pneg %p187
      %p282 = pneg %p184
      %s283 = sadd.s32 %s24, 1
      %s284 = smul.u32 24, %s283
      %p285 = scmp.lt.s32.totalorder %s23, 1
      %s286 = scalar_select %p285, %s23, 1
      %p287 = scmp.lt.s32.totalorder %s284, 95
      %s288 = scalar_select %p287, %s284, 95
      %s289 = smul.addr %s286, 96
      %s290 = sadd.s32 %s288, %s289
      %s291 = smul.addr %s290, 4
      %s292 = scalar_lea.vmem %s6, %s291
      %p293 = pneg %p215
      %p294 = pneg %p212
      %p295 = scmp.lt.s32.totalorder %s23, 1
      %s296 = scalar_select %p295, %s23, 1
      %p297 = scmp.lt.s32.totalorder %s24, 1
      %s298 = scalar_select %p297, %s24, 1
      %s299 = smul.addr %s296, 2
      %s300 = sadd.s32 %s298, %s299
      %s301 = smul.addr %s300, 2
      %s302 = scalar_lea.vmem %s7, %s301
      %p303 = scmp.lt.s32.totalorder %s23, 1
      %s304 = scalar_select %p303, %s23, 1
      %s305 = smul.addr %s304, 96
      %s306 = smul.addr %s305, 4
      %s307 = scalar_lea.vmem %s0, %s306
      %s308 = sadd.s32 %s24, 1
      %s309 = smul.u32 24, %s308
      %p310 = scmp.lt.s32.totalorder %s23, 1
      %s311 = scalar_select %p310, %s23, 1
      %p312 = scmp.lt.s32.totalorder %s309, 95
      %s313 = scalar_select %p312, %s309, 95
      %s314 = smul.addr %s311, 96
      %s315 = sadd.s32 %s313, %s314
      %s316 = smul.addr %s315, 4
      %s317 = scalar_lea.vmem %s6, %s316
      %s318 = sadd.s32 %s24, 1
      %s319 = smul.u32 24, %s318
      %p320 = scmp.lt.s32.totalorder %s23, 1
      %s321 = scalar_select %p320, %s23, 1
      %p322 = scmp.lt.s32.totalorder %s24, 1
      %s323 = scalar_select %p322, %s24, 1
      %s324 = smul.addr %s321, 2
      %s325 = sadd.s32 %s323, %s324
      %s326 = smul.addr %s325, 2
      %s327 = scalar_lea.vmem %s7, %s326
      %s329 = sadd.s32 %s24, 1
      %s330 = smul.u32 %s329, 192
      %s331 = ssub.s32 %s330, 32
      %s332 = sshra.s32 %s331, 3
      %s333 = sand.u32 %s331, 7
      %s334 = smul.addr %s332, 4
      %s335 = scalar_lea.vmem %s307, %s334
      %v336 = vld [vmem:[%s335] sm:$0xf]
      %v337 = vld [vmem:[%s335 + $0x4] sm:$0xf]
      %v338 = vld [vmem:[%s335 + $0x8] sm:$0xf]
      %v339 = vld [vmem:[%s335 + $0xc] sm:$0xf]
      %v340 = vld [vmem:[%s335 + $0x10] sm:$0xf]
      %v341 = vld [vmem:[%s335 + $0x14] sm:$0xf]
      %v342 = vld [vmem:[%s335 + $0x18] sm:$0xf]
      %v343 = vld [vmem:[%s335 + $0x1c] sm:$0xf]
      %v344 = vld [vmem:[%s335 + $0x20] sm:$0xf]
      %v345 = vld [vmem:[%s335 + $0x24] sm:$0xf]
      %v346 = vld [vmem:[%s335 + $0x28] sm:$0xf]
      %v347 = vld [vmem:[%s335 + $0x2c] sm:$0xf]
      %v348 = vld [vmem:[%s335 + $0x30] sm:$0xf]
      %v349 = vld [vmem:[%s335 + $0x34] sm:$0xf]
      %v350 = vld [vmem:[%s335 + $0x38] sm:$0xf]
      %v351 = vld [vmem:[%s335 + $0x3c] sm:$0xf]
      %v352 = vld [vmem:[%s335 + $0x40] sm:$0xf]
      %v353 = vld [vmem:[%s335 + $0x44] sm:$0xf]
      %v354 = vld [vmem:[%s335 + $0x48] sm:$0xf]
      %v355 = vld [vmem:[%s335 + $0x4c] sm:$0xf]
      %v356 = vld [vmem:[%s335 + $0x50] sm:$0xf]
      %v357 = vld [vmem:[%s335 + $0x54] sm:$0xf]
      %v358 = vld [vmem:[%s335 + $0x58] sm:$0xf]
      %v359 = vld [vmem:[%s335 + $0x5c] sm:$0xf]
      %v360 = vld [vmem:[%s335 + $0x60] sm:$0xf]
      %v361 = vld [vmem:[%s335 + $0x64] sm:$0xf]
      %v362 = vld [vmem:[%s335 + $0x68] sm:$0xf]
      %v363 = vld [vmem:[%s335 + $0x6c] sm:$0xf]
      %v364 = vld [vmem:[%s335 + $0x70] sm:$0xf]
      %v365 = vld [vmem:[%s335 + $0x74] sm:$0xf]
      %v366 = vld [vmem:[%s335 + $0x78] sm:$0xf]
      %v367 = vld [vmem:[%s335 + $0x7c] sm:$0xf]
      %v368 = vunpack.c.l.bf16 %v336
      %v369 = vunpack.c.l.bf16 %v337
      %v370 = vunpack.c.l.bf16 %v338
      %v371 = vunpack.c.l.bf16 %v339
      %v372 = vunpack.c.l.bf16 %v340
      %v373 = vunpack.c.l.bf16 %v341
      %v374 = vunpack.c.l.bf16 %v342
      %v375 = vunpack.c.l.bf16 %v343
      %v376 = vunpack.c.l.bf16 %v344
      %v377 = vunpack.c.l.bf16 %v345
      %v378 = vunpack.c.l.bf16 %v346
      %v379 = vunpack.c.l.bf16 %v347
      %v380 = vunpack.c.l.bf16 %v348
      %v381 = vunpack.c.l.bf16 %v349
      %v382 = vunpack.c.l.bf16 %v350
      %v383 = vunpack.c.l.bf16 %v351
      %v384 = vunpack.c.l.bf16 %v352
      %v385 = vunpack.c.l.bf16 %v353
      %v386 = vunpack.c.l.bf16 %v354
      %v387 = vunpack.c.l.bf16 %v355
      %v388 = vunpack.c.l.bf16 %v356
      %v389 = vunpack.c.l.bf16 %v357
      %v390 = vunpack.c.l.bf16 %v358
      %v391 = vunpack.c.l.bf16 %v359
      %v392 = vunpack.c.l.bf16 %v360
      %v393 = vunpack.c.l.bf16 %v361
      %v394 = vunpack.c.l.bf16 %v362
      %v395 = vunpack.c.l.bf16 %v363
      %v396 = vunpack.c.l.bf16 %v364
      %v397 = vunpack.c.l.bf16 %v365
      %v398 = vunpack.c.l.bf16 %v366
      %v399 = vunpack.c.l.bf16 %v367
      %v400 = vld [vmem:[%s2] sm:$0x1]
      %v402 = vlaneseq
      %v403 = vshrl.u32 %v402, 7
      %v404 = vsub.s32 0, %v403
      %v405 = vrot.slane %v400, %v404
      %v407 = vmul.f32 %v368, %v405
      %v408 = vmul.f32 %v369, %v405
      %v409 = vmul.f32 %v370, %v405
      %v410 = vmul.f32 %v371, %v405
      %v411 = vmul.f32 %v372, %v405
      %v412 = vmul.f32 %v373, %v405
      %v413 = vmul.f32 %v374, %v405
      %v414 = vmul.f32 %v375, %v405
      %v415 = vmul.f32 %v376, %v405
      %v416 = vmul.f32 %v377, %v405
      %v417 = vmul.f32 %v378, %v405
      %v418 = vmul.f32 %v379, %v405
      %v419 = vmul.f32 %v380, %v405
      %v420 = vmul.f32 %v381, %v405
      %v421 = vmul.f32 %v382, %v405
      %v422 = vmul.f32 %v383, %v405
      %v423 = vmul.f32 %v384, %v405
      %v424 = vmul.f32 %v385, %v405
      %v425 = vmul.f32 %v386, %v405
      %v426 = vmul.f32 %v387, %v405
      %v427 = vmul.f32 %v388, %v405
      %v428 = vmul.f32 %v389, %v405
      %v429 = vmul.f32 %v390, %v405
      %v430 = vmul.f32 %v391, %v405
      %v431 = vmul.f32 %v392, %v405
      %v432 = vmul.f32 %v393, %v405
      %v433 = vmul.f32 %v394, %v405
      %v434 = vmul.f32 %v395, %v405
      %v435 = vmul.f32 %v396, %v405
      %v436 = vmul.f32 %v397, %v405
      %v437 = vmul.f32 %v398, %v405
      %v438 = vmul.f32 %v399, %v405
      %v439 = vld [vmem:[%s3] sm:$0x1]
      %v441 = vlaneseq
      %v442 = vshrl.u32 %v441, 7
      %v443 = vsub.s32 0, %v442
      %v444 = vrot.slane %v439, %v443
      %v446 = vadd.f32 %v407, %v444
      %v447 = vadd.f32 %v408, %v444
      %v448 = vadd.f32 %v409, %v444
      %v449 = vadd.f32 %v410, %v444
      %v450 = vadd.f32 %v411, %v444
      %v451 = vadd.f32 %v412, %v444
      %v452 = vadd.f32 %v413, %v444
      %v453 = vadd.f32 %v414, %v444
      %v454 = vadd.f32 %v415, %v444
      %v455 = vadd.f32 %v416, %v444
      %v456 = vadd.f32 %v417, %v444
      %v457 = vadd.f32 %v418, %v444
      %v458 = vadd.f32 %v419, %v444
      %v459 = vadd.f32 %v420, %v444
      %v460 = vadd.f32 %v421, %v444
      %v461 = vadd.f32 %v422, %v444
      %v462 = vadd.f32 %v423, %v444
      %v463 = vadd.f32 %v424, %v444
      %v464 = vadd.f32 %v425, %v444
      %v465 = vadd.f32 %v426, %v444
      %v466 = vadd.f32 %v427, %v444
      %v467 = vadd.f32 %v428, %v444
      %v468 = vadd.f32 %v429, %v444
      %v469 = vadd.f32 %v430, %v444
      %v470 = vadd.f32 %v431, %v444
      %v471 = vadd.f32 %v432, %v444
      %v472 = vadd.f32 %v433, %v444
      %v473 = vadd.f32 %v434, %v444
      %v474 = vadd.f32 %v435, %v444
      %v475 = vadd.f32 %v436, %v444
      %v476 = vadd.f32 %v437, %v444
      %v477 = vadd.f32 %v438, %v444
      %v478 = vld [vmem:[%s4] sm:$0x1]
      %vm479 = vcmp.gt.f32.partialorder %v478, 0.5
      %v480 = vmax.f32 %v446, 0.0
      %v481 = vmax.f32 %v447, 0.0
      %v482 = vmax.f32 %v448, 0.0
      %v483 = vmax.f32 %v449, 0.0
      %v484 = vmax.f32 %v450, 0.0
      %v485 = vmax.f32 %v451, 0.0
      %v486 = vmax.f32 %v452, 0.0
      %v487 = vmax.f32 %v453, 0.0
      %v488 = vmax.f32 %v454, 0.0
      %v489 = vmax.f32 %v455, 0.0
      %v490 = vmax.f32 %v456, 0.0
      %v491 = vmax.f32 %v457, 0.0
      %v492 = vmax.f32 %v458, 0.0
      %v493 = vmax.f32 %v459, 0.0
      %v494 = vmax.f32 %v460, 0.0
      %v495 = vmax.f32 %v461, 0.0
      %v496 = vmax.f32 %v462, 0.0
      %v497 = vmax.f32 %v463, 0.0
      %v498 = vmax.f32 %v464, 0.0
      %v499 = vmax.f32 %v465, 0.0
      %v500 = vmax.f32 %v466, 0.0
      %v501 = vmax.f32 %v467, 0.0
      %v502 = vmax.f32 %v468, 0.0
      %v503 = vmax.f32 %v469, 0.0
      %v504 = vmax.f32 %v470, 0.0
      %v505 = vmax.f32 %v471, 0.0
      %v506 = vmax.f32 %v472, 0.0
      %v507 = vmax.f32 %v473, 0.0
      %v508 = vmax.f32 %v474, 0.0
      %v509 = vmax.f32 %v475, 0.0
      %v510 = vmax.f32 %v476, 0.0
      %v511 = vmax.f32 %v477, 0.0
      %v512 = vsel %vm479, 1, 0
      %v513 = vlaneseq
      %v514 = vshrl.u32 %v513, 7
      %v515 = vsub.s32 0, %v514
      %v516 = vrot.slane %v512, %v515
      %vm517 = vcmp.eq.s32.totalorder %v516, 1
      %v518 = vsel %vm517, %v480, %v446
      %v519 = vsel %vm517, %v481, %v447
      %v520 = vsel %vm517, %v482, %v448
      %v521 = vsel %vm517, %v483, %v449
      %v522 = vsel %vm517, %v484, %v450
      %v523 = vsel %vm517, %v485, %v451
      %v524 = vsel %vm517, %v486, %v452
      %v525 = vsel %vm517, %v487, %v453
      %v526 = vsel %vm517, %v488, %v454
      %v527 = vsel %vm517, %v489, %v455
      %v528 = vsel %vm517, %v490, %v456
      %v529 = vsel %vm517, %v491, %v457
      %v530 = vsel %vm517, %v492, %v458
      %v531 = vsel %vm517, %v493, %v459
      %v532 = vsel %vm517, %v494, %v460
      %v533 = vsel %vm517, %v495, %v461
      %v534 = vsel %vm517, %v496, %v462
      %v535 = vsel %vm517, %v497, %v463
      %v536 = vsel %vm517, %v498, %v464
      %v537 = vsel %vm517, %v499, %v465
      %v538 = vsel %vm517, %v500, %v466
      %v539 = vsel %vm517, %v501, %v467
      %v540 = vsel %vm517, %v502, %v468
      %v541 = vsel %vm517, %v503, %v469
      %v542 = vsel %vm517, %v504, %v470
      %v543 = vsel %vm517, %v505, %v471
      %v544 = vsel %vm517, %v506, %v472
      %v545 = vsel %vm517, %v507, %v473
      %v546 = vsel %vm517, %v508, %v474
      %v547 = vsel %vm517, %v509, %v475
      %v548 = vsel %vm517, %v510, %v476
      %v549 = vsel %vm517, %v511, %v477
      %s550 = scalar_lea.vmem %s1, %s331
      %v551 = vld [vmem:[%s550] sm:$0xff]
      %v552 = vld [vmem:[%s550 + $0x8] sm:$0xff]
      %v553 = vld [vmem:[%s550 + $0x10] sm:$0xff]
      %v554 = vld [vmem:[%s550 + $0x18] sm:$0xff]
      %v555 = vld [vmem:[%s550 + $0x20] sm:$0xff]
      %v556 = vld [vmem:[%s550 + $0x28] sm:$0xff]
      %v557 = vld [vmem:[%s550 + $0x30] sm:$0xff]
      %v558 = vld [vmem:[%s550 + $0x38] sm:$0xff]
      %v559 = vld [vmem:[%s550 + $0x40] sm:$0xff]
      %v560 = vld [vmem:[%s550 + $0x48] sm:$0xff]
      %v561 = vld [vmem:[%s550 + $0x50] sm:$0xff]
      %v562 = vld [vmem:[%s550 + $0x58] sm:$0xff]
      %v563 = vld [vmem:[%s550 + $0x60] sm:$0xff]
      %v564 = vld [vmem:[%s550 + $0x68] sm:$0xff]
      %v565 = vld [vmem:[%s550 + $0x70] sm:$0xff]
      %v566 = vld [vmem:[%s550 + $0x78] sm:$0xff]
      %v567 = vld [vmem:[%s550 + $0x80] sm:$0xff]
      %v568 = vld [vmem:[%s550 + $0x88] sm:$0xff]
      %v569 = vld [vmem:[%s550 + $0x90] sm:$0xff]
      %v570 = vld [vmem:[%s550 + $0x98] sm:$0xff]
      %v571 = vld [vmem:[%s550 + $0xa0] sm:$0xff]
      %v572 = vld [vmem:[%s550 + $0xa8] sm:$0xff]
      %v573 = vld [vmem:[%s550 + $0xb0] sm:$0xff]
      %v574 = vld [vmem:[%s550 + $0xb8] sm:$0xff]
      %v575 = vld [vmem:[%s550 + $0xc0] sm:$0xff]
      %v576 = vld [vmem:[%s550 + $0xc8] sm:$0xff]
      %v577 = vld [vmem:[%s550 + $0xd0] sm:$0xff]
      %v578 = vld [vmem:[%s550 + $0xd8] sm:$0xff]
      %v579 = vld [vmem:[%s550 + $0xe0] sm:$0xff]
      %v580 = vld [vmem:[%s550 + $0xe8] sm:$0xff]
      %v581 = vld [vmem:[%s550 + $0xf0] sm:$0xff]
      %v582 = vld [vmem:[%s550 + $0xf8] sm:$0xff]
      %vm583 = vcmp.gt.f32.partialorder %v551, 0.5
      %vm584 = vcmp.gt.f32.partialorder %v552, 0.5
      %vm585 = vcmp.gt.f32.partialorder %v553, 0.5
      %vm586 = vcmp.gt.f32.partialorder %v554, 0.5
      %vm587 = vcmp.gt.f32.partialorder %v555, 0.5
      %vm588 = vcmp.gt.f32.partialorder %v556, 0.5
      %vm589 = vcmp.gt.f32.partialorder %v557, 0.5
      %vm590 = vcmp.gt.f32.partialorder %v558, 0.5
      %vm591 = vcmp.gt.f32.partialorder %v559, 0.5
      %vm592 = vcmp.gt.f32.partialorder %v560, 0.5
      %vm593 = vcmp.gt.f32.partialorder %v561, 0.5
      %vm594 = vcmp.gt.f32.partialorder %v562, 0.5
      %vm595 = vcmp.gt.f32.partialorder %v563, 0.5
      %vm596 = vcmp.gt.f32.partialorder %v564, 0.5
      %vm597 = vcmp.gt.f32.partialorder %v565, 0.5
      %vm598 = vcmp.gt.f32.partialorder %v566, 0.5
      %vm599 = vcmp.gt.f32.partialorder %v567, 0.5
      %vm600 = vcmp.gt.f32.partialorder %v568, 0.5
      %vm601 = vcmp.gt.f32.partialorder %v569, 0.5
      %vm602 = vcmp.gt.f32.partialorder %v570, 0.5
      %vm603 = vcmp.gt.f32.partialorder %v571, 0.5
      %vm604 = vcmp.gt.f32.partialorder %v572, 0.5
      %vm605 = vcmp.gt.f32.partialorder %v573, 0.5
      %vm606 = vcmp.gt.f32.partialorder %v574, 0.5
      %vm607 = vcmp.gt.f32.partialorder %v575, 0.5
      %vm608 = vcmp.gt.f32.partialorder %v576, 0.5
      %vm609 = vcmp.gt.f32.partialorder %v577, 0.5
      %vm610 = vcmp.gt.f32.partialorder %v578, 0.5
      %vm611 = vcmp.gt.f32.partialorder %v579, 0.5
      %vm612 = vcmp.gt.f32.partialorder %v580, 0.5
      %vm613 = vcmp.gt.f32.partialorder %v581, 0.5
      %vm614 = vcmp.gt.f32.partialorder %v582, 0.5
      %v615 = vsel %vm583, 1, 0
      %v616 = vsel %vm584, 1, 0
      %v617 = vsel %vm585, 1, 0
      %v618 = vsel %vm586, 1, 0
      %v619 = vsel %vm587, 1, 0
      %v620 = vsel %vm588, 1, 0
      %v621 = vsel %vm589, 1, 0
      %v622 = vsel %vm590, 1, 0
      %v623 = vsel %vm591, 1, 0
      %v624 = vsel %vm592, 1, 0
      %v625 = vsel %vm593, 1, 0
      %v626 = vsel %vm594, 1, 0
      %v627 = vsel %vm595, 1, 0
      %v628 = vsel %vm596, 1, 0
      %v629 = vsel %vm597, 1, 0
      %v630 = vsel %vm598, 1, 0
      %v631 = vsel %vm599, 1, 0
      %v632 = vsel %vm600, 1, 0
      %v633 = vsel %vm601, 1, 0
      %v634 = vsel %vm602, 1, 0
      %v635 = vsel %vm603, 1, 0
      %v636 = vsel %vm604, 1, 0
      %v637 = vsel %vm605, 1, 0
      %v638 = vsel %vm606, 1, 0
      %v639 = vsel %vm607, 1, 0
      %v640 = vsel %vm608, 1, 0
      %v641 = vsel %vm609, 1, 0
      %v642 = vsel %vm610, 1, 0
      %v643 = vsel %vm611, 1, 0
      %v644 = vsel %vm612, 1, 0
      %v645 = vsel %vm613, 1, 0
      %v646 = vsel %vm614, 1, 0
      %647 = vset.pattern.permute.xlu0 0
      %648 = vperm.xlu0 %647, %v615
      %v649 = vpop.permute.xlu0 %648
      %650 = vset.pattern.permute.xlu0 0
      %651 = vperm.xlu0 %650, %v616
      %v652 = vpop.permute.xlu0 %651
      %653 = vset.pattern.permute.xlu0 0
      %654 = vperm.xlu0 %653, %v617
      %v655 = vpop.permute.xlu0 %654
      %656 = vset.pattern.permute.xlu0 0
      %657 = vperm.xlu0 %656, %v618
      %v658 = vpop.permute.xlu0 %657
      %659 = vset.pattern.permute.xlu0 0
      %660 = vperm.xlu0 %659, %v619
      %v661 = vpop.permute.xlu0 %660
      %662 = vset.pattern.permute.xlu0 0
      %663 = vperm.xlu0 %662, %v620
      %v664 = vpop.permute.xlu0 %663
      %665 = vset.pattern.permute.xlu0 0
      %666 = vperm.xlu0 %665, %v621
      %v667 = vpop.permute.xlu0 %666
      %668 = vset.pattern.permute.xlu0 0
      %669 = vperm.xlu0 %668, %v622
      %v670 = vpop.permute.xlu0 %669
      %671 = vset.pattern.permute.xlu0 0
      %672 = vperm.xlu0 %671, %v623
      %v673 = vpop.permute.xlu0 %672
      %674 = vset.pattern.permute.xlu0 0
      %675 = vperm.xlu0 %674, %v624
      %v676 = vpop.permute.xlu0 %675
      %677 = vset.pattern.permute.xlu0 0
      %678 = vperm.xlu0 %677, %v625
      %v679 = vpop.permute.xlu0 %678
      %680 = vset.pattern.permute.xlu0 0
      %681 = vperm.xlu0 %680, %v626
      %v682 = vpop.permute.xlu0 %681
      %683 = vset.pattern.permute.xlu0 0
      %684 = vperm.xlu0 %683, %v627
      %v685 = vpop.permute.xlu0 %684
      %686 = vset.pattern.permute.xlu0 0
      %687 = vperm.xlu0 %686, %v628
      %v688 = vpop.permute.xlu0 %687
      %689 = vset.pattern.permute.xlu0 0
      %690 = vperm.xlu0 %689, %v629
      %v691 = vpop.permute.xlu0 %690
      %692 = vset.pattern.permute.xlu0 0
      %693 = vperm.xlu0 %692, %v630
      %v694 = vpop.permute.xlu0 %693
      %695 = vset.pattern.permute.xlu0 0
      %696 = vperm.xlu0 %695, %v631
      %v697 = vpop.permute.xlu0 %696
      %698 = vset.pattern.permute.xlu0 0
      %699 = vperm.xlu0 %698, %v632
      %v700 = vpop.permute.xlu0 %699
      %701 = vset.pattern.permute.xlu0 0
      %702 = vperm.xlu0 %701, %v633
      %v703 = vpop.permute.xlu0 %702
      %704 = vset.pattern.permute.xlu0 0
      %705 = vperm.xlu0 %704, %v634
      %v706 = vpop.permute.xlu0 %705
      %707 = vset.pattern.permute.xlu0 0
      %708 = vperm.xlu0 %707, %v635
      %v709 = vpop.permute.xlu0 %708
      %710 = vset.pattern.permute.xlu0 0
      %711 = vperm.xlu0 %710, %v636
      %v712 = vpop.permute.xlu0 %711
      %713 = vset.pattern.permute.xlu0 0
      %714 = vperm.xlu0 %713, %v637
      %v715 = vpop.permute.xlu0 %714
      %716 = vset.pattern.permute.xlu0 0
      %717 = vperm.xlu0 %716, %v638
      %v718 = vpop.permute.xlu0 %717
      %719 = vset.pattern.permute.xlu0 0
      %720 = vperm.xlu0 %719, %v639
      %v721 = vpop.permute.xlu0 %720
      %722 = vset.pattern.permute.xlu0 0
      %723 = vperm.xlu0 %722, %v640
      %v724 = vpop.permute.xlu0 %723
      %725 = vset.pattern.permute.xlu0 0
      %726 = vperm.xlu0 %725, %v641
      %v727 = vpop.permute.xlu0 %726
      %728 = vset.pattern.permute.xlu0 0
      %729 = vperm.xlu0 %728, %v642
      %v730 = vpop.permute.xlu0 %729
      %731 = vset.pattern.permute.xlu0 0
      %732 = vperm.xlu0 %731, %v643
      %v733 = vpop.permute.xlu0 %732
      %734 = vset.pattern.permute.xlu0 0
      %735 = vperm.xlu0 %734, %v644
      %v736 = vpop.permute.xlu0 %735
      %737 = vset.pattern.permute.xlu0 0
      %738 = vperm.xlu0 %737, %v645
      %v739 = vpop.permute.xlu0 %738
      %740 = vset.pattern.permute.xlu0 0
      %741 = vperm.xlu0 %740, %v646
      %v742 = vpop.permute.xlu0 %741
      %vm743 = vcmp.eq.s32.totalorder %v649, 1
      %vm744 = vcmp.eq.s32.totalorder %v652, 1
      %vm745 = vcmp.eq.s32.totalorder %v655, 1
      %vm746 = vcmp.eq.s32.totalorder %v658, 1
      %vm747 = vcmp.eq.s32.totalorder %v661, 1
      %vm748 = vcmp.eq.s32.totalorder %v664, 1
      %vm749 = vcmp.eq.s32.totalorder %v667, 1
      %vm750 = vcmp.eq.s32.totalorder %v670, 1
      %vm751 = vcmp.eq.s32.totalorder %v673, 1
      %vm752 = vcmp.eq.s32.totalorder %v676, 1
      %vm753 = vcmp.eq.s32.totalorder %v679, 1
      %vm754 = vcmp.eq.s32.totalorder %v682, 1
      %vm755 = vcmp.eq.s32.totalorder %v685, 1
      %vm756 = vcmp.eq.s32.totalorder %v688, 1
      %vm757 = vcmp.eq.s32.totalorder %v691, 1
      %vm758 = vcmp.eq.s32.totalorder %v694, 1
      %vm759 = vcmp.eq.s32.totalorder %v697, 1
      %vm760 = vcmp.eq.s32.totalorder %v700, 1
      %vm761 = vcmp.eq.s32.totalorder %v703, 1
      %vm762 = vcmp.eq.s32.totalorder %v706, 1
      %vm763 = vcmp.eq.s32.totalorder %v709, 1
      %vm764 = vcmp.eq.s32.totalorder %v712, 1
      %vm765 = vcmp.eq.s32.totalorder %v715, 1
      %vm766 = vcmp.eq.s32.totalorder %v718, 1
      %vm767 = vcmp.eq.s32.totalorder %v721, 1
      %vm768 = vcmp.eq.s32.totalorder %v724, 1
      %vm769 = vcmp.eq.s32.totalorder %v727, 1
      %vm770 = vcmp.eq.s32.totalorder %v730, 1
      %vm771 = vcmp.eq.s32.totalorder %v733, 1
      %vm772 = vcmp.eq.s32.totalorder %v736, 1
      %vm773 = vcmp.eq.s32.totalorder %v739, 1
      %vm774 = vcmp.eq.s32.totalorder %v742, 1
      %v775 = vsel %vm743, %v518, 0.0
      %v776 = vsel %vm744, %v519, 0.0
      %v777 = vsel %vm745, %v520, 0.0
      %v778 = vsel %vm746, %v521, 0.0
      %v779 = vsel %vm747, %v522, 0.0
      %v780 = vsel %vm748, %v523, 0.0
      %v781 = vsel %vm749, %v524, 0.0
      %v782 = vsel %vm750, %v525, 0.0
      %v783 = vsel %vm751, %v526, 0.0
      %v784 = vsel %vm752, %v527, 0.0
      %v785 = vsel %vm753, %v528, 0.0
      %v786 = vsel %vm754, %v529, 0.0
      %v787 = vsel %vm755, %v530, 0.0
      %v788 = vsel %vm756, %v531, 0.0
      %v789 = vsel %vm757, %v532, 0.0
      %v790 = vsel %vm758, %v533, 0.0
      %v791 = vsel %vm759, %v534, 0.0
      %v792 = vsel %vm760, %v535, 0.0
      %v793 = vsel %vm761, %v536, 0.0
      %v794 = vsel %vm762, %v537, 0.0
      %v795 = vsel %vm763, %v538, 0.0
      %v796 = vsel %vm764, %v539, 0.0
      %v797 = vsel %vm765, %v540, 0.0
      %v798 = vsel %vm766, %v541, 0.0
      %v799 = vsel %vm767, %v542, 0.0
      %v800 = vsel %vm768, %v543, 0.0
      %v801 = vsel %vm769, %v544, 0.0
      %v802 = vsel %vm770, %v545, 0.0
      %v803 = vsel %vm771, %v546, 0.0
      %v804 = vsel %vm772, %v547, 0.0
      %v805 = vsel %vm773, %v548, 0.0
      %v806 = vsel %vm774, %v549, 0.0
      %v807 = vpack.c.bf16 %v776, %v775
      %v808 = vpack.c.bf16 %v778, %v777
      %v809 = vpack.c.bf16 %v780, %v779
      %v810 = vpack.c.bf16 %v782, %v781
      %v811 = vpack.c.bf16 %v784, %v783
      %v812 = vpack.c.bf16 %v786, %v785
      %v813 = vpack.c.bf16 %v788, %v787
      %v814 = vpack.c.bf16 %v790, %v789
      %v815 = vpack.c.bf16 %v792, %v791
      %v816 = vpack.c.bf16 %v794, %v793
      %v817 = vpack.c.bf16 %v796, %v795
      %v818 = vpack.c.bf16 %v798, %v797
      %v819 = vpack.c.bf16 %v800, %v799
      %v820 = vpack.c.bf16 %v802, %v801
      %v821 = vpack.c.bf16 %v804, %v803
      %v822 = vpack.c.bf16 %v806, %v805
      %vm823 = vsmask.f32 7424
      %v825 = vshrl.u32 %v807, 16
      %v827 = vshll.u32 %v807, 16
      %v829 = vrot.slane %v827, 1
      %v830 = vor.u32 %v825, %v829
      %v832 = vshll.u32 %v808, 16
      %v834 = vrot.slane %v832, 1
      %v835 = vsel %vm823, %v830, %v834
      %v836 = vshrl.u32 %v808, 16
      %v838 = vor.u32 %v836, %v834
      %v840 = vshll.u32 %v809, 16
      %v842 = vrot.slane %v840, 1
      %v843 = vsel %vm823, %v838, %v842
      %v844 = vshrl.u32 %v809, 16
      %v846 = vor.u32 %v844, %v842
      %v848 = vshll.u32 %v810, 16
      %v850 = vrot.slane %v848, 1
      %v851 = vsel %vm823, %v846, %v850
      %v852 = vshrl.u32 %v810, 16
      %v854 = vor.u32 %v852, %v850
      %v856 = vshll.u32 %v811, 16
      %v858 = vrot.slane %v856, 1
      %v859 = vsel %vm823, %v854, %v858
      %v860 = vshrl.u32 %v811, 16
      %v862 = vor.u32 %v860, %v858
      %v864 = vshll.u32 %v812, 16
      %v866 = vrot.slane %v864, 1
      %v867 = vsel %vm823, %v862, %v866
      %v868 = vshrl.u32 %v812, 16
      %v870 = vor.u32 %v868, %v866
      %v872 = vshll.u32 %v813, 16
      %v874 = vrot.slane %v872, 1
      %v875 = vsel %vm823, %v870, %v874
      %v876 = vshrl.u32 %v813, 16
      %v878 = vor.u32 %v876, %v874
      %v880 = vshll.u32 %v814, 16
      %v882 = vrot.slane %v880, 1
      %v883 = vsel %vm823, %v878, %v882
      %v884 = vshrl.u32 %v814, 16
      %v886 = vor.u32 %v884, %v882
      %v888 = vshll.u32 %v815, 16
      %v890 = vrot.slane %v888, 1
      %v891 = vsel %vm823, %v886, %v890
      %v892 = vshrl.u32 %v815, 16
      %v894 = vor.u32 %v892, %v890
      %v896 = vshll.u32 %v816, 16
      %v898 = vrot.slane %v896, 1
      %v899 = vsel %vm823, %v894, %v898
      %v900 = vshrl.u32 %v816, 16
      %v902 = vor.u32 %v900, %v898
      %v904 = vshll.u32 %v817, 16
      %v906 = vrot.slane %v904, 1
      %v907 = vsel %vm823, %v902, %v906
      %v908 = vshrl.u32 %v817, 16
      %v910 = vor.u32 %v908, %v906
      %v912 = vshll.u32 %v818, 16
      %v914 = vrot.slane %v912, 1
      %v915 = vsel %vm823, %v910, %v914
      %v916 = vshrl.u32 %v818, 16
      %v918 = vor.u32 %v916, %v914
      %v920 = vshll.u32 %v819, 16
      %v922 = vrot.slane %v920, 1
      %v923 = vsel %vm823, %v918, %v922
      %v924 = vshrl.u32 %v819, 16
      %v926 = vor.u32 %v924, %v922
      %927 = vrot.lane.b32.xlu0 %v835, 80
      %v928 = vpop.permute.xlu0 %927
      %929 = vrot.lane.b32.xlu0 %v843, 80
      %v930 = vpop.permute.xlu0 %929
      %931 = vrot.lane.b32.xlu0 %v851, 80
      %v932 = vpop.permute.xlu0 %931
      %933 = vrot.lane.b32.xlu0 %v859, 80
      %v934 = vpop.permute.xlu0 %933
      %935 = vrot.lane.b32.xlu0 %v867, 80
      %v936 = vpop.permute.xlu0 %935
      %937 = vrot.lane.b32.xlu0 %v875, 80
      %v938 = vpop.permute.xlu0 %937
      %939 = vrot.lane.b32.xlu0 %v883, 80
      %v940 = vpop.permute.xlu0 %939
      %941 = vrot.lane.b32.xlu0 %v891, 80
      %v942 = vpop.permute.xlu0 %941
      %943 = vrot.lane.b32.xlu0 %v899, 80
      %v944 = vpop.permute.xlu0 %943
      %945 = vrot.lane.b32.xlu0 %v907, 80
      %v946 = vpop.permute.xlu0 %945
      %947 = vrot.lane.b32.xlu0 %v915, 80
      %v948 = vpop.permute.xlu0 %947
      %949 = vrot.lane.b32.xlu0 %v923, 80
      %v950 = vpop.permute.xlu0 %949
      %951 = vrot.lane.b32.xlu0 %v926, 80
      %v952 = vpop.permute.xlu0 %951
      %vm966 = vcmask 1046528
      %v967 = vrot.slane %v807, 1
      %v968 = vrot.slane %v808, 1
      %v969 = vsel %vm966, %v967, %v968
      %v970 = vrot.slane %v809, 1
      %v971 = vsel %vm966, %v968, %v970
      %v972 = vrot.slane %v810, 1
      %v973 = vsel %vm966, %v970, %v972
      %v974 = vrot.slane %v811, 1
      %v975 = vsel %vm966, %v972, %v974
      %v976 = vrot.slane %v812, 1
      %v977 = vsel %vm966, %v974, %v976
      %v978 = vrot.slane %v813, 1
      %v979 = vsel %vm966, %v976, %v978
      %v980 = vrot.slane %v814, 1
      %v981 = vsel %vm966, %v978, %v980
      %v982 = vrot.slane %v815, 1
      %v983 = vsel %vm966, %v980, %v982
      %v984 = vrot.slane %v816, 1
      %v985 = vsel %vm966, %v982, %v984
      %v986 = vrot.slane %v817, 1
      %v987 = vsel %vm966, %v984, %v986
      %v988 = vrot.slane %v818, 1
      %v989 = vsel %vm966, %v986, %v988
      %v990 = vrot.slane %v819, 1
      %v991 = vsel %vm966, %v988, %v990
      %992 = vrot.lane.b32.xlu0 %v969, 32
      %v993 = vpop.permute.xlu0 %992
      %994 = vrot.lane.b32.xlu0 %v971, 32
      %v995 = vpop.permute.xlu0 %994
      %996 = vrot.lane.b32.xlu0 %v973, 32
      %v997 = vpop.permute.xlu0 %996
      %998 = vrot.lane.b32.xlu0 %v975, 32
      %v999 = vpop.permute.xlu0 %998
      %1000 = vrot.lane.b32.xlu0 %v977, 32
      %v1001 = vpop.permute.xlu0 %1000
      %1002 = vrot.lane.b32.xlu0 %v979, 32
      %v1003 = vpop.permute.xlu0 %1002
      %1004 = vrot.lane.b32.xlu0 %v981, 32
      %v1005 = vpop.permute.xlu0 %1004
      %1006 = vrot.lane.b32.xlu0 %v983, 32
      %v1007 = vpop.permute.xlu0 %1006
      %1008 = vrot.lane.b32.xlu0 %v985, 32
      %v1009 = vpop.permute.xlu0 %1008
      %1010 = vrot.lane.b32.xlu0 %v987, 32
      %v1011 = vpop.permute.xlu0 %1010
      %1012 = vrot.lane.b32.xlu0 %v989, 32
      %v1013 = vpop.permute.xlu0 %1012
      %1014 = vrot.lane.b32.xlu0 %v991, 32
      %v1015 = vpop.permute.xlu0 %1014
      %1016 = vrot.lane.b32.xlu0 %v990, 32
      %v1017 = vpop.permute.xlu0 %1016
      %vm1019 = vcmask 1043456
      %v1020 = vrot.slane %v808, 4
      %v1021 = vrot.slane %v809, 4
      %v1022 = vsel %vm1019, %v1020, %v1021
      %v1023 = vrot.slane %v810, 4
      %v1024 = vsel %vm1019, %v1021, %v1023
      %v1025 = vrot.slane %v811, 4
      %v1026 = vsel %vm1019, %v1023, %v1025
      %v1027 = vrot.slane %v812, 4
      %v1028 = vsel %vm1019, %v1025, %v1027
      %v1029 = vrot.slane %v813, 4
      %v1030 = vsel %vm1019, %v1027, %v1029
      %v1031 = vrot.slane %v814, 4
      %v1032 = vsel %vm1019, %v1029, %v1031
      %v1033 = vrot.slane %v815, 4
      %v1034 = vsel %vm1019, %v1031, %v1033
      %v1035 = vrot.slane %v816, 4
      %v1036 = vsel %vm1019, %v1033, %v1035
      %v1037 = vrot.slane %v817, 4
      %v1038 = vsel %vm1019, %v1035, %v1037
      %v1039 = vrot.slane %v818, 4
      %v1040 = vsel %vm1019, %v1037, %v1039
      %v1041 = vrot.slane %v819, 4
      %v1042 = vsel %vm1019, %v1039, %v1041
      %v1043 = vrot.slane %v820, 4
      %v1044 = vsel %vm1019, %v1041, %v1043
      %1045 = vrot.lane.b32.xlu0 %v1022, 112
      %v1046 = vpop.permute.xlu0 %1045
      %1047 = vrot.lane.b32.xlu0 %v1024, 112
      %v1048 = vpop.permute.xlu0 %1047
      %1049 = vrot.lane.b32.xlu0 %v1026, 112
      %v1050 = vpop.permute.xlu0 %1049
      %1051 = vrot.lane.b32.xlu0 %v1028, 112
      %v1052 = vpop.permute.xlu0 %1051
      %1053 = vrot.lane.b32.xlu0 %v1030, 112
      %v1054 = vpop.permute.xlu0 %1053
      %1055 = vrot.lane.b32.xlu0 %v1032, 112
      %v1056 = vpop.permute.xlu0 %1055
      %1057 = vrot.lane.b32.xlu0 %v1034, 112
      %v1058 = vpop.permute.xlu0 %1057
      %1059 = vrot.lane.b32.xlu0 %v1036, 112
      %v1060 = vpop.permute.xlu0 %1059
      %1061 = vrot.lane.b32.xlu0 %v1038, 112
      %v1062 = vpop.permute.xlu0 %1061
      %1063 = vrot.lane.b32.xlu0 %v1040, 112
      %v1064 = vpop.permute.xlu0 %1063
      %1065 = vrot.lane.b32.xlu0 %v1042, 112
      %v1066 = vpop.permute.xlu0 %1065
      %1067 = vrot.lane.b32.xlu0 %v1044, 112
      %v1068 = vpop.permute.xlu0 %1067
      %1069 = vrot.lane.b32.xlu0 %v1043, 112
      %v1070 = vpop.permute.xlu0 %1069
      %vm1071 = vsmask.f32 3328
      %v1072 = vrot.slane %v844, 4
      %v1073 = vrot.slane %v840, 5
      %v1074 = vor.u32 %v1072, %v1073
      %v1075 = vrot.slane %v852, 4
      %v1076 = vrot.slane %v848, 5
      %v1077 = vor.u32 %v1075, %v1076
      %v1078 = vsel %vm1071, %v1074, %v1077
      %v1079 = vrot.slane %v860, 4
      %v1080 = vrot.slane %v856, 5
      %v1081 = vor.u32 %v1079, %v1080
      %v1082 = vsel %vm1071, %v1077, %v1081
      %v1083 = vrot.slane %v868, 4
      %v1084 = vrot.slane %v864, 5
      %v1085 = vor.u32 %v1083, %v1084
      %v1086 = vsel %vm1071, %v1081, %v1085
      %v1087 = vrot.slane %v876, 4
      %v1088 = vrot.slane %v872, 5
      %v1089 = vor.u32 %v1087, %v1088
      %v1090 = vsel %vm1071, %v1085, %v1089
      %v1091 = vrot.slane %v884, 4
      %v1092 = vrot.slane %v880, 5
      %v1093 = vor.u32 %v1091, %v1092
      %v1094 = vsel %vm1071, %v1089, %v1093
      %v1095 = vrot.slane %v892, 4
      %v1096 = vrot.slane %v888, 5
      %v1097 = vor.u32 %v1095, %v1096
      %v1098 = vsel %vm1071, %v1093, %v1097
      %v1099 = vrot.slane %v900, 4
      %v1100 = vrot.slane %v896, 5
      %v1101 = vor.u32 %v1099, %v1100
      %v1102 = vsel %vm1071, %v1097, %v1101
      %v1103 = vrot.slane %v908, 4
      %v1104 = vrot.slane %v904, 5
      %v1105 = vor.u32 %v1103, %v1104
      %v1106 = vsel %vm1071, %v1101, %v1105
      %v1107 = vrot.slane %v916, 4
      %v1108 = vrot.slane %v912, 5
      %v1109 = vor.u32 %v1107, %v1108
      %v1110 = vsel %vm1071, %v1105, %v1109
      %v1111 = vrot.slane %v924, 4
      %v1112 = vrot.slane %v920, 5
      %v1113 = vor.u32 %v1111, %v1112
      %v1114 = vsel %vm1071, %v1109, %v1113
      %v1116 = vshrl.u32 %v820, 16
      %v1118 = vrot.slane %v1116, 4
      %v1119 = vshll.u32 %v820, 16
      %v1121 = vrot.slane %v1119, 5
      %v1122 = vor.u32 %v1118, %v1121
      %v1123 = vsel %vm1071, %v1113, %v1122
      %1124 = vrot.lane.b32.xlu0 %v1074, 64
      %v1125 = vpop.permute.xlu0 %1124
      %1126 = vrot.lane.b32.xlu0 %v1078, 64
      %v1127 = vpop.permute.xlu0 %1126
      %1128 = vrot.lane.b32.xlu0 %v1082, 64
      %v1129 = vpop.permute.xlu0 %1128
      %1130 = vrot.lane.b32.xlu0 %v1086, 64
      %v1131 = vpop.permute.xlu0 %1130
      %1132 = vrot.lane.b32.xlu0 %v1090, 64
      %v1133 = vpop.permute.xlu0 %1132
      %1134 = vrot.lane.b32.xlu0 %v1094, 64
      %v1135 = vpop.permute.xlu0 %1134
      %1136 = vrot.lane.b32.xlu0 %v1098, 64
      %v1137 = vpop.permute.xlu0 %1136
      %1138 = vrot.lane.b32.xlu0 %v1102, 64
      %v1139 = vpop.permute.xlu0 %1138
      %1140 = vrot.lane.b32.xlu0 %v1106, 64
      %v1141 = vpop.permute.xlu0 %1140
      %1142 = vrot.lane.b32.xlu0 %v1110, 64
      %v1143 = vpop.permute.xlu0 %1142
      %1144 = vrot.lane.b32.xlu0 %v1114, 64
      %v1145 = vpop.permute.xlu0 %1144
      %1146 = vrot.lane.b32.xlu0 %v1123, 64
      %v1147 = vpop.permute.xlu0 %1146
      %1148 = vrot.lane.b32.xlu0 %v1122, 64
      %v1149 = vpop.permute.xlu0 %1148
      %vm1151 = vcmask 1042432
      %v1152 = vrot.slane %v809, 5
      %v1153 = vrot.slane %v810, 5
      %v1154 = vsel %vm1151, %v1152, %v1153
      %v1155 = vrot.slane %v811, 5
      %v1156 = vsel %vm1151, %v1153, %v1155
      %v1157 = vrot.slane %v812, 5
      %v1158 = vsel %vm1151, %v1155, %v1157
      %v1159 = vrot.slane %v813, 5
      %v1160 = vsel %vm1151, %v1157, %v1159
      %v1161 = vrot.slane %v814, 5
      %v1162 = vsel %vm1151, %v1159, %v1161
      %v1163 = vrot.slane %v815, 5
      %v1164 = vsel %vm1151, %v1161, %v1163
      %v1165 = vrot.slane %v816, 5
      %v1166 = vsel %vm1151, %v1163, %v1165
      %v1167 = vrot.slane %v817, 5
      %v1168 = vsel %vm1151, %v1165, %v1167
      %v1169 = vrot.slane %v818, 5
      %v1170 = vsel %vm1151, %v1167, %v1169
      %v1171 = vrot.slane %v819, 5
      %v1172 = vsel %vm1151, %v1169, %v1171
      %v1173 = vrot.slane %v820, 5
      %v1174 = vsel %vm1151, %v1171, %v1173
      %v1175 = vrot.slane %v821, 5
      %v1176 = vsel %vm1151, %v1173, %v1175
      %1177 = vrot.lane.b32.xlu0 %v1152, 16
      %v1178 = vpop.permute.xlu0 %1177
      %1179 = vrot.lane.b32.xlu0 %v1154, 16
      %v1180 = vpop.permute.xlu0 %1179
      %1181 = vrot.lane.b32.xlu0 %v1156, 16
      %v1182 = vpop.permute.xlu0 %1181
      %1183 = vrot.lane.b32.xlu0 %v1158, 16
      %v1184 = vpop.permute.xlu0 %1183
      %1185 = vrot.lane.b32.xlu0 %v1160, 16
      %v1186 = vpop.permute.xlu0 %1185
      %1187 = vrot.lane.b32.xlu0 %v1162, 16
      %v1188 = vpop.permute.xlu0 %1187
      %1189 = vrot.lane.b32.xlu0 %v1164, 16
      %v1190 = vpop.permute.xlu0 %1189
      %1191 = vrot.lane.b32.xlu0 %v1166, 16
      %v1192 = vpop.permute.xlu0 %1191
      %1193 = vrot.lane.b32.xlu0 %v1168, 16
      %v1194 = vpop.permute.xlu0 %1193
      %1195 = vrot.lane.b32.xlu0 %v1170, 16
      %v1196 = vpop.permute.xlu0 %1195
      %1197 = vrot.lane.b32.xlu0 %v1172, 16
      %v1198 = vpop.permute.xlu0 %1197
      %1199 = vrot.lane.b32.xlu0 %v1174, 16
      %v1200 = vpop.permute.xlu0 %1199
      %1201 = vrot.lane.b32.xlu0 %v1176, 16
      %v1202 = vpop.permute.xlu0 %1201
      %1204 = vrot.lane.b32.xlu0 %v810, 96
      %v1205 = vpop.permute.xlu0 %1204
      %1206 = vrot.lane.b32.xlu0 %v811, 96
      %v1207 = vpop.permute.xlu0 %1206
      %1208 = vrot.lane.b32.xlu0 %v812, 96
      %v1209 = vpop.permute.xlu0 %1208
      %1210 = vrot.lane.b32.xlu0 %v813, 96
      %v1211 = vpop.permute.xlu0 %1210
      %1212 = vrot.lane.b32.xlu0 %v814, 96
      %v1213 = vpop.permute.xlu0 %1212
      %1214 = vrot.lane.b32.xlu0 %v815, 96
      %v1215 = vpop.permute.xlu0 %1214
      %1216 = vrot.lane.b32.xlu0 %v816, 96
      %v1217 = vpop.permute.xlu0 %1216
      %1218 = vrot.lane.b32.xlu0 %v817, 96
      %v1219 = vpop.permute.xlu0 %1218
      %1220 = vrot.lane.b32.xlu0 %v818, 96
      %v1221 = vpop.permute.xlu0 %1220
      %1222 = vrot.lane.b32.xlu0 %v819, 96
      %v1223 = vpop.permute.xlu0 %1222
      %1224 = vrot.lane.b32.xlu0 %v820, 96
      %v1225 = vpop.permute.xlu0 %1224
      %1226 = vrot.lane.b32.xlu0 %v821, 96
      %v1227 = vpop.permute.xlu0 %1226
      %1228 = vrot.lane.b32.xlu0 %v822, 96
      %v1229 = vpop.permute.xlu0 %1228
      %v1230 = vrot.slane %v1119, 1
      %v1231 = vsel %vm823, %v926, %v1230
      %v1232 = vor.u32 %v1116, %v1230
      %v1234 = vshll.u32 %v821, 16
      %v1236 = vrot.slane %v1234, 1
      %v1237 = vsel %vm823, %v1232, %v1236
      %v1238 = vshrl.u32 %v821, 16
      %v1240 = vor.u32 %v1238, %v1236
      %v1242 = vshll.u32 %v822, 16
      %v1244 = vrot.slane %v1242, 1
      %v1245 = vsel %vm823, %v1240, %v1244
      %v1246 = vshrl.u32 %v822, 16
      %v1248 = vor.u32 %v1246, %v1244
      %1249 = vrot.lane.b32.xlu0 %v859, 48
      %v1250 = vpop.permute.xlu0 %1249
      %1251 = vrot.lane.b32.xlu0 %v867, 48
      %v1252 = vpop.permute.xlu0 %1251
      %1253 = vrot.lane.b32.xlu0 %v875, 48
      %v1254 = vpop.permute.xlu0 %1253
      %1255 = vrot.lane.b32.xlu0 %v883, 48
      %v1256 = vpop.permute.xlu0 %1255
      %1257 = vrot.lane.b32.xlu0 %v891, 48
      %v1258 = vpop.permute.xlu0 %1257
      %1259 = vrot.lane.b32.xlu0 %v899, 48
      %v1260 = vpop.permute.xlu0 %1259
      %1261 = vrot.lane.b32.xlu0 %v907, 48
      %v1262 = vpop.permute.xlu0 %1261
      %1263 = vrot.lane.b32.xlu0 %v915, 48
      %v1264 = vpop.permute.xlu0 %1263
      %1265 = vrot.lane.b32.xlu0 %v923, 48
      %v1266 = vpop.permute.xlu0 %1265
      %1267 = vrot.lane.b32.xlu0 %v1231, 48
      %v1268 = vpop.permute.xlu0 %1267
      %1269 = vrot.lane.b32.xlu0 %v1237, 48
      %v1270 = vpop.permute.xlu0 %1269
      %1271 = vrot.lane.b32.xlu0 %v1245, 48
      %v1272 = vpop.permute.xlu0 %1271
      %1273 = vrot.lane.b32.xlu0 %v1248, 48
      %v1274 = vpop.permute.xlu0 %1273
      %v1275 = vrot.slane %v820, 1
      %v1276 = vsel %vm966, %v990, %v1275
      %v1277 = vrot.slane %v821, 1
      %v1278 = vsel %vm966, %v1275, %v1277
      %v1279 = vrot.slane %v822, 1
      %v1280 = vsel %vm966, %v1277, %v1279
      %vm1281 = vcmask 654336
      %v1283 = vsel %vm1281, %v807, %v928
      %v1285 = vsel %vm1281, %v808, %v930
      %v1287 = vsel %vm1281, %v809, %v932
      %v1289 = vsel %vm1281, %v810, %v934
      %v1291 = vsel %vm1281, %v811, %v936
      %v1293 = vsel %vm1281, %v812, %v938
      %v1295 = vsel %vm1281, %v813, %v940
      %v1297 = vsel %vm1281, %v814, %v942
      %v1299 = vsel %vm1281, %v815, %v944
      %v1301 = vsel %vm1281, %v816, %v946
      %v1303 = vsel %vm1281, %v817, %v948
      %v1305 = vsel %vm1281, %v818, %v950
      %v1307 = vsel %vm1281, %v819, %v952
      %vm1308 = vcmask 261120
      %v1310 = vsel %vm1308, %v928, %v993
      %v1312 = vsel %vm1308, %v930, %v995
      %v1314 = vsel %vm1308, %v932, %v997
      %v1316 = vsel %vm1308, %v934, %v999
      %v1318 = vsel %vm1308, %v936, %v1001
      %v1320 = vsel %vm1308, %v938, %v1003
      %v1322 = vsel %vm1308, %v940, %v1005
      %v1324 = vsel %vm1308, %v942, %v1007
      %v1326 = vsel %vm1308, %v944, %v1009
      %v1328 = vsel %vm1308, %v946, %v1011
      %v1330 = vsel %vm1308, %v948, %v1013
      %v1332 = vsel %vm1308, %v950, %v1015
      %v1334 = vsel %vm1308, %v952, %v1017
      %vm1335 = vcmask 916480
      %v1337 = vsel %vm1335, %v1310, %v1046
      %v1339 = vsel %vm1335, %v1312, %v1048
      %v1341 = vsel %vm1335, %v1314, %v1050
      %v1343 = vsel %vm1335, %v1316, %v1052
      %v1345 = vsel %vm1335, %v1318, %v1054
      %v1347 = vsel %vm1335, %v1320, %v1056
      %v1349 = vsel %vm1335, %v1322, %v1058
      %v1351 = vsel %vm1335, %v1324, %v1060
      %v1353 = vsel %vm1335, %v1326, %v1062
      %v1355 = vsel %vm1335, %v1328, %v1064
      %v1357 = vsel %vm1335, %v1330, %v1066
      %v1359 = vsel %vm1335, %v1332, %v1068
      %v1361 = vsel %vm1335, %v1334, %v1070
      %vm1362 = vcmask 523264
      %v1364 = vsel %vm1362, %v1046, %v1125
      %v1366 = vsel %vm1362, %v1048, %v1127
      %v1368 = vsel %vm1362, %v1050, %v1129
      %v1370 = vsel %vm1362, %v1052, %v1131
      %v1372 = vsel %vm1362, %v1054, %v1133
      %v1374 = vsel %vm1362, %v1056, %v1135
      %v1376 = vsel %vm1362, %v1058, %v1137
      %v1378 = vsel %vm1362, %v1060, %v1139
      %v1380 = vsel %vm1362, %v1062, %v1141
      %v1382 = vsel %vm1362, %v1064, %v1143
      %v1384 = vsel %vm1362, %v1066, %v1145
      %v1386 = vsel %vm1362, %v1068, %v1147
      %v1388 = vsel %vm1362, %v1070, %v1149
      %vm1389 = vcmask 130048
      %v1391 = vsel %vm1389, %v1125, %v1178
      %v1393 = vsel %vm1389, %v1127, %v1180
      %v1395 = vsel %vm1389, %v1129, %v1182
      %v1397 = vsel %vm1389, %v1131, %v1184
      %v1399 = vsel %vm1389, %v1133, %v1186
      %v1401 = vsel %vm1389, %v1135, %v1188
      %v1403 = vsel %vm1389, %v1137, %v1190
      %v1405 = vsel %vm1389, %v1139, %v1192
      %v1407 = vsel %vm1389, %v1141, %v1194
      %v1409 = vsel %vm1389, %v1143, %v1196
      %v1411 = vsel %vm1389, %v1145, %v1198
      %v1413 = vsel %vm1389, %v1147, %v1200
      %v1415 = vsel %vm1389, %v1149, %v1202
      %vm1416 = vcmask 785408
      %v1418 = vsel %vm1416, %v1391, %v1205
      %v1420 = vsel %vm1416, %v1393, %v1207
      %v1422 = vsel %vm1416, %v1395, %v1209
      %v1424 = vsel %vm1416, %v1397, %v1211
      %v1426 = vsel %vm1416, %v1399, %v1213
      %v1428 = vsel %vm1416, %v1401, %v1215
      %v1430 = vsel %vm1416, %v1403, %v1217
      %v1432 = vsel %vm1416, %v1405, %v1219
      %v1434 = vsel %vm1416, %v1407, %v1221
      %v1436 = vsel %vm1416, %v1409, %v1223
      %v1438 = vsel %vm1416, %v1411, %v1225
      %v1440 = vsel %vm1416, %v1413, %v1227
      %v1442 = vsel %vm1416, %v1415, %v1229
      %vm1443 = vcmask 392192
      %v1445 = vsel %vm1443, %v1205, %v1250
      %v1447 = vsel %vm1443, %v1207, %v1252
      %v1449 = vsel %vm1443, %v1209, %v1254
      %v1451 = vsel %vm1443, %v1211, %v1256
      %v1453 = vsel %vm1443, %v1213, %v1258
      %v1455 = vsel %vm1443, %v1215, %v1260
      %v1457 = vsel %vm1443, %v1217, %v1262
      %v1459 = vsel %vm1443, %v1219, %v1264
      %v1461 = vsel %vm1443, %v1221, %v1266
      %v1463 = vsel %vm1443, %v1223, %v1268
      %v1465 = vsel %vm1443, %v1225, %v1270
      %v1467 = vsel %vm1443, %v1227, %v1272
      %v1469 = vsel %vm1443, %v1229, %v1274
      %v1470 = vld [vmem:[%s5] sm:$0xf]
      %v1471 = vld [vmem:[%s5 + $0x4] sm:$0xf]
      %v1472 = vld [vmem:[%s5 + $0x8] sm:$0xf]
      %v1473 = vld [vmem:[%s5 + $0xc] sm:$0xf]
      %v1474 = vld [vmem:[%s5 + $0x10] sm:$0xf]
      %v1475 = vld [vmem:[%s5 + $0x14] sm:$0xf]
      %v1476 = vld [vmem:[%s5 + $0x18] sm:$0xf]
      %v1477 = vld [vmem:[%s5 + $0x1c] sm:$0xf]
      %v1478 = vld [vmem:[%s5 + $0x20] sm:$0xf]
      %v1479 = vld [vmem:[%s5 + $0x24] sm:$0xf]
      %v1480 = vld [vmem:[%s5 + $0x28] sm:$0xf]
      %v1481 = vld [vmem:[%s5 + $0x2c] sm:$0xf]
      %v1482 = vld [vmem:[%s5 + $0x30] sm:$0xf]
      %v1483 = vld [vmem:[%s5 + $0x34] sm:$0xf]
      %v1484 = vld [vmem:[%s5 + $0x38] sm:$0xf]
      %v1485 = vld [vmem:[%s5 + $0x3c] sm:$0xf]
      %v1486 = vld [vmem:[%s5 + $0x40] sm:$0xf]
      %v1487 = vld [vmem:[%s5 + $0x44] sm:$0xf]
      %v1488 = vld [vmem:[%s5 + $0x48] sm:$0xf]
      %v1489 = vld [vmem:[%s5 + $0x4c] sm:$0xf]
      %v1490 = vld [vmem:[%s5 + $0x50] sm:$0xf]
      %v1491 = vld [vmem:[%s5 + $0x54] sm:$0xf]
      %v1492 = vld [vmem:[%s5 + $0x58] sm:$0xf]
      %v1493 = vld [vmem:[%s5 + $0x5c] sm:$0xf]
      %v1494 = vld [vmem:[%s5 + $0x60] sm:$0xf]
      %v1495 = vld [vmem:[%s5 + $0x64] sm:$0xf]
      %v1496 = vld [vmem:[%s5 + $0x68] sm:$0xf]
      %v1497 = vld [vmem:[%s5 + $0x6c] sm:$0xf]
      %v1498 = vld [vmem:[%s5 + $0x70] sm:$0xf]
      %v1499 = vld [vmem:[%s5 + $0x74] sm:$0xf]
      %v1500 = vld [vmem:[%s5 + $0x78] sm:$0xf]
      %v1501 = vld [vmem:[%s5 + $0x7c] sm:$0xf]
      %v1502 = vld [vmem:[%s5 + $0x80] sm:$0xf]
      %v1503 = vld [vmem:[%s5 + $0x84] sm:$0xf]
      %v1504 = vld [vmem:[%s5 + $0x88] sm:$0xf]
      %v1505 = vld [vmem:[%s5 + $0x8c] sm:$0xf]
      %v1506 = vld [vmem:[%s5 + $0x90] sm:$0xf]
      %v1507 = vld [vmem:[%s5 + $0x94] sm:$0xf]
      %v1508 = vld [vmem:[%s5 + $0x98] sm:$0xf]
      %v1509 = vld [vmem:[%s5 + $0x9c] sm:$0xf]
      %v1510 = vld [vmem:[%s5 + $0xa0] sm:$0xf]
      %v1511 = vld [vmem:[%s5 + $0xa4] sm:$0xf]
      %v1512 = vld [vmem:[%s5 + $0xa8] sm:$0xf]
      %v1513 = vld [vmem:[%s5 + $0xac] sm:$0xf]
      %v1514 = vld [vmem:[%s5 + $0xb0] sm:$0xf]
      %v1515 = vld [vmem:[%s5 + $0xb4] sm:$0xf]
      %v1516 = vld [vmem:[%s5 + $0xb8] sm:$0xf]
      %v1517 = vld [vmem:[%s5 + $0xbc] sm:$0xf]
      %v1518 = vld [vmem:[%s5 + $0xc0] sm:$0xf]
      %v1519 = vld [vmem:[%s5 + $0xc4] sm:$0xf]
      %v1520 = vld [vmem:[%s5 + $0xc8] sm:$0xf]
      %v1521 = vld [vmem:[%s5 + $0xcc] sm:$0xf]
      %v1522 = vld [vmem:[%s5 + $0xd0] sm:$0xf]
      %v1523 = vld [vmem:[%s5 + $0xd4] sm:$0xf]
      %v1524 = vld [vmem:[%s5 + $0xd8] sm:$0xf]
      %v1525 = vld [vmem:[%s5 + $0xdc] sm:$0xf]
      %v1526 = vld [vmem:[%s5 + $0xe0] sm:$0xf]
      %v1527 = vld [vmem:[%s5 + $0xe4] sm:$0xf]
      %v1528 = vld [vmem:[%s5 + $0xe8] sm:$0xf]
      %v1529 = vld [vmem:[%s5 + $0xec] sm:$0xf]
      %v1530 = vld [vmem:[%s5 + $0xf0] sm:$0xf]
      %v1531 = vld [vmem:[%s5 + $0xf4] sm:$0xf]
      %v1532 = vld [vmem:[%s5 + $0xf8] sm:$0xf]
      %v1533 = vld [vmem:[%s5 + $0xfc] sm:$0xf]
      %v1534 = vld [vmem:[%s5 + $0x100] sm:$0xf]
      %v1535 = vld [vmem:[%s5 + $0x104] sm:$0xf]
      %v1536 = vld [vmem:[%s5 + $0x108] sm:$0xf]
      %v1537 = vld [vmem:[%s5 + $0x10c] sm:$0xf]
      %v1538 = vld [vmem:[%s5 + $0x110] sm:$0xf]
      %v1539 = vld [vmem:[%s5 + $0x114] sm:$0xf]
      %v1540 = vld [vmem:[%s5 + $0x118] sm:$0xf]
      %v1541 = vld [vmem:[%s5 + $0x11c] sm:$0xf]
      %v1542 = vld [vmem:[%s5 + $0x120] sm:$0xf]
      %v1543 = vld [vmem:[%s5 + $0x124] sm:$0xf]
      %v1544 = vld [vmem:[%s5 + $0x128] sm:$0xf]
      %v1545 = vld [vmem:[%s5 + $0x12c] sm:$0xf]
      %v1546 = vld [vmem:[%s5 + $0x130] sm:$0xf]
      %v1547 = vld [vmem:[%s5 + $0x134] sm:$0xf]
      %v1548 = vld [vmem:[%s5 + $0x138] sm:$0xf]
      %v1549 = vld [vmem:[%s5 + $0x13c] sm:$0xf]
      %v1550 = vld [vmem:[%s5 + $0x140] sm:$0xf]
      %v1551 = vld [vmem:[%s5 + $0x144] sm:$0xf]
      %v1552 = vld [vmem:[%s5 + $0x148] sm:$0xf]
      %v1553 = vld [vmem:[%s5 + $0x14c] sm:$0xf]
      %v1554 = vld [vmem:[%s5 + $0x150] sm:$0xf]
      %v1555 = vld [vmem:[%s5 + $0x154] sm:$0xf]
      %v1556 = vld [vmem:[%s5 + $0x158] sm:$0xf]
      %v1557 = vld [vmem:[%s5 + $0x15c] sm:$0xf]
      %v1558 = vld [vmem:[%s5 + $0x160] sm:$0xf]
      %v1559 = vld [vmem:[%s5 + $0x164] sm:$0xf]
      %vm1560 = vsmask.f32 4352
      %v1561 = vshrl.u32 %v1283, 16
      %v1563 = vrot.slane %v1561, 3
      %v1564 = vshll.u32 %v1283, 16
      %v1566 = vrot.slane %v1564, 4
      %v1567 = vor.u32 %v1563, %v1566
      %v1568 = vshrl.u32 %v1285, 16
      %v1570 = vrot.slane %v1568, 3
      %v1571 = vshll.u32 %v1285, 16
      %v1573 = vrot.slane %v1571, 4
      %v1574 = vor.u32 %v1570, %v1573
      %v1575 = vsel %vm1560, %v1567, %v1574
      %v1576 = vshrl.u32 %v1337, 16
      %v1578 = vrot.slane %v1576, 3
      %v1579 = vshll.u32 %v1337, 16
      %v1581 = vrot.slane %v1579, 4
      %v1582 = vor.u32 %v1578, %v1581
      %v1583 = vshrl.u32 %v1339, 16
      %v1585 = vrot.slane %v1583, 3
      %v1586 = vshll.u32 %v1339, 16
      %v1588 = vrot.slane %v1586, 4
      %v1589 = vor.u32 %v1585, %v1588
      %v1590 = vsel %vm1560, %v1582, %v1589
      %v1591 = vshrl.u32 %v1364, 16
      %v1593 = vrot.slane %v1591, 3
      %v1594 = vshll.u32 %v1364, 16
      %v1596 = vrot.slane %v1594, 4
      %v1597 = vor.u32 %v1593, %v1596
      %v1598 = vshrl.u32 %v1366, 16
      %v1600 = vrot.slane %v1598, 3
      %v1601 = vshll.u32 %v1366, 16
      %v1603 = vrot.slane %v1601, 4
      %v1604 = vor.u32 %v1600, %v1603
      %v1605 = vsel %vm1560, %v1597, %v1604
      %v1606 = vshrl.u32 %v1418, 16
      %v1608 = vrot.slane %v1606, 3
      %v1609 = vshll.u32 %v1418, 16
      %v1611 = vrot.slane %v1609, 4
      %v1612 = vor.u32 %v1608, %v1611
      %v1613 = vshrl.u32 %v1420, 16
      %v1615 = vrot.slane %v1613, 3
      %v1616 = vshll.u32 %v1420, 16
      %v1618 = vrot.slane %v1616, 4
      %v1619 = vor.u32 %v1615, %v1618
      %v1620 = vsel %vm1560, %v1612, %v1619
      %v1621 = vshrl.u32 %v1445, 16
      %v1623 = vrot.slane %v1621, 3
      %v1624 = vshll.u32 %v1445, 16
      %v1626 = vrot.slane %v1624, 4
      %v1627 = vor.u32 %v1623, %v1626
      %v1628 = vshrl.u32 %v1447, 16
      %v1630 = vrot.slane %v1628, 3
      %v1631 = vshll.u32 %v1447, 16
      %v1633 = vrot.slane %v1631, 4
      %v1634 = vor.u32 %v1630, %v1633
      %v1635 = vsel %vm1560, %v1627, %v1634
      %v1637 = vshrl.u32 %v975, 16
      %v1639 = vrot.slane %v1637, 3
      %v1640 = vshll.u32 %v975, 16
      %v1642 = vrot.slane %v1640, 4
      %v1643 = vor.u32 %v1639, %v1642
      %v1645 = vshrl.u32 %v977, 16
      %v1647 = vrot.slane %v1645, 3
      %v1648 = vshll.u32 %v977, 16
      %v1650 = vrot.slane %v1648, 4
      %v1651 = vor.u32 %v1647, %v1650
      %v1652 = vsel %vm1560, %v1643, %v1651
      %v1653 = vshrl.u32 %v1287, 16
      %v1655 = vrot.slane %v1653, 3
      %v1656 = vshll.u32 %v1287, 16
      %v1658 = vrot.slane %v1656, 4
      %v1659 = vor.u32 %v1655, %v1658
      %v1660 = vsel %vm1560, %v1574, %v1659
      %v1661 = vshrl.u32 %v1341, 16
      %v1663 = vrot.slane %v1661, 3
      %v1664 = vshll.u32 %v1341, 16
      %v1666 = vrot.slane %v1664, 4
      %v1667 = vor.u32 %v1663, %v1666
      %v1668 = vsel %vm1560, %v1589, %v1667
      %v1669 = vshrl.u32 %v1368, 16
      %v1671 = vrot.slane %v1669, 3
      %v1672 = vshll.u32 %v1368, 16
      %v1674 = vrot.slane %v1672, 4
      %v1675 = vor.u32 %v1671, %v1674
      %v1676 = vsel %vm1560, %v1604, %v1675
      %v1677 = vshrl.u32 %v1422, 16
      %v1679 = vrot.slane %v1677, 3
      %v1680 = vshll.u32 %v1422, 16
      %v1682 = vrot.slane %v1680, 4
      %v1683 = vor.u32 %v1679, %v1682
      %v1684 = vsel %vm1560, %v1619, %v1683
      %v1685 = vshrl.u32 %v1449, 16
      %v1687 = vrot.slane %v1685, 3
      %v1688 = vshll.u32 %v1449, 16
      %v1690 = vrot.slane %v1688, 4
      %v1691 = vor.u32 %v1687, %v1690
      %v1692 = vsel %vm1560, %v1634, %v1691
      %v1694 = vshrl.u32 %v979, 16
      %v1696 = vrot.slane %v1694, 3
      %v1697 = vshll.u32 %v979, 16
      %v1699 = vrot.slane %v1697, 4
      %v1700 = vor.u32 %v1696, %v1699
      %v1701 = vsel %vm1560, %v1651, %v1700
      %v1702 = vshrl.u32 %v1289, 16
      %v1704 = vrot.slane %v1702, 3
      %v1705 = vshll.u32 %v1289, 16
      %v1707 = vrot.slane %v1705, 4
      %v1708 = vor.u32 %v1704, %v1707
      %v1709 = vsel %vm1560, %v1659, %v1708
      %v1710 = vshrl.u32 %v1343, 16
      %v1712 = vrot.slane %v1710, 3
      %v1713 = vshll.u32 %v1343, 16
      %v1715 = vrot.slane %v1713, 4
      %v1716 = vor.u32 %v1712, %v1715
      %v1717 = vsel %vm1560, %v1667, %v1716
      %v1718 = vshrl.u32 %v1370, 16
      %v1720 = vrot.slane %v1718, 3
      %v1721 = vshll.u32 %v1370, 16
      %v1723 = vrot.slane %v1721, 4
      %v1724 = vor.u32 %v1720, %v1723
      %v1725 = vsel %vm1560, %v1675, %v1724
      %v1726 = vshrl.u32 %v1424, 16
      %v1728 = vrot.slane %v1726, 3
      %v1729 = vshll.u32 %v1424, 16
      %v1731 = vrot.slane %v1729, 4
      %v1732 = vor.u32 %v1728, %v1731
      %v1733 = vsel %vm1560, %v1683, %v1732
      %v1734 = vshrl.u32 %v1451, 16
      %v1736 = vrot.slane %v1734, 3
      %v1737 = vshll.u32 %v1451, 16
      %v1739 = vrot.slane %v1737, 4
      %v1740 = vor.u32 %v1736, %v1739
      %v1741 = vsel %vm1560, %v1691, %v1740
      %v1743 = vshrl.u32 %v981, 16
      %v1745 = vrot.slane %v1743, 3
      %v1746 = vshll.u32 %v981, 16
      %v1748 = vrot.slane %v1746, 4
      %v1749 = vor.u32 %v1745, %v1748
      %v1750 = vsel %vm1560, %v1700, %v1749
      %v1751 = vshrl.u32 %v1291, 16
      %v1753 = vrot.slane %v1751, 3
      %v1754 = vshll.u32 %v1291, 16
      %v1756 = vrot.slane %v1754, 4
      %v1757 = vor.u32 %v1753, %v1756
      %v1758 = vsel %vm1560, %v1708, %v1757
      %v1759 = vshrl.u32 %v1345, 16
      %v1761 = vrot.slane %v1759, 3
      %v1762 = vshll.u32 %v1345, 16
      %v1764 = vrot.slane %v1762, 4
      %v1765 = vor.u32 %v1761, %v1764
      %v1766 = vsel %vm1560, %v1716, %v1765
      %v1767 = vshrl.u32 %v1372, 16
      %v1769 = vrot.slane %v1767, 3
      %v1770 = vshll.u32 %v1372, 16
      %v1772 = vrot.slane %v1770, 4
      %v1773 = vor.u32 %v1769, %v1772
      %v1774 = vsel %vm1560, %v1724, %v1773
      %v1775 = vshrl.u32 %v1426, 16
      %v1777 = vrot.slane %v1775, 3
      %v1778 = vshll.u32 %v1426, 16
      %v1780 = vrot.slane %v1778, 4
      %v1781 = vor.u32 %v1777, %v1780
      %v1782 = vsel %vm1560, %v1732, %v1781
      %v1783 = vshrl.u32 %v1453, 16
      %v1785 = vrot.slane %v1783, 3
      %v1786 = vshll.u32 %v1453, 16
      %v1788 = vrot.slane %v1786, 4
      %v1789 = vor.u32 %v1785, %v1788
      %v1790 = vsel %vm1560, %v1740, %v1789
      %v1792 = vshrl.u32 %v983, 16
      %v1794 = vrot.slane %v1792, 3
      %v1795 = vshll.u32 %v983, 16
      %v1797 = vrot.slane %v1795, 4
      %v1798 = vor.u32 %v1794, %v1797
      %v1799 = vsel %vm1560, %v1749, %v1798
      %v1800 = vshrl.u32 %v1293, 16
      %v1802 = vrot.slane %v1800, 3
      %v1803 = vshll.u32 %v1293, 16
      %v1805 = vrot.slane %v1803, 4
      %v1806 = vor.u32 %v1802, %v1805
      %v1807 = vsel %vm1560, %v1757, %v1806
      %v1808 = vshrl.u32 %v1347, 16
      %v1810 = vrot.slane %v1808, 3
      %v1811 = vshll.u32 %v1347, 16
      %v1813 = vrot.slane %v1811, 4
      %v1814 = vor.u32 %v1810, %v1813
      %v1815 = vsel %vm1560, %v1765, %v1814
      %v1816 = vshrl.u32 %v1374, 16
      %v1818 = vrot.slane %v1816, 3
      %v1819 = vshll.u32 %v1374, 16
      %v1821 = vrot.slane %v1819, 4
      %v1822 = vor.u32 %v1818, %v1821
      %v1823 = vsel %vm1560, %v1773, %v1822
      %v1824 = vshrl.u32 %v1428, 16
      %v1826 = vrot.slane %v1824, 3
      %v1827 = vshll.u32 %v1428, 16
      %v1829 = vrot.slane %v1827, 4
      %v1830 = vor.u32 %v1826, %v1829
      %v1831 = vsel %vm1560, %v1781, %v1830
      %v1832 = vshrl.u32 %v1455, 16
      %v1834 = vrot.slane %v1832, 3
      %v1835 = vshll.u32 %v1455, 16
      %v1837 = vrot.slane %v1835, 4
      %v1838 = vor.u32 %v1834, %v1837
      %v1839 = vsel %vm1560, %v1789, %v1838
      %v1841 = vshrl.u32 %v985, 16
      %v1843 = vrot.slane %v1841, 3
      %v1844 = vshll.u32 %v985, 16
      %v1846 = vrot.slane %v1844, 4
      %v1847 = vor.u32 %v1843, %v1846
      %v1848 = vsel %vm1560, %v1798, %v1847
      %v1849 = vshrl.u32 %v1295, 16
      %v1851 = vrot.slane %v1849, 3
      %v1852 = vshll.u32 %v1295, 16
      %v1854 = vrot.slane %v1852, 4
      %v1855 = vor.u32 %v1851, %v1854
      %v1856 = vsel %vm1560, %v1806, %v1855
      %v1857 = vshrl.u32 %v1349, 16
      %v1859 = vrot.slane %v1857, 3
      %v1860 = vshll.u32 %v1349, 16
      %v1862 = vrot.slane %v1860, 4
      %v1863 = vor.u32 %v1859, %v1862
      %v1864 = vsel %vm1560, %v1814, %v1863
      %v1865 = vshrl.u32 %v1376, 16
      %v1867 = vrot.slane %v1865, 3
      %v1868 = vshll.u32 %v1376, 16
      %v1870 = vrot.slane %v1868, 4
      %v1871 = vor.u32 %v1867, %v1870
      %v1872 = vsel %vm1560, %v1822, %v1871
      %v1873 = vshrl.u32 %v1430, 16
      %v1875 = vrot.slane %v1873, 3
      %v1876 = vshll.u32 %v1430, 16
      %v1878 = vrot.slane %v1876, 4
      %v1879 = vor.u32 %v1875, %v1878
      %v1880 = vsel %vm1560, %v1830, %v1879
      %v1881 = vshrl.u32 %v1457, 16
      %v1883 = vrot.slane %v1881, 3
      %v1884 = vshll.u32 %v1457, 16
      %v1886 = vrot.slane %v1884, 4
      %v1887 = vor.u32 %v1883, %v1886
      %v1888 = vsel %vm1560, %v1838, %v1887
      %v1890 = vshrl.u32 %v987, 16
      %v1892 = vrot.slane %v1890, 3
      %v1893 = vshll.u32 %v987, 16
      %v1895 = vrot.slane %v1893, 4
      %v1896 = vor.u32 %v1892, %v1895
      %v1897 = vsel %vm1560, %v1847, %v1896
      %v1898 = vshrl.u32 %v1297, 16
      %v1900 = vrot.slane %v1898, 3
      %v1901 = vshll.u32 %v1297, 16
      %v1903 = vrot.slane %v1901, 4
      %v1904 = vor.u32 %v1900, %v1903
      %v1905 = vsel %vm1560, %v1855, %v1904
      %v1906 = vshrl.u32 %v1351, 16
      %v1908 = vrot.slane %v1906, 3
      %v1909 = vshll.u32 %v1351, 16
      %v1911 = vrot.slane %v1909, 4
      %v1912 = vor.u32 %v1908, %v1911
      %v1913 = vsel %vm1560, %v1863, %v1912
      %v1914 = vshrl.u32 %v1378, 16
      %v1916 = vrot.slane %v1914, 3
      %v1917 = vshll.u32 %v1378, 16
      %v1919 = vrot.slane %v1917, 4
      %v1920 = vor.u32 %v1916, %v1919
      %v1921 = vsel %vm1560, %v1871, %v1920
      %v1922 = vshrl.u32 %v1432, 16
      %v1924 = vrot.slane %v1922, 3
      %v1925 = vshll.u32 %v1432, 16
      %v1927 = vrot.slane %v1925, 4
      %v1928 = vor.u32 %v1924, %v1927
      %v1929 = vsel %vm1560, %v1879, %v1928
      %v1930 = vshrl.u32 %v1459, 16
      %v1932 = vrot.slane %v1930, 3
      %v1933 = vshll.u32 %v1459, 16
      %v1935 = vrot.slane %v1933, 4
      %v1936 = vor.u32 %v1932, %v1935
      %v1937 = vsel %vm1560, %v1887, %v1936
      %v1939 = vshrl.u32 %v989, 16
      %v1941 = vrot.slane %v1939, 3
      %v1942 = vshll.u32 %v989, 16
      %v1944 = vrot.slane %v1942, 4
      %v1945 = vor.u32 %v1941, %v1944
      %v1946 = vsel %vm1560, %v1896, %v1945
      %v1947 = vshrl.u32 %v1299, 16
      %v1949 = vrot.slane %v1947, 3
      %v1950 = vshll.u32 %v1299, 16
      %v1952 = vrot.slane %v1950, 4
      %v1953 = vor.u32 %v1949, %v1952
      %v1954 = vsel %vm1560, %v1904, %v1953
      %v1955 = vshrl.u32 %v1353, 16
      %v1957 = vrot.slane %v1955, 3
      %v1958 = vshll.u32 %v1353, 16
      %v1960 = vrot.slane %v1958, 4
      %v1961 = vor.u32 %v1957, %v1960
      %v1962 = vsel %vm1560, %v1912, %v1961
      %v1963 = vshrl.u32 %v1380, 16
      %v1965 = vrot.slane %v1963, 3
      %v1966 = vshll.u32 %v1380, 16
      %v1968 = vrot.slane %v1966, 4
      %v1969 = vor.u32 %v1965, %v1968
      %v1970 = vsel %vm1560, %v1920, %v1969
      %v1971 = vshrl.u32 %v1434, 16
      %v1973 = vrot.slane %v1971, 3
      %v1974 = vshll.u32 %v1434, 16
      %v1976 = vrot.slane %v1974, 4
      %v1977 = vor.u32 %v1973, %v1976
      %v1978 = vsel %vm1560, %v1928, %v1977
      %v1979 = vshrl.u32 %v1461, 16
      %v1981 = vrot.slane %v1979, 3
      %v1982 = vshll.u32 %v1461, 16
      %v1984 = vrot.slane %v1982, 4
      %v1985 = vor.u32 %v1981, %v1984
      %v1986 = vsel %vm1560, %v1936, %v1985
      %v1988 = vshrl.u32 %v991, 16
      %v1990 = vrot.slane %v1988, 3
      %v1991 = vshll.u32 %v991, 16
      %v1993 = vrot.slane %v1991, 4
      %v1994 = vor.u32 %v1990, %v1993
      %v1995 = vsel %vm1560, %v1945, %v1994
      %v1996 = vshrl.u32 %v1301, 16
      %v1998 = vrot.slane %v1996, 3
      %v1999 = vshll.u32 %v1301, 16
      %v2001 = vrot.slane %v1999, 4
      %v2002 = vor.u32 %v1998, %v2001
      %v2003 = vsel %vm1560, %v1953, %v2002
      %v2004 = vshrl.u32 %v1355, 16
      %v2006 = vrot.slane %v2004, 3
      %v2007 = vshll.u32 %v1355, 16
      %v2009 = vrot.slane %v2007, 4
      %v2010 = vor.u32 %v2006, %v2009
      %v2011 = vsel %vm1560, %v1961, %v2010
      %v2012 = vshrl.u32 %v1382, 16
      %v2014 = vrot.slane %v2012, 3
      %v2015 = vshll.u32 %v1382, 16
      %v2017 = vrot.slane %v2015, 4
      %v2018 = vor.u32 %v2014, %v2017
      %v2019 = vsel %vm1560, %v1969, %v2018
      %v2020 = vshrl.u32 %v1436, 16
      %v2022 = vrot.slane %v2020, 3
      %v2023 = vshll.u32 %v1436, 16
      %v2025 = vrot.slane %v2023, 4
      %v2026 = vor.u32 %v2022, %v2025
      %v2027 = vsel %vm1560, %v1977, %v2026
      %v2028 = vshrl.u32 %v1463, 16
      %v2030 = vrot.slane %v2028, 3
      %v2031 = vshll.u32 %v1463, 16
      %v2033 = vrot.slane %v2031, 4
      %v2034 = vor.u32 %v2030, %v2033
      %v2035 = vsel %vm1560, %v1985, %v2034
      %v2037 = vshrl.u32 %v1276, 16
      %v2039 = vrot.slane %v2037, 3
      %v2040 = vshll.u32 %v1276, 16
      %v2042 = vrot.slane %v2040, 4
      %v2043 = vor.u32 %v2039, %v2042
      %v2044 = vsel %vm1560, %v1994, %v2043
      %v2045 = vshrl.u32 %v1303, 16
      %v2047 = vrot.slane %v2045, 3
      %v2048 = vshll.u32 %v1303, 16
      %v2050 = vrot.slane %v2048, 4
      %v2051 = vor.u32 %v2047, %v2050
      %v2052 = vsel %vm1560, %v2002, %v2051
      %v2053 = vshrl.u32 %v1357, 16
      %v2055 = vrot.slane %v2053, 3
      %v2056 = vshll.u32 %v1357, 16
      %v2058 = vrot.slane %v2056, 4
      %v2059 = vor.u32 %v2055, %v2058
      %v2060 = vsel %vm1560, %v2010, %v2059
      %v2061 = vshrl.u32 %v1384, 16
      %v2063 = vrot.slane %v2061, 3
      %v2064 = vshll.u32 %v1384, 16
      %v2066 = vrot.slane %v2064, 4
      %v2067 = vor.u32 %v2063, %v2066
      %v2068 = vsel %vm1560, %v2018, %v2067
      %v2069 = vshrl.u32 %v1438, 16
      %v2071 = vrot.slane %v2069, 3
      %v2072 = vshll.u32 %v1438, 16
      %v2074 = vrot.slane %v2072, 4
      %v2075 = vor.u32 %v2071, %v2074
      %v2076 = vsel %vm1560, %v2026, %v2075
      %v2077 = vshrl.u32 %v1465, 16
      %v2079 = vrot.slane %v2077, 3
      %v2080 = vshll.u32 %v1465, 16
      %v2082 = vrot.slane %v2080, 4
      %v2083 = vor.u32 %v2079, %v2082
      %v2084 = vsel %vm1560, %v2034, %v2083
      %v2086 = vshrl.u32 %v1278, 16
      %v2088 = vrot.slane %v2086, 3
      %v2089 = vshll.u32 %v1278, 16
      %v2091 = vrot.slane %v2089, 4
      %v2092 = vor.u32 %v2088, %v2091
      %v2093 = vsel %vm1560, %v2043, %v2092
      %v2094 = vshrl.u32 %v1305, 16
      %v2096 = vrot.slane %v2094, 3
      %v2097 = vshll.u32 %v1305, 16
      %v2099 = vrot.slane %v2097, 4
      %v2100 = vor.u32 %v2096, %v2099
      %v2101 = vsel %vm1560, %v2051, %v2100
      %v2102 = vshrl.u32 %v1359, 16
      %v2104 = vrot.slane %v2102, 3
      %v2105 = vshll.u32 %v1359, 16
      %v2107 = vrot.slane %v2105, 4
      %v2108 = vor.u32 %v2104, %v2107
      %v2109 = vsel %vm1560, %v2059, %v2108
      %v2110 = vshrl.u32 %v1386, 16
      %v2112 = vrot.slane %v2110, 3
      %v2113 = vshll.u32 %v1386, 16
      %v2115 = vrot.slane %v2113, 4
      %v2116 = vor.u32 %v2112, %v2115
      %v2117 = vsel %vm1560, %v2067, %v2116
      %v2118 = vshrl.u32 %v1440, 16
      %v2120 = vrot.slane %v2118, 3
      %v2121 = vshll.u32 %v1440, 16
      %v2123 = vrot.slane %v2121, 4
      %v2124 = vor.u32 %v2120, %v2123
      %v2125 = vsel %vm1560, %v2075, %v2124
      %v2126 = vshrl.u32 %v1467, 16
      %v2128 = vrot.slane %v2126, 3
      %v2129 = vshll.u32 %v1467, 16
      %v2131 = vrot.slane %v2129, 4
      %v2132 = vor.u32 %v2128, %v2131
      %v2133 = vsel %vm1560, %v2083, %v2132
      %v2135 = vshrl.u32 %v1280, 16
      %v2137 = vrot.slane %v2135, 3
      %v2138 = vshll.u32 %v1280, 16
      %v2140 = vrot.slane %v2138, 4
      %v2141 = vor.u32 %v2137, %v2140
      %v2142 = vsel %vm1560, %v2092, %v2141
      %v2143 = vshrl.u32 %v1307, 16
      %v2145 = vrot.slane %v2143, 3
      %v2146 = vshll.u32 %v1307, 16
      %v2148 = vrot.slane %v2146, 4
      %v2149 = vor.u32 %v2145, %v2148
      %v2150 = vsel %vm1560, %v2100, %v2149
      %v2151 = vshrl.u32 %v1361, 16
      %v2153 = vrot.slane %v2151, 3
      %v2154 = vshll.u32 %v1361, 16
      %v2156 = vrot.slane %v2154, 4
      %v2157 = vor.u32 %v2153, %v2156
      %v2158 = vsel %vm1560, %v2108, %v2157
      %v2159 = vshrl.u32 %v1388, 16
      %v2161 = vrot.slane %v2159, 3
      %v2162 = vshll.u32 %v1388, 16
      %v2164 = vrot.slane %v2162, 4
      %v2165 = vor.u32 %v2161, %v2164
      %v2166 = vsel %vm1560, %v2116, %v2165
      %v2167 = vshrl.u32 %v1442, 16
      %v2169 = vrot.slane %v2167, 3
      %v2170 = vshll.u32 %v1442, 16
      %v2172 = vrot.slane %v2170, 4
      %v2173 = vor.u32 %v2169, %v2172
      %v2174 = vsel %vm1560, %v2124, %v2173
      %v2175 = vshrl.u32 %v1469, 16
      %v2177 = vrot.slane %v2175, 3
      %v2178 = vshll.u32 %v1469, 16
      %v2180 = vrot.slane %v2178, 4
      %v2181 = vor.u32 %v2177, %v2180
      %v2182 = vsel %vm1560, %v2132, %v2181
      %v2184 = vshrl.u32 %v1279, 16
      %v2186 = vrot.slane %v2184, 3
      %v2187 = vshll.u32 %v1279, 16
      %v2189 = vrot.slane %v2187, 4
      %v2190 = vor.u32 %v2186, %v2189
      %v2191 = vsel %vm1560, %v2141, %v2190
      %v2342 = vunpack.c.l.b16 %v1470
      %v2343 = vunpack.c.l.b16 %v1471
      %v2344 = vunpack.c.l.b16 %v1472
      %v2345 = vunpack.c.l.b16 %v1473
      %v2346 = vunpack.c.l.b16 %v1474
      %v2347 = vunpack.c.l.b16 %v1475
      %v2348 = vunpack.c.l.b16 %v1476
      %v2349 = vunpack.c.l.b16 %v1477
      %v2350 = vunpack.c.l.b16 %v1478
      %v2351 = vunpack.c.l.b16 %v1479
      %v2352 = vunpack.c.l.b16 %v1480
      %v2353 = vunpack.c.l.b16 %v1481
      %v2354 = vunpack.c.l.b16 %v1482
      %v2355 = vunpack.c.l.b16 %v1483
      %v2356 = vunpack.c.l.b16 %v1484
      %v2357 = vunpack.c.l.b16 %v1485
      %v2358 = vunpack.c.l.b16 %v1486
      %v2359 = vunpack.c.l.b16 %v1487
      %v2360 = vunpack.c.l.b16 %v1488
      %v2361 = vunpack.c.l.b16 %v1489
      %v2362 = vunpack.c.l.b16 %v1490
      %v2363 = vunpack.c.l.b16 %v1491
      %v2364 = vunpack.c.l.b16 %v1492
      %v2365 = vunpack.c.l.b16 %v1493
      %v2366 = vunpack.c.l.b16 %v1494
      %v2367 = vunpack.c.l.b16 %v1495
      %v2368 = vunpack.c.l.b16 %v1496
      %v2369 = vunpack.c.l.b16 %v1497
      %v2370 = vunpack.c.l.b16 %v1498
      %v2371 = vunpack.c.l.b16 %v1499
      %v2372 = vunpack.c.l.b16 %v1500
      %v2373 = vunpack.c.l.b16 %v1501
      %v2374 = vunpack.c.l.b16 %v1502
      %v2375 = vunpack.c.l.b16 %v1503
      %v2376 = vunpack.c.l.b16 %v1504
      %v2377 = vunpack.c.l.b16 %v1505
      %v2378 = vunpack.c.l.b16 %v1506
      %v2379 = vunpack.c.l.b16 %v1507
      %v2380 = vunpack.c.l.b16 %v1508
      %v2381 = vunpack.c.l.b16 %v1509
      %v2382 = vunpack.c.l.b16 %v1510
      %v2383 = vunpack.c.l.b16 %v1511
      %v2384 = vunpack.c.l.b16 %v1512
      %v2385 = vunpack.c.l.b16 %v1513
      %v2386 = vunpack.c.l.b16 %v1514
      %v2387 = vunpack.c.l.b16 %v1515
      %v2388 = vunpack.c.l.b16 %v1516
      %v2389 = vunpack.c.l.b16 %v1517
      %v2390 = vunpack.c.l.b16 %v1518
      %v2391 = vunpack.c.l.b16 %v1519
      %v2392 = vunpack.c.l.b16 %v1520
      %v2393 = vunpack.c.l.b16 %v1521
      %v2394 = vunpack.c.l.b16 %v1522
      %v2395 = vunpack.c.l.b16 %v1523
      %v2396 = vunpack.c.l.b16 %v1524
      %v2397 = vunpack.c.l.b16 %v1525
      %v2398 = vunpack.c.l.b16 %v1526
      %v2399 = vunpack.c.l.b16 %v1527
      %v2400 = vunpack.c.l.b16 %v1528
      %v2401 = vunpack.c.l.b16 %v1529
      %v2402 = vunpack.c.l.b16 %v1530
      %v2403 = vunpack.c.l.b16 %v1531
      %v2404 = vunpack.c.l.b16 %v1532
      %v2405 = vunpack.c.l.b16 %v1533
      %v2406 = vunpack.c.l.b16 %v1534
      %v2407 = vunpack.c.l.b16 %v1535
      %v2408 = vunpack.c.l.b16 %v1536
      %v2409 = vunpack.c.l.b16 %v1537
      %v2410 = vunpack.c.l.b16 %v1538
      %v2411 = vunpack.c.l.b16 %v1539
      %v2412 = vunpack.c.l.b16 %v1540
      %v2413 = vunpack.c.l.b16 %v1541
      %v2414 = vunpack.c.l.b16 %v1542
      %v2415 = vunpack.c.l.b16 %v1543
      %v2416 = vunpack.c.l.b16 %v1544
      %v2417 = vunpack.c.l.b16 %v1545
      %v2418 = vunpack.c.l.b16 %v1546
      %v2419 = vunpack.c.l.b16 %v1547
      %v2420 = vunpack.c.l.b16 %v1548
      %v2421 = vunpack.c.l.b16 %v1549
      %v2422 = vunpack.c.l.b16 %v1550
      %v2423 = vunpack.c.l.b16 %v1551
      %v2424 = vunpack.c.l.b16 %v1552
      %v2425 = vunpack.c.l.b16 %v1553
      %v2426 = vunpack.c.l.b16 %v1554
      %v2427 = vunpack.c.l.b16 %v1555
      %v2428 = vunpack.c.l.b16 %v1556
      %v2429 = vunpack.c.l.b16 %v1557
      %v2430 = vunpack.c.l.b16 %v1558
      %v2431 = vunpack.c.l.b16 %v1559
      %v2432 = vpack.c.b16 %v2343, %v2342
      %v2433 = vpack.c.b16 %v2345, %v2344
      %v2434 = vpack.c.b16 %v2347, %v2346
      %v2435 = vpack.c.b16 %v2349, %v2348
      %v2436 = vpack.c.b16 %v2351, %v2350
      %v2437 = vpack.c.b16 %v2353, %v2352
      %v2438 = vpack.c.b16 %v2355, %v2354
      %v2439 = vpack.c.b16 %v2357, %v2356
      %v2440 = vpack.c.b16 %v2359, %v2358
      %v2441 = vpack.c.b16 %v2361, %v2360
      %v2442 = vpack.c.b16 %v2363, %v2362
      %v2443 = vpack.c.b16 %v2365, %v2364
      %v2444 = vpack.c.b16 %v2367, %v2366
      %v2445 = vpack.c.b16 %v2369, %v2368
      %v2446 = vpack.c.b16 %v2371, %v2370
      %v2447 = vpack.c.b16 %v2373, %v2372
      %v2448 = vpack.c.b16 %v2375, %v2374
      %v2449 = vpack.c.b16 %v2377, %v2376
      %v2450 = vpack.c.b16 %v2379, %v2378
      %v2451 = vpack.c.b16 %v2381, %v2380
      %v2452 = vpack.c.b16 %v2383, %v2382
      %v2453 = vpack.c.b16 %v2385, %v2384
      %v2454 = vpack.c.b16 %v2387, %v2386
      %v2455 = vpack.c.b16 %v2389, %v2388
      %v2456 = vpack.c.b16 %v2391, %v2390
      %v2457 = vpack.c.b16 %v2393, %v2392
      %v2458 = vpack.c.b16 %v2395, %v2394
      %v2459 = vpack.c.b16 %v2397, %v2396
      %v2460 = vpack.c.b16 %v2399, %v2398
      %v2461 = vpack.c.b16 %v2401, %v2400
      %v2462 = vpack.c.b16 %v2403, %v2402
      %v2463 = vpack.c.b16 %v2405, %v2404
      %v2464 = vpack.c.b16 %v2407, %v2406
      %v2465 = vpack.c.b16 %v2409, %v2408
      %v2466 = vpack.c.b16 %v2411, %v2410
      %v2467 = vpack.c.b16 %v2413, %v2412
      %v2468 = vpack.c.b16 %v2415, %v2414
      %v2469 = vpack.c.b16 %v2417, %v2416
      %v2470 = vpack.c.b16 %v2419, %v2418
      %v2471 = vpack.c.b16 %v2421, %v2420
      %v2472 = vpack.c.b16 %v2423, %v2422
      %v2473 = vpack.c.b16 %v2425, %v2424
      %v2474 = vpack.c.b16 %v2427, %v2426
      %v2475 = vpack.c.b16 %v2429, %v2428
      %v2476 = vpack.c.b16 %v2431, %v2430
      %v2523 = vsel %vm1281, %v1652, 0
      %v2526 = vsel %vm1281, %v1701, 0
      %v2529 = vsel %vm1281, %v1750, 0
      %v2532 = vsel %vm1281, %v1799, 0
      %v2535 = vsel %vm1281, %v1848, 0
      %v2538 = vsel %vm1281, %v1897, 0
      %v2541 = vsel %vm1281, %v1946, 0
      %v2544 = vsel %vm1281, %v1995, 0
      %v2547 = vsel %vm1281, %v2044, 0
      %v2550 = vsel %vm1281, %v2093, 0
      %v2553 = vsel %vm1281, %v2142, 0
      %v2556 = vsel %vm1281, %v2191, 0
      %2558 = vmatprep.subr.bf16.mxu0 0
      %2559 = vmatpush1.bf16.msra.mxu0 %v2432
      %2560 = vmatprep.subr.bf16.mxu0 0
      %2561 = vmatpush1.bf16.msra.mxu0 %v2433
      %2562 = vmatprep.subr.bf16.mxu0 0
      %2563 = vmatpush1.bf16.msra.mxu0 %v2434
      %2564 = vmatprep.subr.bf16.mxu0 0
      %2565 = vmatpush1.bf16.msra.mxu0 %v2435
      %2566 = vmatprep.subr.bf16.mxu0 0
      %2567 = vmatpush1.bf16.msra.mxu0 %v2436
      %2568 = vmatprep.subr.bf16.mxu0 0
      %2569 = vmatpush1.bf16.msra.mxu0 %v2437
      %2570 = vmatprep.subr.bf16.mxu0 0
      %2571 = vmatpush1.bf16.msra.mxu0 %v2438
      %2572 = vmatprep.subr.bf16.mxu0 0
      %2573 = vmatpush1.bf16.msra.mxu0 %v2439
      %2574 = vmatprep.subr.bf16.mxu0 0
      %2575 = vmatpush1.bf16.msra.mxu0 %v2440
      %2576 = vmatprep.subr.bf16.mxu0 0
      %2577 = vmatpush1.bf16.msra.mxu0 %v2441
      %2578 = vmatprep.subr.bf16.mxu0 0
      %2579 = vmatpush1.bf16.msra.mxu0 %v2442
      %2580 = vmatprep.subr.bf16.mxu0 0
      %2581 = vmatpush1.bf16.msra.mxu0 %v2443
      %2582 = vmatprep.subr.bf16.mxu0 0
      %2583 = vmatpush1.bf16.msra.mxu0 %v2444
      %2584 = vmatprep.subr.bf16.mxu0 0
      %2585 = vmatpush1.bf16.msra.mxu0 %v2445
      %2586 = vmatprep.subr.bf16.mxu0 0
      %2587 = vmatpush1.bf16.msra.mxu0 %v2446
      %2588 = vmatprep.subr.bf16.mxu0 0
      %2589 = vmatpush1.bf16.msra.mxu0 %v2447
      %2590 = vmatprep.mubr.bf16.mxu0 %v1590
      %2591 = vmatmul.mubr.bf16.gmra.mrb[0].mxu0 %v1575
      %v2592 = vpop.f32.mrb[0].mxu0
      %v2593 = vadd.f32 0.0, %v2592
      %v2594 = vpop.f32.mrb[0].mxu0
      %v2595 = vpop.f32.mrb[0].mxu0
      %v2596 = vadd.f32 0.0, %v2595
      %v2597 = vpop.f32.mrb[0].mxu0
      %2598 = vmatprep.mubr.bf16.mxu0 %v1668
      %2599 = vmatmul.mubr.bf16.gmra.mrb[0].mxu0 %v1660
      %v2600 = vpop.f32.mrb[0].mxu0
      %v2601 = vadd.f32 0.0, %v2600
      %v2602 = vpop.f32.mrb[0].mxu0
      %v2603 = vpop.f32.mrb[0].mxu0
      %v2604 = vadd.f32 0.0, %v2603
      %v2605 = vpop.f32.mrb[0].mxu0
      %2606 = vmatprep.mubr.bf16.mxu0 %v1717
      %2607 = vmatmul.mubr.bf16.gmra.mrb[0].mxu0 %v1709
      %v2608 = vpop.f32.mrb[0].mxu0
      %v2609 = vadd.f32 0.0, %v2608
      %v2610 = vpop.f32.mrb[0].mxu0
      %v2611 = vpop.f32.mrb[0].mxu0
      %v2612 = vadd.f32 0.0, %v2611
      %v2613 = vpop.f32.mrb[0].mxu0
      %2614 = vmatprep.mubr.bf16.mxu0 %v1766
      %2615 = vmatmul.mubr.bf16.gmra.mrb[0].mxu0 %v1758
      %v2616 = vpop.f32.mrb[0].mxu0
      %v2617 = vadd.f32 0.0, %v2616
      %v2618 = vpop.f32.mrb[0].mxu0
      %v2619 = vpop.f32.mrb[0].mxu0
      %v2620 = vadd.f32 0.0, %v2619
      %v2621 = vpop.f32.mrb[0].mxu0
      %2622 = vmatprep.mubr.bf16.mxu0 %v1815
      %2623 = vmatmul.mubr.bf16.gmra.mrb[0].mxu0 %v1807
      %v2624 = vpop.f32.mrb[0].mxu0
      %v2625 = vadd.f32 0.0, %v2624
      %v2626 = vpop.f32.mrb[0].mxu0
      %v2627 = vpop.f32.mrb[0].mxu0
      %v2628 = vadd.f32 0.0, %v2627
      %v2629 = vpop.f32.mrb[0].mxu0
      %2630 = vmatprep.mubr.bf16.mxu0 %v1864
      %2631 = vmatmul.mubr.bf16.gmra.mrb[0].mxu0 %v1856
      %v2632 = vpop.f32.mrb[0].mxu0
      %v2633 = vadd.f32 0.0, %v2632
      %v2634 = vpop.f32.mrb[0].mxu0
      %v2635 = vpop.f32.mrb[0].mxu0
      %v2636 = vadd.f32 0.0, %v2635
      %v2637 = vpop.f32.mrb[0].mxu0
      %2638 = vmatprep.mubr.bf16.mxu0 %v1913
      %2639 = vmatmul.mubr.bf16.gmra.mrb[0].mxu0 %v1905
      %v2640 = vpop.f32.mrb[0].mxu0
      %v2641 = vadd.f32 0.0, %v2640
      %v2642 = vpop.f32.mrb[0].mxu0
      %v2643 = vpop.f32.mrb[0].mxu0
      %v2644 = vadd.f32 0.0, %v2643
      %v2645 = vpop.f32.mrb[0].mxu0
      %2646 = vmatprep.mubr.bf16.mxu0 %v1962
      %2647 = vmatmul.mubr.bf16.gmra.mrb[0].mxu0 %v1954
      %v2648 = vpop.f32.mrb[0].mxu0
      %v2649 = vadd.f32 0.0, %v2648
      %v2650 = vpop.f32.mrb[0].mxu0
      %v2651 = vpop.f32.mrb[0].mxu0
      %v2652 = vadd.f32 0.0, %v2651
      %v2653 = vpop.f32.mrb[0].mxu0
      %2654 = vmatprep.mubr.bf16.mxu0 %v2011
      %2655 = vmatmul.mubr.bf16.gmra.mrb[0].mxu0 %v2003
      %v2656 = vpop.f32.mrb[0].mxu0
      %v2657 = vadd.f32 0.0, %v2656
      %v2658 = vpop.f32.mrb[0].mxu0
      %v2659 = vpop.f32.mrb[0].mxu0
      %v2660 = vadd.f32 0.0, %v2659
      %v2661 = vpop.f32.mrb[0].mxu0
      %2662 = vmatprep.mubr.bf16.mxu0 %v2060
      %2663 = vmatmul.mubr.bf16.gmra.mrb[0].mxu0 %v2052
      %v2664 = vpop.f32.mrb[0].mxu0
      %v2665 = vadd.f32 0.0, %v2664
      %v2666 = vpop.f32.mrb[0].mxu0
      %v2667 = vpop.f32.mrb[0].mxu0
      %v2668 = vadd.f32 0.0, %v2667
      %v2669 = vpop.f32.mrb[0].mxu0
      %2670 = vmatprep.mubr.bf16.mxu0 %v2109
      %2671 = vmatmul.mubr.bf16.gmra.mrb[0].mxu0 %v2101
      %v2672 = vpop.f32.mrb[0].mxu0
      %v2673 = vadd.f32 0.0, %v2672
      %v2674 = vpop.f32.mrb[0].mxu0
      %v2675 = vpop.f32.mrb[0].mxu0
      %v2676 = vadd.f32 0.0, %v2675
      %v2677 = vpop.f32.mrb[0].mxu0
      %2678 = vmatprep.mubr.bf16.mxu0 %v2158
      %2679 = vmatmul.mubr.bf16.gmra.mrb[0].mxu0 %v2150
      %v2680 = vpop.f32.mrb[0].mxu0
      %v2681 = vadd.f32 0.0, %v2680
      %v2682 = vpop.f32.mrb[0].mxu0
      %v2683 = vpop.f32.mrb[0].mxu0
      %v2684 = vadd.f32 0.0, %v2683
      %v2685 = vpop.f32.mrb[0].mxu0
      %2686 = vdwg.mxu0
      %2687 = vmatprep.subr.bf16.mxu0 0
      %2688 = vmatpush1.bf16.msra.mxu0 %v2448
      %2689 = vmatprep.subr.bf16.mxu0 0
      %2690 = vmatpush1.bf16.msra.mxu0 %v2449
      %2691 = vmatprep.subr.bf16.mxu0 0
      %2692 = vmatpush1.bf16.msra.mxu0 %v2450
      %2693 = vmatprep.subr.bf16.mxu0 0
      %2694 = vmatpush1.bf16.msra.mxu0 %v2451
      %2695 = vmatprep.subr.bf16.mxu0 0
      %2696 = vmatpush1.bf16.msra.mxu0 %v2452
      %2697 = vmatprep.subr.bf16.mxu0 0
      %2698 = vmatpush1.bf16.msra.mxu0 %v2453
      %2699 = vmatprep.subr.bf16.mxu0 0
      %2700 = vmatpush1.bf16.msra.mxu0 %v2454
      %2701 = vmatprep.subr.bf16.mxu0 0
      %2702 = vmatpush1.bf16.msra.mxu0 %v2455
      %2703 = vmatprep.subr.bf16.mxu0 0
      %2704 = vmatpush1.bf16.msra.mxu0 %v2456
      %2705 = vmatprep.subr.bf16.mxu0 0
      %2706 = vmatpush1.bf16.msra.mxu0 %v2457
      %2707 = vmatprep.subr.bf16.mxu0 0
      %2708 = vmatpush1.bf16.msra.mxu0 %v2458
      %2709 = vmatprep.subr.bf16.mxu0 0
      %2710 = vmatpush1.bf16.msra.mxu0 %v2459
      %2711 = vmatprep.subr.bf16.mxu0 0
      %2712 = vmatpush1.bf16.msra.mxu0 %v2460
      %2713 = vmatprep.subr.bf16.mxu0 0
      %2714 = vmatpush1.bf16.msra.mxu0 %v2461
      %2715 = vmatprep.subr.bf16.mxu0 0
      %2716 = vmatpush1.bf16.msra.mxu0 %v2462
      %2717 = vmatprep.subr.bf16.mxu0 0
      %2718 = vmatpush1.bf16.msra.mxu0 %v2463
      %2719 = vmatprep.mubr.bf16.mxu0 %v1620
      %2720 = vmatmul.mubr.bf16.gmra.mrb[0].mxu0 %v1605
      %v2721 = vpop.f32.mrb[0].mxu0
      %v2722 = vadd.f32 %v2593, %v2721
      %v2723 = vpop.f32.mrb[0].mxu0
      %v2724 = vpop.f32.mrb[0].mxu0
      %v2725 = vadd.f32 %v2596, %v2724
      %v2726 = vpop.f32.mrb[0].mxu0
      %2727 = vmatprep.mubr.bf16.mxu0 %v1684
      %2728 = vmatmul.mubr.bf16.gmra.mrb[0].mxu0 %v1676
      %v2729 = vpop.f32.mrb[0].mxu0
      %v2730 = vadd.f32 %v2601, %v2729
      %v2731 = vpop.f32.mrb[0].mxu0
      %v2732 = vpop.f32.mrb[0].mxu0
      %v2733 = vadd.f32 %v2604, %v2732
      %v2734 = vpop.f32.mrb[0].mxu0
      %2735 = vmatprep.mubr.bf16.mxu0 %v1733
      %2736 = vmatmul.mubr.bf16.gmra.mrb[0].mxu0 %v1725
      %v2737 = vpop.f32.mrb[0].mxu0
      %v2738 = vadd.f32 %v2609, %v2737
      %v2739 = vpop.f32.mrb[0].mxu0
      %v2740 = vpop.f32.mrb[0].mxu0
      %v2741 = vadd.f32 %v2612, %v2740
      %v2742 = vpop.f32.mrb[0].mxu0
      %2743 = vmatprep.mubr.bf16.mxu0 %v1782
      %2744 = vmatmul.mubr.bf16.gmra.mrb[0].mxu0 %v1774
      %v2745 = vpop.f32.mrb[0].mxu0
      %v2746 = vadd.f32 %v2617, %v2745
      %v2747 = vpop.f32.mrb[0].mxu0
      %v2748 = vpop.f32.mrb[0].mxu0
      %v2749 = vadd.f32 %v2620, %v2748
      %v2750 = vpop.f32.mrb[0].mxu0
      %2751 = vmatprep.mubr.bf16.mxu0 %v1831
      %2752 = vmatmul.mubr.bf16.gmra.mrb[0].mxu0 %v1823
      %v2753 = vpop.f32.mrb[0].mxu0
      %v2754 = vadd.f32 %v2625, %v2753
      %v2755 = vpop.f32.mrb[0].mxu0
      %v2756 = vpop.f32.mrb[0].mxu0
      %v2757 = vadd.f32 %v2628, %v2756
      %v2758 = vpop.f32.mrb[0].mxu0
      %2759 = vmatprep.mubr.bf16.mxu0 %v1880
      %2760 = vmatmul.mubr.bf16.gmra.mrb[0].mxu0 %v1872
      %v2761 = vpop.f32.mrb[0].mxu0
      %v2762 = vadd.f32 %v2633, %v2761
      %v2763 = vpop.f32.mrb[0].mxu0
      %v2764 = vpop.f32.mrb[0].mxu0
      %v2765 = vadd.f32 %v2636, %v2764
      %v2766 = vpop.f32.mrb[0].mxu0
      %2767 = vmatprep.mubr.bf16.mxu0 %v1929
      %2768 = vmatmul.mubr.bf16.gmra.mrb[0].mxu0 %v1921
      %v2769 = vpop.f32.mrb[0].mxu0
      %v2770 = vadd.f32 %v2641, %v2769
      %v2771 = vpop.f32.mrb[0].mxu0
      %v2772 = vpop.f32.mrb[0].mxu0
      %v2773 = vadd.f32 %v2644, %v2772
      %v2774 = vpop.f32.mrb[0].mxu0
      %2775 = vmatprep.mubr.bf16.mxu0 %v1978
      %2776 = vmatmul.mubr.bf16.gmra.mrb[0].mxu0 %v1970
      %v2777 = vpop.f32.mrb[0].mxu0
      %v2778 = vadd.f32 %v2649, %v2777
      %v2779 = vpop.f32.mrb[0].mxu0
      %v2780 = vpop.f32.mrb[0].mxu0
      %v2781 = vadd.f32 %v2652, %v2780
      %v2782 = vpop.f32.mrb[0].mxu0
      %2783 = vmatprep.mubr.bf16.mxu0 %v2027
      %2784 = vmatmul.mubr.bf16.gmra.mrb[0].mxu0 %v2019
      %v2785 = vpop.f32.mrb[0].mxu0
      %v2786 = vadd.f32 %v2657, %v2785
      %v2787 = vpop.f32.mrb[0].mxu0
      %v2788 = vpop.f32.mrb[0].mxu0
      %v2789 = vadd.f32 %v2660, %v2788
      %v2790 = vpop.f32.mrb[0].mxu0
      %2791 = vmatprep.mubr.bf16.mxu0 %v2076
      %2792 = vmatmul.mubr.bf16.gmra.mrb[0].mxu0 %v2068
      %v2793 = vpop.f32.mrb[0].mxu0
      %v2794 = vadd.f32 %v2665, %v2793
      %v2795 = vpop.f32.mrb[0].mxu0
      %v2796 = vpop.f32.mrb[0].mxu0
      %v2797 = vadd.f32 %v2668, %v2796
      %v2798 = vpop.f32.mrb[0].mxu0
      %2799 = vmatprep.mubr.bf16.mxu0 %v2125
      %2800 = vmatmul.mubr.bf16.gmra.mrb[0].mxu0 %v2117
      %v2801 = vpop.f32.mrb[0].mxu0
      %v2802 = vadd.f32 %v2673, %v2801
      %v2803 = vpop.f32.mrb[0].mxu0
      %v2804 = vpop.f32.mrb[0].mxu0
      %v2805 = vadd.f32 %v2676, %v2804
      %v2806 = vpop.f32.mrb[0].mxu0
      %2807 = vmatprep.mubr.bf16.mxu0 %v2174
      %2808 = vmatmul.mubr.bf16.gmra.mrb[0].mxu0 %v2166
      %v2809 = vpop.f32.mrb[0].mxu0
      %v2810 = vadd.f32 %v2681, %v2809
      %v2811 = vpop.f32.mrb[0].mxu0
      %v2812 = vpop.f32.mrb[0].mxu0
      %v2813 = vadd.f32 %v2684, %v2812
      %v2814 = vpop.f32.mrb[0].mxu0
      %2815 = vdwg.mxu0
      %2816 = vmatprep.subr.bf16.mxu0 0
      %2817 = vmatpush1.bf16.msra.mxu0 %v2464
      %2818 = vmatprep.subr.bf16.mxu0 0
      %2819 = vmatpush1.bf16.msra.mxu0 %v2465
      %2820 = vmatprep.subr.bf16.mxu0 0
      %2821 = vmatpush1.bf16.msra.mxu0 %v2466
      %2822 = vmatprep.subr.bf16.mxu0 0
      %2823 = vmatpush1.bf16.msra.mxu0 %v2467
      %2824 = vmatprep.subr.bf16.mxu0 0
      %2825 = vmatpush1.bf16.msra.mxu0 %v2468
      %2826 = vmatprep.subr.bf16.mxu0 0
      %2827 = vmatpush1.bf16.msra.mxu0 %v2469
      %2828 = vmatprep.subr.bf16.mxu0 0
      %2829 = vmatpush1.bf16.msra.mxu0 %v2470
      %2830 = vmatprep.subr.bf16.mxu0 0
      %2831 = vmatpush1.bf16.msra.mxu0 %v2471
      %2832 = vmatprep.subr.bf16.mxu0 0
      %2833 = vmatpush1.bf16.msra.mxu0 %v2472
      %2834 = vmatprep.subr.bf16.mxu0 0
      %2835 = vmatpush1.bf16.msra.mxu0 %v2473
      %2836 = vmatprep.subr.bf16.mxu0 0
      %2837 = vmatpush1.bf16.msra.mxu0 %v2474
      %2838 = vmatprep.subr.bf16.mxu0 0
      %2839 = vmatpush1.bf16.msra.mxu0 %v2475
      %2840 = vmatprep.subr.bf16.mxu0 0
      %2841 = vmatpush1.bf16.msra.mxu0 %v2476
      %2842 = vmatprep.subr.bf16.mxu0 0
      %2843 = vmatpush1.bf16.msra.mxu0 0
      %2844 = vmatprep.subr.bf16.mxu0 0
      %2845 = vmatpush1.bf16.msra.mxu0 0
      %2846 = vmatprep.subr.bf16.mxu0 0
      %2847 = vmatpush1.bf16.msra.mxu0 0
      %2848 = vmatprep.mubr.bf16.mxu0 %v2523
      %2849 = vmatmul.mubr.bf16.gmra.mrb[0].mxu0 %v1635
      %v2850 = vpop.f32.mrb[0].mxu0
      %v2851 = vadd.f32 %v2722, %v2850
      %v2852 = vpop.f32.mrb[0].mxu0
      %v2853 = vpop.f32.mrb[0].mxu0
      %v2854 = vadd.f32 %v2725, %v2853
      %v2855 = vpop.f32.mrb[0].mxu0
      %2856 = vmatprep.mubr.bf16.mxu0 %v2526
      %2857 = vmatmul.mubr.bf16.gmra.mrb[0].mxu0 %v1692
      %v2858 = vpop.f32.mrb[0].mxu0
      %v2859 = vadd.f32 %v2730, %v2858
      %v2860 = vpop.f32.mrb[0].mxu0
      %v2861 = vpop.f32.mrb[0].mxu0
      %v2862 = vadd.f32 %v2733, %v2861
      %v2863 = vpop.f32.mrb[0].mxu0
      %2864 = vmatprep.mubr.bf16.mxu0 %v2529
      %2865 = vmatmul.mubr.bf16.gmra.mrb[0].mxu0 %v1741
      %v2866 = vpop.f32.mrb[0].mxu0
      %v2867 = vadd.f32 %v2738, %v2866
      %v2868 = vpop.f32.mrb[0].mxu0
      %v2869 = vpop.f32.mrb[0].mxu0
      %v2870 = vadd.f32 %v2741, %v2869
      %v2871 = vpop.f32.mrb[0].mxu0
      %2872 = vmatprep.mubr.bf16.mxu0 %v2532
      %2873 = vmatmul.mubr.bf16.gmra.mrb[0].mxu0 %v1790
      %v2874 = vpop.f32.mrb[0].mxu0
      %v2875 = vadd.f32 %v2746, %v2874
      %v2876 = vpop.f32.mrb[0].mxu0
      %v2877 = vpop.f32.mrb[0].mxu0
      %v2878 = vadd.f32 %v2749, %v2877
      %v2879 = vpop.f32.mrb[0].mxu0
      %2880 = vmatprep.mubr.bf16.mxu0 %v2535
      %2881 = vmatmul.mubr.bf16.gmra.mrb[0].mxu0 %v1839
      %v2882 = vpop.f32.mrb[0].mxu0
      %v2883 = vadd.f32 %v2754, %v2882
      %v2884 = vpop.f32.mrb[0].mxu0
      %v2885 = vpop.f32.mrb[0].mxu0
      %v2886 = vadd.f32 %v2757, %v2885
      %v2887 = vpop.f32.mrb[0].mxu0
      %2888 = vmatprep.mubr.bf16.mxu0 %v2538
      %2889 = vmatmul.mubr.bf16.gmra.mrb[0].mxu0 %v1888
      %v2890 = vpop.f32.mrb[0].mxu0
      %v2891 = vadd.f32 %v2762, %v2890
      %v2892 = vpop.f32.mrb[0].mxu0
      %v2893 = vpop.f32.mrb[0].mxu0
      %v2894 = vadd.f32 %v2765, %v2893
      %v2895 = vpop.f32.mrb[0].mxu0
      %2896 = vmatprep.mubr.bf16.mxu0 %v2541
      %2897 = vmatmul.mubr.bf16.gmra.mrb[0].mxu0 %v1937
      %v2898 = vpop.f32.mrb[0].mxu0
      %v2899 = vadd.f32 %v2770, %v2898
      %v2900 = vpop.f32.mrb[0].mxu0
      %v2901 = vpop.f32.mrb[0].mxu0
      %v2902 = vadd.f32 %v2773, %v2901
      %v2903 = vpop.f32.mrb[0].mxu0
      %2904 = vmatprep.mubr.bf16.mxu0 %v2544
      %2905 = vmatmul.mubr.bf16.gmra.mrb[0].mxu0 %v1986
      %v2906 = vpop.f32.mrb[0].mxu0
      %v2907 = vadd.f32 %v2778, %v2906
      %v2908 = vpop.f32.mrb[0].mxu0
      %v2909 = vpop.f32.mrb[0].mxu0
      %v2910 = vadd.f32 %v2781, %v2909
      %v2911 = vpop.f32.mrb[0].mxu0
      %2912 = vmatprep.mubr.bf16.mxu0 %v2547
      %2913 = vmatmul.mubr.bf16.gmra.mrb[0].mxu0 %v2035
      %v2914 = vpop.f32.mrb[0].mxu0
      %v2915 = vadd.f32 %v2786, %v2914
      %v2916 = vpop.f32.mrb[0].mxu0
      %v2917 = vpop.f32.mrb[0].mxu0
      %v2918 = vadd.f32 %v2789, %v2917
      %v2919 = vpop.f32.mrb[0].mxu0
      %2920 = vmatprep.mubr.bf16.mxu0 %v2550
      %2921 = vmatmul.mubr.bf16.gmra.mrb[0].mxu0 %v2084
      %v2922 = vpop.f32.mrb[0].mxu0
      %v2923 = vadd.f32 %v2794, %v2922
      %v2924 = vpop.f32.mrb[0].mxu0
      %v2925 = vpop.f32.mrb[0].mxu0
      %v2926 = vadd.f32 %v2797, %v2925
      %v2927 = vpop.f32.mrb[0].mxu0
      %2928 = vmatprep.mubr.bf16.mxu0 %v2553
      %2929 = vmatmul.mubr.bf16.gmra.mrb[0].mxu0 %v2133
      %v2930 = vpop.f32.mrb[0].mxu0
      %v2931 = vadd.f32 %v2802, %v2930
      %v2932 = vpop.f32.mrb[0].mxu0
      %v2933 = vpop.f32.mrb[0].mxu0
      %v2934 = vadd.f32 %v2805, %v2933
      %v2935 = vpop.f32.mrb[0].mxu0
      %2936 = vmatprep.mubr.bf16.mxu0 %v2556
      %2937 = vmatmul.mubr.bf16.gmra.mrb[0].mxu0 %v2182
      %v2938 = vpop.f32.mrb[0].mxu0
      %v2939 = vadd.f32 %v2810, %v2938
      %v2940 = vpop.f32.mrb[0].mxu0
      %v2941 = vpop.f32.mrb[0].mxu0
      %v2942 = vadd.f32 %v2813, %v2941
      %v2943 = vpop.f32.mrb[0].mxu0
      %2944 = vdwg.mxu0
      %v2945 = vpack.c.bf16 %v2854, %v2851
      %v2946 = vpack.c.bf16 %v2862, %v2859
      %v2947 = vpack.c.bf16 %v2870, %v2867
      %v2948 = vpack.c.bf16 %v2878, %v2875
      %v2949 = vpack.c.bf16 %v2886, %v2883
      %v2950 = vpack.c.bf16 %v2894, %v2891
      %v2951 = vpack.c.bf16 %v2902, %v2899
      %v2952 = vpack.c.bf16 %v2910, %v2907
      %v2953 = vpack.c.bf16 %v2918, %v2915
      %v2954 = vpack.c.bf16 %v2926, %v2923
      %v2955 = vpack.c.bf16 %v2934, %v2931
      %v2956 = vpack.c.bf16 %v2942, %v2939
      %v2969 = vunpack.c.l.b16 %v2945
      %v2970 = vunpack.c.h.b16 %v2945
      %v2971 = vunpack.c.l.b16 %v2946
      %v2972 = vunpack.c.h.b16 %v2946
      %v2973 = vunpack.c.l.b16 %v2947
      %v2974 = vunpack.c.h.b16 %v2947
      %v2975 = vunpack.c.l.b16 %v2948
      %v2976 = vunpack.c.h.b16 %v2948
      %v2977 = vunpack.c.l.b16 %v2949
      %v2978 = vunpack.c.h.b16 %v2949
      %v2979 = vunpack.c.l.b16 %v2950
      %v2980 = vunpack.c.h.b16 %v2950
      %v2981 = vunpack.c.l.b16 %v2951
      %v2982 = vunpack.c.h.b16 %v2951
      %v2983 = vunpack.c.l.b16 %v2952
      %v2984 = vunpack.c.h.b16 %v2952
      %v2985 = vunpack.c.l.b16 %v2953
      %v2986 = vunpack.c.h.b16 %v2953
      %v2987 = vunpack.c.l.b16 %v2954
      %v2988 = vunpack.c.h.b16 %v2954
      %v2989 = vunpack.c.l.b16 %v2955
      %v2990 = vunpack.c.h.b16 %v2955
      %v2991 = vunpack.c.l.b16 %v2956
      %v2992 = vunpack.c.h.b16 %v2956
      %v2993 = vpack.c.b16 %v2969, %v2969
      %v2994 = vpack.c.b16 %v2970, %v2970
      %v2995 = vpack.c.b16 %v2971, %v2971
      %v2996 = vpack.c.b16 %v2972, %v2972
      %v2997 = vpack.c.b16 %v2973, %v2973
      %v2998 = vpack.c.b16 %v2974, %v2974
      %v2999 = vpack.c.b16 %v2975, %v2975
      %v3000 = vpack.c.b16 %v2976, %v2976
      %v3001 = vpack.c.b16 %v2977, %v2977
      %v3002 = vpack.c.b16 %v2978, %v2978
      %v3003 = vpack.c.b16 %v2979, %v2979
      %v3004 = vpack.c.b16 %v2980, %v2980
      %v3005 = vpack.c.b16 %v2981, %v2981
      %v3006 = vpack.c.b16 %v2982, %v2982
      %v3007 = vpack.c.b16 %v2983, %v2983
      %v3008 = vpack.c.b16 %v2984, %v2984
      %v3009 = vpack.c.b16 %v2985, %v2985
      %v3010 = vpack.c.b16 %v2986, %v2986
      %v3011 = vpack.c.b16 %v2987, %v2987
      %v3012 = vpack.c.b16 %v2988, %v2988
      %v3013 = vpack.c.b16 %v2989, %v2989
      %v3014 = vpack.c.b16 %v2990, %v2990
      %v3015 = vpack.c.b16 %v2991, %v2991
      %v3016 = vpack.c.b16 %v2992, %v2992
      %vm3041 = vcmask 519168
      %3042 = vst.msk [vmem:[%s317] sm:$0xf] %vm3041, %v2993
      %3043 = vst.msk [vmem:[%s317 + $0x4] sm:$0xf] %vm3041, %v2994
      %3044 = vst.msk [vmem:[%s317 + $0x8] sm:$0xf] %vm3041, %v2995
      %3045 = vst.msk [vmem:[%s317 + $0xc] sm:$0xf] %vm3041, %v2996
      %3046 = vst.msk [vmem:[%s317 + $0x10] sm:$0xf] %vm3041, %v2997
      %3047 = vst.msk [vmem:[%s317 + $0x14] sm:$0xf] %vm3041, %v2998
      %3048 = vst.msk [vmem:[%s317 + $0x18] sm:$0xf] %vm3041, %v2999
      %3049 = vst.msk [vmem:[%s317 + $0x1c] sm:$0xf] %vm3041, %v3000
      %3050 = vst.msk [vmem:[%s317 + $0x20] sm:$0xf] %vm3041, %v3001
      %3051 = vst.msk [vmem:[%s317 + $0x24] sm:$0xf] %vm3041, %v3002
      %3052 = vst.msk [vmem:[%s317 + $0x28] sm:$0xf] %vm3041, %v3003
      %3053 = vst.msk [vmem:[%s317 + $0x2c] sm:$0xf] %vm3041, %v3004
      %3054 = vst.msk [vmem:[%s317 + $0x30] sm:$0xf] %vm3041, %v3005
      %3055 = vst.msk [vmem:[%s317 + $0x34] sm:$0xf] %vm3041, %v3006
      %3056 = vst.msk [vmem:[%s317 + $0x38] sm:$0xf] %vm3041, %v3007
      %3057 = vst.msk [vmem:[%s317 + $0x3c] sm:$0xf] %vm3041, %v3008
      %3058 = vst.msk [vmem:[%s317 + $0x40] sm:$0xf] %vm3041, %v3009
      %3059 = vst.msk [vmem:[%s317 + $0x44] sm:$0xf] %vm3041, %v3010
      %3060 = vst.msk [vmem:[%s317 + $0x48] sm:$0xf] %vm3041, %v3011
      %3061 = vst.msk [vmem:[%s317 + $0x4c] sm:$0xf] %vm3041, %v3012
      %3062 = vst.msk [vmem:[%s317 + $0x50] sm:$0xf] %vm3041, %v3013
      %3063 = vst.msk [vmem:[%s317 + $0x54] sm:$0xf] %vm3041, %v3014
      %3064 = vst.msk [vmem:[%s317 + $0x58] sm:$0xf] %vm3041, %v3015
      %3065 = vst.msk [vmem:[%s317 + $0x5c] sm:$0xf] %vm3041, %v3016
      %s3066 = scalar_lea.vmem %s1, %s330
      %v3067 = vld [vmem:[%s3066] sm:$0xff]
      %v3068 = vld [vmem:[%s3066 + $0x8] sm:$0xff]
      %v3069 = vld [vmem:[%s3066 + $0x10] sm:$0xff]
      %v3070 = vld [vmem:[%s3066 + $0x18] sm:$0xff]
      %v3071 = vld [vmem:[%s3066 + $0x20] sm:$0xff]
      %v3072 = vld [vmem:[%s3066 + $0x28] sm:$0xff]
      %v3073 = vld [vmem:[%s3066 + $0x30] sm:$0xff]
      %v3074 = vld [vmem:[%s3066 + $0x38] sm:$0xff]
      %v3075 = vld [vmem:[%s3066 + $0x40] sm:$0xff]
      %v3076 = vld [vmem:[%s3066 + $0x48] sm:$0xff]
      %v3077 = vld [vmem:[%s3066 + $0x50] sm:$0xff]
      %v3078 = vld [vmem:[%s3066 + $0x58] sm:$0xff]
      %v3079 = vld [vmem:[%s3066 + $0x60] sm:$0xff]
      %v3080 = vld [vmem:[%s3066 + $0x68] sm:$0xff]
      %v3081 = vld [vmem:[%s3066 + $0x70] sm:$0xff]
      %v3082 = vld [vmem:[%s3066 + $0x78] sm:$0xff]
      %v3083 = vld [vmem:[%s3066 + $0x80] sm:$0xff]
      %v3084 = vld [vmem:[%s3066 + $0x88] sm:$0xff]
      %v3085 = vld [vmem:[%s3066 + $0x90] sm:$0xff]
      %v3086 = vld [vmem:[%s3066 + $0x98] sm:$0xff]
      %v3087 = vld [vmem:[%s3066 + $0xa0] sm:$0xff]
      %v3088 = vld [vmem:[%s3066 + $0xa8] sm:$0xff]
      %v3089 = vld [vmem:[%s3066 + $0xb0] sm:$0xff]
      %v3090 = vld [vmem:[%s3066 + $0xb8] sm:$0xff]
      %vm3091 = vcmp.gt.f32.partialorder %v3067, 0.5
      %vm3092 = vcmp.gt.f32.partialorder %v3068, 0.5
      %vm3093 = vcmp.gt.f32.partialorder %v3069, 0.5
      %vm3094 = vcmp.gt.f32.partialorder %v3070, 0.5
      %vm3095 = vcmp.gt.f32.partialorder %v3071, 0.5
      %vm3096 = vcmp.gt.f32.partialorder %v3072, 0.5
      %vm3097 = vcmp.gt.f32.partialorder %v3073, 0.5
      %vm3098 = vcmp.gt.f32.partialorder %v3074, 0.5
      %vm3099 = vcmp.gt.f32.partialorder %v3075, 0.5
      %vm3100 = vcmp.gt.f32.partialorder %v3076, 0.5
      %vm3101 = vcmp.gt.f32.partialorder %v3077, 0.5
      %vm3102 = vcmp.gt.f32.partialorder %v3078, 0.5
      %vm3103 = vcmp.gt.f32.partialorder %v3079, 0.5
      %vm3104 = vcmp.gt.f32.partialorder %v3080, 0.5
      %vm3105 = vcmp.gt.f32.partialorder %v3081, 0.5
      %vm3106 = vcmp.gt.f32.partialorder %v3082, 0.5
      %vm3107 = vcmp.gt.f32.partialorder %v3083, 0.5
      %vm3108 = vcmp.gt.f32.partialorder %v3084, 0.5
      %vm3109 = vcmp.gt.f32.partialorder %v3085, 0.5
      %vm3110 = vcmp.gt.f32.partialorder %v3086, 0.5
      %vm3111 = vcmp.gt.f32.partialorder %v3087, 0.5
      %vm3112 = vcmp.gt.f32.partialorder %v3088, 0.5
      %vm3113 = vcmp.gt.f32.partialorder %v3089, 0.5
      %vm3114 = vcmp.gt.f32.partialorder %v3090, 0.5
      %v3115 = vsel %vm3091, 1, 0
      %v3116 = vsel %vm3092, 1, 0
      %v3117 = vsel %vm3093, 1, 0
      %v3118 = vsel %vm3094, 1, 0
      %v3119 = vsel %vm3095, 1, 0
      %v3120 = vsel %vm3096, 1, 0
      %v3121 = vsel %vm3097, 1, 0
      %v3122 = vsel %vm3098, 1, 0
      %v3123 = vsel %vm3099, 1, 0
      %v3124 = vsel %vm3100, 1, 0
      %v3125 = vsel %vm3101, 1, 0
      %v3126 = vsel %vm3102, 1, 0
      %v3127 = vsel %vm3103, 1, 0
      %v3128 = vsel %vm3104, 1, 0
      %v3129 = vsel %vm3105, 1, 0
      %v3130 = vsel %vm3106, 1, 0
      %v3131 = vsel %vm3107, 1, 0
      %v3132 = vsel %vm3108, 1, 0
      %v3133 = vsel %vm3109, 1, 0
      %v3134 = vsel %vm3110, 1, 0
      %v3135 = vsel %vm3111, 1, 0
      %v3136 = vsel %vm3112, 1, 0
      %v3137 = vsel %vm3113, 1, 0
      %v3138 = vsel %vm3114, 1, 0
      %3139 = vset.pattern.permute.xlu0 0
      %3140 = vperm.xlu0 %3139, %v3115
      %v3141 = vpop.permute.xlu0 %3140
      %3142 = vset.pattern.permute.xlu0 0
      %3143 = vperm.xlu0 %3142, %v3116
      %v3144 = vpop.permute.xlu0 %3143
      %3145 = vset.pattern.permute.xlu0 0
      %3146 = vperm.xlu0 %3145, %v3117
      %v3147 = vpop.permute.xlu0 %3146
      %3148 = vset.pattern.permute.xlu0 0
      %3149 = vperm.xlu0 %3148, %v3118
      %v3150 = vpop.permute.xlu0 %3149
      %3151 = vset.pattern.permute.xlu0 0
      %3152 = vperm.xlu0 %3151, %v3119
      %v3153 = vpop.permute.xlu0 %3152
      %3154 = vset.pattern.permute.xlu0 0
      %3155 = vperm.xlu0 %3154, %v3120
      %v3156 = vpop.permute.xlu0 %3155
      %3157 = vset.pattern.permute.xlu0 0
      %3158 = vperm.xlu0 %3157, %v3121
      %v3159 = vpop.permute.xlu0 %3158
      %3160 = vset.pattern.permute.xlu0 0
      %3161 = vperm.xlu0 %3160, %v3122
      %v3162 = vpop.permute.xlu0 %3161
      %3163 = vset.pattern.permute.xlu0 0
      %3164 = vperm.xlu0 %3163, %v3123
      %v3165 = vpop.permute.xlu0 %3164
      %3166 = vset.pattern.permute.xlu0 0
      %3167 = vperm.xlu0 %3166, %v3124
      %v3168 = vpop.permute.xlu0 %3167
      %3169 = vset.pattern.permute.xlu0 0
      %3170 = vperm.xlu0 %3169, %v3125
      %v3171 = vpop.permute.xlu0 %3170
      %3172 = vset.pattern.permute.xlu0 0
      %3173 = vperm.xlu0 %3172, %v3126
      %v3174 = vpop.permute.xlu0 %3173
      %3175 = vset.pattern.permute.xlu0 0
      %3176 = vperm.xlu0 %3175, %v3127
      %v3177 = vpop.permute.xlu0 %3176
      %3178 = vset.pattern.permute.xlu0 0
      %3179 = vperm.xlu0 %3178, %v3128
      %v3180 = vpop.permute.xlu0 %3179
      %3181 = vset.pattern.permute.xlu0 0
      %3182 = vperm.xlu0 %3181, %v3129
      %v3183 = vpop.permute.xlu0 %3182
      %3184 = vset.pattern.permute.xlu0 0
      %3185 = vperm.xlu0 %3184, %v3130
      %v3186 = vpop.permute.xlu0 %3185
      %3187 = vset.pattern.permute.xlu0 0
      %3188 = vperm.xlu0 %3187, %v3131
      %v3189 = vpop.permute.xlu0 %3188
      %3190 = vset.pattern.permute.xlu0 0
      %3191 = vperm.xlu0 %3190, %v3132
      %v3192 = vpop.permute.xlu0 %3191
      %3193 = vset.pattern.permute.xlu0 0
      %3194 = vperm.xlu0 %3193, %v3133
      %v3195 = vpop.permute.xlu0 %3194
      %3196 = vset.pattern.permute.xlu0 0
      %3197 = vperm.xlu0 %3196, %v3134
      %v3198 = vpop.permute.xlu0 %3197
      %3199 = vset.pattern.permute.xlu0 0
      %3200 = vperm.xlu0 %3199, %v3135
      %v3201 = vpop.permute.xlu0 %3200
      %3202 = vset.pattern.permute.xlu0 0
      %3203 = vperm.xlu0 %3202, %v3136
      %v3204 = vpop.permute.xlu0 %3203
      %3205 = vset.pattern.permute.xlu0 0
      %3206 = vperm.xlu0 %3205, %v3137
      %v3207 = vpop.permute.xlu0 %3206
      %3208 = vset.pattern.permute.xlu0 0
      %3209 = vperm.xlu0 %3208, %v3138
      %v3210 = vpop.permute.xlu0 %3209
      %vm3211 = vcmp.eq.s32.totalorder %v3141, 1
      %vm3212 = vcmp.eq.s32.totalorder %v3144, 1
      %vm3213 = vcmp.eq.s32.totalorder %v3147, 1
      %vm3214 = vcmp.eq.s32.totalorder %v3150, 1
      %vm3215 = vcmp.eq.s32.totalorder %v3153, 1
      %vm3216 = vcmp.eq.s32.totalorder %v3156, 1
      %vm3217 = vcmp.eq.s32.totalorder %v3159, 1
      %vm3218 = vcmp.eq.s32.totalorder %v3162, 1
      %vm3219 = vcmp.eq.s32.totalorder %v3165, 1
      %vm3220 = vcmp.eq.s32.totalorder %v3168, 1
      %vm3221 = vcmp.eq.s32.totalorder %v3171, 1
      %vm3222 = vcmp.eq.s32.totalorder %v3174, 1
      %vm3223 = vcmp.eq.s32.totalorder %v3177, 1
      %vm3224 = vcmp.eq.s32.totalorder %v3180, 1
      %vm3225 = vcmp.eq.s32.totalorder %v3183, 1
      %vm3226 = vcmp.eq.s32.totalorder %v3186, 1
      %vm3227 = vcmp.eq.s32.totalorder %v3189, 1
      %vm3228 = vcmp.eq.s32.totalorder %v3192, 1
      %vm3229 = vcmp.eq.s32.totalorder %v3195, 1
      %vm3230 = vcmp.eq.s32.totalorder %v3198, 1
      %vm3231 = vcmp.eq.s32.totalorder %v3201, 1
      %vm3232 = vcmp.eq.s32.totalorder %v3204, 1
      %vm3233 = vcmp.eq.s32.totalorder %v3207, 1
      %vm3234 = vcmp.eq.s32.totalorder %v3210, 1
      %v3235 = vsel %vm3211, %v2851, 0.0
      %v3236 = vsel %vm3212, %v2854, 0.0
      %v3237 = vsel %vm3213, %v2859, 0.0
      %v3238 = vsel %vm3214, %v2862, 0.0
      %v3239 = vsel %vm3215, %v2867, 0.0
      %v3240 = vsel %vm3216, %v2870, 0.0
      %v3241 = vsel %vm3217, %v2875, 0.0
      %v3242 = vsel %vm3218, %v2878, 0.0
      %v3243 = vsel %vm3219, %v2883, 0.0
      %v3244 = vsel %vm3220, %v2886, 0.0
      %v3245 = vsel %vm3221, %v2891, 0.0
      %v3246 = vsel %vm3222, %v2894, 0.0
      %v3247 = vsel %vm3223, %v2899, 0.0
      %v3248 = vsel %vm3224, %v2902, 0.0
      %v3249 = vsel %vm3225, %v2907, 0.0
      %v3250 = vsel %vm3226, %v2910, 0.0
      %v3251 = vsel %vm3227, %v2915, 0.0
      %v3252 = vsel %vm3228, %v2918, 0.0
      %v3253 = vsel %vm3229, %v2923, 0.0
      %v3254 = vsel %vm3230, %v2926, 0.0
      %v3255 = vsel %vm3231, %v2931, 0.0
      %v3256 = vsel %vm3232, %v2934, 0.0
      %v3257 = vsel %vm3233, %v2939, 0.0
      %v3258 = vsel %vm3234, %v2942, 0.0
      %v3259 = vsel %vm1362, %v3235, 0.0
      %v3260 = vsel %vm1362, %v3236, 0.0
      %v3261 = vadd.f32 %v3259, %v3260
      %v3262 = vsel %vm1362, %v3237, 0.0
      %v3263 = vadd.f32 %v3261, %v3262
      %v3264 = vsel %vm1362, %v3238, 0.0
      %v3265 = vadd.f32 %v3263, %v3264
      %v3266 = vsel %vm1362, %v3239, 0.0
      %v3267 = vadd.f32 %v3265, %v3266
      %v3268 = vsel %vm1362, %v3240, 0.0
      %v3269 = vadd.f32 %v3267, %v3268
      %v3270 = vsel %vm1362, %v3241, 0.0
      %v3271 = vadd.f32 %v3269, %v3270
      %v3272 = vsel %vm1362, %v3242, 0.0
      %v3273 = vadd.f32 %v3271, %v3272
      %v3274 = vsel %vm1362, %v3243, 0.0
      %v3275 = vadd.f32 %v3273, %v3274
      %v3276 = vsel %vm1362, %v3244, 0.0
      %v3277 = vadd.f32 %v3275, %v3276
      %v3278 = vsel %vm1362, %v3245, 0.0
      %v3279 = vadd.f32 %v3277, %v3278
      %v3280 = vsel %vm1362, %v3246, 0.0
      %v3281 = vadd.f32 %v3279, %v3280
      %v3282 = vsel %vm1362, %v3247, 0.0
      %v3283 = vadd.f32 %v3281, %v3282
      %v3284 = vsel %vm1362, %v3248, 0.0
      %v3285 = vadd.f32 %v3283, %v3284
      %v3286 = vsel %vm1362, %v3249, 0.0
      %v3287 = vadd.f32 %v3285, %v3286
      %v3288 = vsel %vm1362, %v3250, 0.0
      %v3289 = vadd.f32 %v3287, %v3288
      %v3290 = vsel %vm1362, %v3251, 0.0
      %v3291 = vadd.f32 %v3289, %v3290
      %v3292 = vsel %vm1362, %v3252, 0.0
      %v3293 = vadd.f32 %v3291, %v3292
      %v3294 = vsel %vm1362, %v3253, 0.0
      %v3295 = vadd.f32 %v3293, %v3294
      %v3296 = vsel %vm1362, %v3254, 0.0
      %v3297 = vadd.f32 %v3295, %v3296
      %v3298 = vsel %vm1362, %v3255, 0.0
      %v3299 = vadd.f32 %v3297, %v3298
      %v3300 = vsel %vm1362, %v3256, 0.0
      %v3301 = vadd.f32 %v3299, %v3300
      %v3302 = vsel %vm1362, %v3257, 0.0
      %v3303 = vadd.f32 %v3301, %v3302
      %v3304 = vsel %vm1362, %v3258, 0.0
      %v3305 = vadd.f32 %v3303, %v3304
      %v3306 = vrot.slane %v3305, 4
      %v3307 = vadd.f32 %v3305, %v3306
      %v3308 = vrot.slane %v3307, 2
      %v3309 = vadd.f32 %v3307, %v3308
      %v3310 = vrot.slane %v3309, 1
      %v3311 = vadd.f32 %v3309, %v3310
      %v3312 = vmul.f32 %v3235, %v3235
      %v3313 = vmul.f32 %v3236, %v3236
      %v3314 = vmul.f32 %v3237, %v3237
      %v3315 = vmul.f32 %v3238, %v3238
      %v3316 = vmul.f32 %v3239, %v3239
      %v3317 = vmul.f32 %v3240, %v3240
      %v3318 = vmul.f32 %v3241, %v3241
      %v3319 = vmul.f32 %v3242, %v3242
      %v3320 = vmul.f32 %v3243, %v3243
      %v3321 = vmul.f32 %v3244, %v3244
      %v3322 = vmul.f32 %v3245, %v3245
      %v3323 = vmul.f32 %v3246, %v3246
      %v3324 = vmul.f32 %v3247, %v3247
      %v3325 = vmul.f32 %v3248, %v3248
      %v3326 = vmul.f32 %v3249, %v3249
      %v3327 = vmul.f32 %v3250, %v3250
      %v3328 = vmul.f32 %v3251, %v3251
      %v3329 = vmul.f32 %v3252, %v3252
      %v3330 = vmul.f32 %v3253, %v3253
      %v3331 = vmul.f32 %v3254, %v3254
      %v3332 = vmul.f32 %v3255, %v3255
      %v3333 = vmul.f32 %v3256, %v3256
      %v3334 = vmul.f32 %v3257, %v3257
      %v3335 = vmul.f32 %v3258, %v3258
      %v3336 = vsel %vm1362, %v3312, 0.0
      %v3337 = vsel %vm1362, %v3313, 0.0
      %v3338 = vadd.f32 %v3336, %v3337
      %v3339 = vsel %vm1362, %v3314, 0.0
      %v3340 = vadd.f32 %v3338, %v3339
      %v3341 = vsel %vm1362, %v3315, 0.0
      %v3342 = vadd.f32 %v3340, %v3341
      %v3343 = vsel %vm1362, %v3316, 0.0
      %v3344 = vadd.f32 %v3342, %v3343
      %v3345 = vsel %vm1362, %v3317, 0.0
      %v3346 = vadd.f32 %v3344, %v3345
      %v3347 = vsel %vm1362, %v3318, 0.0
      %v3348 = vadd.f32 %v3346, %v3347
      %v3349 = vsel %vm1362, %v3319, 0.0
      %v3350 = vadd.f32 %v3348, %v3349
      %v3351 = vsel %vm1362, %v3320, 0.0
      %v3352 = vadd.f32 %v3350, %v3351
      %v3353 = vsel %vm1362, %v3321, 0.0
      %v3354 = vadd.f32 %v3352, %v3353
      %v3355 = vsel %vm1362, %v3322, 0.0
      %v3356 = vadd.f32 %v3354, %v3355
      %v3357 = vsel %vm1362, %v3323, 0.0
      %v3358 = vadd.f32 %v3356, %v3357
      %v3359 = vsel %vm1362, %v3324, 0.0
      %v3360 = vadd.f32 %v3358, %v3359
      %v3361 = vsel %vm1362, %v3325, 0.0
      %v3362 = vadd.f32 %v3360, %v3361
      %v3363 = vsel %vm1362, %v3326, 0.0
      %v3364 = vadd.f32 %v3362, %v3363
      %v3365 = vsel %vm1362, %v3327, 0.0
      %v3366 = vadd.f32 %v3364, %v3365
      %v3367 = vsel %vm1362, %v3328, 0.0
      %v3368 = vadd.f32 %v3366, %v3367
      %v3369 = vsel %vm1362, %v3329, 0.0
      %v3370 = vadd.f32 %v3368, %v3369
      %v3371 = vsel %vm1362, %v3330, 0.0
      %v3372 = vadd.f32 %v3370, %v3371
      %v3373 = vsel %vm1362, %v3331, 0.0
      %v3374 = vadd.f32 %v3372, %v3373
      %v3375 = vsel %vm1362, %v3332, 0.0
      %v3376 = vadd.f32 %v3374, %v3375
      %v3377 = vsel %vm1362, %v3333, 0.0
      %v3378 = vadd.f32 %v3376, %v3377
      %v3379 = vsel %vm1362, %v3334, 0.0
      %v3380 = vadd.f32 %v3378, %v3379
      %v3381 = vsel %vm1362, %v3335, 0.0
      %v3382 = vadd.f32 %v3380, %v3381
      %v3383 = vrot.slane %v3382, 4
      %v3384 = vadd.f32 %v3382, %v3383
      %v3385 = vrot.slane %v3384, 2
      %v3386 = vadd.f32 %v3384, %v3385
      %v3387 = vrot.slane %v3386, 1
      %v3388 = vadd.f32 %v3386, %v3387
      %vm3389 = vcmask 1040384
      %v3390 = vsel %vm3389, %v3311, %v3388
      %vm3391 = vcmask 517120
      %3392 = vst.msk [vmem:[%s327] sm:$0x3] %vm3391, %v3390
      %s3393 = sadd.s32 %s24, 1
      %s3394 = smul.u32 24, %s3393
      %p3395 = scmp.lt.s32.totalorder %s23, 1
      %s3396 = scalar_select %p3395, %s23, 1
      %p3397 = scmp.lt.s32.totalorder %s3394, 95
      %s3398 = scalar_select %p3397, %s3394, 95
      %s3399 = smul.addr %s3396, 96
      %s3400 = sadd.s32 %s3398, %s3399
      %s3401 = smul.addr %s3400, 4
      %s3402 = scalar_lea.vmem %s6, %s3401
      %p3403 = scmp.lt.s32.totalorder %s23, 1
      %s3404 = scalar_select %p3403, %s23, 1
      %p3405 = scmp.lt.s32.totalorder %s24, 1
      %s3406 = scalar_select %p3405, %s24, 1
      %s3407 = smul.addr %s3404, 2
      %s3408 = sadd.s32 %s3406, %s3407
      %s3409 = smul.addr %s3408, 2
      %s3410 = scalar_lea.vmem %s7, %s3409
      // Predicated region
      $region45: #{hidden_encoder_forward.10} parent=43 // pred_check
        %p3411 = pneg %p184
      $region46: #{hidden_encoder_forward.10} parent=43 // pred_check_branch
        %3413 = sbr.rel (%p3411) target = $region48
      $region47: #{hidden_encoder_forward.10} parent=43 // pred_region
        %s3414 = sadd.s32 %s24, 1
        %s3415 = smul.u32 24, %s3414
      $region48: #{hidden_encoder_forward.10} parent=43 // pred_fallthru
        _
      // Predicated region
      $region49: #{hidden_encoder_forward.10} parent=43 // pred_check
        %p3416 = pneg %p212
      $region50: #{hidden_encoder_forward.10} parent=43 // pred_check_branch
        %3418 = sbr.rel (%p3416) target = $region52
      $region51: #{hidden_encoder_forward.10} parent=43 // pred_region
        _
      $region52: #{hidden_encoder_forward.10} parent=43 // pred_fallthru
        _
    $region44: #{hidden_encoder_forward.10} parent=5 // pred_fallthru
      _
    %p3419 = scmp.le.s32.totalorder 2, %s14
    // Predicated region
    $region53: #{hidden_encoder_forward.10} parent=5 // pred_check
      %p3420 = pneg %p3419
    $region54: #{hidden_encoder_forward.10} parent=5 // pred_check_branch
      %3422 = sbr.rel (%p3420) target = $region56
    $region55: #{hidden_encoder_forward.10} parent=5 // pred_region
      %s3423 = ssub.s32 %s14, 2
      // Predicated region
      $region57: #{hidden_encoder_forward.10} parent=55 // pred_check
        %p3424 = pneg %p190
      $region58: #{hidden_encoder_forward.10} parent=55 // pred_check_branch
        %3426 = sbr.rel (%p3424) target = $region60
      $region59: #{hidden_encoder_forward.10} parent=55 // pred_region
        %s3427 = sadd.s32 %s26, 1
        %s3428 = smul.u32 24, %s3427
        %p3429 = scmp.lt.s32.totalorder %s25, 1
        %s3430 = scalar_select %p3429, %s25, 1
        %p3431 = scmp.lt.s32.totalorder %s3428, 95
        %s3432 = scalar_select %p3431, %s3428, 95
        %s3433 = smul.addr %s3430, 96
        %s3434 = sadd.s32 %s3432, %s3433
        %s3435 = smul.addr %s3434, 4
        %s3436 = scalar_lea.vmem %s6, %s3435
      $region60: #{hidden_encoder_forward.10} parent=55 // pred_fallthru
        _
      // Predicated region
      $region61: #{hidden_encoder_forward.10} parent=55 // pred_check
        %p3437 = pneg %p218
      $region62: #{hidden_encoder_forward.10} parent=55 // pred_check_branch
        %3439 = sbr.rel (%p3437) target = $region64
      $region63: #{hidden_encoder_forward.10} parent=55 // pred_region
        %p3440 = scmp.lt.s32.totalorder %s25, 1
        %s3441 = scalar_select %p3440, %s25, 1
        %p3442 = scmp.lt.s32.totalorder %s26, 1
        %s3443 = scalar_select %p3442, %s26, 1
        %s3444 = smul.addr %s3441, 2
        %s3445 = sadd.s32 %s3443, %s3444
        %s3446 = smul.addr %s3445, 2
        %s3447 = scalar_lea.vmem %s7, %s3446
      $region64: #{hidden_encoder_forward.10} parent=55 // pred_fallthru
        _
    $region56: #{hidden_encoder_forward.10} parent=5 // pred_fallthru
      _
  $region6: #{hidden_encoder_forward.10} parent=0 // loop_footer
    %s18 = sadd.s32 1, %s14
  $region7: #{hidden_encoder_forward.10} parent=0 // loop_footer_branch
    %13 = sbr.rel target = $region3
  $region8: #{hidden_encoder_forward.10} parent=0 // loop_exit
    _

// kernel: hidden_encoder_forward.11
$region0: #{hidden_encoder_forward.11}
  #allocation0 [shape = 'u32[]', space=smem, size = 0x4, offset = 0x4, fixed_abs, tag = 'smem constant byte address 0x4 - core index']
  #allocation1 [shape = 'u32[144,128]{1,0:T(1,128)}', space=vmem, size = 0x12000, scoped, tag = 'internal scratch']
  %s0 = inlined_call_operand.vmem [shape: bf16[768,128], index: 0, kind: input, shape index: {}]
  %s1 = inlined_call_operand.vmem [shape: f32[1,128], index: 1, kind: input, shape index: {}]
  %s2 = inlined_call_operand.vmem [shape: f32[1,128], index: 2, kind: input, shape index: {}]
  %s3 = inlined_call_operand.vmem [shape: bf16[128,16], index: 3, kind: input, shape index: {}]
  %s4 = inlined_call_operand.vmem [shape: f32[1,16], index: 4, kind: input, shape index: {}]
  %s5 = inlined_call_operand.vmem [shape: f32[768,16], index: 5, kind: output, shape index: {}]
  %s6 = sld [smem:[#allocation0]]
  $region53: #{hidden_encoder_forward.11} parent=0
    _
  %s8 = ssub.s32 1, %s6
  %s9 = scalar_select 0, %s8, %s6
  loop: start=0, step=1, limit=5
  $region2: #{hidden_encoder_forward.11} parent=0 // loop_pre_header
    _
  $region3: #{hidden_encoder_forward.11} parent=0 // loop_header
    %s11 = sphi 0, %s15
    %p12 = scmp.ge.s32.totalorder %s11, 5
    %s21 = sphi 0, %s23
    %s24 = sphi 0, %s21
    %s25 = sphi 0, %s24
    %s41 = sphi 0, %s25
    %s45 = sphi 0, %s45
    %s47 = sphi 0, %s45
    %s48 = sphi 0, %s47
    %s62 = sphi 0, %s48
    %s66 = sphi 0, %s66
    %s68 = sphi 0, %s66
    %s69 = sphi 0, %s68
    %s83 = sphi 0, %s69
    %s87 = sphi 0, %s87
    %s89 = sphi 0, %s87
    %s90 = sphi 0, %s89
    %s104 = sphi 0, %s90
    %s108 = sphi 0, %s108
    %s110 = sphi 0, %s108
    %s111 = sphi 0, %s110
    %s125 = sphi 0, %s111
    %s131 = sphi 0, %s133
    %s134 = sphi 0, %s131
    %s135 = sphi 0, %s134
    %s151 = sphi 0, %s135
  $region4: #{hidden_encoder_forward.11} parent=0 // loop_header_branch
    %14 = sbr.rel (%p12) target = $region8
  $region5: #{hidden_encoder_forward.11} parent=0 // loop_body
    %s16 = ssub.s32 %s11, 1
    %s17 = ssub.s32 %s11, 2
    %s18 = sadd.s32 %s11, 1
    %s19 = ssub.s32 %s11, %s18
    %p20 = scmp.eq.s32.totalorder %s19, 0
    %s22 = sadd.s32 %s21, 1
    %s23 = scalar_select %p20, %s21, %s22
    %p26 = pneg %p20
    %p27 = scmp.eq.s32.totalorder %s11, 2
    %p28 = por %p26, %p27
    %p29 = scmp.ne.s32.totalorder %s21, %s24
    %p30 = scmp.eq.s32.totalorder %s11, 0
    %p31 = por %p29, %p30
    %p32 = scmp.ne.s32.totalorder %s21, %s24
    %p33 = scmp.eq.s32.totalorder %s16, 2
    %p34 = por %p32, %p33
    %p35 = scmp.ne.s32.totalorder %s24, %s25
    %p36 = scmp.eq.s32.totalorder %s16, 0
    %p37 = por %p35, %p36
    %p38 = scmp.ne.s32.totalorder %s24, %s25
    %p39 = scmp.eq.s32.totalorder %s17, 2
    %p40 = por %p38, %p39
    %p42 = scmp.ne.s32.totalorder %s25, %s41
    %p43 = scmp.eq.s32.totalorder %s17, 0
    %p44 = por %p42, %p43
    %s46 = sadd.s32 %s45, 1
    %p49 = scmp.eq.s32.totalorder %s11, 2
    %p50 = scmp.ne.s32.totalorder %s45, %s47
    %p51 = scmp.eq.s32.totalorder %s11, 0
    %p52 = por %p50, %p51
    %p53 = scmp.ne.s32.totalorder %s45, %s47
    %p54 = scmp.eq.s32.totalorder %s16, 2
    %p55 = por %p53, %p54
    %p56 = scmp.ne.s32.totalorder %s47, %s48
    %p57 = scmp.eq.s32.totalorder %s16, 0
    %p58 = por %p56, %p57
    %p59 = scmp.ne.s32.totalorder %s47, %s48
    %p60 = scmp.eq.s32.totalorder %s17, 2
    %p61 = por %p59, %p60
    %p63 = scmp.ne.s32.totalorder %s48, %s62
    %p64 = scmp.eq.s32.totalorder %s17, 0
    %p65 = por %p63, %p64
    %s67 = sadd.s32 %s66, 1
    %p70 = scmp.eq.s32.totalorder %s11, 2
    %p71 = scmp.ne.s32.totalorder %s66, %s68
    %p72 = scmp.eq.s32.totalorder %s11, 0
    %p73 = por %p71, %p72
    %p74 = scmp.ne.s32.totalorder %s66, %s68
    %p75 = scmp.eq.s32.totalorder %s16, 2
    %p76 = por %p74, %p75
    %p77 = scmp.ne.s32.totalorder %s68, %s69
    %p78 = scmp.eq.s32.totalorder %s16, 0
    %p79 = por %p77, %p78
    %p80 = scmp.ne.s32.totalorder %s68, %s69
    %p81 = scmp.eq.s32.totalorder %s17, 2
    %p82 = por %p80, %p81
    %p84 = scmp.ne.s32.totalorder %s69, %s83
    %p85 = scmp.eq.s32.totalorder %s17, 0
    %p86 = por %p84, %p85
    %s88 = sadd.s32 %s87, 1
    %p91 = scmp.eq.s32.totalorder %s11, 2
    %p92 = scmp.ne.s32.totalorder %s87, %s89
    %p93 = scmp.eq.s32.totalorder %s11, 0
    %p94 = por %p92, %p93
    %p95 = scmp.ne.s32.totalorder %s87, %s89
    %p96 = scmp.eq.s32.totalorder %s16, 2
    %p97 = por %p95, %p96
    %p98 = scmp.ne.s32.totalorder %s89, %s90
    %p99 = scmp.eq.s32.totalorder %s16, 0
    %p100 = por %p98, %p99
    %p101 = scmp.ne.s32.totalorder %s89, %s90
    %p102 = scmp.eq.s32.totalorder %s17, 2
    %p103 = por %p101, %p102
    %p105 = scmp.ne.s32.totalorder %s90, %s104
    %p106 = scmp.eq.s32.totalorder %s17, 0
    %p107 = por %p105, %p106
    %s109 = sadd.s32 %s108, 1
    %p112 = scmp.eq.s32.totalorder %s11, 2
    %p113 = scmp.ne.s32.totalorder %s108, %s110
    %p114 = scmp.eq.s32.totalorder %s11, 0
    %p115 = por %p113, %p114
    %p116 = scmp.ne.s32.totalorder %s108, %s110
    %p117 = scmp.eq.s32.totalorder %s16, 2
    %p118 = por %p116, %p117
    %p119 = scmp.ne.s32.totalorder %s110, %s111
    %p120 = scmp.eq.s32.totalorder %s16, 0
    %p121 = por %p119, %p120
    %p122 = scmp.ne.s32.totalorder %s110, %s111
    %p123 = scmp.eq.s32.totalorder %s17, 2
    %p124 = por %p122, %p123
    %p126 = scmp.ne.s32.totalorder %s111, %s125
    %p127 = scmp.eq.s32.totalorder %s17, 0
    %p128 = por %p126, %p127
    %s129 = ssub.s32 %s11, %s18
    %p130 = scmp.eq.s32.totalorder %s129, 0
    %s132 = sadd.s32 %s131, 1
    %s133 = scalar_select %p130, %s131, %s132
    %p136 = pneg %p130
    %p137 = scmp.eq.s32.totalorder %s11, 2
    %p138 = por %p136, %p137
    %p139 = scmp.ne.s32.totalorder %s131, %s134
    %p140 = scmp.eq.s32.totalorder %s11, 0
    %p141 = por %p139, %p140
    %p142 = scmp.ne.s32.totalorder %s131, %s134
    %p143 = scmp.eq.s32.totalorder %s16, 2
    %p144 = por %p142, %p143
    %p145 = scmp.ne.s32.totalorder %s134, %s135
    %p146 = scmp.eq.s32.totalorder %s16, 0
    %p147 = por %p145, %p146
    %p148 = scmp.ne.s32.totalorder %s134, %s135
    %p149 = scmp.eq.s32.totalorder %s17, 2
    %p150 = por %p148, %p149
    %p152 = scmp.ne.s32.totalorder %s135, %s151
    %p153 = scmp.eq.s32.totalorder %s17, 0
    %p154 = por %p152, %p153
    %p155 = scmp.le.s32.totalorder 1, %s11
    %p156 = scmp.lt.s32.totalorder %s11, 4
    %p157 = pnand %p155, %p156
    %p158 = pneg %p157
    // Predicated region
    $region9: #{hidden_encoder_forward.11} parent=5 // pred_check
      _
    $region10: #{hidden_encoder_forward.11} parent=5 // pred_check_branch
      %160 = sbr.rel (%p157) target = $region12
    $region11: #{hidden_encoder_forward.11} parent=5 // pred_region
      %s161 = ssub.s32 %s11, 1
      // Predicated region
      $region13: #{hidden_encoder_forward.11} parent=11 // pred_check
        %p162 = pneg %p58
      $region14: #{hidden_encoder_forward.11} parent=11 // pred_check_branch
        %164 = sbr.rel (%p162) target = $region16
      $region15: #{hidden_encoder_forward.11} parent=11 // pred_region
        _
      $region16: #{hidden_encoder_forward.11} parent=11 // pred_fallthru
        _
      // Predicated region
      $region17: #{hidden_encoder_forward.11} parent=11 // pred_check
        %p165 = pneg %p79
      $region18: #{hidden_encoder_forward.11} parent=11 // pred_check_branch
        %167 = sbr.rel (%p165) target = $region20
      $region19: #{hidden_encoder_forward.11} parent=11 // pred_region
        _
      $region20: #{hidden_encoder_forward.11} parent=11 // pred_fallthru
        _
      // Predicated region
      $region21: #{hidden_encoder_forward.11} parent=11 // pred_check
        %p168 = pneg %p100
      $region22: #{hidden_encoder_forward.11} parent=11 // pred_check_branch
        %170 = sbr.rel (%p168) target = $region24
      $region23: #{hidden_encoder_forward.11} parent=11 // pred_region
        _
      $region24: #{hidden_encoder_forward.11} parent=11 // pred_fallthru
        _
      // Predicated region
      $region25: #{hidden_encoder_forward.11} parent=11 // pred_check
        %p171 = pneg %p121
      $region26: #{hidden_encoder_forward.11} parent=11 // pred_check_branch
        %173 = sbr.rel (%p171) target = $region28
      $region27: #{hidden_encoder_forward.11} parent=11 // pred_region
        _
      $region28: #{hidden_encoder_forward.11} parent=11 // pred_fallthru
        _
    $region12: #{hidden_encoder_forward.11} parent=5 // pred_fallthru
      _
    %p174 = scmp.lt.s32.totalorder %s11, 3
    // Predicated region
    $region29: #{hidden_encoder_forward.11} parent=5 // pred_check
      %p175 = pneg %p174
    $region30: #{hidden_encoder_forward.11} parent=5 // pred_check_branch
      %177 = sbr.rel (%p175) target = $region32
    $region31: #{hidden_encoder_forward.11} parent=5 // pred_region
      // Predicated region
      $region33: #{hidden_encoder_forward.11} parent=31 // pred_check
        %p178 = pneg %p31
      $region34: #{hidden_encoder_forward.11} parent=31 // pred_check_branch
        %180 = sbr.rel (%p178) target = $region36
      $region35: #{hidden_encoder_forward.11} parent=31 // pred_region
        %s181 = smul.u32 32, %s11
        %p182 = scmp.lt.s32.totalorder %s181, 95
        %s183 = scalar_select %p182, %s181, 95
        %s184 = smul.addr %s183, 4
        %s185 = scalar_lea.vmem %s0, %s184
        %s186 = smul.u32 32, %s11
      $region36: #{hidden_encoder_forward.11} parent=31 // pred_fallthru
        _
    $region32: #{hidden_encoder_forward.11} parent=5 // pred_fallthru
      _
    %p187 = scmp.le.s32.totalorder 1, %s11
    %p188 = scmp.lt.s32.totalorder %s11, 4
    %p189 = pnand %p187, %p188
    %p190 = pneg %p189
    // Predicated region
    $region37: #{hidden_encoder_forward.11} parent=5 // pred_check
      _
    $region38: #{hidden_encoder_forward.11} parent=5 // pred_check_branch
      %192 = sbr.rel (%p189) target = $region40
    $region39: #{hidden_encoder_forward.11} parent=5 // pred_region
      %s193 = ssub.s32 %s11, 1
      %s194 = smul.u32 32, %s16
      %p195 = scmp.lt.s32.totalorder %s194, 95
      %s196 = scalar_select %p195, %s194, 95
      %s197 = smul.addr %s196, 4
      %s198 = scalar_lea.vmem %s0, %s197
      %p199 = pneg %p37
      %p200 = pneg %p34
      %p201 = pneg %p58
      %p202 = pneg %p55
      %p203 = pneg %p79
      %p204 = pneg %p76
      %p205 = pneg %p100
      %p206 = pneg %p97
      %p207 = pneg %p121
      %p208 = pneg %p118
      %p209 = pneg %p147
      %p210 = pneg %p144
      %s211 = smul.u32 32, %s16
      %p212 = scmp.lt.s32.totalorder %s211, 95
      %s213 = scalar_select %p212, %s211, 95
      %s214 = smul.addr %s213, 8
      %s215 = scalar_lea.vmem %s5, %s214
      %s216 = smul.u32 32, %s16
      %p217 = scmp.lt.s32.totalorder %s216, 95
      %s218 = scalar_select %p217, %s216, 95
      %s219 = smul.addr %s218, 4
      %s220 = scalar_lea.vmem %s0, %s219
      %s221 = smul.u32 32, %s16
      %s222 = smul.u32 32, %s16
      %p223 = scmp.lt.s32.totalorder %s222, 95
      %s224 = scalar_select %p223, %s222, 95
      %s225 = smul.addr %s224, 8
      %s226 = scalar_lea.vmem %s5, %s225
      %s227 = smul.u32 32, %s16
      %v229 = vld [vmem:[%s220] sm:$0xf]
      %v230 = vld [vmem:[%s220 + $0x4] sm:$0xf]
      %v231 = vld [vmem:[%s220 + $0x8] sm:$0xf]
      %v232 = vld [vmem:[%s220 + $0xc] sm:$0xf]
      %v233 = vld [vmem:[%s220 + $0x10] sm:$0xf]
      %v234 = vld [vmem:[%s220 + $0x14] sm:$0xf]
      %v235 = vld [vmem:[%s220 + $0x18] sm:$0xf]
      %v236 = vld [vmem:[%s220 + $0x1c] sm:$0xf]
      %v237 = vld [vmem:[%s220 + $0x20] sm:$0xf]
      %v238 = vld [vmem:[%s220 + $0x24] sm:$0xf]
      %v239 = vld [vmem:[%s220 + $0x28] sm:$0xf]
      %v240 = vld [vmem:[%s220 + $0x2c] sm:$0xf]
      %v241 = vld [vmem:[%s220 + $0x30] sm:$0xf]
      %v242 = vld [vmem:[%s220 + $0x34] sm:$0xf]
      %v243 = vld [vmem:[%s220 + $0x38] sm:$0xf]
      %v244 = vld [vmem:[%s220 + $0x3c] sm:$0xf]
      %v245 = vld [vmem:[%s220 + $0x40] sm:$0xf]
      %v246 = vld [vmem:[%s220 + $0x44] sm:$0xf]
      %v247 = vld [vmem:[%s220 + $0x48] sm:$0xf]
      %v248 = vld [vmem:[%s220 + $0x4c] sm:$0xf]
      %v249 = vld [vmem:[%s220 + $0x50] sm:$0xf]
      %v250 = vld [vmem:[%s220 + $0x54] sm:$0xf]
      %v251 = vld [vmem:[%s220 + $0x58] sm:$0xf]
      %v252 = vld [vmem:[%s220 + $0x5c] sm:$0xf]
      %v253 = vld [vmem:[%s220 + $0x60] sm:$0xf]
      %v254 = vld [vmem:[%s220 + $0x64] sm:$0xf]
      %v255 = vld [vmem:[%s220 + $0x68] sm:$0xf]
      %v256 = vld [vmem:[%s220 + $0x6c] sm:$0xf]
      %v257 = vld [vmem:[%s220 + $0x70] sm:$0xf]
      %v258 = vld [vmem:[%s220 + $0x74] sm:$0xf]
      %v259 = vld [vmem:[%s220 + $0x78] sm:$0xf]
      %v260 = vld [vmem:[%s220 + $0x7c] sm:$0xf]
      %v261 = vunpack.c.l.bf16 %v229
      %v262 = vunpack.c.l.bf16 %v230
      %v263 = vunpack.c.l.bf16 %v231
      %v264 = vunpack.c.l.bf16 %v232
      %v265 = vunpack.c.l.bf16 %v233
      %v266 = vunpack.c.l.bf16 %v234
      %v267 = vunpack.c.l.bf16 %v235
      %v268 = vunpack.c.l.bf16 %v236
      %v269 = vunpack.c.l.bf16 %v237
      %v270 = vunpack.c.l.bf16 %v238
      %v271 = vunpack.c.l.bf16 %v239
      %v272 = vunpack.c.l.bf16 %v240
      %v273 = vunpack.c.l.bf16 %v241
      %v274 = vunpack.c.l.bf16 %v242
      %v275 = vunpack.c.l.bf16 %v243
      %v276 = vunpack.c.l.bf16 %v244
      %v277 = vunpack.c.l.bf16 %v245
      %v278 = vunpack.c.l.bf16 %v246
      %v279 = vunpack.c.l.bf16 %v247
      %v280 = vunpack.c.l.bf16 %v248
      %v281 = vunpack.c.l.bf16 %v249
      %v282 = vunpack.c.l.bf16 %v250
      %v283 = vunpack.c.l.bf16 %v251
      %v284 = vunpack.c.l.bf16 %v252
      %v285 = vunpack.c.l.bf16 %v253
      %v286 = vunpack.c.l.bf16 %v254
      %v287 = vunpack.c.l.bf16 %v255
      %v288 = vunpack.c.l.bf16 %v256
      %v289 = vunpack.c.l.bf16 %v257
      %v290 = vunpack.c.l.bf16 %v258
      %v291 = vunpack.c.l.bf16 %v259
      %v292 = vunpack.c.l.bf16 %v260
      %v293 = vld [vmem:[%s1] sm:$0x1]
      %v295 = vlaneseq
      %v296 = vshrl.u32 %v295, 7
      %v297 = vsub.s32 0, %v296
      %v298 = vrot.slane %v293, %v297
      %v300 = vmul.f32 %v261, %v298
      %v301 = vmul.f32 %v262, %v298
      %v302 = vmul.f32 %v263, %v298
      %v303 = vmul.f32 %v264, %v298
      %v304 = vmul.f32 %v265, %v298
      %v305 = vmul.f32 %v266, %v298
      %v306 = vmul.f32 %v267, %v298
      %v307 = vmul.f32 %v268, %v298
      %v308 = vmul.f32 %v269, %v298
      %v309 = vmul.f32 %v270, %v298
      %v310 = vmul.f32 %v271, %v298
      %v311 = vmul.f32 %v272, %v298
      %v312 = vmul.f32 %v273, %v298
      %v313 = vmul.f32 %v274, %v298
      %v314 = vmul.f32 %v275, %v298
      %v315 = vmul.f32 %v276, %v298
      %v316 = vmul.f32 %v277, %v298
      %v317 = vmul.f32 %v278, %v298
      %v318 = vmul.f32 %v279, %v298
      %v319 = vmul.f32 %v280, %v298
      %v320 = vmul.f32 %v281, %v298
      %v321 = vmul.f32 %v282, %v298
      %v322 = vmul.f32 %v283, %v298
      %v323 = vmul.f32 %v284, %v298
      %v324 = vmul.f32 %v285, %v298
      %v325 = vmul.f32 %v286, %v298
      %v326 = vmul.f32 %v287, %v298
      %v327 = vmul.f32 %v288, %v298
      %v328 = vmul.f32 %v289, %v298
      %v329 = vmul.f32 %v290, %v298
      %v330 = vmul.f32 %v291, %v298
      %v331 = vmul.f32 %v292, %v298
      %v332 = vld [vmem:[%s2] sm:$0x1]
      %v334 = vlaneseq
      %v335 = vshrl.u32 %v334, 7
      %v336 = vsub.s32 0, %v335
      %v337 = vrot.slane %v332, %v336
      %v339 = vadd.f32 %v300, %v337
      %v340 = vadd.f32 %v301, %v337
      %v341 = vadd.f32 %v302, %v337
      %v342 = vadd.f32 %v303, %v337
      %v343 = vadd.f32 %v304, %v337
      %v344 = vadd.f32 %v305, %v337
      %v345 = vadd.f32 %v306, %v337
      %v346 = vadd.f32 %v307, %v337
      %v347 = vadd.f32 %v308, %v337
      %v348 = vadd.f32 %v309, %v337
      %v349 = vadd.f32 %v310, %v337
      %v350 = vadd.f32 %v311, %v337
      %v351 = vadd.f32 %v312, %v337
      %v352 = vadd.f32 %v313, %v337
      %v353 = vadd.f32 %v314, %v337
      %v354 = vadd.f32 %v315, %v337
      %v355 = vadd.f32 %v316, %v337
      %v356 = vadd.f32 %v317, %v337
      %v357 = vadd.f32 %v318, %v337
      %v358 = vadd.f32 %v319, %v337
      %v359 = vadd.f32 %v320, %v337
      %v360 = vadd.f32 %v321, %v337
      %v361 = vadd.f32 %v322, %v337
      %v362 = vadd.f32 %v323, %v337
      %v363 = vadd.f32 %v324, %v337
      %v364 = vadd.f32 %v325, %v337
      %v365 = vadd.f32 %v326, %v337
      %v366 = vadd.f32 %v327, %v337
      %v367 = vadd.f32 %v328, %v337
      %v368 = vadd.f32 %v329, %v337
      %v369 = vadd.f32 %v330, %v337
      %v370 = vadd.f32 %v331, %v337
      %v371 = vmax.f32 %v339, 0.0
      %v372 = vmax.f32 %v340, 0.0
      %v373 = vmax.f32 %v341, 0.0
      %v374 = vmax.f32 %v342, 0.0
      %v375 = vmax.f32 %v343, 0.0
      %v376 = vmax.f32 %v344, 0.0
      %v377 = vmax.f32 %v345, 0.0
      %v378 = vmax.f32 %v346, 0.0
      %v379 = vmax.f32 %v347, 0.0
      %v380 = vmax.f32 %v348, 0.0
      %v381 = vmax.f32 %v349, 0.0
      %v382 = vmax.f32 %v350, 0.0
      %v383 = vmax.f32 %v351, 0.0
      %v384 = vmax.f32 %v352, 0.0
      %v385 = vmax.f32 %v353, 0.0
      %v386 = vmax.f32 %v354, 0.0
      %v387 = vmax.f32 %v355, 0.0
      %v388 = vmax.f32 %v356, 0.0
      %v389 = vmax.f32 %v357, 0.0
      %v390 = vmax.f32 %v358, 0.0
      %v391 = vmax.f32 %v359, 0.0
      %v392 = vmax.f32 %v360, 0.0
      %v393 = vmax.f32 %v361, 0.0
      %v394 = vmax.f32 %v362, 0.0
      %v395 = vmax.f32 %v363, 0.0
      %v396 = vmax.f32 %v364, 0.0
      %v397 = vmax.f32 %v365, 0.0
      %v398 = vmax.f32 %v366, 0.0
      %v399 = vmax.f32 %v367, 0.0
      %v400 = vmax.f32 %v368, 0.0
      %v401 = vmax.f32 %v369, 0.0
      %v402 = vmax.f32 %v370, 0.0
      %v403 = vpack.c.bf16 %v372, %v371
      %v404 = vpack.c.bf16 %v374, %v373
      %v405 = vpack.c.bf16 %v376, %v375
      %v406 = vpack.c.bf16 %v378, %v377
      %v407 = vpack.c.bf16 %v380, %v379
      %v408 = vpack.c.bf16 %v382, %v381
      %v409 = vpack.c.bf16 %v384, %v383
      %v410 = vpack.c.bf16 %v386, %v385
      %v411 = vpack.c.bf16 %v388, %v387
      %v412 = vpack.c.bf16 %v390, %v389
      %v413 = vpack.c.bf16 %v392, %v391
      %v414 = vpack.c.bf16 %v394, %v393
      %v415 = vpack.c.bf16 %v396, %v395
      %v416 = vpack.c.bf16 %v398, %v397
      %v417 = vpack.c.bf16 %v400, %v399
      %v418 = vpack.c.bf16 %v402, %v401
      %v419 = vld [vmem:[%s3] sm:$0xf]
      %v420 = vld [vmem:[%s3 + $0x4] sm:$0xf]
      %v421 = vld [vmem:[%s3 + $0x8] sm:$0xf]
      %v422 = vld [vmem:[%s3 + $0xc] sm:$0xf]
      %v423 = vld [vmem:[%s3 + $0x10] sm:$0xf]
      %v424 = vld [vmem:[%s3 + $0x14] sm:$0xf]
      %v425 = vld [vmem:[%s3 + $0x18] sm:$0xf]
      %v426 = vld [vmem:[%s3 + $0x1c] sm:$0xf]
      %v427 = vld [vmem:[%s3 + $0x20] sm:$0xf]
      %v428 = vld [vmem:[%s3 + $0x24] sm:$0xf]
      %v429 = vld [vmem:[%s3 + $0x28] sm:$0xf]
      %v430 = vld [vmem:[%s3 + $0x2c] sm:$0xf]
      %v431 = vld [vmem:[%s3 + $0x30] sm:$0xf]
      %v432 = vld [vmem:[%s3 + $0x34] sm:$0xf]
      %v433 = vld [vmem:[%s3 + $0x38] sm:$0xf]
      %v434 = vld [vmem:[%s3 + $0x3c] sm:$0xf]
      %v435 = vld [vmem:[%s4] sm:$0x1]
      %v437 = vlaneseq
      %v438 = vshrl.u32 %v437, 7
      %v439 = vsub.s32 0, %v438
      %v440 = vrot.slane %v435, %v439
      %v458 = vunpack.c.l.b16 %v419
      %v459 = vunpack.c.l.b16 %v420
      %v460 = vunpack.c.l.b16 %v421
      %v461 = vunpack.c.l.b16 %v422
      %v462 = vunpack.c.l.b16 %v423
      %v463 = vunpack.c.l.b16 %v424
      %v464 = vunpack.c.l.b16 %v425
      %v465 = vunpack.c.l.b16 %v426
      %v466 = vunpack.c.l.b16 %v427
      %v467 = vunpack.c.l.b16 %v428
      %v468 = vunpack.c.l.b16 %v429
      %v469 = vunpack.c.l.b16 %v430
      %v470 = vunpack.c.l.b16 %v431
      %v471 = vunpack.c.l.b16 %v432
      %v472 = vunpack.c.l.b16 %v433
      %v473 = vunpack.c.l.b16 %v434
      %v474 = vpack.c.b16 %v459, %v458
      %v475 = vpack.c.b16 %v461, %v460
      %v476 = vpack.c.b16 %v463, %v462
      %v477 = vpack.c.b16 %v465, %v464
      %v478 = vpack.c.b16 %v467, %v466
      %v479 = vpack.c.b16 %v469, %v468
      %v480 = vpack.c.b16 %v471, %v470
      %v481 = vpack.c.b16 %v473, %v472
      %490 = vmatprep.subr.bf16.mxu0 0
      %491 = vmatpush1.bf16.msra.mxu0 %v474
      %492 = vmatprep.subr.bf16.mxu0 0
      %493 = vmatpush1.bf16.msra.mxu0 %v475
      %494 = vmatprep.subr.bf16.mxu0 0
      %495 = vmatpush1.bf16.msra.mxu0 %v476
      %496 = vmatprep.subr.bf16.mxu0 0
      %497 = vmatpush1.bf16.msra.mxu0 %v477
      %498 = vmatprep.subr.bf16.mxu0 0
      %499 = vmatpush1.bf16.msra.mxu0 %v478
      %500 = vmatprep.subr.bf16.mxu0 0
      %501 = vmatpush1.bf16.msra.mxu0 %v479
      %502 = vmatprep.subr.bf16.mxu0 0
      %503 = vmatpush1.bf16.msra.mxu0 %v480
      %504 = vmatprep.subr.bf16.mxu0 0
      %505 = vmatpush1.bf16.msra.mxu0 %v481
      %506 = vmatprep.subr.bf16.mxu0 0
      %507 = vmatpush1.bf16.msra.mxu0 0
      %508 = vmatprep.subr.bf16.mxu0 0
      %509 = vmatpush1.bf16.msra.mxu0 0
      %510 = vmatprep.subr.bf16.mxu0 0
      %511 = vmatpush1.bf16.msra.mxu0 0
      %512 = vmatprep.subr.bf16.mxu0 0
      %513 = vmatpush1.bf16.msra.mxu0 0
      %514 = vmatprep.subr.bf16.mxu0 0
      %515 = vmatpush1.bf16.msra.mxu0 0
      %516 = vmatprep.subr.bf16.mxu0 0
      %517 = vmatpush1.bf16.msra.mxu0 0
      %518 = vmatprep.subr.bf16.mxu0 0
      %519 = vmatpush1.bf16.msra.mxu0 0
      %520 = vmatprep.subr.bf16.mxu0 0
      %521 = vmatpush1.bf16.msra.mxu0 0
      %522 = vmatprep.mubr.bf16.mxu0 0
      %523 = vmatmul.mubr.bf16.gmra.mrb[0].mxu0 %v403
      %v524 = vpop.f32.mrb[0].mxu0
      %v525 = vadd.f32 %v440, %v524
      %v526 = vpop.f32.mrb[0].mxu0
      %v527 = vpop.f32.mrb[0].mxu0
      %v528 = vadd.f32 %v440, %v527
      %v529 = vpop.f32.mrb[0].mxu0
      %530 = vmatprep.mubr.bf16.mxu0 0
      %531 = vmatmul.mubr.bf16.gmra.mrb[0].mxu0 %v404
      %v532 = vpop.f32.mrb[0].mxu0
      %v533 = vadd.f32 %v440, %v532
      %v534 = vpop.f32.mrb[0].mxu0
      %v535 = vpop.f32.mrb[0].mxu0
      %v536 = vadd.f32 %v440, %v535
      %v537 = vpop.f32.mrb[0].mxu0
      %538 = vmatprep.mubr.bf16.mxu0 0
      %539 = vmatmul.mubr.bf16.gmra.mrb[0].mxu0 %v405
      %v540 = vpop.f32.mrb[0].mxu0
      %v541 = vadd.f32 %v440, %v540
      %v542 = vpop.f32.mrb[0].mxu0
      %v543 = vpop.f32.mrb[0].mxu0
      %v544 = vadd.f32 %v440, %v543
      %v545 = vpop.f32.mrb[0].mxu0
      %546 = vmatprep.mubr.bf16.mxu0 0
      %547 = vmatmul.mubr.bf16.gmra.mrb[0].mxu0 %v406
      %v548 = vpop.f32.mrb[0].mxu0
      %v549 = vadd.f32 %v440, %v548
      %v550 = vpop.f32.mrb[0].mxu0
      %v551 = vpop.f32.mrb[0].mxu0
      %v552 = vadd.f32 %v440, %v551
      %v553 = vpop.f32.mrb[0].mxu0
      %554 = vmatprep.mubr.bf16.mxu0 0
      %555 = vmatmul.mubr.bf16.gmra.mrb[0].mxu0 %v407
      %v556 = vpop.f32.mrb[0].mxu0
      %v557 = vadd.f32 %v440, %v556
      %v558 = vpop.f32.mrb[0].mxu0
      %v559 = vpop.f32.mrb[0].mxu0
      %v560 = vadd.f32 %v440, %v559
      %v561 = vpop.f32.mrb[0].mxu0
      %562 = vmatprep.mubr.bf16.mxu0 0
      %563 = vmatmul.mubr.bf16.gmra.mrb[0].mxu0 %v408
      %v564 = vpop.f32.mrb[0].mxu0
      %v565 = vadd.f32 %v440, %v564
      %v566 = vpop.f32.mrb[0].mxu0
      %v567 = vpop.f32.mrb[0].mxu0
      %v568 = vadd.f32 %v440, %v567
      %v569 = vpop.f32.mrb[0].mxu0
      %570 = vmatprep.mubr.bf16.mxu0 0
      %571 = vmatmul.mubr.bf16.gmra.mrb[0].mxu0 %v409
      %v572 = vpop.f32.mrb[0].mxu0
      %v573 = vadd.f32 %v440, %v572
      %v574 = vpop.f32.mrb[0].mxu0
      %v575 = vpop.f32.mrb[0].mxu0
      %v576 = vadd.f32 %v440, %v575
      %v577 = vpop.f32.mrb[0].mxu0
      %578 = vmatprep.mubr.bf16.mxu0 0
      %579 = vmatmul.mubr.bf16.gmra.mrb[0].mxu0 %v410
      %v580 = vpop.f32.mrb[0].mxu0
      %v581 = vadd.f32 %v440, %v580
      %v582 = vpop.f32.mrb[0].mxu0
      %v583 = vpop.f32.mrb[0].mxu0
      %v584 = vadd.f32 %v440, %v583
      %v585 = vpop.f32.mrb[0].mxu0
      %586 = vmatprep.mubr.bf16.mxu0 0
      %587 = vmatmul.mubr.bf16.gmra.mrb[0].mxu0 %v411
      %v588 = vpop.f32.mrb[0].mxu0
      %v589 = vadd.f32 %v440, %v588
      %v590 = vpop.f32.mrb[0].mxu0
      %v591 = vpop.f32.mrb[0].mxu0
      %v592 = vadd.f32 %v440, %v591
      %v593 = vpop.f32.mrb[0].mxu0
      %594 = vmatprep.mubr.bf16.mxu0 0
      %595 = vmatmul.mubr.bf16.gmra.mrb[0].mxu0 %v412
      %v596 = vpop.f32.mrb[0].mxu0
      %v597 = vadd.f32 %v440, %v596
      %v598 = vpop.f32.mrb[0].mxu0
      %v599 = vpop.f32.mrb[0].mxu0
      %v600 = vadd.f32 %v440, %v599
      %v601 = vpop.f32.mrb[0].mxu0
      %602 = vmatprep.mubr.bf16.mxu0 0
      %603 = vmatmul.mubr.bf16.gmra.mrb[0].mxu0 %v413
      %v604 = vpop.f32.mrb[0].mxu0
      %v605 = vadd.f32 %v440, %v604
      %v606 = vpop.f32.mrb[0].mxu0
      %v607 = vpop.f32.mrb[0].mxu0
      %v608 = vadd.f32 %v440, %v607
      %v609 = vpop.f32.mrb[0].mxu0
      %610 = vmatprep.mubr.bf16.mxu0 0
      %611 = vmatmul.mubr.bf16.gmra.mrb[0].mxu0 %v414
      %v612 = vpop.f32.mrb[0].mxu0
      %v613 = vadd.f32 %v440, %v612
      %v614 = vpop.f32.mrb[0].mxu0
      %v615 = vpop.f32.mrb[0].mxu0
      %v616 = vadd.f32 %v440, %v615
      %v617 = vpop.f32.mrb[0].mxu0
      %618 = vmatprep.mubr.bf16.mxu0 0
      %619 = vmatmul.mubr.bf16.gmra.mrb[0].mxu0 %v415
      %v620 = vpop.f32.mrb[0].mxu0
      %v621 = vadd.f32 %v440, %v620
      %v622 = vpop.f32.mrb[0].mxu0
      %v623 = vpop.f32.mrb[0].mxu0
      %v624 = vadd.f32 %v440, %v623
      %v625 = vpop.f32.mrb[0].mxu0
      %626 = vmatprep.mubr.bf16.mxu0 0
      %627 = vmatmul.mubr.bf16.gmra.mrb[0].mxu0 %v416
      %v628 = vpop.f32.mrb[0].mxu0
      %v629 = vadd.f32 %v440, %v628
      %v630 = vpop.f32.mrb[0].mxu0
      %v631 = vpop.f32.mrb[0].mxu0
      %v632 = vadd.f32 %v440, %v631
      %v633 = vpop.f32.mrb[0].mxu0
      %634 = vmatprep.mubr.bf16.mxu0 0
      %635 = vmatmul.mubr.bf16.gmra.mrb[0].mxu0 %v417
      %v636 = vpop.f32.mrb[0].mxu0
      %v637 = vadd.f32 %v440, %v636
      %v638 = vpop.f32.mrb[0].mxu0
      %v639 = vpop.f32.mrb[0].mxu0
      %v640 = vadd.f32 %v440, %v639
      %v641 = vpop.f32.mrb[0].mxu0
      %642 = vmatprep.mubr.bf16.mxu0 0
      %643 = vmatmul.mubr.bf16.gmra.mrb[0].mxu0 %v418
      %v644 = vpop.f32.mrb[0].mxu0
      %v645 = vadd.f32 %v440, %v644
      %v646 = vpop.f32.mrb[0].mxu0
      %v647 = vpop.f32.mrb[0].mxu0
      %v648 = vadd.f32 %v440, %v647
      %v649 = vpop.f32.mrb[0].mxu0
      %650 = vdwg.mxu0
      %vm651 = vcmask 130048
      %652 = vst.msk [vmem:[%s226] sm:$0xff] %vm651, %v525
      %653 = vst.msk [vmem:[%s226 + $0x8] sm:$0xff] %vm651, %v528
      %654 = vst.msk [vmem:[%s226 + $0x10] sm:$0xff] %vm651, %v533
      %655 = vst.msk [vmem:[%s226 + $0x18] sm:$0xff] %vm651, %v536
      %656 = vst.msk [vmem:[%s226 + $0x20] sm:$0xff] %vm651, %v541
      %657 = vst.msk [vmem:[%s226 + $0x28] sm:$0xff] %vm651, %v544
      %658 = vst.msk [vmem:[%s226 + $0x30] sm:$0xff] %vm651, %v549
      %659 = vst.msk [vmem:[%s226 + $0x38] sm:$0xff] %vm651, %v552
      %660 = vst.msk [vmem:[%s226 + $0x40] sm:$0xff] %vm651, %v557
      %661 = vst.msk [vmem:[%s226 + $0x48] sm:$0xff] %vm651, %v560
      %662 = vst.msk [vmem:[%s226 + $0x50] sm:$0xff] %vm651, %v565
      %663 = vst.msk [vmem:[%s226 + $0x58] sm:$0xff] %vm651, %v568
      %664 = vst.msk [vmem:[%s226 + $0x60] sm:$0xff] %vm651, %v573
      %665 = vst.msk [vmem:[%s226 + $0x68] sm:$0xff] %vm651, %v576
      %666 = vst.msk [vmem:[%s226 + $0x70] sm:$0xff] %vm651, %v581
      %667 = vst.msk [vmem:[%s226 + $0x78] sm:$0xff] %vm651, %v584
      %668 = vst.msk [vmem:[%s226 + $0x80] sm:$0xff] %vm651, %v589
      %669 = vst.msk [vmem:[%s226 + $0x88] sm:$0xff] %vm651, %v592
      %670 = vst.msk [vmem:[%s226 + $0x90] sm:$0xff] %vm651, %v597
      %671 = vst.msk [vmem:[%s226 + $0x98] sm:$0xff] %vm651, %v600
      %672 = vst.msk [vmem:[%s226 + $0xa0] sm:$0xff] %vm651, %v605
      %673 = vst.msk [vmem:[%s226 + $0xa8] sm:$0xff] %vm651, %v608
      %674 = vst.msk [vmem:[%s226 + $0xb0] sm:$0xff] %vm651, %v613
      %675 = vst.msk [vmem:[%s226 + $0xb8] sm:$0xff] %vm651, %v616
      %676 = vst.msk [vmem:[%s226 + $0xc0] sm:$0xff] %vm651, %v621
      %677 = vst.msk [vmem:[%s226 + $0xc8] sm:$0xff] %vm651, %v624
      %678 = vst.msk [vmem:[%s226 + $0xd0] sm:$0xff] %vm651, %v629
      %679 = vst.msk [vmem:[%s226 + $0xd8] sm:$0xff] %vm651, %v632
      %680 = vst.msk [vmem:[%s226 + $0xe0] sm:$0xff] %vm651, %v637
      %681 = vst.msk [vmem:[%s226 + $0xe8] sm:$0xff] %vm651, %v640
      %682 = vst.msk [vmem:[%s226 + $0xf0] sm:$0xff] %vm651, %v645
      %683 = vst.msk [vmem:[%s226 + $0xf8] sm:$0xff] %vm651, %v648
      %s684 = smul.u32 32, %s16
      %p685 = scmp.lt.s32.totalorder %s684, 95
      %s686 = scalar_select %p685, %s684, 95
      %s687 = smul.addr %s686, 8
      %s688 = scalar_lea.vmem %s5, %s687
      // Predicated region
      $region41: #{hidden_encoder_forward.11} parent=39 // pred_check
        %p689 = pneg %p144
      $region42: #{hidden_encoder_forward.11} parent=39 // pred_check_branch
        %691 = sbr.rel (%p689) target = $region44
      $region43: #{hidden_encoder_forward.11} parent=39 // pred_region
        %s692 = smul.u32 32, %s16
      $region44: #{hidden_encoder_forward.11} parent=39 // pred_fallthru
        _
    $region40: #{hidden_encoder_forward.11} parent=5 // pred_fallthru
      _
    %p693 = scmp.le.s32.totalorder 2, %s11
    // Predicated region
    $region45: #{hidden_encoder_forward.11} parent=5 // pred_check
      %p694 = pneg %p693
    $region46: #{hidden_encoder_forward.11} parent=5 // pred_check_branch
      %696 = sbr.rel (%p694) target = $region48
    $region47: #{hidden_encoder_forward.11} parent=5 // pred_region
      %s697 = ssub.s32 %s11, 2
      // Predicated region
      $region49: #{hidden_encoder_forward.11} parent=47 // pred_check
        %p698 = pneg %p150
      $region50: #{hidden_encoder_forward.11} parent=47 // pred_check_branch
        %700 = sbr.rel (%p698) target = $region52
      $region51: #{hidden_encoder_forward.11} parent=47 // pred_region
        %s701 = smul.u32 32, %s17
        %p702 = scmp.lt.s32.totalorder %s701, 95
        %s703 = scalar_select %p702, %s701, 95
        %s704 = smul.addr %s703, 8
        %s705 = scalar_lea.vmem %s5, %s704
      $region52: #{hidden_encoder_forward.11} parent=47 // pred_fallthru
        _
    $region48: #{hidden_encoder_forward.11} parent=5 // pred_fallthru
      _
  $region6: #{hidden_encoder_forward.11} parent=0 // loop_footer
    %s15 = sadd.s32 1, %s11
  $region7: #{hidden_encoder_forward.11} parent=0 // loop_footer_branch
    %10 = sbr.rel target = $region3
  $region8: #{hidden_encoder_forward.11} parent=0 // loop_exit
    _

</llo_original>
